<compile_context>
chip_gen: v6e
topology: v6e:2x2x1
jax: 0.10.0
libtpu: 0.0.40
codegen_flags: <defaults>
</compile_context>

<pallas_src>
import jax
import jax.numpy as jnp
from jax import lax
from jax.experimental import pallas as pl
from jax.experimental.pallas import tpu as pltpu

EPS = 1e-5
LANE = 128                       # channel dims are zero-padded to a multiple of this
MXU_DTYPE = jnp.bfloat16         # matmul-operand dtype (f32 accumulation, f32 BN math)


def _round_up(n, m):
    return ((n + m - 1) // m) * m


def _pad_last(a, n):
    return jnp.pad(a, [(0, 0)] * (a.ndim - 1) + [(0, n - a.shape[-1])])


# ---------------------------------------------------------------------------
# Kernel 1: conv1(3x3,p1) + bias + ReLU  ->  padded a1,
#           per-image BN1 partial stats [sum, sum^2], fused time MLP relu(t@W+b)
# ---------------------------------------------------------------------------
def _conv1_stats_temb_kernel(xp_ref, w_ref, b_ref, t_ref, tw_ref, tb_ref,
                             a1_ref, st_ref):
    Hp, Wp, cin = xp_ref.shape[1], xp_ref.shape[2], xp_ref.shape[3]
    H, W = Hp - 2, Wp - 2
    Cp = a1_ref.shape[3]

    xp = xp_ref[0]                                           # (Hp, Wp, cin) bf16
    # in-kernel im2col: lane-aligned concat -> single K = 9*cin MXU matmul
    slabs = [xp[kh:kh + H, kw:kw + W, :].reshape(H * W, cin)
             for kh in range(3) for kw in range(3)]
    patch = jnp.concatenate(slabs, axis=-1)                  # (H*W, 9*cin)
    acc = jnp.dot(patch, w_ref[...], preferred_element_type=jnp.float32)
    acc = jnp.maximum(acc + b_ref[...], 0.0)                 # (H*W, Cp) f32

    # fused time MLP: relu(t @ tw + tb)   (M=1 matmul, negligible)
    temb = jnp.maximum(
        jnp.dot(t_ref[0], tw_ref[...], preferred_element_type=jnp.float32)
        + tb_ref[...], 0.0)                                  # (1, Cp)

    # single-pass per-image BN1 partial statistics + temb (3 rows, lane-dense)
    st_ref[0] = jnp.concatenate(
        [jnp.sum(acc, axis=0, keepdims=True),
         jnp.sum(acc * acc, axis=0, keepdims=True),
         temb], axis=0)

    # store a1 padded by 1 so kernel 2 gets its 3x3 halo straight from its BlockSpec
    a1_ref[...] = jnp.zeros(a1_ref.shape, jnp.float32)
    a1_ref[0, pl.ds(1, H), pl.ds(1, W), :] = acc.reshape(H, W, Cp)


# ---------------------------------------------------------------------------
# Kernel 2: BN1 affine (+ temb, folded into the per-image shift) + conv2(3x3,p1)
#           + bias + ReLU  ->  padded a2, per-image BN2 partial stats
# ---------------------------------------------------------------------------
def _bn1_conv2_stats_kernel(a1_ref, sc_ref, sh_ref, w_ref, b_ref,
                            a2_ref, st_ref):
    Hp, Wp, Cp = a1_ref.shape[1], a1_ref.shape[2], a1_ref.shape[3]
    H, W = Hp - 2, Wp - 2

    a1 = a1_ref[0]                                           # (Hp, Wp, Cp) f32
    ri = lax.broadcasted_iota(jnp.int32, (Hp, Wp, Cp), 0)
    ci = lax.broadcasted_iota(jnp.int32, (Hp, Wp, Cp), 1)
    interior = (ri >= 1) & (ri <= H) & (ci >= 1) & (ci <= W)
    # BN1 affine + time-embedding add (f32); halo kept exactly zero for conv padding
    h1 = jnp.where(interior, a1 * sc_ref[...] + sh_ref[0], 0.0).astype(MXU_DTYPE)

    slabs = [h1[kh:kh + H, kw:kw + W, :].reshape(H * W, Cp)
             for kh in range(3) for kw in range(3)]
    patch = jnp.concatenate(slabs, axis=-1)                  # (H*W, 9*Cp)
    acc = jnp.dot(patch, w_ref[...], preferred_element_type=jnp.float32)
    acc = jnp.maximum(acc + b_ref[...], 0.0)

    st_ref[0] = jnp.concatenate(
        [jnp.sum(acc, axis=0, keepdims=True),
         jnp.sum(acc * acc, axis=0, keepdims=True)], axis=0)

    a2_ref[...] = jnp.zeros(a2_ref.shape, jnp.float32)
    a2_ref[0, pl.ds(1, H), pl.ds(1, W), :] = acc.reshape(H, W, Cp)


# ---------------------------------------------------------------------------
# Kernel 3: BN2 affine + transform conv (4x4, stride 2, pad 1) + bias.
# Input is the 1x space-to-depth parity split of padded a2, so the strided conv
# becomes 16 unit-stride slabs -> one K = 16*Cp MXU matmul.
# ---------------------------------------------------------------------------
def _bn2_transform_kernel(pp_ref, sc_ref, sh_ref, w_ref, b_ref, o_ref):
    Hq, Wq, Cp = pp_ref.shape[2], pp_ref.shape[3], pp_ref.shape[4]
    Ho, Wo = Hq - 1, Wq - 1

    ri = lax.broadcasted_iota(jnp.int32, (Hq, Wq, Cp), 0)
    ci = lax.broadcasted_iota(jnp.int32, (Hq, Wq, Cp), 1)

    slabs = []
    for ph in range(2):
        for pw in range(2):
            plane = pp_ref[0, 2 * ph + pw]                   # (Hq, Wq, Cp) f32
            # the single padded row/col of this parity plane must stay exactly zero
            bad_r = 0 if ph == 0 else Ho
            bad_c = 0 if pw == 0 else Wo
            ok = (ri != bad_r) & (ci != bad_c)
            h2 = jnp.where(ok, plane * sc_ref[...] + sh_ref[...],
                           0.0).astype(MXU_DTYPE)
            for ah in range(2):
                for aw in range(2):
                    slabs.append(h2[ah:ah + Ho, aw:aw + Wo, :].reshape(Ho * Wo, Cp))
    patch = jnp.concatenate(slabs, axis=-1)                  # (Ho*Wo, 16*Cp)
    out = jnp.dot(patch, w_ref[...], preferred_element_type=jnp.float32) + b_ref[...]
    o_ref[0] = out.reshape(Ho, Wo, Cp)


# ---------------------------------------------------------------------------
# Block forward (Pallas): NCHW in -> NCHW out (spatial halved)
# ---------------------------------------------------------------------------
def block_forward(x_nchw, t, params):
    f32 = jnp.float32
    x = jnp.transpose(x_nchw, (0, 2, 3, 1)).astype(f32)      # NCHW -> NHWC
    N, H, W, Cin = x.shape
    assert H % 2 == 0 and W % 2 == 0
    Cout = params["w1"].shape[-1]
    T = t.shape[-1]
    Ho, Wo = H // 2, W // 2
    Hp, Wp = H + 2, W + 2
    Cin_p = _round_up(Cin, LANE)
    Cp = _round_up(Cout, LANE)
    cnt = float(N * H * W)
    par = pltpu.CompilerParams(dimension_semantics=("parallel",))

    # ---- lane-dense parameter prep: pad channels to 128, flatten conv taps ----
    w1 = jnp.pad(params["w1"], ((0, 0), (0, 0), (0, Cin_p - Cin), (0, Cp - Cout)))
    w1f = w1.reshape(9 * Cin_p, Cp).astype(MXU_DTYPE)
    w2 = jnp.pad(params["w2"], ((0, 0), (0, 0), (0, Cp - Cout), (0, Cp - Cout)))
    w2f = w2.reshape(9 * Cp, Cp).astype(MXU_DTYPE)
    wt = jnp.pad(params["wt"], ((0, 0), (0, 0), (0, Cp - Cout), (0, Cp - Cout)))
    # tap order must match kernel 3's (ph, pw, ah, aw) slab order: kh=2*ah+ph, kw=2*aw+pw
    wtf = jnp.concatenate(
        [wt[2 * ah + ph, 2 * aw + pw]
         for ph in (0, 1) for pw in (0, 1) for ah in (0, 1) for aw in (0, 1)],
        axis=0).astype(MXU_DTYPE)                            # (16*Cp, Cp)
    b1 = _pad_last(params["b1"], Cp).astype(f32)
    b2 = _pad_last(params["b2"], Cp).astype(f32)
    bt = _pad_last(params["bt"], Cp).astype(f32)
    g1 = _pad_last(params["g1"], Cp).astype(f32)
    be1 = _pad_last(params["be1"], Cp).astype(f32)
    g2 = _pad_last(params["g2"], Cp).astype(f32)
    be2 = _pad_last(params["be2"], Cp).astype(f32)
    tw = _pad_last(params["tw"], Cp).astype(MXU_DTYPE)       # (T, Cp)
    tb = _pad_last(params["tb"], Cp).astype(f32)             # (1, Cp)

    # ---- inputs: NHWC, channel-padded, spatially padded once, bf16 operands ----
    xp = jnp.pad(x, ((0, 0), (1, 1), (1, 1), (0, Cin_p - Cin))).astype(MXU_DTYPE)
    t3 = t.astype(MXU_DTYPE).reshape(N, 1, T)

    # ---- kernel 1 ---------------------------------------------------------------
    a1p, st1 = pl.pallas_call(
        _conv1_stats_temb_kernel,
        out_shape=(jax.ShapeDtypeStruct((N, Hp, Wp, Cp), f32),
                   jax.ShapeDtypeStruct((N, 3, Cp), f32)),
        grid=(N,),
        in_specs=[
            pl.BlockSpec((1, Hp, Wp, Cin_p), lambda n: (n, 0, 0, 0)),
            pl.BlockSpec((9 * Cin_p, Cp), lambda n: (0, 0)),
            pl.BlockSpec((1, Cp), lambda n: (0, 0)),
            pl.BlockSpec((1, 1, T), lambda n: (n, 0, 0)),
            pl.BlockSpec((T, Cp), lambda n: (0, 0)),
            pl.BlockSpec((1, Cp), lambda n: (0, 0)),
        ],
        out_specs=(
            pl.BlockSpec((1, Hp, Wp, Cp), lambda n: (n, 0, 0, 0)),
            pl.BlockSpec((1, 3, Cp), lambda n: (n, 0, 0)),
        ),
        compiler_params=par,
    )(xp, w1f, b1, t3, tw, tb)

    # ---- BN1: reduce per-image partial sums (tiny per-channel XLA op), fold temb
    mean1 = jnp.sum(st1[:, 0, :], axis=0) / cnt
    var1 = jnp.sum(st1[:, 1, :], axis=0) / cnt - mean1 * mean1
    inv1 = lax.rsqrt(var1 + EPS)
    scale1 = (g1[0] * inv1)[None, :]                         # (1, Cp)
    shift1 = ((be1[0] - mean1 * g1[0] * inv1)[None, :]
              + st1[:, 2, :]).reshape(N, 1, Cp)              # + relu(time_mlp(t))

    # ---- kernel 2 ---------------------------------------------------------------
    a2p, st2 = pl.pallas_call(
        _bn1_conv2_stats_kernel,
        out_shape=(jax.ShapeDtypeStruct((N, Hp, Wp, Cp), f32),
                   jax.ShapeDtypeStruct((N, 2, Cp), f32)),
        grid=(N,),
        in_specs=[
            pl.BlockSpec((1, Hp, Wp, Cp), lambda n: (n, 0, 0, 0)),
            pl.BlockSpec((1, Cp), lambda n: (0, 0)),
            pl.BlockSpec((1, 1, Cp), lambda n: (n, 0, 0)),
            pl.BlockSpec((9 * Cp, Cp), lambda n: (0, 0)),
            pl.BlockSpec((1, Cp), lambda n: (0, 0)),
        ],
        out_specs=(
            pl.BlockSpec((1, Hp, Wp, Cp), lambda n: (n, 0, 0, 0)),
            pl.BlockSpec((1, 2, Cp), lambda n: (n, 0, 0)),
        ),
        compiler_params=par,
    )(a1p, scale1, shift1, w2f, b2)

    # ---- BN2 scale/shift ----------------------------------------------------------
    mean2 = jnp.sum(st2[:, 0, :], axis=0) / cnt
    var2 = jnp.sum(st2[:, 1, :], axis=0) / cnt - mean2 * mean2
    inv2 = lax.rsqrt(var2 + EPS)
    scale2 = (g2[0] * inv2)[None, :]
    shift2 = (be2[0] - mean2 * g2[0] * inv2)[None, :]

    # ---- 1x space-to-depth parity split of padded a2 (no 16x im2col blow-up) ------
    pp = a2p.reshape(N, Ho + 1, 2, Wo + 1, 2, Cp).transpose(0, 2, 4, 1, 3, 5)
    pp = pp.reshape(N, 4, Ho + 1, Wo + 1, Cp)

    # ---- kernel 3 ---------------------------------------------------------------
    out = pl.pallas_call(
        _bn2_transform_kernel,
        out_shape=jax.ShapeDtypeStruct((N, Ho, Wo, Cp), f32),
        grid=(N,),
        in_specs=[
            pl.BlockSpec((1, 4, Ho + 1, Wo + 1, Cp), lambda n: (n, 0, 0, 0, 0)),
            pl.BlockSpec((1, Cp), lambda n: (0, 0)),
            pl.BlockSpec((1, Cp), lambda n: (0, 0)),
            pl.BlockSpec((16 * Cp, Cp), lambda n: (0, 0)),
            pl.BlockSpec((1, Cp), lambda n: (0, 0)),
        ],
        out_specs=pl.BlockSpec((1, Ho, Wo, Cp), lambda n: (n, 0, 0, 0)),
        compiler_params=par,
    )(pp, scale2, shift2, wtf, bt)

    out = out[:, :, :, :Cout]
    return jnp.transpose(out, (0, 3, 1, 2))                  # NHWC -> NCHW


# ---------------------------------------------------------------------------
# Pure-JAX reference. With mxu_dtype=float32 this is the exact PyTorch
# (training-mode BatchNorm) forward; with mxu_dtype=bfloat16 the conv/linear
# OPERANDS are rounded to bf16 with f32 accumulation, matching the Pallas
# kernels' MXU precision (BN stats / normalization stay f32 in both).
# ---------------------------------------------------------------------------
def block_forward_ref(x_nchw, t, params, mxu_dtype=jnp.float32):
    x = jnp.transpose(x_nchw, (0, 2, 3, 1)).astype(jnp.float32)

    def conv(h, w, b, stride, pad):
        y = lax.conv_general_dilated(
            h.astype(mxu_dtype), w.astype(mxu_dtype), (stride, stride),
            [(pad, pad), (pad, pad)],
            dimension_numbers=("NHWC", "HWIO", "NHWC"),
            preferred_element_type=jnp.float32)
        return y + b.reshape(1, 1, 1, -1)

    def bn(h, g, be):
        m = jnp.mean(h, axis=(0, 1, 2), keepdims=True)
        v = jnp.mean((h - m) ** 2, axis=(0, 1, 2), keepdims=True)
        return ((h - m) * lax.rsqrt(v + EPS) * g.reshape(1, 1, 1, -1)
                + be.reshape(1, 1, 1, -1))

    h = bn(jax.nn.relu(conv(x, params["w1"], params["b1"], 1, 1)),
           params["g1"], params["be1"])
    temb = jax.nn.relu(
        jnp.dot(t.astype(mxu_dtype), params["tw"].astype(mxu_dtype),
                preferred_element_type=jnp.float32) + params["tb"])
    h = h + temb[:, None, None, :]
    h = bn(jax.nn.relu(conv(h, params["w2"], params["b2"], 1, 1)),
           params["g2"], params["be2"])
    out = conv(h, params["wt"], params["bt"], 2, 1)
    return jnp.transpose(out, (0, 3, 1, 2))


# ---------------------------------------------------------------------------
def make_params(key, in_ch, out_ch, time_emb_dim):
    ks = jax.random.split(key, 8)
    s = 0.1
    p = {}
    p["tw"] = jax.random.normal(ks[0], (time_emb_dim, out_ch), jnp.float32) * s
    p["tb"] = jax.random.normal(ks[1], (1, out_ch), jnp.float32) * s
    p["w1"] = jax.random.normal(ks[2], (3, 3, in_ch, out_ch), jnp.float32) * s
    p["b1"] = jax.random.normal(ks[3], (1, out_ch), jnp.float32) * s
    p["w2"] = jax.random.normal(ks[4], (3, 3, out_ch, out_ch), jnp.float32) * s
    p["b2"] = jax.random.normal(ks[5], (1, out_ch), jnp.float32) * s
    p["wt"] = jax.random.normal(ks[6], (4, 4, out_ch, out_ch), jnp.float32) * s
    p["bt"] = jax.random.normal(ks[7], (1, out_ch), jnp.float32) * s
    # BatchNorm affine params at PyTorch init: weight=1, bias=0
    p["g1"] = jnp.ones((1, out_ch), jnp.float32)
    p["be1"] = jnp.zeros((1, out_ch), jnp.float32)
    p["g2"] = jnp.ones((1, out_ch), jnp.float32)
    p["be2"] = jnp.zeros((1, out_ch), jnp.float32)
    return p


if __name__ == "__main__":
    N, in_ch, out_ch, H, W, time_dim = 2, 4, 8, 16, 16, 32

    key = jax.random.PRNGKey(0)
    kx, kt, kp = jax.random.split(key, 3)
    x = jax.random.normal(kx, (N, in_ch, H, W), jnp.float32)   # NCHW, like PyTorch
    t = jax.random.normal(kt, (N, time_dim), jnp.float32)
    params = make_params(kp, in_ch, out_ch, time_dim)

    out = jax.block_until_ready(jax.jit(block_forward)(x, t, params))
    # precision-matched reference (bf16 MXU operands, f32 accumulation / BN)
    ref = jax.block_until_ready(block_forward_ref(x, t, params, mxu_dtype=MXU_DTYPE))

    assert out.shape == (N, out_ch, H // 2, W // 2), out.shape
    max_err = float(jnp.max(jnp.abs(out - ref)))
    assert jnp.allclose(out, ref, rtol=5e-3, atol=5e-3), max_err
    print("KERNEL_OK")
</pallas_src>

<mosaic_0001>
module attributes {stable_mosaic.version = 11 : i64} {
  func.func @_conv1_stats_temb_kernel(%arg0: i32, %arg1: memref<1x18x18x128xbf16, #tpu.memory_space<vmem>>, %arg2: memref<1152x128xbf16, #tpu.memory_space<vmem>>, %arg3: memref<1x128xf32, #tpu.memory_space<vmem>>, %arg4: memref<1x1x32xbf16, #tpu.memory_space<vmem>>, %arg5: memref<32x128xbf16, #tpu.memory_space<vmem>>, %arg6: memref<1x128xf32, #tpu.memory_space<vmem>>, %arg7: memref<1x18x18x128xf32, #tpu.memory_space<vmem>>, %arg8: memref<1x3x128xf32, #tpu.memory_space<vmem>>) attributes {dimension_semantics = [#tpu.dimension_semantics<parallel>], iteration_bounds = array<i64: 2>, scalar_prefetch = 0 : i64, scratch_operands = 0 : i64, tpu.core_type = #tpu.core_type<tc>, window_params = [{transform_indices = @transform_0, window_bounds = array<i64: 1, 18, 18, 128>}, {pipeline_mode = #tpu.pipeline_mode<synchronous>, transform_indices = @transform_1, window_bounds = array<i64: 1152, 128>}, {pipeline_mode = #tpu.pipeline_mode<synchronous>, transform_indices = @transform_2, window_bounds = array<i64: 1, 128>}, {transform_indices = @transform_3, window_bounds = array<i64: 1, 1, 32>}, {pipeline_mode = #tpu.pipeline_mode<synchronous>, transform_indices = @transform_4, window_bounds = array<i64: 32, 128>}, {pipeline_mode = #tpu.pipeline_mode<synchronous>, transform_indices = @transform_5, window_bounds = array<i64: 1, 128>}, {transform_indices = @transform_6, window_bounds = array<i64: 1, 18, 18, 128>}, {transform_indices = @transform_7, window_bounds = array<i64: 1, 3, 128>}]} {
    %c0 = arith.constant 0 : index
    %c0_0 = arith.constant 0 : index
    %c0_1 = arith.constant 0 : index
    %c0_2 = arith.constant 0 : index
    %0 = vector.load %arg1[%c0, %c0_0, %c0_1, %c0_2] : memref<1x18x18x128xbf16, #tpu.memory_space<vmem>>, vector<1x18x18x128xbf16>
    %1 = vector.shape_cast %0 : vector<1x18x18x128xbf16> to vector<18x18x128xbf16>
    %2 = vector.extract_strided_slice %1 {offsets = [0, 0, 0], sizes = [16, 16, 128], strides = [1, 1, 1]} : vector<18x18x128xbf16> to vector<16x16x128xbf16>
    %3 = vector.shape_cast %2 : vector<16x16x128xbf16> to vector<256x128xbf16>
    %4 = vector.extract_strided_slice %1 {offsets = [0, 1, 0], sizes = [16, 16, 128], strides = [1, 1, 1]} : vector<18x18x128xbf16> to vector<16x16x128xbf16>
    %5 = vector.shape_cast %4 : vector<16x16x128xbf16> to vector<256x128xbf16>
    %6 = vector.extract_strided_slice %1 {offsets = [0, 2, 0], sizes = [16, 16, 128], strides = [1, 1, 1]} : vector<18x18x128xbf16> to vector<16x16x128xbf16>
    %7 = vector.shape_cast %6 : vector<16x16x128xbf16> to vector<256x128xbf16>
    %8 = vector.extract_strided_slice %1 {offsets = [1, 0, 0], sizes = [16, 16, 128], strides = [1, 1, 1]} : vector<18x18x128xbf16> to vector<16x16x128xbf16>
    %9 = vector.shape_cast %8 : vector<16x16x128xbf16> to vector<256x128xbf16>
    %10 = vector.extract_strided_slice %1 {offsets = [1, 1, 0], sizes = [16, 16, 128], strides = [1, 1, 1]} : vector<18x18x128xbf16> to vector<16x16x128xbf16>
    %11 = vector.shape_cast %10 : vector<16x16x128xbf16> to vector<256x128xbf16>
    %12 = vector.extract_strided_slice %1 {offsets = [1, 2, 0], sizes = [16, 16, 128], strides = [1, 1, 1]} : vector<18x18x128xbf16> to vector<16x16x128xbf16>
    %13 = vector.shape_cast %12 : vector<16x16x128xbf16> to vector<256x128xbf16>
    %14 = vector.extract_strided_slice %1 {offsets = [2, 0, 0], sizes = [16, 16, 128], strides = [1, 1, 1]} : vector<18x18x128xbf16> to vector<16x16x128xbf16>
    %15 = vector.shape_cast %14 : vector<16x16x128xbf16> to vector<256x128xbf16>
    %16 = vector.extract_strided_slice %1 {offsets = [2, 1, 0], sizes = [16, 16, 128], strides = [1, 1, 1]} : vector<18x18x128xbf16> to vector<16x16x128xbf16>
    %17 = vector.shape_cast %16 : vector<16x16x128xbf16> to vector<256x128xbf16>
    %18 = vector.extract_strided_slice %1 {offsets = [2, 2, 0], sizes = [16, 16, 128], strides = [1, 1, 1]} : vector<18x18x128xbf16> to vector<16x16x128xbf16>
    %19 = vector.shape_cast %18 : vector<16x16x128xbf16> to vector<256x128xbf16>
    %20 = tpu.concatenate %3, %5, %7, %9, %11, %13, %15, %17, %19 in 1 : vector<256x128xbf16>, vector<256x128xbf16>, vector<256x128xbf16>, vector<256x128xbf16>, vector<256x128xbf16>, vector<256x128xbf16>, vector<256x128xbf16>, vector<256x128xbf16>, vector<256x128xbf16> -> vector<256x1152xbf16>
    %c0_3 = arith.constant 0 : index
    %c0_4 = arith.constant 0 : index
    %21 = vector.load %arg2[%c0_3, %c0_4] : memref<1152x128xbf16, #tpu.memory_space<vmem>>, vector<1152x128xbf16>
    %cst = arith.constant dense<0.000000e+00> : vector<256x128xf32>
    %22 = tpu.matmul %20, %21, %cst {dimension_numbers = #tpu.dot_dimension_numbers<[1], [0], [0], [1], [0, 0, 1, 1], [], []>} : vector<256x1152xbf16>, vector<1152x128xbf16>, vector<256x128xf32> -> vector<256x128xf32>
    %c0_5 = arith.constant 0 : index
    %c0_6 = arith.constant 0 : index
    %23 = vector.load %arg3[%c0_5, %c0_6] : memref<1x128xf32, #tpu.memory_space<vmem>>, vector<1x128xf32>
    %24 = vector.broadcast %23 : vector<1x128xf32> to vector<256x128xf32>
    %25 = arith.addf %22, %24 : vector<256x128xf32>
    %cst_7 = arith.constant 0.000000e+00 : f32
    %26 = vector.broadcast %cst_7 : f32 to vector<256x128xf32>
    %27 = arith.maximumf %25, %26 : vector<256x128xf32>
    %c0_8 = arith.constant 0 : index
    %c0_9 = arith.constant 0 : index
    %c0_10 = arith.constant 0 : index
    %28 = vector.load %arg4[%c0_8, %c0_9, %c0_10] : memref<1x1x32xbf16, #tpu.memory_space<vmem>>, vector<1x1x32xbf16>
    %29 = vector.shape_cast %28 : vector<1x1x32xbf16> to vector<1x32xbf16>
    %c0_11 = arith.constant 0 : index
    %c0_12 = arith.constant 0 : index
    %30 = vector.load %arg5[%c0_11, %c0_12] : memref<32x128xbf16, #tpu.memory_space<vmem>>, vector<32x128xbf16>
    %cst_13 = arith.constant dense<0.000000e+00> : vector<1x128xf32>
    %31 = tpu.matmul %29, %30, %cst_13 {dimension_numbers = #tpu.dot_dimension_numbers<[1], [0], [0], [1], [0, 0, 1, 1], [], []>} : vector<1x32xbf16>, vector<32x128xbf16>, vector<1x128xf32> -> vector<1x128xf32>
    %c0_14 = arith.constant 0 : index
    %c0_15 = arith.constant 0 : index
    %32 = vector.load %arg6[%c0_14, %c0_15] : memref<1x128xf32, #tpu.memory_space<vmem>>, vector<1x128xf32>
    %33 = arith.addf %31, %32 : vector<1x128xf32>
    %cst_16 = arith.constant 0.000000e+00 : f32
    %34 = vector.broadcast %cst_16 : f32 to vector<1x128xf32>
    %35 = arith.maximumf %33, %34 : vector<1x128xf32>
    %cst_17 = arith.constant dense<0.000000e+00> : vector<128xf32>
    %36 = vector.multi_reduction <add>, %27, %cst_17 [0] : vector<256x128xf32> to vector<128xf32>
    %37 = vector.shape_cast %36 : vector<128xf32> to vector<1x128xf32>
    %38 = arith.mulf %27, %27 : vector<256x128xf32>
    %cst_18 = arith.constant dense<0.000000e+00> : vector<128xf32>
    %39 = vector.multi_reduction <add>, %38, %cst_18 [0] : vector<256x128xf32> to vector<128xf32>
    %40 = vector.shape_cast %39 : vector<128xf32> to vector<1x128xf32>
    %41 = tpu.concatenate %37, %40, %35 in 0 : vector<1x128xf32>, vector<1x128xf32>, vector<1x128xf32> -> vector<3x128xf32>
    %c0_19 = arith.constant 0 : index
    %c0_20 = arith.constant 0 : index
    %c0_21 = arith.constant 0 : index
    %42 = vector.load %arg8[%c0_19, %c0_20, %c0_21] : memref<1x3x128xf32, #tpu.memory_space<vmem>>, vector<1x3x128xf32>
    %43 = vector.shape_cast %42 : vector<1x3x128xf32> to vector<3x128xf32>
    %44 = vector.shape_cast %41 : vector<3x128xf32> to vector<1x3x128xf32>
    tpu.vector_store %arg8[%c0_19, %c0_20, %c0_21], %44 {strides = array<i32>} : memref<1x3x128xf32, #tpu.memory_space<vmem>>, vector<1x3x128xf32>,
    %cst_22 = arith.constant 0.000000e+00 : f32
    %45 = vector.broadcast %cst_22 : f32 to vector<1x18x18x128xf32>
    %c0_23 = arith.constant 0 : index
    %c0_24 = arith.constant 0 : index
    %c0_25 = arith.constant 0 : index
    %c0_26 = arith.constant 0 : index
    %46 = vector.load %arg7[%c0_23, %c0_24, %c0_25, %c0_26] : memref<1x18x18x128xf32, #tpu.memory_space<vmem>>, vector<1x18x18x128xf32>
    tpu.vector_store %arg7[%c0_23, %c0_24, %c0_25, %c0_26], %45 {strides = array<i32>} : memref<1x18x18x128xf32, #tpu.memory_space<vmem>>, vector<1x18x18x128xf32>,
    %47 = vector.shape_cast %27 : vector<256x128xf32> to vector<16x16x128xf32>
    %c0_27 = arith.constant 0 : index
    %c1 = arith.constant 1 : index
    %c1_28 = arith.constant 1 : index
    %c0_29 = arith.constant 0 : index
    %48 = vector.load %arg7[%c0_27, %c1, %c1_28, %c0_29] : memref<1x18x18x128xf32, #tpu.memory_space<vmem>>, vector<1x16x16x128xf32>
    %49 = vector.shape_cast %48 : vector<1x16x16x128xf32> to vector<16x16x128xf32>
    %50 = vector.shape_cast %47 : vector<16x16x128xf32> to vector<1x16x16x128xf32>
    tpu.vector_store %arg7[%c0_27, %c1, %c1_28, %c0_29], %50 {strides = array<i32>} : memref<1x18x18x128xf32, #tpu.memory_space<vmem>>, vector<1x16x16x128xf32>,
    return
  }
  func.func @transform_0(%arg0: i32) -> (i32, i32, i32, i32) {
    %c0_i32 = arith.constant 0 : i32
    %c0_i32_0 = arith.constant 0 : i32
    %c0_i32_1 = arith.constant 0 : i32
    %c0_i32_2 = arith.constant 0 : i32
    return %arg0, %c0_i32, %c0_i32_0, %c0_i32_1 : i32, i32, i32, i32
  }
  func.func @transform_1(%arg0: i32) -> (i32, i32) {
    %c0_i32 = arith.constant 0 : i32
    %c0_i32_0 = arith.constant 0 : i32
    %c0_i32_1 = arith.constant 0 : i32
    return %c0_i32, %c0_i32_0 : i32, i32
  }
  func.func @transform_2(%arg0: i32) -> (i32, i32) {
    %c0_i32 = arith.constant 0 : i32
    %c0_i32_0 = arith.constant 0 : i32
    %c0_i32_1 = arith.constant 0 : i32
    return %c0_i32, %c0_i32_0 : i32, i32
  }
  func.func @transform_3(%arg0: i32) -> (i32, i32, i32) {
    %c0_i32 = arith.constant 0 : i32
    %c0_i32_0 = arith.constant 0 : i32
    %c0_i32_1 = arith.constant 0 : i32
    return %arg0, %c0_i32, %c0_i32_0 : i32, i32, i32
  }
  func.func @transform_4(%arg0: i32) -> (i32, i32) {
    %c0_i32 = arith.constant 0 : i32
    %c0_i32_0 = arith.constant 0 : i32
    %c0_i32_1 = arith.constant 0 : i32
    return %c0_i32, %c0_i32_0 : i32, i32
  }
  func.func @transform_5(%arg0: i32) -> (i32, i32) {
    %c0_i32 = arith.constant 0 : i32
    %c0_i32_0 = arith.constant 0 : i32
    %c0_i32_1 = arith.constant 0 : i32
    return %c0_i32, %c0_i32_0 : i32, i32
  }
  func.func @transform_6(%arg0: i32) -> (i32, i32, i32, i32) {
    %c0_i32 = arith.constant 0 : i32
    %c0_i32_0 = arith.constant 0 : i32
    %c0_i32_1 = arith.constant 0 : i32
    %c0_i32_2 = arith.constant 0 : i32
    return %arg0, %c0_i32, %c0_i32_0, %c0_i32_1 : i32, i32, i32, i32
  }
  func.func @transform_7(%arg0: i32) -> (i32, i32, i32) {
    %c0_i32 = arith.constant 0 : i32
    %c0_i32_0 = arith.constant 0 : i32
    %c0_i32_1 = arith.constant 0 : i32
    return %arg0, %c0_i32, %c0_i32_0 : i32, i32, i32
  }
}

module attributes {stable_mosaic.version = 11 : i64} {
  func.func @_bn1_conv2_stats_kernel(%arg0: i32, %arg1: memref<1x18x18x128xf32, #tpu.memory_space<vmem>>, %arg2: memref<1x128xf32, #tpu.memory_space<vmem>>, %arg3: memref<1x1x128xf32, #tpu.memory_space<vmem>>, %arg4: memref<1152x128xbf16, #tpu.memory_space<vmem>>, %arg5: memref<1x128xf32, #tpu.memory_space<vmem>>, %arg6: memref<1x18x18x128xf32, #tpu.memory_space<vmem>>, %arg7: memref<1x2x128xf32, #tpu.memory_space<vmem>>) attributes {dimension_semantics = [#tpu.dimension_semantics<parallel>], iteration_bounds = array<i64: 2>, scalar_prefetch = 0 : i64, scratch_operands = 0 : i64, tpu.core_type = #tpu.core_type<tc>, window_params = [{transform_indices = @transform_0, window_bounds = array<i64: 1, 18, 18, 128>}, {pipeline_mode = #tpu.pipeline_mode<synchronous>, transform_indices = @transform_1, window_bounds = array<i64: 1, 128>}, {transform_indices = @transform_2, window_bounds = array<i64: 1, 1, 128>}, {pipeline_mode = #tpu.pipeline_mode<synchronous>, transform_indices = @transform_3, window_bounds = array<i64: 1152, 128>}, {pipeline_mode = #tpu.pipeline_mode<synchronous>, transform_indices = @transform_4, window_bounds = array<i64: 1, 128>}, {transform_indices = @transform_5, window_bounds = array<i64: 1, 18, 18, 128>}, {transform_indices = @transform_6, window_bounds = array<i64: 1, 2, 128>}]} {
    %c0 = arith.constant 0 : index
    %c0_0 = arith.constant 0 : index
    %c0_1 = arith.constant 0 : index
    %c0_2 = arith.constant 0 : index
    %0 = vector.load %arg1[%c0, %c0_0, %c0_1, %c0_2] : memref<1x18x18x128xf32, #tpu.memory_space<vmem>>, vector<1x18x18x128xf32>
    %1 = vector.shape_cast %0 : vector<1x18x18x128xf32> to vector<18x18x128xf32>
    %2 = tpu.iota {dimensions = array<i32: 0>} : vector<18x18x128xi32>
    %3 = tpu.iota {dimensions = array<i32: 1>} : vector<18x18x128xi32>
    %c1_i32 = arith.constant 1 : i32
    %4 = vector.broadcast %c1_i32 : i32 to vector<18x18x128xi32>
    %5 = arith.cmpi sge, %2, %4 : vector<18x18x128xi32>
    %c16_i32 = arith.constant 16 : i32
    %6 = vector.broadcast %c16_i32 : i32 to vector<18x18x128xi32>
    %7 = arith.cmpi sle, %2, %6 : vector<18x18x128xi32>
    %8 = arith.andi %5, %7 : vector<18x18x128xi1>
    %c1_i32_3 = arith.constant 1 : i32
    %9 = vector.broadcast %c1_i32_3 : i32 to vector<18x18x128xi32>
    %10 = arith.cmpi sge, %3, %9 : vector<18x18x128xi32>
    %11 = arith.andi %8, %10 : vector<18x18x128xi1>
    %c16_i32_4 = arith.constant 16 : i32
    %12 = vector.broadcast %c16_i32_4 : i32 to vector<18x18x128xi32>
    %13 = arith.cmpi sle, %3, %12 : vector<18x18x128xi32>
    %14 = arith.andi %11, %13 : vector<18x18x128xi1>
    %c0_5 = arith.constant 0 : index
    %c0_6 = arith.constant 0 : index
    %15 = vector.load %arg2[%c0_5, %c0_6] : memref<1x128xf32, #tpu.memory_space<vmem>>, vector<1x128xf32>
    %16 = vector.shape_cast %15 : vector<1x128xf32> to vector<1x1x128xf32>
    %17 = vector.broadcast %16 : vector<1x1x128xf32> to vector<18x18x128xf32>
    %18 = arith.mulf %1, %17 : vector<18x18x128xf32>
    %c0_7 = arith.constant 0 : index
    %c0_8 = arith.constant 0 : index
    %c0_9 = arith.constant 0 : index
    %19 = vector.load %arg3[%c0_7, %c0_8, %c0_9] : memref<1x1x128xf32, #tpu.memory_space<vmem>>, vector<1x1x128xf32>
    %20 = vector.shape_cast %19 : vector<1x1x128xf32> to vector<1x128xf32>
    %21 = vector.shape_cast %20 : vector<1x128xf32> to vector<1x1x128xf32>
    %22 = vector.broadcast %21 : vector<1x1x128xf32> to vector<18x18x128xf32>
    %23 = arith.addf %18, %22 : vector<18x18x128xf32>
    %cst = arith.constant 0.000000e+00 : f32
    %24 = vector.broadcast %cst : f32 to vector<18x18x128xf32>
    %25 = arith.select %14, %23, %24 : vector<18x18x128xi1>, vector<18x18x128xf32>
    %26 = arith.truncf %25 : vector<18x18x128xf32> to vector<18x18x128xbf16>
    %27 = vector.extract_strided_slice %26 {offsets = [0, 0, 0], sizes = [16, 16, 128], strides = [1, 1, 1]} : vector<18x18x128xbf16> to vector<16x16x128xbf16>
    %28 = vector.shape_cast %27 : vector<16x16x128xbf16> to vector<256x128xbf16>
    %29 = vector.extract_strided_slice %26 {offsets = [0, 1, 0], sizes = [16, 16, 128], strides = [1, 1, 1]} : vector<18x18x128xbf16> to vector<16x16x128xbf16>
    %30 = vector.shape_cast %29 : vector<16x16x128xbf16> to vector<256x128xbf16>
    %31 = vector.extract_strided_slice %26 {offsets = [0, 2, 0], sizes = [16, 16, 128], strides = [1, 1, 1]} : vector<18x18x128xbf16> to vector<16x16x128xbf16>
    %32 = vector.shape_cast %31 : vector<16x16x128xbf16> to vector<256x128xbf16>
    %33 = vector.extract_strided_slice %26 {offsets = [1, 0, 0], sizes = [16, 16, 128], strides = [1, 1, 1]} : vector<18x18x128xbf16> to vector<16x16x128xbf16>
    %34 = vector.shape_cast %33 : vector<16x16x128xbf16> to vector<256x128xbf16>
    %35 = vector.extract_strided_slice %26 {offsets = [1, 1, 0], sizes = [16, 16, 128], strides = [1, 1, 1]} : vector<18x18x128xbf16> to vector<16x16x128xbf16>
    %36 = vector.shape_cast %35 : vector<16x16x128xbf16> to vector<256x128xbf16>
    %37 = vector.extract_strided_slice %26 {offsets = [1, 2, 0], sizes = [16, 16, 128], strides = [1, 1, 1]} : vector<18x18x128xbf16> to vector<16x16x128xbf16>
    %38 = vector.shape_cast %37 : vector<16x16x128xbf16> to vector<256x128xbf16>
    %39 = vector.extract_strided_slice %26 {offsets = [2, 0, 0], sizes = [16, 16, 128], strides = [1, 1, 1]} : vector<18x18x128xbf16> to vector<16x16x128xbf16>
    %40 = vector.shape_cast %39 : vector<16x16x128xbf16> to vector<256x128xbf16>
    %41 = vector.extract_strided_slice %26 {offsets = [2, 1, 0], sizes = [16, 16, 128], strides = [1, 1, 1]} : vector<18x18x128xbf16> to vector<16x16x128xbf16>
    %42 = vector.shape_cast %41 : vector<16x16x128xbf16> to vector<256x128xbf16>
    %43 = vector.extract_strided_slice %26 {offsets = [2, 2, 0], sizes = [16, 16, 128], strides = [1, 1, 1]} : vector<18x18x128xbf16> to vector<16x16x128xbf16>
    %44 = vector.shape_cast %43 : vector<16x16x128xbf16> to vector<256x128xbf16>
    %45 = tpu.concatenate %28, %30, %32, %34, %36, %38, %40, %42, %44 in 1 : vector<256x128xbf16>, vector<256x128xbf16>, vector<256x128xbf16>, vector<256x128xbf16>, vector<256x128xbf16>, vector<256x128xbf16>, vector<256x128xbf16>, vector<256x128xbf16>, vector<256x128xbf16> -> vector<256x1152xbf16>
    %c0_10 = arith.constant 0 : index
    %c0_11 = arith.constant 0 : index
    %46 = vector.load %arg4[%c0_10, %c0_11] : memref<1152x128xbf16, #tpu.memory_space<vmem>>, vector<1152x128xbf16>
    %cst_12 = arith.constant dense<0.000000e+00> : vector<256x128xf32>
    %47 = tpu.matmul %45, %46, %cst_12 {dimension_numbers = #tpu.dot_dimension_numbers<[1], [0], [0], [1], [0, 0, 1, 1], [], []>} : vector<256x1152xbf16>, vector<1152x128xbf16>, vector<256x128xf32> -> vector<256x128xf32>
    %c0_13 = arith.constant 0 : index
    %c0_14 = arith.constant 0 : index
    %48 = vector.load %arg5[%c0_13, %c0_14] : memref<1x128xf32, #tpu.memory_space<vmem>>, vector<1x128xf32>
    %49 = vector.broadcast %48 : vector<1x128xf32> to vector<256x128xf32>
    %50 = arith.addf %47, %49 : vector<256x128xf32>
    %cst_15 = arith.constant 0.000000e+00 : f32
    %51 = vector.broadcast %cst_15 : f32 to vector<256x128xf32>
    %52 = arith.maximumf %50, %51 : vector<256x128xf32>
    %cst_16 = arith.constant dense<0.000000e+00> : vector<128xf32>
    %53 = vector.multi_reduction <add>, %52, %cst_16 [0] : vector<256x128xf32> to vector<128xf32>
    %54 = vector.shape_cast %53 : vector<128xf32> to vector<1x128xf32>
    %55 = arith.mulf %52, %52 : vector<256x128xf32>
    %cst_17 = arith.constant dense<0.000000e+00> : vector<128xf32>
    %56 = vector.multi_reduction <add>, %55, %cst_17 [0] : vector<256x128xf32> to vector<128xf32>
    %57 = vector.shape_cast %56 : vector<128xf32> to vector<1x128xf32>
    %58 = tpu.concatenate %54, %57 in 0 : vector<1x128xf32>, vector<1x128xf32> -> vector<2x128xf32>
    %c0_18 = arith.constant 0 : index
    %c0_19 = arith.constant 0 : index
    %c0_20 = arith.constant 0 : index
    %59 = vector.load %arg7[%c0_18, %c0_19, %c0_20] : memref<1x2x128xf32, #tpu.memory_space<vmem>>, vector<1x2x128xf32>
    %60 = vector.shape_cast %59 : vector<1x2x128xf32> to vector<2x128xf32>
    %61 = vector.shape_cast %58 : vector<2x128xf32> to vector<1x2x128xf32>
    tpu.vector_store %arg7[%c0_18, %c0_19, %c0_20], %61 {strides = array<i32>} : memref<1x2x128xf32, #tpu.memory_space<vmem>>, vector<1x2x128xf32>,
    %cst_21 = arith.constant 0.000000e+00 : f32
    %62 = vector.broadcast %cst_21 : f32 to vector<1x18x18x128xf32>
    %c0_22 = arith.constant 0 : index
    %c0_23 = arith.constant 0 : index
    %c0_24 = arith.constant 0 : index
    %c0_25 = arith.constant 0 : index
    %63 = vector.load %arg6[%c0_22, %c0_23, %c0_24, %c0_25] : memref<1x18x18x128xf32, #tpu.memory_space<vmem>>, vector<1x18x18x128xf32>
    tpu.vector_store %arg6[%c0_22, %c0_23, %c0_24, %c0_25], %62 {strides = array<i32>} : memref<1x18x18x128xf32, #tpu.memory_space<vmem>>, vector<1x18x18x128xf32>,
    %64 = vector.shape_cast %52 : vector<256x128xf32> to vector<16x16x128xf32>
    %c0_26 = arith.constant 0 : index
    %c1 = arith.constant 1 : index
    %c1_27 = arith.constant 1 : index
    %c0_28 = arith.constant 0 : index
    %65 = vector.load %arg6[%c0_26, %c1, %c1_27, %c0_28] : memref<1x18x18x128xf32, #tpu.memory_space<vmem>>, vector<1x16x16x128xf32>
    %66 = vector.shape_cast %65 : vector<1x16x16x128xf32> to vector<16x16x128xf32>
    %67 = vector.shape_cast %64 : vector<16x16x128xf32> to vector<1x16x16x128xf32>
    tpu.vector_store %arg6[%c0_26, %c1, %c1_27, %c0_28], %67 {strides = array<i32>} : memref<1x18x18x128xf32, #tpu.memory_space<vmem>>, vector<1x16x16x128xf32>,
    return
  }
  func.func @transform_0(%arg0: i32) -> (i32, i32, i32, i32) {
    %c0_i32 = arith.constant 0 : i32
    %c0_i32_0 = arith.constant 0 : i32
    %c0_i32_1 = arith.constant 0 : i32
    %c0_i32_2 = arith.constant 0 : i32
    return %arg0, %c0_i32, %c0_i32_0, %c0_i32_1 : i32, i32, i32, i32
  }
  func.func @transform_1(%arg0: i32) -> (i32, i32) {
    %c0_i32 = arith.constant 0 : i32
    %c0_i32_0 = arith.constant 0 : i32
    %c0_i32_1 = arith.constant 0 : i32
    return %c0_i32, %c0_i32_0 : i32, i32
  }
  func.func @transform_2(%arg0: i32) -> (i32, i32, i32) {
    %c0_i32 = arith.constant 0 : i32
    %c0_i32_0 = arith.constant 0 : i32
    %c0_i32_1 = arith.constant 0 : i32
    return %arg0, %c0_i32, %c0_i32_0 : i32, i32, i32
  }
  func.func @transform_3(%arg0: i32) -> (i32, i32) {
    %c0_i32 = arith.constant 0 : i32
    %c0_i32_0 = arith.constant 0 : i32
    %c0_i32_1 = arith.constant 0 : i32
    return %c0_i32, %c0_i32_0 : i32, i32
  }
  func.func @transform_4(%arg0: i32) -> (i32, i32) {
    %c0_i32 = arith.constant 0 : i32
    %c0_i32_0 = arith.constant 0 : i32
    %c0_i32_1 = arith.constant 0 : i32
    return %c0_i32, %c0_i32_0 : i32, i32
  }
  func.func @transform_5(%arg0: i32) -> (i32, i32, i32, i32) {
    %c0_i32 = arith.constant 0 : i32
    %c0_i32_0 = arith.constant 0 : i32
    %c0_i32_1 = arith.constant 0 : i32
    %c0_i32_2 = arith.constant 0 : i32
    return %arg0, %c0_i32, %c0_i32_0, %c0_i32_1 : i32, i32, i32, i32
  }
  func.func @transform_6(%arg0: i32) -> (i32, i32, i32) {
    %c0_i32 = arith.constant 0 : i32
    %c0_i32_0 = arith.constant 0 : i32
    %c0_i32_1 = arith.constant 0 : i32
    return %arg0, %c0_i32, %c0_i32_0 : i32, i32, i32
  }
}

module attributes {stable_mosaic.version = 11 : i64} {
  func.func @_bn2_transform_kernel(%arg0: i32, %arg1: memref<1x4x9x9x128xf32, #tpu.memory_space<vmem>>, %arg2: memref<1x128xf32, #tpu.memory_space<vmem>>, %arg3: memref<1x128xf32, #tpu.memory_space<vmem>>, %arg4: memref<2048x128xbf16, #tpu.memory_space<vmem>>, %arg5: memref<1x128xf32, #tpu.memory_space<vmem>>, %arg6: memref<1x8x8x128xf32, #tpu.memory_space<vmem>>) attributes {dimension_semantics = [#tpu.dimension_semantics<parallel>], iteration_bounds = array<i64: 2>, scalar_prefetch = 0 : i64, scratch_operands = 0 : i64, tpu.core_type = #tpu.core_type<tc>, window_params = [{transform_indices = @transform_0, window_bounds = array<i64: 1, 4, 9, 9, 128>}, {pipeline_mode = #tpu.pipeline_mode<synchronous>, transform_indices = @transform_1, window_bounds = array<i64: 1, 128>}, {pipeline_mode = #tpu.pipeline_mode<synchronous>, transform_indices = @transform_2, window_bounds = array<i64: 1, 128>}, {pipeline_mode = #tpu.pipeline_mode<synchronous>, transform_indices = @transform_3, window_bounds = array<i64: 2048, 128>}, {pipeline_mode = #tpu.pipeline_mode<synchronous>, transform_indices = @transform_4, window_bounds = array<i64: 1, 128>}, {transform_indices = @transform_5, window_bounds = array<i64: 1, 8, 8, 128>}]} {
    %0 = tpu.iota {dimensions = array<i32: 0>} : vector<9x9x128xi32>
    %1 = tpu.iota {dimensions = array<i32: 1>} : vector<9x9x128xi32>
    %c0 = arith.constant 0 : index
    %c0_0 = arith.constant 0 : index
    %c0_1 = arith.constant 0 : index
    %c0_2 = arith.constant 0 : index
    %c0_3 = arith.constant 0 : index
    %2 = vector.load %arg1[%c0, %c0_0, %c0_1, %c0_2, %c0_3] : memref<1x4x9x9x128xf32, #tpu.memory_space<vmem>>, vector<1x1x9x9x128xf32>
    %3 = vector.shape_cast %2 : vector<1x1x9x9x128xf32> to vector<9x9x128xf32>
    %c0_i32 = arith.constant 0 : i32
    %4 = vector.broadcast %c0_i32 : i32 to vector<9x9x128xi32>
    %5 = arith.cmpi ne, %0, %4 : vector<9x9x128xi32>
    %c0_i32_4 = arith.constant 0 : i32
    %6 = vector.broadcast %c0_i32_4 : i32 to vector<9x9x128xi32>
    %7 = arith.cmpi ne, %1, %6 : vector<9x9x128xi32>
    %8 = arith.andi %5, %7 : vector<9x9x128xi1>
    %c0_5 = arith.constant 0 : index
    %c0_6 = arith.constant 0 : index
    %9 = vector.load %arg2[%c0_5, %c0_6] : memref<1x128xf32, #tpu.memory_space<vmem>>, vector<1x128xf32>
    %10 = vector.shape_cast %9 : vector<1x128xf32> to vector<1x1x128xf32>
    %11 = vector.broadcast %10 : vector<1x1x128xf32> to vector<9x9x128xf32>
    %12 = arith.mulf %3, %11 : vector<9x9x128xf32>
    %c0_7 = arith.constant 0 : index
    %c0_8 = arith.constant 0 : index
    %13 = vector.load %arg3[%c0_7, %c0_8] : memref<1x128xf32, #tpu.memory_space<vmem>>, vector<1x128xf32>
    %14 = vector.shape_cast %13 : vector<1x128xf32> to vector<1x1x128xf32>
    %15 = vector.broadcast %14 : vector<1x1x128xf32> to vector<9x9x128xf32>
    %16 = arith.addf %12, %15 : vector<9x9x128xf32>
    %cst = arith.constant 0.000000e+00 : f32
    %17 = vector.broadcast %cst : f32 to vector<9x9x128xf32>
    %18 = arith.select %8, %16, %17 : vector<9x9x128xi1>, vector<9x9x128xf32>
    %19 = arith.truncf %18 : vector<9x9x128xf32> to vector<9x9x128xbf16>
    %20 = vector.extract_strided_slice %19 {offsets = [0, 0, 0], sizes = [8, 8, 128], strides = [1, 1, 1]} : vector<9x9x128xbf16> to vector<8x8x128xbf16>
    %21 = vector.shape_cast %20 : vector<8x8x128xbf16> to vector<64x128xbf16>
    %22 = vector.extract_strided_slice %19 {offsets = [0, 1, 0], sizes = [8, 8, 128], strides = [1, 1, 1]} : vector<9x9x128xbf16> to vector<8x8x128xbf16>
    %23 = vector.shape_cast %22 : vector<8x8x128xbf16> to vector<64x128xbf16>
    %24 = vector.extract_strided_slice %19 {offsets = [1, 0, 0], sizes = [8, 8, 128], strides = [1, 1, 1]} : vector<9x9x128xbf16> to vector<8x8x128xbf16>
    %25 = vector.shape_cast %24 : vector<8x8x128xbf16> to vector<64x128xbf16>
    %26 = vector.extract_strided_slice %19 {offsets = [1, 1, 0], sizes = [8, 8, 128], strides = [1, 1, 1]} : vector<9x9x128xbf16> to vector<8x8x128xbf16>
    %27 = vector.shape_cast %26 : vector<8x8x128xbf16> to vector<64x128xbf16>
    %c0_9 = arith.constant 0 : index
    %c1 = arith.constant 1 : index
    %c0_10 = arith.constant 0 : index
    %c0_11 = arith.constant 0 : index
    %c0_12 = arith.constant 0 : index
    %28 = vector.load %arg1[%c0_9, %c1, %c0_10, %c0_11, %c0_12] : memref<1x4x9x9x128xf32, #tpu.memory_space<vmem>>, vector<1x1x9x9x128xf32>
    %29 = vector.shape_cast %28 : vector<1x1x9x9x128xf32> to vector<9x9x128xf32>
    %c0_i32_13 = arith.constant 0 : i32
    %30 = vector.broadcast %c0_i32_13 : i32 to vector<9x9x128xi32>
    %31 = arith.cmpi ne, %0, %30 : vector<9x9x128xi32>
    %c8_i32 = arith.constant 8 : i32
    %32 = vector.broadcast %c8_i32 : i32 to vector<9x9x128xi32>
    %33 = arith.cmpi ne, %1, %32 : vector<9x9x128xi32>
    %34 = arith.andi %31, %33 : vector<9x9x128xi1>
    %c0_14 = arith.constant 0 : index
    %c0_15 = arith.constant 0 : index
    %35 = vector.load %arg2[%c0_14, %c0_15] : memref<1x128xf32, #tpu.memory_space<vmem>>, vector<1x128xf32>
    %36 = vector.shape_cast %35 : vector<1x128xf32> to vector<1x1x128xf32>
    %37 = vector.broadcast %36 : vector<1x1x128xf32> to vector<9x9x128xf32>
    %38 = arith.mulf %29, %37 : vector<9x9x128xf32>
    %c0_16 = arith.constant 0 : index
    %c0_17 = arith.constant 0 : index
    %39 = vector.load %arg3[%c0_16, %c0_17] : memref<1x128xf32, #tpu.memory_space<vmem>>, vector<1x128xf32>
    %40 = vector.shape_cast %39 : vector<1x128xf32> to vector<1x1x128xf32>
    %41 = vector.broadcast %40 : vector<1x1x128xf32> to vector<9x9x128xf32>
    %42 = arith.addf %38, %41 : vector<9x9x128xf32>
    %cst_18 = arith.constant 0.000000e+00 : f32
    %43 = vector.broadcast %cst_18 : f32 to vector<9x9x128xf32>
    %44 = arith.select %34, %42, %43 : vector<9x9x128xi1>, vector<9x9x128xf32>
    %45 = arith.truncf %44 : vector<9x9x128xf32> to vector<9x9x128xbf16>
    %46 = vector.extract_strided_slice %45 {offsets = [0, 0, 0], sizes = [8, 8, 128], strides = [1, 1, 1]} : vector<9x9x128xbf16> to vector<8x8x128xbf16>
    %47 = vector.shape_cast %46 : vector<8x8x128xbf16> to vector<64x128xbf16>
    %48 = vector.extract_strided_slice %45 {offsets = [0, 1, 0], sizes = [8, 8, 128], strides = [1, 1, 1]} : vector<9x9x128xbf16> to vector<8x8x128xbf16>
    %49 = vector.shape_cast %48 : vector<8x8x128xbf16> to vector<64x128xbf16>
    %50 = vector.extract_strided_slice %45 {offsets = [1, 0, 0], sizes = [8, 8, 128], strides = [1, 1, 1]} : vector<9x9x128xbf16> to vector<8x8x128xbf16>
    %51 = vector.shape_cast %50 : vector<8x8x128xbf16> to vector<64x128xbf16>
    %52 = vector.extract_strided_slice %45 {offsets = [1, 1, 0], sizes = [8, 8, 128], strides = [1, 1, 1]} : vector<9x9x128xbf16> to vector<8x8x128xbf16>
    %53 = vector.shape_cast %52 : vector<8x8x128xbf16> to vector<64x128xbf16>
    %c0_19 = arith.constant 0 : index
    %c2 = arith.constant 2 : index
    %c0_20 = arith.constant 0 : index
    %c0_21 = arith.constant 0 : index
    %c0_22 = arith.constant 0 : index
    %54 = vector.load %arg1[%c0_19, %c2, %c0_20, %c0_21, %c0_22] : memref<1x4x9x9x128xf32, #tpu.memory_space<vmem>>, vector<1x1x9x9x128xf32>
    %55 = vector.shape_cast %54 : vector<1x1x9x9x128xf32> to vector<9x9x128xf32>
    %c8_i32_23 = arith.constant 8 : i32
    %56 = vector.broadcast %c8_i32_23 : i32 to vector<9x9x128xi32>
    %57 = arith.cmpi ne, %0, %56 : vector<9x9x128xi32>
    %c0_i32_24 = arith.constant 0 : i32
    %58 = vector.broadcast %c0_i32_24 : i32 to vector<9x9x128xi32>
    %59 = arith.cmpi ne, %1, %58 : vector<9x9x128xi32>
    %60 = arith.andi %57, %59 : vector<9x9x128xi1>
    %c0_25 = arith.constant 0 : index
    %c0_26 = arith.constant 0 : index
    %61 = vector.load %arg2[%c0_25, %c0_26] : memref<1x128xf32, #tpu.memory_space<vmem>>, vector<1x128xf32>
    %62 = vector.shape_cast %61 : vector<1x128xf32> to vector<1x1x128xf32>
    %63 = vector.broadcast %62 : vector<1x1x128xf32> to vector<9x9x128xf32>
    %64 = arith.mulf %55, %63 : vector<9x9x128xf32>
    %c0_27 = arith.constant 0 : index
    %c0_28 = arith.constant 0 : index
    %65 = vector.load %arg3[%c0_27, %c0_28] : memref<1x128xf32, #tpu.memory_space<vmem>>, vector<1x128xf32>
    %66 = vector.shape_cast %65 : vector<1x128xf32> to vector<1x1x128xf32>
    %67 = vector.broadcast %66 : vector<1x1x128xf32> to vector<9x9x128xf32>
    %68 = arith.addf %64, %67 : vector<9x9x128xf32>
    %cst_29 = arith.constant 0.000000e+00 : f32
    %69 = vector.broadcast %cst_29 : f32 to vector<9x9x128xf32>
    %70 = arith.select %60, %68, %69 : vector<9x9x128xi1>, vector<9x9x128xf32>
    %71 = arith.truncf %70 : vector<9x9x128xf32> to vector<9x9x128xbf16>
    %72 = vector.extract_strided_slice %71 {offsets = [0, 0, 0], sizes = [8, 8, 128], strides = [1, 1, 1]} : vector<9x9x128xbf16> to vector<8x8x128xbf16>
    %73 = vector.shape_cast %72 : vector<8x8x128xbf16> to vector<64x128xbf16>
    %74 = vector.extract_strided_slice %71 {offsets = [0, 1, 0], sizes = [8, 8, 128], strides = [1, 1, 1]} : vector<9x9x128xbf16> to vector<8x8x128xbf16>
    %75 = vector.shape_cast %74 : vector<8x8x128xbf16> to vector<64x128xbf16>
    %76 = vector.extract_strided_slice %71 {offsets = [1, 0, 0], sizes = [8, 8, 128], strides = [1, 1, 1]} : vector<9x9x128xbf16> to vector<8x8x128xbf16>
    %77 = vector.shape_cast %76 : vector<8x8x128xbf16> to vector<64x128xbf16>
    %78 = vector.extract_strided_slice %71 {offsets = [1, 1, 0], sizes = [8, 8, 128], strides = [1, 1, 1]} : vector<9x9x128xbf16> to vector<8x8x128xbf16>
    %79 = vector.shape_cast %78 : vector<8x8x128xbf16> to vector<64x128xbf16>
    %c0_30 = arith.constant 0 : index
    %c3 = arith.constant 3 : index
    %c0_31 = arith.constant 0 : index
    %c0_32 = arith.constant 0 : index
    %c0_33 = arith.constant 0 : index
    %80 = vector.load %arg1[%c0_30, %c3, %c0_31, %c0_32, %c0_33] : memref<1x4x9x9x128xf32, #tpu.memory_space<vmem>>, vector<1x1x9x9x128xf32>
    %81 = vector.shape_cast %80 : vector<1x1x9x9x128xf32> to vector<9x9x128xf32>
    %c8_i32_34 = arith.constant 8 : i32
    %82 = vector.broadcast %c8_i32_34 : i32 to vector<9x9x128xi32>
    %83 = arith.cmpi ne, %0, %82 : vector<9x9x128xi32>
    %c8_i32_35 = arith.constant 8 : i32
    %84 = vector.broadcast %c8_i32_35 : i32 to vector<9x9x128xi32>
    %85 = arith.cmpi ne, %1, %84 : vector<9x9x128xi32>
    %86 = arith.andi %83, %85 : vector<9x9x128xi1>
    %c0_36 = arith.constant 0 : index
    %c0_37 = arith.constant 0 : index
    %87 = vector.load %arg2[%c0_36, %c0_37] : memref<1x128xf32, #tpu.memory_space<vmem>>, vector<1x128xf32>
    %88 = vector.shape_cast %87 : vector<1x128xf32> to vector<1x1x128xf32>
    %89 = vector.broadcast %88 : vector<1x1x128xf32> to vector<9x9x128xf32>
    %90 = arith.mulf %81, %89 : vector<9x9x128xf32>
    %c0_38 = arith.constant 0 : index
    %c0_39 = arith.constant 0 : index
    %91 = vector.load %arg3[%c0_38, %c0_39] : memref<1x128xf32, #tpu.memory_space<vmem>>, vector<1x128xf32>
    %92 = vector.shape_cast %91 : vector<1x128xf32> to vector<1x1x128xf32>
    %93 = vector.broadcast %92 : vector<1x1x128xf32> to vector<9x9x128xf32>
    %94 = arith.addf %90, %93 : vector<9x9x128xf32>
    %cst_40 = arith.constant 0.000000e+00 : f32
    %95 = vector.broadcast %cst_40 : f32 to vector<9x9x128xf32>
    %96 = arith.select %86, %94, %95 : vector<9x9x128xi1>, vector<9x9x128xf32>
    %97 = arith.truncf %96 : vector<9x9x128xf32> to vector<9x9x128xbf16>
    %98 = vector.extract_strided_slice %97 {offsets = [0, 0, 0], sizes = [8, 8, 128], strides = [1, 1, 1]} : vector<9x9x128xbf16> to vector<8x8x128xbf16>
    %99 = vector.shape_cast %98 : vector<8x8x128xbf16> to vector<64x128xbf16>
    %100 = vector.extract_strided_slice %97 {offsets = [0, 1, 0], sizes = [8, 8, 128], strides = [1, 1, 1]} : vector<9x9x128xbf16> to vector<8x8x128xbf16>
    %101 = vector.shape_cast %100 : vector<8x8x128xbf16> to vector<64x128xbf16>
    %102 = vector.extract_strided_slice %97 {offsets = [1, 0, 0], sizes = [8, 8, 128], strides = [1, 1, 1]} : vector<9x9x128xbf16> to vector<8x8x128xbf16>
    %103 = vector.shape_cast %102 : vector<8x8x128xbf16> to vector<64x128xbf16>
    %104 = vector.extract_strided_slice %97 {offsets = [1, 1, 0], sizes = [8, 8, 128], strides = [1, 1, 1]} : vector<9x9x128xbf16> to vector<8x8x128xbf16>
    %105 = vector.shape_cast %104 : vector<8x8x128xbf16> to vector<64x128xbf16>
    %106 = tpu.concatenate %21, %23, %25, %27, %47, %49, %51, %53, %73, %75, %77, %79, %99, %101, %103, %105 in 1 : vector<64x128xbf16>, vector<64x128xbf16>, vector<64x128xbf16>, vector<64x128xbf16>, vector<64x128xbf16>, vector<64x128xbf16>, vector<64x128xbf16>, vector<64x128xbf16>, vector<64x128xbf16>, vector<64x128xbf16>, vector<64x128xbf16>, vector<64x128xbf16>, vector<64x128xbf16>, vector<64x128xbf16>, vector<64x128xbf16>, vector<64x128xbf16> -> vector<64x2048xbf16>
    %c0_41 = arith.constant 0 : index
    %c0_42 = arith.constant 0 : index
    %107 = vector.load %arg4[%c0_41, %c0_42] : memref<2048x128xbf16, #tpu.memory_space<vmem>>, vector<2048x128xbf16>
    %cst_43 = arith.constant dense<0.000000e+00> : vector<64x128xf32>
    %108 = tpu.matmul %106, %107, %cst_43 {dimension_numbers = #tpu.dot_dimension_numbers<[1], [0], [0], [1], [0, 0, 1, 1], [], []>} : vector<64x2048xbf16>, vector<2048x128xbf16>, vector<64x128xf32> -> vector<64x128xf32>
    %c0_44 = arith.constant 0 : index
    %c0_45 = arith.constant 0 : index
    %109 = vector.load %arg5[%c0_44, %c0_45] : memref<1x128xf32, #tpu.memory_space<vmem>>, vector<1x128xf32>
    %110 = vector.broadcast %109 : vector<1x128xf32> to vector<64x128xf32>
    %111 = arith.addf %108, %110 : vector<64x128xf32>
    %112 = vector.shape_cast %111 : vector<64x128xf32> to vector<8x8x128xf32>
    %c0_46 = arith.constant 0 : index
    %c0_47 = arith.constant 0 : index
    %c0_48 = arith.constant 0 : index
    %c0_49 = arith.constant 0 : index
    %113 = vector.load %arg6[%c0_46, %c0_47, %c0_48, %c0_49] : memref<1x8x8x128xf32, #tpu.memory_space<vmem>>, vector<1x8x8x128xf32>
    %114 = vector.shape_cast %113 : vector<1x8x8x128xf32> to vector<8x8x128xf32>
    %115 = vector.shape_cast %112 : vector<8x8x128xf32> to vector<1x8x8x128xf32>
    tpu.vector_store %arg6[%c0_46, %c0_47, %c0_48, %c0_49], %115 {strides = array<i32>} : memref<1x8x8x128xf32, #tpu.memory_space<vmem>>, vector<1x8x8x128xf32>,
    return
  }
  func.func @transform_0(%arg0: i32) -> (i32, i32, i32, i32, i32) {
    %c0_i32 = arith.constant 0 : i32
    %c0_i32_0 = arith.constant 0 : i32
    %c0_i32_1 = arith.constant 0 : i32
    %c0_i32_2 = arith.constant 0 : i32
    %c0_i32_3 = arith.constant 0 : i32
    return %arg0, %c0_i32, %c0_i32_0, %c0_i32_1, %c0_i32_2 : i32, i32, i32, i32, i32
  }
  func.func @transform_1(%arg0: i32) -> (i32, i32) {
    %c0_i32 = arith.constant 0 : i32
    %c0_i32_0 = arith.constant 0 : i32
    %c0_i32_1 = arith.constant 0 : i32
    return %c0_i32, %c0_i32_0 : i32, i32
  }
  func.func @transform_2(%arg0: i32) -> (i32, i32) {
    %c0_i32 = arith.constant 0 : i32
    %c0_i32_0 = arith.constant 0 : i32
    %c0_i32_1 = arith.constant 0 : i32
    return %c0_i32, %c0_i32_0 : i32, i32
  }
  func.func @transform_3(%arg0: i32) -> (i32, i32) {
    %c0_i32 = arith.constant 0 : i32
    %c0_i32_0 = arith.constant 0 : i32
    %c0_i32_1 = arith.constant 0 : i32
    return %c0_i32, %c0_i32_0 : i32, i32
  }
  func.func @transform_4(%arg0: i32) -> (i32, i32) {
    %c0_i32 = arith.constant 0 : i32
    %c0_i32_0 = arith.constant 0 : i32
    %c0_i32_1 = arith.constant 0 : i32
    return %c0_i32, %c0_i32_0 : i32, i32
  }
  func.func @transform_5(%arg0: i32) -> (i32, i32, i32, i32) {
    %c0_i32 = arith.constant 0 : i32
    %c0_i32_0 = arith.constant 0 : i32
    %c0_i32_1 = arith.constant 0 : i32
    %c0_i32_2 = arith.constant 0 : i32
    return %arg0, %c0_i32, %c0_i32_0, %c0_i32_1 : i32, i32, i32, i32
  }
}

</mosaic_0001>

<llo_original>
// kernel: block_forward.4
$region0: #{block_forward.4}
  #allocation0 [shape = 'u32[]', space=smem, size = 0x4, offset = 0x4, fixed_abs, tag = 'smem constant byte address 0x4 - core index']
  #allocation1 [shape = 'u32[144,128]{1,0:T(1,128)}', space=vmem, size = 0x12000, scoped, tag = 'internal scratch']
  %s0 = inlined_call_operand.vmem [shape: f32[2,18,18,128], index: 0, kind: input, shape index: {}]
  %s1 = inlined_call_operand.vmem [shape: f32[1,128], index: 1, kind: input, shape index: {}]
  %s2 = inlined_call_operand.vmem [shape: f32[2,1,128], index: 2, kind: input, shape index: {}]
  %s3 = inlined_call_operand.vmem [shape: bf16[1152,128], index: 3, kind: input, shape index: {}]
  %s4 = inlined_call_operand.vmem [shape: f32[1,128], index: 4, kind: input, shape index: {}]
  %s5 = inlined_call_operand.vmem [shape: f32[2,18,18,128], index: 5, kind: output, shape index: {0}]
  %s6 = inlined_call_operand.vmem [shape: f32[2,2,128], index: 6, kind: output, shape index: {1}]
  %7 = xla_tuple %s5, %s6
  %s8 = sld [smem:[#allocation0]]
  $region61: #{block_forward.4} parent=0
    _
  %s10 = ssub.s32 1, %s8
  %s11 = scalar_select 0, %s10, %s8
  loop: start=0, step=1, limit=4
  $region2: #{block_forward.4} parent=0 // loop_pre_header
    _
  $region3: #{block_forward.4} parent=0 // loop_header
    %s13 = sphi 0, %s17
    %p14 = scmp.ge.s32.totalorder %s13, 4
    %s23 = sphi 0, %s25
    %s26 = sphi 0, %s23
    %s27 = sphi 0, %s26
    %s43 = sphi 0, %s27
    %s47 = sphi 0, %s47
    %s49 = sphi 0, %s47
    %s50 = sphi 0, %s49
    %s64 = sphi 0, %s50
    %s70 = sphi 0, %s72
    %s73 = sphi 0, %s70
    %s74 = sphi 0, %s73
    %s90 = sphi 0, %s74
    %s94 = sphi 0, %s94
    %s96 = sphi 0, %s94
    %s97 = sphi 0, %s96
    %s111 = sphi 0, %s97
    %s115 = sphi 0, %s115
    %s117 = sphi 0, %s115
    %s118 = sphi 0, %s117
    %s132 = sphi 0, %s118
    %s138 = sphi 0, %s140
    %s141 = sphi 0, %s138
    %s142 = sphi 0, %s141
    %s158 = sphi 0, %s142
    %s164 = sphi 0, %s166
    %s167 = sphi 0, %s164
    %s168 = sphi 0, %s167
    %s184 = sphi 0, %s168
  $region4: #{block_forward.4} parent=0 // loop_header_branch
    %16 = sbr.rel (%p14) target = $region8
  $region5: #{block_forward.4} parent=0 // loop_body
    %s18 = ssub.s32 %s13, 1
    %s19 = ssub.s32 %s13, 2
    %s20 = sadd.s32 %s13, 1
    %s21 = ssub.s32 %s13, %s20
    %p22 = scmp.eq.s32.totalorder %s21, 0
    %s24 = sadd.s32 %s23, 1
    %s25 = scalar_select %p22, %s23, %s24
    %p28 = pneg %p22
    %p29 = scmp.eq.s32.totalorder %s13, 1
    %p30 = por %p28, %p29
    %p31 = scmp.ne.s32.totalorder %s23, %s26
    %p32 = scmp.eq.s32.totalorder %s13, 0
    %p33 = por %p31, %p32
    %p34 = scmp.ne.s32.totalorder %s23, %s26
    %p35 = scmp.eq.s32.totalorder %s18, 1
    %p36 = por %p34, %p35
    %p37 = scmp.ne.s32.totalorder %s26, %s27
    %p38 = scmp.eq.s32.totalorder %s18, 0
    %p39 = por %p37, %p38
    %p40 = scmp.ne.s32.totalorder %s26, %s27
    %p41 = scmp.eq.s32.totalorder %s19, 1
    %p42 = por %p40, %p41
    %p44 = scmp.ne.s32.totalorder %s27, %s43
    %p45 = scmp.eq.s32.totalorder %s19, 0
    %p46 = por %p44, %p45
    %s48 = sadd.s32 %s47, 1
    %p51 = scmp.eq.s32.totalorder %s13, 1
    %p52 = scmp.ne.s32.totalorder %s47, %s49
    %p53 = scmp.eq.s32.totalorder %s13, 0
    %p54 = por %p52, %p53
    %p55 = scmp.ne.s32.totalorder %s47, %s49
    %p56 = scmp.eq.s32.totalorder %s18, 1
    %p57 = por %p55, %p56
    %p58 = scmp.ne.s32.totalorder %s49, %s50
    %p59 = scmp.eq.s32.totalorder %s18, 0
    %p60 = por %p58, %p59
    %p61 = scmp.ne.s32.totalorder %s49, %s50
    %p62 = scmp.eq.s32.totalorder %s19, 1
    %p63 = por %p61, %p62
    %p65 = scmp.ne.s32.totalorder %s50, %s64
    %p66 = scmp.eq.s32.totalorder %s19, 0
    %p67 = por %p65, %p66
    %s68 = ssub.s32 %s13, %s20
    %p69 = scmp.eq.s32.totalorder %s68, 0
    %s71 = sadd.s32 %s70, 1
    %s72 = scalar_select %p69, %s70, %s71
    %p75 = pneg %p69
    %p76 = scmp.eq.s32.totalorder %s13, 1
    %p77 = por %p75, %p76
    %p78 = scmp.ne.s32.totalorder %s70, %s73
    %p79 = scmp.eq.s32.totalorder %s13, 0
    %p80 = por %p78, %p79
    %p81 = scmp.ne.s32.totalorder %s70, %s73
    %p82 = scmp.eq.s32.totalorder %s18, 1
    %p83 = por %p81, %p82
    %p84 = scmp.ne.s32.totalorder %s73, %s74
    %p85 = scmp.eq.s32.totalorder %s18, 0
    %p86 = por %p84, %p85
    %p87 = scmp.ne.s32.totalorder %s73, %s74
    %p88 = scmp.eq.s32.totalorder %s19, 1
    %p89 = por %p87, %p88
    %p91 = scmp.ne.s32.totalorder %s74, %s90
    %p92 = scmp.eq.s32.totalorder %s19, 0
    %p93 = por %p91, %p92
    %s95 = sadd.s32 %s94, 1
    %p98 = scmp.eq.s32.totalorder %s13, 1
    %p99 = scmp.ne.s32.totalorder %s94, %s96
    %p100 = scmp.eq.s32.totalorder %s13, 0
    %p101 = por %p99, %p100
    %p102 = scmp.ne.s32.totalorder %s94, %s96
    %p103 = scmp.eq.s32.totalorder %s18, 1
    %p104 = por %p102, %p103
    %p105 = scmp.ne.s32.totalorder %s96, %s97
    %p106 = scmp.eq.s32.totalorder %s18, 0
    %p107 = por %p105, %p106
    %p108 = scmp.ne.s32.totalorder %s96, %s97
    %p109 = scmp.eq.s32.totalorder %s19, 1
    %p110 = por %p108, %p109
    %p112 = scmp.ne.s32.totalorder %s97, %s111
    %p113 = scmp.eq.s32.totalorder %s19, 0
    %p114 = por %p112, %p113
    %s116 = sadd.s32 %s115, 1
    %p119 = scmp.eq.s32.totalorder %s13, 1
    %p120 = scmp.ne.s32.totalorder %s115, %s117
    %p121 = scmp.eq.s32.totalorder %s13, 0
    %p122 = por %p120, %p121
    %p123 = scmp.ne.s32.totalorder %s115, %s117
    %p124 = scmp.eq.s32.totalorder %s18, 1
    %p125 = por %p123, %p124
    %p126 = scmp.ne.s32.totalorder %s117, %s118
    %p127 = scmp.eq.s32.totalorder %s18, 0
    %p128 = por %p126, %p127
    %p129 = scmp.ne.s32.totalorder %s117, %s118
    %p130 = scmp.eq.s32.totalorder %s19, 1
    %p131 = por %p129, %p130
    %p133 = scmp.ne.s32.totalorder %s118, %s132
    %p134 = scmp.eq.s32.totalorder %s19, 0
    %p135 = por %p133, %p134
    %s136 = ssub.s32 %s13, %s20
    %p137 = scmp.eq.s32.totalorder %s136, 0
    %s139 = sadd.s32 %s138, 1
    %s140 = scalar_select %p137, %s138, %s139
    %p143 = pneg %p137
    %p144 = scmp.eq.s32.totalorder %s13, 1
    %p145 = por %p143, %p144
    %p146 = scmp.ne.s32.totalorder %s138, %s141
    %p147 = scmp.eq.s32.totalorder %s13, 0
    %p148 = por %p146, %p147
    %p149 = scmp.ne.s32.totalorder %s138, %s141
    %p150 = scmp.eq.s32.totalorder %s18, 1
    %p151 = por %p149, %p150
    %p152 = scmp.ne.s32.totalorder %s141, %s142
    %p153 = scmp.eq.s32.totalorder %s18, 0
    %p154 = por %p152, %p153
    %p155 = scmp.ne.s32.totalorder %s141, %s142
    %p156 = scmp.eq.s32.totalorder %s19, 1
    %p157 = por %p155, %p156
    %p159 = scmp.ne.s32.totalorder %s142, %s158
    %p160 = scmp.eq.s32.totalorder %s19, 0
    %p161 = por %p159, %p160
    %s162 = ssub.s32 %s13, %s20
    %p163 = scmp.eq.s32.totalorder %s162, 0
    %s165 = sadd.s32 %s164, 1
    %s166 = scalar_select %p163, %s164, %s165
    %p169 = pneg %p163
    %p170 = scmp.eq.s32.totalorder %s13, 1
    %p171 = por %p169, %p170
    %p172 = scmp.ne.s32.totalorder %s164, %s167
    %p173 = scmp.eq.s32.totalorder %s13, 0
    %p174 = por %p172, %p173
    %p175 = scmp.ne.s32.totalorder %s164, %s167
    %p176 = scmp.eq.s32.totalorder %s18, 1
    %p177 = por %p175, %p176
    %p178 = scmp.ne.s32.totalorder %s167, %s168
    %p179 = scmp.eq.s32.totalorder %s18, 0
    %p180 = por %p178, %p179
    %p181 = scmp.ne.s32.totalorder %s167, %s168
    %p182 = scmp.eq.s32.totalorder %s19, 1
    %p183 = por %p181, %p182
    %p185 = scmp.ne.s32.totalorder %s168, %s184
    %p186 = scmp.eq.s32.totalorder %s19, 0
    %p187 = por %p185, %p186
    %p188 = scmp.le.s32.totalorder 1, %s13
    %p189 = scmp.lt.s32.totalorder %s13, 3
    %p190 = pnand %p188, %p189
    %p191 = pneg %p190
    // Predicated region
    $region9: #{block_forward.4} parent=5 // pred_check
      _
    $region10: #{block_forward.4} parent=5 // pred_check_branch
      %193 = sbr.rel (%p190) target = $region12
    $region11: #{block_forward.4} parent=5 // pred_region
      %s194 = ssub.s32 %s13, 1
      // Predicated region
      $region13: #{block_forward.4} parent=11 // pred_check
        %p195 = pneg %p60
      $region14: #{block_forward.4} parent=11 // pred_check_branch
        %197 = sbr.rel (%p195) target = $region16
      $region15: #{block_forward.4} parent=11 // pred_region
        _
      $region16: #{block_forward.4} parent=11 // pred_fallthru
        _
      // Predicated region
      $region17: #{block_forward.4} parent=11 // pred_check
        %p198 = pneg %p107
      $region18: #{block_forward.4} parent=11 // pred_check_branch
        %200 = sbr.rel (%p198) target = $region20
      $region19: #{block_forward.4} parent=11 // pred_region
        _
      $region20: #{block_forward.4} parent=11 // pred_fallthru
        _
      // Predicated region
      $region21: #{block_forward.4} parent=11 // pred_check
        %p201 = pneg %p128
      $region22: #{block_forward.4} parent=11 // pred_check_branch
        %203 = sbr.rel (%p201) target = $region24
      $region23: #{block_forward.4} parent=11 // pred_region
        _
      $region24: #{block_forward.4} parent=11 // pred_fallthru
        _
    $region12: #{block_forward.4} parent=5 // pred_fallthru
      _
    %p204 = scmp.lt.s32.totalorder %s13, 2
    // Predicated region
    $region25: #{block_forward.4} parent=5 // pred_check
      %p205 = pneg %p204
    $region26: #{block_forward.4} parent=5 // pred_check_branch
      %207 = sbr.rel (%p205) target = $region28
    $region27: #{block_forward.4} parent=5 // pred_region
      // Predicated region
      $region29: #{block_forward.4} parent=27 // pred_check
        %p208 = pneg %p33
      $region30: #{block_forward.4} parent=27 // pred_check_branch
        %210 = sbr.rel (%p208) target = $region32
      $region31: #{block_forward.4} parent=27 // pred_region
        %p211 = scmp.lt.s32.totalorder %s13, 1
        %s212 = scalar_select %p211, %s13, 1
        %s213 = smul.addr %s212, 54
        %s214 = smul.addr %s213, 8
        %s215 = scalar_lea.vmem %s0, %s214
      $region32: #{block_forward.4} parent=27 // pred_fallthru
        _
      // Predicated region
      $region33: #{block_forward.4} parent=27 // pred_check
        %p216 = pneg %p80
      $region34: #{block_forward.4} parent=27 // pred_check_branch
        %218 = sbr.rel (%p216) target = $region36
      $region35: #{block_forward.4} parent=27 // pred_region
        %p219 = scmp.lt.s32.totalorder %s13, 1
        %s220 = scalar_select %p219, %s13, 1
        %s221 = scalar_lea.vmem %s2, %s220
      $region36: #{block_forward.4} parent=27 // pred_fallthru
        _
    $region28: #{block_forward.4} parent=5 // pred_fallthru
      _
    %p222 = scmp.le.s32.totalorder 1, %s13
    %p223 = scmp.lt.s32.totalorder %s13, 3
    %p224 = pnand %p222, %p223
    %p225 = pneg %p224
    // Predicated region
    $region37: #{block_forward.4} parent=5 // pred_check
      _
    $region38: #{block_forward.4} parent=5 // pred_check_branch
      %227 = sbr.rel (%p224) target = $region40
    $region39: #{block_forward.4} parent=5 // pred_region
      %s228 = ssub.s32 %s13, 1
      %p229 = scmp.lt.s32.totalorder %s18, 1
      %s230 = scalar_select %p229, %s18, 1
      %s231 = smul.addr %s230, 54
      %s232 = smul.addr %s231, 8
      %s233 = scalar_lea.vmem %s0, %s232
      %p234 = pneg %p39
      %p235 = pneg %p36
      %p236 = pneg %p60
      %p237 = pneg %p57
      %p238 = scmp.lt.s32.totalorder %s18, 1
      %s239 = scalar_select %p238, %s18, 1
      %s240 = scalar_lea.vmem %s2, %s239
      %p241 = pneg %p86
      %p242 = pneg %p83
      %p243 = pneg %p107
      %p244 = pneg %p104
      %p245 = pneg %p128
      %p246 = pneg %p125
      %p247 = pneg %p154
      %p248 = pneg %p151
      %p249 = scmp.lt.s32.totalorder %s18, 1
      %s250 = scalar_select %p249, %s18, 1
      %s251 = smul.addr %s250, 54
      %s252 = smul.addr %s251, 8
      %s253 = scalar_lea.vmem %s5, %s252
      %p254 = pneg %p180
      %p255 = pneg %p177
      %p256 = scmp.lt.s32.totalorder %s18, 1
      %s257 = scalar_select %p256, %s18, 1
      %s258 = smul.addr %s257, 2
      %s259 = scalar_lea.vmem %s6, %s258
      %p260 = scmp.lt.s32.totalorder %s18, 1
      %s261 = scalar_select %p260, %s18, 1
      %s262 = smul.addr %s261, 54
      %s263 = smul.addr %s262, 8
      %s264 = scalar_lea.vmem %s0, %s263
      %p265 = scmp.lt.s32.totalorder %s18, 1
      %s266 = scalar_select %p265, %s18, 1
      %s267 = scalar_lea.vmem %s2, %s266
      %p268 = scmp.lt.s32.totalorder %s18, 1
      %s269 = scalar_select %p268, %s18, 1
      %s270 = smul.addr %s269, 54
      %s271 = smul.addr %s270, 8
      %s272 = scalar_lea.vmem %s5, %s271
      %p273 = scmp.lt.s32.totalorder %s18, 1
      %s274 = scalar_select %p273, %s18, 1
      %s275 = smul.addr %s274, 2
      %s276 = scalar_lea.vmem %s6, %s275
      %v278 = vld [vmem:[%s264] sm:$0xff]
      %v279 = vld [vmem:[%s264 + $0x8] sm:$0xff]
      %v280 = vld [vmem:[%s264 + $0x10] sm:$0x3]
      %v281 = vld [vmem:[%s264 + $0x18] sm:$0xff]
      %v282 = vld [vmem:[%s264 + $0x20] sm:$0xff]
      %v283 = vld [vmem:[%s264 + $0x28] sm:$0x3]
      %v284 = vld [vmem:[%s264 + $0x30] sm:$0xff]
      %v285 = vld [vmem:[%s264 + $0x38] sm:$0xff]
      %v286 = vld [vmem:[%s264 + $0x40] sm:$0x3]
      %v287 = vld [vmem:[%s264 + $0x48] sm:$0xff]
      %v288 = vld [vmem:[%s264 + $0x50] sm:$0xff]
      %v289 = vld [vmem:[%s264 + $0x58] sm:$0x3]
      %v290 = vld [vmem:[%s264 + $0x60] sm:$0xff]
      %v291 = vld [vmem:[%s264 + $0x68] sm:$0xff]
      %v292 = vld [vmem:[%s264 + $0x70] sm:$0x3]
      %v293 = vld [vmem:[%s264 + $0x78] sm:$0xff]
      %v294 = vld [vmem:[%s264 + $0x80] sm:$0xff]
      %v295 = vld [vmem:[%s264 + $0x88] sm:$0x3]
      %v296 = vld [vmem:[%s264 + $0x90] sm:$0xff]
      %v297 = vld [vmem:[%s264 + $0x98] sm:$0xff]
      %v298 = vld [vmem:[%s264 + $0xa0] sm:$0x3]
      %v299 = vld [vmem:[%s264 + $0xa8] sm:$0xff]
      %v300 = vld [vmem:[%s264 + $0xb0] sm:$0xff]
      %v301 = vld [vmem:[%s264 + $0xb8] sm:$0x3]
      %v302 = vld [vmem:[%s264 + $0xc0] sm:$0xff]
      %v303 = vld [vmem:[%s264 + $0xc8] sm:$0xff]
      %v304 = vld [vmem:[%s264 + $0xd0] sm:$0x3]
      %v305 = vld [vmem:[%s264 + $0xd8] sm:$0xff]
      %v306 = vld [vmem:[%s264 + $0xe0] sm:$0xff]
      %v307 = vld [vmem:[%s264 + $0xe8] sm:$0x3]
      %v308 = vld [vmem:[%s264 + $0xf0] sm:$0xff]
      %v309 = vld [vmem:[%s264 + $0xf8] sm:$0xff]
      %v310 = vld [vmem:[%s264 + $0x100] sm:$0x3]
      %v311 = vld [vmem:[%s264 + $0x108] sm:$0xff]
      %v312 = vld [vmem:[%s264 + $0x110] sm:$0xff]
      %v313 = vld [vmem:[%s264 + $0x118] sm:$0x3]
      %v314 = vld [vmem:[%s264 + $0x120] sm:$0xff]
      %v315 = vld [vmem:[%s264 + $0x128] sm:$0xff]
      %v316 = vld [vmem:[%s264 + $0x130] sm:$0x3]
      %v317 = vld [vmem:[%s264 + $0x138] sm:$0xff]
      %v318 = vld [vmem:[%s264 + $0x140] sm:$0xff]
      %v319 = vld [vmem:[%s264 + $0x148] sm:$0x3]
      %v320 = vld [vmem:[%s264 + $0x150] sm:$0xff]
      %v321 = vld [vmem:[%s264 + $0x158] sm:$0xff]
      %v322 = vld [vmem:[%s264 + $0x160] sm:$0x3]
      %v323 = vld [vmem:[%s264 + $0x168] sm:$0xff]
      %v324 = vld [vmem:[%s264 + $0x170] sm:$0xff]
      %v325 = vld [vmem:[%s264 + $0x178] sm:$0x3]
      %v326 = vld [vmem:[%s264 + $0x180] sm:$0xff]
      %v327 = vld [vmem:[%s264 + $0x188] sm:$0xff]
      %v328 = vld [vmem:[%s264 + $0x190] sm:$0x3]
      %v329 = vld [vmem:[%s264 + $0x198] sm:$0xff]
      %v330 = vld [vmem:[%s264 + $0x1a0] sm:$0xff]
      %v331 = vld [vmem:[%s264 + $0x1a8] sm:$0x3]
      %v332 = vlaneseq
      %v333 = vshrl.u32 %v332, 7
      %v334 = vadd.s32 %v333, 8
      %v335 = vadd.s32 %v333, 16
      %vm336 = vcmp.ge.s32.totalorder %v333, 1
      %vm337 = vcmp.ge.s32.totalorder %v334, 1
      %vm338 = vcmp.ge.s32.totalorder %v335, 1
      %vm339 = vmand 0, %vm336
      %vm340 = vmand 0, %vm337
      %vm341 = vmand 0, %vm338
      %vm342 = vmand 1, %vm336
      %vm343 = vmand 1, %vm337
      %vm344 = vmand 1, %vm338
      %vm345 = vcmp.le.s32.totalorder %v333, 16
      %vm346 = vcmp.le.s32.totalorder %v334, 16
      %vm347 = vcmp.le.s32.totalorder %v335, 16
      %vm348 = vmand %vm339, %vm345
      %vm349 = vmand %vm340, %vm346
      %vm350 = vmand %vm341, %vm347
      %vm351 = vmand %vm342, %vm345
      %vm352 = vmand %vm343, %vm346
      %vm353 = vmand %vm344, %vm347
      %v354 = vld [vmem:[%s1] sm:$0x1]
      %v356 = vlaneseq
      %v357 = vshrl.u32 %v356, 7
      %v358 = vsub.s32 0, %v357
      %v359 = vrot.slane %v354, %v358
      %v361 = vmul.f32 %v278, %v359
      %v362 = vmul.f32 %v279, %v359
      %v363 = vmul.f32 %v280, %v359
      %v364 = vmul.f32 %v281, %v359
      %v365 = vmul.f32 %v282, %v359
      %v366 = vmul.f32 %v283, %v359
      %v367 = vmul.f32 %v284, %v359
      %v368 = vmul.f32 %v285, %v359
      %v369 = vmul.f32 %v286, %v359
      %v370 = vmul.f32 %v287, %v359
      %v371 = vmul.f32 %v288, %v359
      %v372 = vmul.f32 %v289, %v359
      %v373 = vmul.f32 %v290, %v359
      %v374 = vmul.f32 %v291, %v359
      %v375 = vmul.f32 %v292, %v359
      %v376 = vmul.f32 %v293, %v359
      %v377 = vmul.f32 %v294, %v359
      %v378 = vmul.f32 %v295, %v359
      %v379 = vmul.f32 %v296, %v359
      %v380 = vmul.f32 %v297, %v359
      %v381 = vmul.f32 %v298, %v359
      %v382 = vmul.f32 %v299, %v359
      %v383 = vmul.f32 %v300, %v359
      %v384 = vmul.f32 %v301, %v359
      %v385 = vmul.f32 %v302, %v359
      %v386 = vmul.f32 %v303, %v359
      %v387 = vmul.f32 %v304, %v359
      %v388 = vmul.f32 %v305, %v359
      %v389 = vmul.f32 %v306, %v359
      %v390 = vmul.f32 %v307, %v359
      %v391 = vmul.f32 %v308, %v359
      %v392 = vmul.f32 %v309, %v359
      %v393 = vmul.f32 %v310, %v359
      %v394 = vmul.f32 %v311, %v359
      %v395 = vmul.f32 %v312, %v359
      %v396 = vmul.f32 %v313, %v359
      %v397 = vmul.f32 %v314, %v359
      %v398 = vmul.f32 %v315, %v359
      %v399 = vmul.f32 %v316, %v359
      %v400 = vmul.f32 %v317, %v359
      %v401 = vmul.f32 %v318, %v359
      %v402 = vmul.f32 %v319, %v359
      %v403 = vmul.f32 %v320, %v359
      %v404 = vmul.f32 %v321, %v359
      %v405 = vmul.f32 %v322, %v359
      %v406 = vmul.f32 %v323, %v359
      %v407 = vmul.f32 %v324, %v359
      %v408 = vmul.f32 %v325, %v359
      %v409 = vmul.f32 %v326, %v359
      %v410 = vmul.f32 %v327, %v359
      %v411 = vmul.f32 %v328, %v359
      %v412 = vmul.f32 %v329, %v359
      %v413 = vmul.f32 %v330, %v359
      %v414 = vmul.f32 %v331, %v359
      %v415 = vld [vmem:[%s267] sm:$0x1]
      %v417 = vlaneseq
      %v418 = vshrl.u32 %v417, 7
      %v419 = vsub.s32 0, %v418
      %v420 = vrot.slane %v415, %v419
      %v422 = vadd.f32 %v361, %v420
      %v423 = vadd.f32 %v362, %v420
      %v424 = vadd.f32 %v363, %v420
      %v425 = vadd.f32 %v364, %v420
      %v426 = vadd.f32 %v365, %v420
      %v427 = vadd.f32 %v366, %v420
      %v428 = vadd.f32 %v367, %v420
      %v429 = vadd.f32 %v368, %v420
      %v430 = vadd.f32 %v369, %v420
      %v431 = vadd.f32 %v370, %v420
      %v432 = vadd.f32 %v371, %v420
      %v433 = vadd.f32 %v372, %v420
      %v434 = vadd.f32 %v373, %v420
      %v435 = vadd.f32 %v374, %v420
      %v436 = vadd.f32 %v375, %v420
      %v437 = vadd.f32 %v376, %v420
      %v438 = vadd.f32 %v377, %v420
      %v439 = vadd.f32 %v378, %v420
      %v440 = vadd.f32 %v379, %v420
      %v441 = vadd.f32 %v380, %v420
      %v442 = vadd.f32 %v381, %v420
      %v443 = vadd.f32 %v382, %v420
      %v444 = vadd.f32 %v383, %v420
      %v445 = vadd.f32 %v384, %v420
      %v446 = vadd.f32 %v385, %v420
      %v447 = vadd.f32 %v386, %v420
      %v448 = vadd.f32 %v387, %v420
      %v449 = vadd.f32 %v388, %v420
      %v450 = vadd.f32 %v389, %v420
      %v451 = vadd.f32 %v390, %v420
      %v452 = vadd.f32 %v391, %v420
      %v453 = vadd.f32 %v392, %v420
      %v454 = vadd.f32 %v393, %v420
      %v455 = vadd.f32 %v394, %v420
      %v456 = vadd.f32 %v395, %v420
      %v457 = vadd.f32 %v396, %v420
      %v458 = vadd.f32 %v397, %v420
      %v459 = vadd.f32 %v398, %v420
      %v460 = vadd.f32 %v399, %v420
      %v461 = vadd.f32 %v400, %v420
      %v462 = vadd.f32 %v401, %v420
      %v463 = vadd.f32 %v402, %v420
      %v464 = vadd.f32 %v403, %v420
      %v465 = vadd.f32 %v404, %v420
      %v466 = vadd.f32 %v405, %v420
      %v467 = vadd.f32 %v406, %v420
      %v468 = vadd.f32 %v407, %v420
      %v469 = vadd.f32 %v408, %v420
      %v470 = vadd.f32 %v409, %v420
      %v471 = vadd.f32 %v410, %v420
      %v472 = vadd.f32 %v411, %v420
      %v473 = vadd.f32 %v412, %v420
      %v474 = vadd.f32 %v413, %v420
      %v475 = vadd.f32 %v414, %v420
      %v476 = vsel %vm348, %v422, 0.0
      %v477 = vsel %vm349, %v423, 0.0
      %v478 = vsel %vm350, %v424, 0.0
      %v479 = vsel %vm351, %v425, 0.0
      %v480 = vsel %vm352, %v426, 0.0
      %v481 = vsel %vm353, %v427, 0.0
      %v482 = vsel %vm351, %v428, 0.0
      %v483 = vsel %vm352, %v429, 0.0
      %v484 = vsel %vm353, %v430, 0.0
      %v485 = vsel %vm351, %v431, 0.0
      %v486 = vsel %vm352, %v432, 0.0
      %v487 = vsel %vm353, %v433, 0.0
      %v488 = vsel %vm351, %v434, 0.0
      %v489 = vsel %vm352, %v435, 0.0
      %v490 = vsel %vm353, %v436, 0.0
      %v491 = vsel %vm351, %v437, 0.0
      %v492 = vsel %vm352, %v438, 0.0
      %v493 = vsel %vm353, %v439, 0.0
      %v494 = vsel %vm351, %v440, 0.0
      %v495 = vsel %vm352, %v441, 0.0
      %v496 = vsel %vm353, %v442, 0.0
      %v497 = vsel %vm351, %v443, 0.0
      %v498 = vsel %vm352, %v444, 0.0
      %v499 = vsel %vm353, %v445, 0.0
      %v500 = vsel %vm351, %v446, 0.0
      %v501 = vsel %vm352, %v447, 0.0
      %v502 = vsel %vm353, %v448, 0.0
      %v503 = vsel %vm351, %v449, 0.0
      %v504 = vsel %vm352, %v450, 0.0
      %v505 = vsel %vm353, %v451, 0.0
      %v506 = vsel %vm351, %v452, 0.0
      %v507 = vsel %vm352, %v453, 0.0
      %v508 = vsel %vm353, %v454, 0.0
      %v509 = vsel %vm351, %v455, 0.0
      %v510 = vsel %vm352, %v456, 0.0
      %v511 = vsel %vm353, %v457, 0.0
      %v512 = vsel %vm351, %v458, 0.0
      %v513 = vsel %vm352, %v459, 0.0
      %v514 = vsel %vm353, %v460, 0.0
      %v515 = vsel %vm351, %v461, 0.0
      %v516 = vsel %vm352, %v462, 0.0
      %v517 = vsel %vm353, %v463, 0.0
      %v518 = vsel %vm351, %v464, 0.0
      %v519 = vsel %vm352, %v465, 0.0
      %v520 = vsel %vm353, %v466, 0.0
      %v521 = vsel %vm351, %v467, 0.0
      %v522 = vsel %vm352, %v468, 0.0
      %v523 = vsel %vm353, %v469, 0.0
      %v524 = vsel %vm351, %v470, 0.0
      %v525 = vsel %vm352, %v471, 0.0
      %v526 = vsel %vm353, %v472, 0.0
      %v527 = vsel %vm348, %v473, 0.0
      %v528 = vsel %vm349, %v474, 0.0
      %v529 = vsel %vm350, %v475, 0.0
      %v530 = vpack.c.bf16 %v477, %v476
      %v531 = vpack.c.bf16 %v478, %v478
      %v532 = vpack.c.bf16 %v480, %v479
      %v533 = vpack.c.bf16 %v481, %v481
      %v534 = vpack.c.bf16 %v483, %v482
      %v535 = vpack.c.bf16 %v484, %v484
      %v536 = vpack.c.bf16 %v486, %v485
      %v537 = vpack.c.bf16 %v487, %v487
      %v538 = vpack.c.bf16 %v489, %v488
      %v539 = vpack.c.bf16 %v490, %v490
      %v540 = vpack.c.bf16 %v492, %v491
      %v541 = vpack.c.bf16 %v493, %v493
      %v542 = vpack.c.bf16 %v495, %v494
      %v543 = vpack.c.bf16 %v496, %v496
      %v544 = vpack.c.bf16 %v498, %v497
      %v545 = vpack.c.bf16 %v499, %v499
      %v546 = vpack.c.bf16 %v501, %v500
      %v547 = vpack.c.bf16 %v502, %v502
      %v548 = vpack.c.bf16 %v504, %v503
      %v549 = vpack.c.bf16 %v505, %v505
      %v550 = vpack.c.bf16 %v507, %v506
      %v551 = vpack.c.bf16 %v508, %v508
      %v552 = vpack.c.bf16 %v510, %v509
      %v553 = vpack.c.bf16 %v511, %v511
      %v554 = vpack.c.bf16 %v513, %v512
      %v555 = vpack.c.bf16 %v514, %v514
      %v556 = vpack.c.bf16 %v516, %v515
      %v557 = vpack.c.bf16 %v517, %v517
      %v558 = vpack.c.bf16 %v519, %v518
      %v559 = vpack.c.bf16 %v520, %v520
      %v560 = vpack.c.bf16 %v522, %v521
      %v561 = vpack.c.bf16 %v523, %v523
      %v562 = vpack.c.bf16 %v525, %v524
      %v563 = vpack.c.bf16 %v526, %v526
      %v564 = vpack.c.bf16 %v528, %v527
      %v565 = vpack.c.bf16 %v529, %v529
      %vm566 = vsmask.f32 7424
      %v568 = vshrl.u32 %v530, 16
      %v570 = vshll.u32 %v530, 16
      %v572 = vrot.slane %v570, 1
      %v573 = vor.u32 %v568, %v572
      %v575 = vshll.u32 %v531, 16
      %v577 = vrot.slane %v575, 1
      %v578 = vsel %vm566, %v573, %v577
      %v580 = vshrl.u32 %v532, 16
      %v582 = vshll.u32 %v532, 16
      %v584 = vrot.slane %v582, 1
      %v585 = vor.u32 %v580, %v584
      %v587 = vshll.u32 %v533, 16
      %v589 = vrot.slane %v587, 1
      %v590 = vsel %vm566, %v585, %v589
      %v592 = vshrl.u32 %v534, 16
      %v594 = vshll.u32 %v534, 16
      %v596 = vrot.slane %v594, 1
      %v597 = vor.u32 %v592, %v596
      %v599 = vshll.u32 %v535, 16
      %v601 = vrot.slane %v599, 1
      %v602 = vsel %vm566, %v597, %v601
      %v604 = vshrl.u32 %v536, 16
      %v606 = vshll.u32 %v536, 16
      %v608 = vrot.slane %v606, 1
      %v609 = vor.u32 %v604, %v608
      %v611 = vshll.u32 %v537, 16
      %v613 = vrot.slane %v611, 1
      %v614 = vsel %vm566, %v609, %v613
      %v616 = vshrl.u32 %v538, 16
      %v618 = vshll.u32 %v538, 16
      %v620 = vrot.slane %v618, 1
      %v621 = vor.u32 %v616, %v620
      %v623 = vshll.u32 %v539, 16
      %v625 = vrot.slane %v623, 1
      %v626 = vsel %vm566, %v621, %v625
      %v628 = vshrl.u32 %v540, 16
      %v630 = vshll.u32 %v540, 16
      %v632 = vrot.slane %v630, 1
      %v633 = vor.u32 %v628, %v632
      %v635 = vshll.u32 %v541, 16
      %v637 = vrot.slane %v635, 1
      %v638 = vsel %vm566, %v633, %v637
      %v640 = vshrl.u32 %v542, 16
      %v642 = vshll.u32 %v542, 16
      %v644 = vrot.slane %v642, 1
      %v645 = vor.u32 %v640, %v644
      %v647 = vshll.u32 %v543, 16
      %v649 = vrot.slane %v647, 1
      %v650 = vsel %vm566, %v645, %v649
      %v652 = vshrl.u32 %v544, 16
      %v654 = vshll.u32 %v544, 16
      %v656 = vrot.slane %v654, 1
      %v657 = vor.u32 %v652, %v656
      %v659 = vshll.u32 %v545, 16
      %v661 = vrot.slane %v659, 1
      %v662 = vsel %vm566, %v657, %v661
      %v664 = vshrl.u32 %v546, 16
      %v666 = vshll.u32 %v546, 16
      %v668 = vrot.slane %v666, 1
      %v669 = vor.u32 %v664, %v668
      %v671 = vshll.u32 %v547, 16
      %v673 = vrot.slane %v671, 1
      %v674 = vsel %vm566, %v669, %v673
      %v676 = vshrl.u32 %v548, 16
      %v678 = vshll.u32 %v548, 16
      %v680 = vrot.slane %v678, 1
      %v681 = vor.u32 %v676, %v680
      %v683 = vshll.u32 %v549, 16
      %v685 = vrot.slane %v683, 1
      %v686 = vsel %vm566, %v681, %v685
      %v688 = vshrl.u32 %v550, 16
      %v690 = vshll.u32 %v550, 16
      %v692 = vrot.slane %v690, 1
      %v693 = vor.u32 %v688, %v692
      %v695 = vshll.u32 %v551, 16
      %v697 = vrot.slane %v695, 1
      %v698 = vsel %vm566, %v693, %v697
      %v700 = vshrl.u32 %v552, 16
      %v702 = vshll.u32 %v552, 16
      %v704 = vrot.slane %v702, 1
      %v705 = vor.u32 %v700, %v704
      %v707 = vshll.u32 %v553, 16
      %v709 = vrot.slane %v707, 1
      %v710 = vsel %vm566, %v705, %v709
      %v712 = vshrl.u32 %v554, 16
      %v714 = vshll.u32 %v554, 16
      %v716 = vrot.slane %v714, 1
      %v717 = vor.u32 %v712, %v716
      %v719 = vshll.u32 %v555, 16
      %v721 = vrot.slane %v719, 1
      %v722 = vsel %vm566, %v717, %v721
      %v724 = vshrl.u32 %v556, 16
      %v726 = vshll.u32 %v556, 16
      %v728 = vrot.slane %v726, 1
      %v729 = vor.u32 %v724, %v728
      %v731 = vshll.u32 %v557, 16
      %v733 = vrot.slane %v731, 1
      %v734 = vsel %vm566, %v729, %v733
      %v736 = vshrl.u32 %v558, 16
      %v738 = vshll.u32 %v558, 16
      %v740 = vrot.slane %v738, 1
      %v741 = vor.u32 %v736, %v740
      %v743 = vshll.u32 %v559, 16
      %v745 = vrot.slane %v743, 1
      %v746 = vsel %vm566, %v741, %v745
      %v748 = vshrl.u32 %v560, 16
      %v750 = vshll.u32 %v560, 16
      %v752 = vrot.slane %v750, 1
      %v753 = vor.u32 %v748, %v752
      %v755 = vshll.u32 %v561, 16
      %v757 = vrot.slane %v755, 1
      %v758 = vsel %vm566, %v753, %v757
      %vm807 = vcmask 1046528
      %v808 = vrot.slane %v530, 1
      %v809 = vrot.slane %v531, 1
      %v810 = vsel %vm807, %v808, %v809
      %v811 = vrot.slane %v532, 1
      %v812 = vrot.slane %v533, 1
      %v813 = vsel %vm807, %v811, %v812
      %v814 = vrot.slane %v534, 1
      %v815 = vrot.slane %v535, 1
      %v816 = vsel %vm807, %v814, %v815
      %v817 = vrot.slane %v536, 1
      %v818 = vrot.slane %v537, 1
      %v819 = vsel %vm807, %v817, %v818
      %v820 = vrot.slane %v538, 1
      %v821 = vrot.slane %v539, 1
      %v822 = vsel %vm807, %v820, %v821
      %v823 = vrot.slane %v540, 1
      %v824 = vrot.slane %v541, 1
      %v825 = vsel %vm807, %v823, %v824
      %v826 = vrot.slane %v542, 1
      %v827 = vrot.slane %v543, 1
      %v828 = vsel %vm807, %v826, %v827
      %v829 = vrot.slane %v544, 1
      %v830 = vrot.slane %v545, 1
      %v831 = vsel %vm807, %v829, %v830
      %v832 = vrot.slane %v546, 1
      %v833 = vrot.slane %v547, 1
      %v834 = vsel %vm807, %v832, %v833
      %v835 = vrot.slane %v548, 1
      %v836 = vrot.slane %v549, 1
      %v837 = vsel %vm807, %v835, %v836
      %v838 = vrot.slane %v550, 1
      %v839 = vrot.slane %v551, 1
      %v840 = vsel %vm807, %v838, %v839
      %v841 = vrot.slane %v552, 1
      %v842 = vrot.slane %v553, 1
      %v843 = vsel %vm807, %v841, %v842
      %v844 = vrot.slane %v554, 1
      %v845 = vrot.slane %v555, 1
      %v846 = vsel %vm807, %v844, %v845
      %v847 = vrot.slane %v556, 1
      %v848 = vrot.slane %v557, 1
      %v849 = vsel %vm807, %v847, %v848
      %v850 = vrot.slane %v558, 1
      %v851 = vrot.slane %v559, 1
      %v852 = vsel %vm807, %v850, %v851
      %v853 = vrot.slane %v560, 1
      %v854 = vrot.slane %v561, 1
      %v855 = vsel %vm807, %v853, %v854
      %v873 = vshrl.u32 %v562, 16
      %v875 = vshll.u32 %v562, 16
      %v877 = vrot.slane %v875, 1
      %v878 = vor.u32 %v873, %v877
      %v880 = vshll.u32 %v563, 16
      %v882 = vrot.slane %v880, 1
      %v883 = vsel %vm566, %v878, %v882
      %v887 = vrot.slane %v562, 1
      %v888 = vrot.slane %v563, 1
      %v889 = vsel %vm807, %v887, %v888
      %v892 = vshrl.u32 %v564, 16
      %v894 = vshll.u32 %v564, 16
      %v896 = vrot.slane %v894, 1
      %v897 = vor.u32 %v892, %v896
      %v899 = vshll.u32 %v565, 16
      %v901 = vrot.slane %v899, 1
      %v902 = vsel %vm566, %v897, %v901
      %v906 = vrot.slane %v564, 1
      %v907 = vrot.slane %v565, 1
      %v908 = vsel %vm807, %v906, %v907
      %v910 = vld [vmem:[%s3] sm:$0xf]
      %v911 = vld [vmem:[%s3 + $0x4] sm:$0xf]
      %v912 = vld [vmem:[%s3 + $0x8] sm:$0xf]
      %v913 = vld [vmem:[%s3 + $0xc] sm:$0xf]
      %v914 = vld [vmem:[%s3 + $0x10] sm:$0xf]
      %v915 = vld [vmem:[%s3 + $0x14] sm:$0xf]
      %v916 = vld [vmem:[%s3 + $0x18] sm:$0xf]
      %v917 = vld [vmem:[%s3 + $0x1c] sm:$0xf]
      %v918 = vld [vmem:[%s3 + $0x20] sm:$0xf]
      %v919 = vld [vmem:[%s3 + $0x24] sm:$0xf]
      %v920 = vld [vmem:[%s3 + $0x28] sm:$0xf]
      %v921 = vld [vmem:[%s3 + $0x2c] sm:$0xf]
      %v922 = vld [vmem:[%s3 + $0x30] sm:$0xf]
      %v923 = vld [vmem:[%s3 + $0x34] sm:$0xf]
      %v924 = vld [vmem:[%s3 + $0x38] sm:$0xf]
      %v925 = vld [vmem:[%s3 + $0x3c] sm:$0xf]
      %v926 = vld [vmem:[%s3 + $0x40] sm:$0xf]
      %v927 = vld [vmem:[%s3 + $0x44] sm:$0xf]
      %v928 = vld [vmem:[%s3 + $0x48] sm:$0xf]
      %v929 = vld [vmem:[%s3 + $0x4c] sm:$0xf]
      %v930 = vld [vmem:[%s3 + $0x50] sm:$0xf]
      %v931 = vld [vmem:[%s3 + $0x54] sm:$0xf]
      %v932 = vld [vmem:[%s3 + $0x58] sm:$0xf]
      %v933 = vld [vmem:[%s3 + $0x5c] sm:$0xf]
      %v934 = vld [vmem:[%s3 + $0x60] sm:$0xf]
      %v935 = vld [vmem:[%s3 + $0x64] sm:$0xf]
      %v936 = vld [vmem:[%s3 + $0x68] sm:$0xf]
      %v937 = vld [vmem:[%s3 + $0x6c] sm:$0xf]
      %v938 = vld [vmem:[%s3 + $0x70] sm:$0xf]
      %v939 = vld [vmem:[%s3 + $0x74] sm:$0xf]
      %v940 = vld [vmem:[%s3 + $0x78] sm:$0xf]
      %v941 = vld [vmem:[%s3 + $0x7c] sm:$0xf]
      %v942 = vld [vmem:[%s3 + $0x80] sm:$0xf]
      %v943 = vld [vmem:[%s3 + $0x84] sm:$0xf]
      %v944 = vld [vmem:[%s3 + $0x88] sm:$0xf]
      %v945 = vld [vmem:[%s3 + $0x8c] sm:$0xf]
      %v946 = vld [vmem:[%s3 + $0x90] sm:$0xf]
      %v947 = vld [vmem:[%s3 + $0x94] sm:$0xf]
      %v948 = vld [vmem:[%s3 + $0x98] sm:$0xf]
      %v949 = vld [vmem:[%s3 + $0x9c] sm:$0xf]
      %v950 = vld [vmem:[%s3 + $0xa0] sm:$0xf]
      %v951 = vld [vmem:[%s3 + $0xa4] sm:$0xf]
      %v952 = vld [vmem:[%s3 + $0xa8] sm:$0xf]
      %v953 = vld [vmem:[%s3 + $0xac] sm:$0xf]
      %v954 = vld [vmem:[%s3 + $0xb0] sm:$0xf]
      %v955 = vld [vmem:[%s3 + $0xb4] sm:$0xf]
      %v956 = vld [vmem:[%s3 + $0xb8] sm:$0xf]
      %v957 = vld [vmem:[%s3 + $0xbc] sm:$0xf]
      %v958 = vld [vmem:[%s3 + $0xc0] sm:$0xf]
      %v959 = vld [vmem:[%s3 + $0xc4] sm:$0xf]
      %v960 = vld [vmem:[%s3 + $0xc8] sm:$0xf]
      %v961 = vld [vmem:[%s3 + $0xcc] sm:$0xf]
      %v962 = vld [vmem:[%s3 + $0xd0] sm:$0xf]
      %v963 = vld [vmem:[%s3 + $0xd4] sm:$0xf]
      %v964 = vld [vmem:[%s3 + $0xd8] sm:$0xf]
      %v965 = vld [vmem:[%s3 + $0xdc] sm:$0xf]
      %v966 = vld [vmem:[%s3 + $0xe0] sm:$0xf]
      %v967 = vld [vmem:[%s3 + $0xe4] sm:$0xf]
      %v968 = vld [vmem:[%s3 + $0xe8] sm:$0xf]
      %v969 = vld [vmem:[%s3 + $0xec] sm:$0xf]
      %v970 = vld [vmem:[%s3 + $0xf0] sm:$0xf]
      %v971 = vld [vmem:[%s3 + $0xf4] sm:$0xf]
      %v972 = vld [vmem:[%s3 + $0xf8] sm:$0xf]
      %v973 = vld [vmem:[%s3 + $0xfc] sm:$0xf]
      %v974 = vld [vmem:[%s3 + $0x100] sm:$0xf]
      %v975 = vld [vmem:[%s3 + $0x104] sm:$0xf]
      %v976 = vld [vmem:[%s3 + $0x108] sm:$0xf]
      %v977 = vld [vmem:[%s3 + $0x10c] sm:$0xf]
      %v978 = vld [vmem:[%s3 + $0x110] sm:$0xf]
      %v979 = vld [vmem:[%s3 + $0x114] sm:$0xf]
      %v980 = vld [vmem:[%s3 + $0x118] sm:$0xf]
      %v981 = vld [vmem:[%s3 + $0x11c] sm:$0xf]
      %v982 = vld [vmem:[%s3 + $0x120] sm:$0xf]
      %v983 = vld [vmem:[%s3 + $0x124] sm:$0xf]
      %v984 = vld [vmem:[%s3 + $0x128] sm:$0xf]
      %v985 = vld [vmem:[%s3 + $0x12c] sm:$0xf]
      %v986 = vld [vmem:[%s3 + $0x130] sm:$0xf]
      %v987 = vld [vmem:[%s3 + $0x134] sm:$0xf]
      %v988 = vld [vmem:[%s3 + $0x138] sm:$0xf]
      %v989 = vld [vmem:[%s3 + $0x13c] sm:$0xf]
      %v990 = vld [vmem:[%s3 + $0x140] sm:$0xf]
      %v991 = vld [vmem:[%s3 + $0x144] sm:$0xf]
      %v992 = vld [vmem:[%s3 + $0x148] sm:$0xf]
      %v993 = vld [vmem:[%s3 + $0x14c] sm:$0xf]
      %v994 = vld [vmem:[%s3 + $0x150] sm:$0xf]
      %v995 = vld [vmem:[%s3 + $0x154] sm:$0xf]
      %v996 = vld [vmem:[%s3 + $0x158] sm:$0xf]
      %v997 = vld [vmem:[%s3 + $0x15c] sm:$0xf]
      %v998 = vld [vmem:[%s3 + $0x160] sm:$0xf]
      %v999 = vld [vmem:[%s3 + $0x164] sm:$0xf]
      %v1000 = vld [vmem:[%s3 + $0x168] sm:$0xf]
      %v1001 = vld [vmem:[%s3 + $0x16c] sm:$0xf]
      %v1002 = vld [vmem:[%s3 + $0x170] sm:$0xf]
      %v1003 = vld [vmem:[%s3 + $0x174] sm:$0xf]
      %v1004 = vld [vmem:[%s3 + $0x178] sm:$0xf]
      %v1005 = vld [vmem:[%s3 + $0x17c] sm:$0xf]
      %v1006 = vld [vmem:[%s3 + $0x180] sm:$0xf]
      %v1007 = vld [vmem:[%s3 + $0x184] sm:$0xf]
      %v1008 = vld [vmem:[%s3 + $0x188] sm:$0xf]
      %v1009 = vld [vmem:[%s3 + $0x18c] sm:$0xf]
      %v1010 = vld [vmem:[%s3 + $0x190] sm:$0xf]
      %v1011 = vld [vmem:[%s3 + $0x194] sm:$0xf]
      %v1012 = vld [vmem:[%s3 + $0x198] sm:$0xf]
      %v1013 = vld [vmem:[%s3 + $0x19c] sm:$0xf]
      %v1014 = vld [vmem:[%s3 + $0x1a0] sm:$0xf]
      %v1015 = vld [vmem:[%s3 + $0x1a4] sm:$0xf]
      %v1016 = vld [vmem:[%s3 + $0x1a8] sm:$0xf]
      %v1017 = vld [vmem:[%s3 + $0x1ac] sm:$0xf]
      %v1018 = vld [vmem:[%s3 + $0x1b0] sm:$0xf]
      %v1019 = vld [vmem:[%s3 + $0x1b4] sm:$0xf]
      %v1020 = vld [vmem:[%s3 + $0x1b8] sm:$0xf]
      %v1021 = vld [vmem:[%s3 + $0x1bc] sm:$0xf]
      %v1022 = vld [vmem:[%s3 + $0x1c0] sm:$0xf]
      %v1023 = vld [vmem:[%s3 + $0x1c4] sm:$0xf]
      %v1024 = vld [vmem:[%s3 + $0x1c8] sm:$0xf]
      %v1025 = vld [vmem:[%s3 + $0x1cc] sm:$0xf]
      %v1026 = vld [vmem:[%s3 + $0x1d0] sm:$0xf]
      %v1027 = vld [vmem:[%s3 + $0x1d4] sm:$0xf]
      %v1028 = vld [vmem:[%s3 + $0x1d8] sm:$0xf]
      %v1029 = vld [vmem:[%s3 + $0x1dc] sm:$0xf]
      %v1030 = vld [vmem:[%s3 + $0x1e0] sm:$0xf]
      %v1031 = vld [vmem:[%s3 + $0x1e4] sm:$0xf]
      %v1032 = vld [vmem:[%s3 + $0x1e8] sm:$0xf]
      %v1033 = vld [vmem:[%s3 + $0x1ec] sm:$0xf]
      %v1034 = vld [vmem:[%s3 + $0x1f0] sm:$0xf]
      %v1035 = vld [vmem:[%s3 + $0x1f4] sm:$0xf]
      %v1036 = vld [vmem:[%s3 + $0x1f8] sm:$0xf]
      %v1037 = vld [vmem:[%s3 + $0x1fc] sm:$0xf]
      %v1038 = vld [vmem:[%s3 + $0x200] sm:$0xf]
      %v1039 = vld [vmem:[%s3 + $0x204] sm:$0xf]
      %v1040 = vld [vmem:[%s3 + $0x208] sm:$0xf]
      %v1041 = vld [vmem:[%s3 + $0x20c] sm:$0xf]
      %v1042 = vld [vmem:[%s3 + $0x210] sm:$0xf]
      %v1043 = vld [vmem:[%s3 + $0x214] sm:$0xf]
      %v1044 = vld [vmem:[%s3 + $0x218] sm:$0xf]
      %v1045 = vld [vmem:[%s3 + $0x21c] sm:$0xf]
      %v1046 = vld [vmem:[%s3 + $0x220] sm:$0xf]
      %v1047 = vld [vmem:[%s3 + $0x224] sm:$0xf]
      %v1048 = vld [vmem:[%s3 + $0x228] sm:$0xf]
      %v1049 = vld [vmem:[%s3 + $0x22c] sm:$0xf]
      %v1050 = vld [vmem:[%s3 + $0x230] sm:$0xf]
      %v1051 = vld [vmem:[%s3 + $0x234] sm:$0xf]
      %v1052 = vld [vmem:[%s3 + $0x238] sm:$0xf]
      %v1053 = vld [vmem:[%s3 + $0x23c] sm:$0xf]
      %v1054 = vld [vmem:[%s4] sm:$0x1]
      %v1056 = vlaneseq
      %v1057 = vshrl.u32 %v1056, 7
      %v1058 = vsub.s32 0, %v1057
      %v1059 = vrot.slane %v1054, %v1058
      %v1205 = vunpack.c.l.b16 %v910
      %v1206 = vunpack.c.l.b16 %v911
      %v1207 = vunpack.c.l.b16 %v912
      %v1208 = vunpack.c.l.b16 %v913
      %v1209 = vunpack.c.l.b16 %v914
      %v1210 = vunpack.c.l.b16 %v915
      %v1211 = vunpack.c.l.b16 %v916
      %v1212 = vunpack.c.l.b16 %v917
      %v1213 = vunpack.c.l.b16 %v918
      %v1214 = vunpack.c.l.b16 %v919
      %v1215 = vunpack.c.l.b16 %v920
      %v1216 = vunpack.c.l.b16 %v921
      %v1217 = vunpack.c.l.b16 %v922
      %v1218 = vunpack.c.l.b16 %v923
      %v1219 = vunpack.c.l.b16 %v924
      %v1220 = vunpack.c.l.b16 %v925
      %v1221 = vunpack.c.l.b16 %v926
      %v1222 = vunpack.c.l.b16 %v927
      %v1223 = vunpack.c.l.b16 %v928
      %v1224 = vunpack.c.l.b16 %v929
      %v1225 = vunpack.c.l.b16 %v930
      %v1226 = vunpack.c.l.b16 %v931
      %v1227 = vunpack.c.l.b16 %v932
      %v1228 = vunpack.c.l.b16 %v933
      %v1229 = vunpack.c.l.b16 %v934
      %v1230 = vunpack.c.l.b16 %v935
      %v1231 = vunpack.c.l.b16 %v936
      %v1232 = vunpack.c.l.b16 %v937
      %v1233 = vunpack.c.l.b16 %v938
      %v1234 = vunpack.c.l.b16 %v939
      %v1235 = vunpack.c.l.b16 %v940
      %v1236 = vunpack.c.l.b16 %v941
      %v1237 = vunpack.c.l.b16 %v942
      %v1238 = vunpack.c.l.b16 %v943
      %v1239 = vunpack.c.l.b16 %v944
      %v1240 = vunpack.c.l.b16 %v945
      %v1241 = vunpack.c.l.b16 %v946
      %v1242 = vunpack.c.l.b16 %v947
      %v1243 = vunpack.c.l.b16 %v948
      %v1244 = vunpack.c.l.b16 %v949
      %v1245 = vunpack.c.l.b16 %v950
      %v1246 = vunpack.c.l.b16 %v951
      %v1247 = vunpack.c.l.b16 %v952
      %v1248 = vunpack.c.l.b16 %v953
      %v1249 = vunpack.c.l.b16 %v954
      %v1250 = vunpack.c.l.b16 %v955
      %v1251 = vunpack.c.l.b16 %v956
      %v1252 = vunpack.c.l.b16 %v957
      %v1253 = vunpack.c.l.b16 %v958
      %v1254 = vunpack.c.l.b16 %v959
      %v1255 = vunpack.c.l.b16 %v960
      %v1256 = vunpack.c.l.b16 %v961
      %v1257 = vunpack.c.l.b16 %v962
      %v1258 = vunpack.c.l.b16 %v963
      %v1259 = vunpack.c.l.b16 %v964
      %v1260 = vunpack.c.l.b16 %v965
      %v1261 = vunpack.c.l.b16 %v966
      %v1262 = vunpack.c.l.b16 %v967
      %v1263 = vunpack.c.l.b16 %v968
      %v1264 = vunpack.c.l.b16 %v969
      %v1265 = vunpack.c.l.b16 %v970
      %v1266 = vunpack.c.l.b16 %v971
      %v1267 = vunpack.c.l.b16 %v972
      %v1268 = vunpack.c.l.b16 %v973
      %v1269 = vunpack.c.l.b16 %v974
      %v1270 = vunpack.c.l.b16 %v975
      %v1271 = vunpack.c.l.b16 %v976
      %v1272 = vunpack.c.l.b16 %v977
      %v1273 = vunpack.c.l.b16 %v978
      %v1274 = vunpack.c.l.b16 %v979
      %v1275 = vunpack.c.l.b16 %v980
      %v1276 = vunpack.c.l.b16 %v981
      %v1277 = vunpack.c.l.b16 %v982
      %v1278 = vunpack.c.l.b16 %v983
      %v1279 = vunpack.c.l.b16 %v984
      %v1280 = vunpack.c.l.b16 %v985
      %v1281 = vunpack.c.l.b16 %v986
      %v1282 = vunpack.c.l.b16 %v987
      %v1283 = vunpack.c.l.b16 %v988
      %v1284 = vunpack.c.l.b16 %v989
      %v1285 = vunpack.c.l.b16 %v990
      %v1286 = vunpack.c.l.b16 %v991
      %v1287 = vunpack.c.l.b16 %v992
      %v1288 = vunpack.c.l.b16 %v993
      %v1289 = vunpack.c.l.b16 %v994
      %v1290 = vunpack.c.l.b16 %v995
      %v1291 = vunpack.c.l.b16 %v996
      %v1292 = vunpack.c.l.b16 %v997
      %v1293 = vunpack.c.l.b16 %v998
      %v1294 = vunpack.c.l.b16 %v999
      %v1295 = vunpack.c.l.b16 %v1000
      %v1296 = vunpack.c.l.b16 %v1001
      %v1297 = vunpack.c.l.b16 %v1002
      %v1298 = vunpack.c.l.b16 %v1003
      %v1299 = vunpack.c.l.b16 %v1004
      %v1300 = vunpack.c.l.b16 %v1005
      %v1301 = vunpack.c.l.b16 %v1006
      %v1302 = vunpack.c.l.b16 %v1007
      %v1303 = vunpack.c.l.b16 %v1008
      %v1304 = vunpack.c.l.b16 %v1009
      %v1305 = vunpack.c.l.b16 %v1010
      %v1306 = vunpack.c.l.b16 %v1011
      %v1307 = vunpack.c.l.b16 %v1012
      %v1308 = vunpack.c.l.b16 %v1013
      %v1309 = vunpack.c.l.b16 %v1014
      %v1310 = vunpack.c.l.b16 %v1015
      %v1311 = vunpack.c.l.b16 %v1016
      %v1312 = vunpack.c.l.b16 %v1017
      %v1313 = vunpack.c.l.b16 %v1018
      %v1314 = vunpack.c.l.b16 %v1019
      %v1315 = vunpack.c.l.b16 %v1020
      %v1316 = vunpack.c.l.b16 %v1021
      %v1317 = vunpack.c.l.b16 %v1022
      %v1318 = vunpack.c.l.b16 %v1023
      %v1319 = vunpack.c.l.b16 %v1024
      %v1320 = vunpack.c.l.b16 %v1025
      %v1321 = vunpack.c.l.b16 %v1026
      %v1322 = vunpack.c.l.b16 %v1027
      %v1323 = vunpack.c.l.b16 %v1028
      %v1324 = vunpack.c.l.b16 %v1029
      %v1325 = vunpack.c.l.b16 %v1030
      %v1326 = vunpack.c.l.b16 %v1031
      %v1327 = vunpack.c.l.b16 %v1032
      %v1328 = vunpack.c.l.b16 %v1033
      %v1329 = vunpack.c.l.b16 %v1034
      %v1330 = vunpack.c.l.b16 %v1035
      %v1331 = vunpack.c.l.b16 %v1036
      %v1332 = vunpack.c.l.b16 %v1037
      %v1333 = vunpack.c.l.b16 %v1038
      %v1334 = vunpack.c.l.b16 %v1039
      %v1335 = vunpack.c.l.b16 %v1040
      %v1336 = vunpack.c.l.b16 %v1041
      %v1337 = vunpack.c.l.b16 %v1042
      %v1338 = vunpack.c.l.b16 %v1043
      %v1339 = vunpack.c.l.b16 %v1044
      %v1340 = vunpack.c.l.b16 %v1045
      %v1341 = vunpack.c.l.b16 %v1046
      %v1342 = vunpack.c.l.b16 %v1047
      %v1343 = vunpack.c.l.b16 %v1048
      %v1344 = vunpack.c.l.b16 %v1049
      %v1345 = vunpack.c.l.b16 %v1050
      %v1346 = vunpack.c.l.b16 %v1051
      %v1347 = vunpack.c.l.b16 %v1052
      %v1348 = vunpack.c.l.b16 %v1053
      %v1349 = vpack.c.b16 %v1206, %v1205
      %v1350 = vpack.c.b16 %v1208, %v1207
      %v1351 = vpack.c.b16 %v1210, %v1209
      %v1352 = vpack.c.b16 %v1212, %v1211
      %v1353 = vpack.c.b16 %v1214, %v1213
      %v1354 = vpack.c.b16 %v1216, %v1215
      %v1355 = vpack.c.b16 %v1218, %v1217
      %v1356 = vpack.c.b16 %v1220, %v1219
      %v1357 = vpack.c.b16 %v1222, %v1221
      %v1358 = vpack.c.b16 %v1224, %v1223
      %v1359 = vpack.c.b16 %v1226, %v1225
      %v1360 = vpack.c.b16 %v1228, %v1227
      %v1361 = vpack.c.b16 %v1230, %v1229
      %v1362 = vpack.c.b16 %v1232, %v1231
      %v1363 = vpack.c.b16 %v1234, %v1233
      %v1364 = vpack.c.b16 %v1236, %v1235
      %v1365 = vpack.c.b16 %v1238, %v1237
      %v1366 = vpack.c.b16 %v1240, %v1239
      %v1367 = vpack.c.b16 %v1242, %v1241
      %v1368 = vpack.c.b16 %v1244, %v1243
      %v1369 = vpack.c.b16 %v1246, %v1245
      %v1370 = vpack.c.b16 %v1248, %v1247
      %v1371 = vpack.c.b16 %v1250, %v1249
      %v1372 = vpack.c.b16 %v1252, %v1251
      %v1373 = vpack.c.b16 %v1254, %v1253
      %v1374 = vpack.c.b16 %v1256, %v1255
      %v1375 = vpack.c.b16 %v1258, %v1257
      %v1376 = vpack.c.b16 %v1260, %v1259
      %v1377 = vpack.c.b16 %v1262, %v1261
      %v1378 = vpack.c.b16 %v1264, %v1263
      %v1379 = vpack.c.b16 %v1266, %v1265
      %v1380 = vpack.c.b16 %v1268, %v1267
      %v1381 = vpack.c.b16 %v1270, %v1269
      %v1382 = vpack.c.b16 %v1272, %v1271
      %v1383 = vpack.c.b16 %v1274, %v1273
      %v1384 = vpack.c.b16 %v1276, %v1275
      %v1385 = vpack.c.b16 %v1278, %v1277
      %v1386 = vpack.c.b16 %v1280, %v1279
      %v1387 = vpack.c.b16 %v1282, %v1281
      %v1388 = vpack.c.b16 %v1284, %v1283
      %v1389 = vpack.c.b16 %v1286, %v1285
      %v1390 = vpack.c.b16 %v1288, %v1287
      %v1391 = vpack.c.b16 %v1290, %v1289
      %v1392 = vpack.c.b16 %v1292, %v1291
      %v1393 = vpack.c.b16 %v1294, %v1293
      %v1394 = vpack.c.b16 %v1296, %v1295
      %v1395 = vpack.c.b16 %v1298, %v1297
      %v1396 = vpack.c.b16 %v1300, %v1299
      %v1397 = vpack.c.b16 %v1302, %v1301
      %v1398 = vpack.c.b16 %v1304, %v1303
      %v1399 = vpack.c.b16 %v1306, %v1305
      %v1400 = vpack.c.b16 %v1308, %v1307
      %v1401 = vpack.c.b16 %v1310, %v1309
      %v1402 = vpack.c.b16 %v1312, %v1311
      %v1403 = vpack.c.b16 %v1314, %v1313
      %v1404 = vpack.c.b16 %v1316, %v1315
      %v1405 = vpack.c.b16 %v1318, %v1317
      %v1406 = vpack.c.b16 %v1320, %v1319
      %v1407 = vpack.c.b16 %v1322, %v1321
      %v1408 = vpack.c.b16 %v1324, %v1323
      %v1409 = vpack.c.b16 %v1326, %v1325
      %v1410 = vpack.c.b16 %v1328, %v1327
      %v1411 = vpack.c.b16 %v1330, %v1329
      %v1412 = vpack.c.b16 %v1332, %v1331
      %v1413 = vpack.c.b16 %v1334, %v1333
      %v1414 = vpack.c.b16 %v1336, %v1335
      %v1415 = vpack.c.b16 %v1338, %v1337
      %v1416 = vpack.c.b16 %v1340, %v1339
      %v1417 = vpack.c.b16 %v1342, %v1341
      %v1418 = vpack.c.b16 %v1344, %v1343
      %v1419 = vpack.c.b16 %v1346, %v1345
      %v1420 = vpack.c.b16 %v1348, %v1347
      %1493 = vmatprep.subr.bf16.mxu0 0
      %1494 = vmatpush1.bf16.msra.mxu0 %v1356
      %1495 = vmatprep.subr.bf16.mxu0 0
      %1496 = vmatpush1.bf16.msra.mxu0 %v1355
      %1497 = vmatprep.subr.bf16.mxu0 0
      %1498 = vmatpush1.bf16.msra.mxu0 %v1354
      %1499 = vmatprep.subr.bf16.mxu0 0
      %1500 = vmatpush1.bf16.msra.mxu0 %v1353
      %1501 = vmatprep.subr.bf16.mxu0 0
      %1502 = vmatpush1.bf16.msra.mxu0 %v1352
      %1503 = vmatprep.subr.bf16.mxu0 0
      %1504 = vmatpush1.bf16.msra.mxu0 %v1351
      %1505 = vmatprep.subr.bf16.mxu0 0
      %1506 = vmatpush1.bf16.msra.mxu0 %v1350
      %1507 = vmatprep.subr.bf16.mxu0 0
      %1508 = vmatpush1.bf16.msra.mxu0 %v1349
      %1509 = vmatprep.subr.bf16.mxu0 0
      %1510 = vmatpush2.bf16.msra.mxu0 %v1364
      %1511 = vmatprep.subr.bf16.mxu0 0
      %1512 = vmatpush2.bf16.msra.mxu0 %v1363
      %1513 = vmatprep.subr.bf16.mxu0 0
      %1514 = vmatpush2.bf16.msra.mxu0 %v1362
      %1515 = vmatprep.subr.bf16.mxu0 0
      %1516 = vmatpush2.bf16.msra.mxu0 %v1361
      %1517 = vmatprep.subr.bf16.mxu0 0
      %1518 = vmatpush2.bf16.msra.mxu0 %v1360
      %1519 = vmatprep.subr.bf16.mxu0 0
      %1520 = vmatpush2.bf16.msra.mxu0 %v1359
      %1521 = vmatprep.subr.bf16.mxu0 0
      %1522 = vmatpush2.bf16.msra.mxu0 %v1358
      %1523 = vmatprep.subr.bf16.mxu0 0
      %1524 = vmatpush2.bf16.msra.mxu0 %v1357
      %1525 = vmatprep.mubr.bf16.mxu0 %v578
      %1526 = vmatmul.mubr.bf16.gmra.mxu0 %v530
      %v1527 = vpop.f32.mrf.mxu0
      %v1528 = vadd.f32 %v1059, %v1527
      %v1529 = vpop.f32.mrf.mxu0
      %v1530 = vpop.f32.mrf.mxu0
      %v1531 = vadd.f32 %v1059, %v1530
      %v1532 = vpop.f32.mrf.mxu0
      %1533 = vmatprep.mubr.bf16.mxu0 %v590
      %1534 = vmatmul.mubr.bf16.gmra.mxu0 %v532
      %v1535 = vpop.f32.mrf.mxu0
      %v1536 = vadd.f32 %v1059, %v1535
      %v1537 = vpop.f32.mrf.mxu0
      %v1538 = vpop.f32.mrf.mxu0
      %v1539 = vadd.f32 %v1059, %v1538
      %v1540 = vpop.f32.mrf.mxu0
      %1541 = vmatprep.mubr.bf16.mxu0 %v602
      %1542 = vmatmul.mubr.bf16.gmra.mxu0 %v534
      %v1543 = vpop.f32.mrf.mxu0
      %v1544 = vadd.f32 %v1059, %v1543
      %v1545 = vpop.f32.mrf.mxu0
      %v1546 = vpop.f32.mrf.mxu0
      %v1547 = vadd.f32 %v1059, %v1546
      %v1548 = vpop.f32.mrf.mxu0
      %1549 = vmatprep.mubr.bf16.mxu0 %v614
      %1550 = vmatmul.mubr.bf16.gmra.mxu0 %v536
      %v1551 = vpop.f32.mrf.mxu0
      %v1552 = vadd.f32 %v1059, %v1551
      %v1553 = vpop.f32.mrf.mxu0
      %v1554 = vpop.f32.mrf.mxu0
      %v1555 = vadd.f32 %v1059, %v1554
      %v1556 = vpop.f32.mrf.mxu0
      %1557 = vmatprep.mubr.bf16.mxu0 %v626
      %1558 = vmatmul.mubr.bf16.gmra.mxu0 %v538
      %v1559 = vpop.f32.mrf.mxu0
      %v1560 = vadd.f32 %v1059, %v1559
      %v1561 = vpop.f32.mrf.mxu0
      %v1562 = vpop.f32.mrf.mxu0
      %v1563 = vadd.f32 %v1059, %v1562
      %v1564 = vpop.f32.mrf.mxu0
      %1565 = vmatprep.mubr.bf16.mxu0 %v638
      %1566 = vmatmul.mubr.bf16.gmra.mxu0 %v540
      %v1567 = vpop.f32.mrf.mxu0
      %v1568 = vadd.f32 %v1059, %v1567
      %v1569 = vpop.f32.mrf.mxu0
      %v1570 = vpop.f32.mrf.mxu0
      %v1571 = vadd.f32 %v1059, %v1570
      %v1572 = vpop.f32.mrf.mxu0
      %1573 = vmatprep.mubr.bf16.mxu0 %v650
      %1574 = vmatmul.mubr.bf16.gmra.mxu0 %v542
      %v1575 = vpop.f32.mrf.mxu0
      %v1576 = vadd.f32 %v1059, %v1575
      %v1577 = vpop.f32.mrf.mxu0
      %v1578 = vpop.f32.mrf.mxu0
      %v1579 = vadd.f32 %v1059, %v1578
      %v1580 = vpop.f32.mrf.mxu0
      %1581 = vmatprep.mubr.bf16.mxu0 %v662
      %1582 = vmatmul.mubr.bf16.gmra.mxu0 %v544
      %v1583 = vpop.f32.mrf.mxu0
      %v1584 = vadd.f32 %v1059, %v1583
      %v1585 = vpop.f32.mrf.mxu0
      %v1586 = vpop.f32.mrf.mxu0
      %v1587 = vadd.f32 %v1059, %v1586
      %v1588 = vpop.f32.mrf.mxu0
      %1589 = vmatprep.mubr.bf16.mxu0 %v674
      %1590 = vmatmul.mubr.bf16.gmra.mxu0 %v546
      %v1591 = vpop.f32.mrf.mxu0
      %v1592 = vadd.f32 %v1059, %v1591
      %v1593 = vpop.f32.mrf.mxu0
      %v1594 = vpop.f32.mrf.mxu0
      %v1595 = vadd.f32 %v1059, %v1594
      %v1596 = vpop.f32.mrf.mxu0
      %1597 = vmatprep.mubr.bf16.mxu0 %v686
      %1598 = vmatmul.mubr.bf16.gmra.mxu0 %v548
      %v1599 = vpop.f32.mrf.mxu0
      %v1600 = vadd.f32 %v1059, %v1599
      %v1601 = vpop.f32.mrf.mxu0
      %v1602 = vpop.f32.mrf.mxu0
      %v1603 = vadd.f32 %v1059, %v1602
      %v1604 = vpop.f32.mrf.mxu0
      %1605 = vmatprep.mubr.bf16.mxu0 %v698
      %1606 = vmatmul.mubr.bf16.gmra.mxu0 %v550
      %v1607 = vpop.f32.mrf.mxu0
      %v1608 = vadd.f32 %v1059, %v1607
      %v1609 = vpop.f32.mrf.mxu0
      %v1610 = vpop.f32.mrf.mxu0
      %v1611 = vadd.f32 %v1059, %v1610
      %v1612 = vpop.f32.mrf.mxu0
      %1613 = vmatprep.mubr.bf16.mxu0 %v710
      %1614 = vmatmul.mubr.bf16.gmra.mxu0 %v552
      %v1615 = vpop.f32.mrf.mxu0
      %v1616 = vadd.f32 %v1059, %v1615
      %v1617 = vpop.f32.mrf.mxu0
      %v1618 = vpop.f32.mrf.mxu0
      %v1619 = vadd.f32 %v1059, %v1618
      %v1620 = vpop.f32.mrf.mxu0
      %1621 = vmatprep.mubr.bf16.mxu0 %v722
      %1622 = vmatmul.mubr.bf16.gmra.mxu0 %v554
      %v1623 = vpop.f32.mrf.mxu0
      %v1624 = vadd.f32 %v1059, %v1623
      %v1625 = vpop.f32.mrf.mxu0
      %v1626 = vpop.f32.mrf.mxu0
      %v1627 = vadd.f32 %v1059, %v1626
      %v1628 = vpop.f32.mrf.mxu0
      %1629 = vmatprep.mubr.bf16.mxu0 %v734
      %1630 = vmatmul.mubr.bf16.gmra.mxu0 %v556
      %v1631 = vpop.f32.mrf.mxu0
      %v1632 = vadd.f32 %v1059, %v1631
      %v1633 = vpop.f32.mrf.mxu0
      %v1634 = vpop.f32.mrf.mxu0
      %v1635 = vadd.f32 %v1059, %v1634
      %v1636 = vpop.f32.mrf.mxu0
      %1637 = vmatprep.mubr.bf16.mxu0 %v746
      %1638 = vmatmul.mubr.bf16.gmra.mxu0 %v558
      %v1639 = vpop.f32.mrf.mxu0
      %v1640 = vadd.f32 %v1059, %v1639
      %v1641 = vpop.f32.mrf.mxu0
      %v1642 = vpop.f32.mrf.mxu0
      %v1643 = vadd.f32 %v1059, %v1642
      %v1644 = vpop.f32.mrf.mxu0
      %1645 = vmatprep.mubr.bf16.mxu0 %v758
      %1646 = vmatmul.mubr.bf16.gmra.mxu0 %v560
      %v1647 = vpop.f32.mrf.mxu0
      %v1648 = vadd.f32 %v1059, %v1647
      %v1649 = vpop.f32.mrf.mxu0
      %v1650 = vpop.f32.mrf.mxu0
      %v1651 = vadd.f32 %v1059, %v1650
      %v1652 = vpop.f32.mrf.mxu0
      %1653 = vdwg.mxu0
      %1654 = vmatprep.subr.bf16.mxu0 0
      %1655 = vmatpush1.bf16.msra.mxu0 %v1372
      %1656 = vmatprep.subr.bf16.mxu0 0
      %1657 = vmatpush1.bf16.msra.mxu0 %v1371
      %1658 = vmatprep.subr.bf16.mxu0 0
      %1659 = vmatpush1.bf16.msra.mxu0 %v1370
      %1660 = vmatprep.subr.bf16.mxu0 0
      %1661 = vmatpush1.bf16.msra.mxu0 %v1369
      %1662 = vmatprep.subr.bf16.mxu0 0
      %1663 = vmatpush1.bf16.msra.mxu0 %v1368
      %1664 = vmatprep.subr.bf16.mxu0 0
      %1665 = vmatpush1.bf16.msra.mxu0 %v1367
      %1666 = vmatprep.subr.bf16.mxu0 0
      %1667 = vmatpush1.bf16.msra.mxu0 %v1366
      %1668 = vmatprep.subr.bf16.mxu0 0
      %1669 = vmatpush1.bf16.msra.mxu0 %v1365
      %1670 = vmatprep.subr.bf16.mxu0 0
      %1671 = vmatpush2.bf16.msra.mxu0 %v1380
      %1672 = vmatprep.subr.bf16.mxu0 0
      %1673 = vmatpush2.bf16.msra.mxu0 %v1379
      %1674 = vmatprep.subr.bf16.mxu0 0
      %1675 = vmatpush2.bf16.msra.mxu0 %v1378
      %1676 = vmatprep.subr.bf16.mxu0 0
      %1677 = vmatpush2.bf16.msra.mxu0 %v1377
      %1678 = vmatprep.subr.bf16.mxu0 0
      %1679 = vmatpush2.bf16.msra.mxu0 %v1376
      %1680 = vmatprep.subr.bf16.mxu0 0
      %1681 = vmatpush2.bf16.msra.mxu0 %v1375
      %1682 = vmatprep.subr.bf16.mxu0 0
      %1683 = vmatpush2.bf16.msra.mxu0 %v1374
      %1684 = vmatprep.subr.bf16.mxu0 0
      %1685 = vmatpush2.bf16.msra.mxu0 %v1373
      %1686 = vmatprep.mubr.bf16.mxu0 %v532
      %1687 = vmatmul.mubr.bf16.gmra.mxu0 %v810
      %v1688 = vpop.f32.mrf.mxu0
      %v1689 = vadd.f32 %v1528, %v1688
      %v1690 = vpop.f32.mrf.mxu0
      %v1691 = vpop.f32.mrf.mxu0
      %v1692 = vadd.f32 %v1531, %v1691
      %v1693 = vpop.f32.mrf.mxu0
      %1694 = vmatprep.mubr.bf16.mxu0 %v534
      %1695 = vmatmul.mubr.bf16.gmra.mxu0 %v813
      %v1696 = vpop.f32.mrf.mxu0
      %v1697 = vadd.f32 %v1536, %v1696
      %v1698 = vpop.f32.mrf.mxu0
      %v1699 = vpop.f32.mrf.mxu0
      %v1700 = vadd.f32 %v1539, %v1699
      %v1701 = vpop.f32.mrf.mxu0
      %1702 = vmatprep.mubr.bf16.mxu0 %v536
      %1703 = vmatmul.mubr.bf16.gmra.mxu0 %v816
      %v1704 = vpop.f32.mrf.mxu0
      %v1705 = vadd.f32 %v1544, %v1704
      %v1706 = vpop.f32.mrf.mxu0
      %v1707 = vpop.f32.mrf.mxu0
      %v1708 = vadd.f32 %v1547, %v1707
      %v1709 = vpop.f32.mrf.mxu0
      %1710 = vmatprep.mubr.bf16.mxu0 %v538
      %1711 = vmatmul.mubr.bf16.gmra.mxu0 %v819
      %v1712 = vpop.f32.mrf.mxu0
      %v1713 = vadd.f32 %v1552, %v1712
      %v1714 = vpop.f32.mrf.mxu0
      %v1715 = vpop.f32.mrf.mxu0
      %v1716 = vadd.f32 %v1555, %v1715
      %v1717 = vpop.f32.mrf.mxu0
      %1718 = vmatprep.mubr.bf16.mxu0 %v540
      %1719 = vmatmul.mubr.bf16.gmra.mxu0 %v822
      %v1720 = vpop.f32.mrf.mxu0
      %v1721 = vadd.f32 %v1560, %v1720
      %v1722 = vpop.f32.mrf.mxu0
      %v1723 = vpop.f32.mrf.mxu0
      %v1724 = vadd.f32 %v1563, %v1723
      %v1725 = vpop.f32.mrf.mxu0
      %1726 = vmatprep.mubr.bf16.mxu0 %v542
      %1727 = vmatmul.mubr.bf16.gmra.mxu0 %v825
      %v1728 = vpop.f32.mrf.mxu0
      %v1729 = vadd.f32 %v1568, %v1728
      %v1730 = vpop.f32.mrf.mxu0
      %v1731 = vpop.f32.mrf.mxu0
      %v1732 = vadd.f32 %v1571, %v1731
      %v1733 = vpop.f32.mrf.mxu0
      %1734 = vmatprep.mubr.bf16.mxu0 %v544
      %1735 = vmatmul.mubr.bf16.gmra.mxu0 %v828
      %v1736 = vpop.f32.mrf.mxu0
      %v1737 = vadd.f32 %v1576, %v1736
      %v1738 = vpop.f32.mrf.mxu0
      %v1739 = vpop.f32.mrf.mxu0
      %v1740 = vadd.f32 %v1579, %v1739
      %v1741 = vpop.f32.mrf.mxu0
      %1742 = vmatprep.mubr.bf16.mxu0 %v546
      %1743 = vmatmul.mubr.bf16.gmra.mxu0 %v831
      %v1744 = vpop.f32.mrf.mxu0
      %v1745 = vadd.f32 %v1584, %v1744
      %v1746 = vpop.f32.mrf.mxu0
      %v1747 = vpop.f32.mrf.mxu0
      %v1748 = vadd.f32 %v1587, %v1747
      %v1749 = vpop.f32.mrf.mxu0
      %1750 = vmatprep.mubr.bf16.mxu0 %v548
      %1751 = vmatmul.mubr.bf16.gmra.mxu0 %v834
      %v1752 = vpop.f32.mrf.mxu0
      %v1753 = vadd.f32 %v1592, %v1752
      %v1754 = vpop.f32.mrf.mxu0
      %v1755 = vpop.f32.mrf.mxu0
      %v1756 = vadd.f32 %v1595, %v1755
      %v1757 = vpop.f32.mrf.mxu0
      %1758 = vmatprep.mubr.bf16.mxu0 %v550
      %1759 = vmatmul.mubr.bf16.gmra.mxu0 %v837
      %v1760 = vpop.f32.mrf.mxu0
      %v1761 = vadd.f32 %v1600, %v1760
      %v1762 = vpop.f32.mrf.mxu0
      %v1763 = vpop.f32.mrf.mxu0
      %v1764 = vadd.f32 %v1603, %v1763
      %v1765 = vpop.f32.mrf.mxu0
      %1766 = vmatprep.mubr.bf16.mxu0 %v552
      %1767 = vmatmul.mubr.bf16.gmra.mxu0 %v840
      %v1768 = vpop.f32.mrf.mxu0
      %v1769 = vadd.f32 %v1608, %v1768
      %v1770 = vpop.f32.mrf.mxu0
      %v1771 = vpop.f32.mrf.mxu0
      %v1772 = vadd.f32 %v1611, %v1771
      %v1773 = vpop.f32.mrf.mxu0
      %1774 = vmatprep.mubr.bf16.mxu0 %v554
      %1775 = vmatmul.mubr.bf16.gmra.mxu0 %v843
      %v1776 = vpop.f32.mrf.mxu0
      %v1777 = vadd.f32 %v1616, %v1776
      %v1778 = vpop.f32.mrf.mxu0
      %v1779 = vpop.f32.mrf.mxu0
      %v1780 = vadd.f32 %v1619, %v1779
      %v1781 = vpop.f32.mrf.mxu0
      %1782 = vmatprep.mubr.bf16.mxu0 %v556
      %1783 = vmatmul.mubr.bf16.gmra.mxu0 %v846
      %v1784 = vpop.f32.mrf.mxu0
      %v1785 = vadd.f32 %v1624, %v1784
      %v1786 = vpop.f32.mrf.mxu0
      %v1787 = vpop.f32.mrf.mxu0
      %v1788 = vadd.f32 %v1627, %v1787
      %v1789 = vpop.f32.mrf.mxu0
      %1790 = vmatprep.mubr.bf16.mxu0 %v558
      %1791 = vmatmul.mubr.bf16.gmra.mxu0 %v849
      %v1792 = vpop.f32.mrf.mxu0
      %v1793 = vadd.f32 %v1632, %v1792
      %v1794 = vpop.f32.mrf.mxu0
      %v1795 = vpop.f32.mrf.mxu0
      %v1796 = vadd.f32 %v1635, %v1795
      %v1797 = vpop.f32.mrf.mxu0
      %1798 = vmatprep.mubr.bf16.mxu0 %v560
      %1799 = vmatmul.mubr.bf16.gmra.mxu0 %v852
      %v1800 = vpop.f32.mrf.mxu0
      %v1801 = vadd.f32 %v1640, %v1800
      %v1802 = vpop.f32.mrf.mxu0
      %v1803 = vpop.f32.mrf.mxu0
      %v1804 = vadd.f32 %v1643, %v1803
      %v1805 = vpop.f32.mrf.mxu0
      %1806 = vmatprep.mubr.bf16.mxu0 %v562
      %1807 = vmatmul.mubr.bf16.gmra.mxu0 %v855
      %v1808 = vpop.f32.mrf.mxu0
      %v1809 = vadd.f32 %v1648, %v1808
      %v1810 = vpop.f32.mrf.mxu0
      %v1811 = vpop.f32.mrf.mxu0
      %v1812 = vadd.f32 %v1651, %v1811
      %v1813 = vpop.f32.mrf.mxu0
      %1814 = vdwg.mxu0
      %1815 = vmatprep.subr.bf16.mxu0 0
      %1816 = vmatpush1.bf16.msra.mxu0 %v1388
      %1817 = vmatprep.subr.bf16.mxu0 0
      %1818 = vmatpush1.bf16.msra.mxu0 %v1387
      %1819 = vmatprep.subr.bf16.mxu0 0
      %1820 = vmatpush1.bf16.msra.mxu0 %v1386
      %1821 = vmatprep.subr.bf16.mxu0 0
      %1822 = vmatpush1.bf16.msra.mxu0 %v1385
      %1823 = vmatprep.subr.bf16.mxu0 0
      %1824 = vmatpush1.bf16.msra.mxu0 %v1384
      %1825 = vmatprep.subr.bf16.mxu0 0
      %1826 = vmatpush1.bf16.msra.mxu0 %v1383
      %1827 = vmatprep.subr.bf16.mxu0 0
      %1828 = vmatpush1.bf16.msra.mxu0 %v1382
      %1829 = vmatprep.subr.bf16.mxu0 0
      %1830 = vmatpush1.bf16.msra.mxu0 %v1381
      %1831 = vmatprep.subr.bf16.mxu0 0
      %1832 = vmatpush2.bf16.msra.mxu0 %v1396
      %1833 = vmatprep.subr.bf16.mxu0 0
      %1834 = vmatpush2.bf16.msra.mxu0 %v1395
      %1835 = vmatprep.subr.bf16.mxu0 0
      %1836 = vmatpush2.bf16.msra.mxu0 %v1394
      %1837 = vmatprep.subr.bf16.mxu0 0
      %1838 = vmatpush2.bf16.msra.mxu0 %v1393
      %1839 = vmatprep.subr.bf16.mxu0 0
      %1840 = vmatpush2.bf16.msra.mxu0 %v1392
      %1841 = vmatprep.subr.bf16.mxu0 0
      %1842 = vmatpush2.bf16.msra.mxu0 %v1391
      %1843 = vmatprep.subr.bf16.mxu0 0
      %1844 = vmatpush2.bf16.msra.mxu0 %v1390
      %1845 = vmatprep.subr.bf16.mxu0 0
      %1846 = vmatpush2.bf16.msra.mxu0 %v1389
      %1847 = vmatprep.mubr.bf16.mxu0 %v813
      %1848 = vmatmul.mubr.bf16.gmra.mxu0 %v590
      %v1849 = vpop.f32.mrf.mxu0
      %v1850 = vadd.f32 %v1689, %v1849
      %v1851 = vpop.f32.mrf.mxu0
      %v1852 = vpop.f32.mrf.mxu0
      %v1853 = vadd.f32 %v1692, %v1852
      %v1854 = vpop.f32.mrf.mxu0
      %1855 = vmatprep.mubr.bf16.mxu0 %v816
      %1856 = vmatmul.mubr.bf16.gmra.mxu0 %v602
      %v1857 = vpop.f32.mrf.mxu0
      %v1858 = vadd.f32 %v1697, %v1857
      %v1859 = vpop.f32.mrf.mxu0
      %v1860 = vpop.f32.mrf.mxu0
      %v1861 = vadd.f32 %v1700, %v1860
      %v1862 = vpop.f32.mrf.mxu0
      %1863 = vmatprep.mubr.bf16.mxu0 %v819
      %1864 = vmatmul.mubr.bf16.gmra.mxu0 %v614
      %v1865 = vpop.f32.mrf.mxu0
      %v1866 = vadd.f32 %v1705, %v1865
      %v1867 = vpop.f32.mrf.mxu0
      %v1868 = vpop.f32.mrf.mxu0
      %v1869 = vadd.f32 %v1708, %v1868
      %v1870 = vpop.f32.mrf.mxu0
      %1871 = vmatprep.mubr.bf16.mxu0 %v822
      %1872 = vmatmul.mubr.bf16.gmra.mxu0 %v626
      %v1873 = vpop.f32.mrf.mxu0
      %v1874 = vadd.f32 %v1713, %v1873
      %v1875 = vpop.f32.mrf.mxu0
      %v1876 = vpop.f32.mrf.mxu0
      %v1877 = vadd.f32 %v1716, %v1876
      %v1878 = vpop.f32.mrf.mxu0
      %1879 = vmatprep.mubr.bf16.mxu0 %v825
      %1880 = vmatmul.mubr.bf16.gmra.mxu0 %v638
      %v1881 = vpop.f32.mrf.mxu0
      %v1882 = vadd.f32 %v1721, %v1881
      %v1883 = vpop.f32.mrf.mxu0
      %v1884 = vpop.f32.mrf.mxu0
      %v1885 = vadd.f32 %v1724, %v1884
      %v1886 = vpop.f32.mrf.mxu0
      %1887 = vmatprep.mubr.bf16.mxu0 %v828
      %1888 = vmatmul.mubr.bf16.gmra.mxu0 %v650
      %v1889 = vpop.f32.mrf.mxu0
      %v1890 = vadd.f32 %v1729, %v1889
      %v1891 = vpop.f32.mrf.mxu0
      %v1892 = vpop.f32.mrf.mxu0
      %v1893 = vadd.f32 %v1732, %v1892
      %v1894 = vpop.f32.mrf.mxu0
      %1895 = vmatprep.mubr.bf16.mxu0 %v831
      %1896 = vmatmul.mubr.bf16.gmra.mxu0 %v662
      %v1897 = vpop.f32.mrf.mxu0
      %v1898 = vadd.f32 %v1737, %v1897
      %v1899 = vpop.f32.mrf.mxu0
      %v1900 = vpop.f32.mrf.mxu0
      %v1901 = vadd.f32 %v1740, %v1900
      %v1902 = vpop.f32.mrf.mxu0
      %1903 = vmatprep.mubr.bf16.mxu0 %v834
      %1904 = vmatmul.mubr.bf16.gmra.mxu0 %v674
      %v1905 = vpop.f32.mrf.mxu0
      %v1906 = vadd.f32 %v1745, %v1905
      %v1907 = vpop.f32.mrf.mxu0
      %v1908 = vpop.f32.mrf.mxu0
      %v1909 = vadd.f32 %v1748, %v1908
      %v1910 = vpop.f32.mrf.mxu0
      %1911 = vmatprep.mubr.bf16.mxu0 %v837
      %1912 = vmatmul.mubr.bf16.gmra.mxu0 %v686
      %v1913 = vpop.f32.mrf.mxu0
      %v1914 = vadd.f32 %v1753, %v1913
      %v1915 = vpop.f32.mrf.mxu0
      %v1916 = vpop.f32.mrf.mxu0
      %v1917 = vadd.f32 %v1756, %v1916
      %v1918 = vpop.f32.mrf.mxu0
      %1919 = vmatprep.mubr.bf16.mxu0 %v840
      %1920 = vmatmul.mubr.bf16.gmra.mxu0 %v698
      %v1921 = vpop.f32.mrf.mxu0
      %v1922 = vadd.f32 %v1761, %v1921
      %v1923 = vpop.f32.mrf.mxu0
      %v1924 = vpop.f32.mrf.mxu0
      %v1925 = vadd.f32 %v1764, %v1924
      %v1926 = vpop.f32.mrf.mxu0
      %1927 = vmatprep.mubr.bf16.mxu0 %v843
      %1928 = vmatmul.mubr.bf16.gmra.mxu0 %v710
      %v1929 = vpop.f32.mrf.mxu0
      %v1930 = vadd.f32 %v1769, %v1929
      %v1931 = vpop.f32.mrf.mxu0
      %v1932 = vpop.f32.mrf.mxu0
      %v1933 = vadd.f32 %v1772, %v1932
      %v1934 = vpop.f32.mrf.mxu0
      %1935 = vmatprep.mubr.bf16.mxu0 %v846
      %1936 = vmatmul.mubr.bf16.gmra.mxu0 %v722
      %v1937 = vpop.f32.mrf.mxu0
      %v1938 = vadd.f32 %v1777, %v1937
      %v1939 = vpop.f32.mrf.mxu0
      %v1940 = vpop.f32.mrf.mxu0
      %v1941 = vadd.f32 %v1780, %v1940
      %v1942 = vpop.f32.mrf.mxu0
      %1943 = vmatprep.mubr.bf16.mxu0 %v849
      %1944 = vmatmul.mubr.bf16.gmra.mxu0 %v734
      %v1945 = vpop.f32.mrf.mxu0
      %v1946 = vadd.f32 %v1785, %v1945
      %v1947 = vpop.f32.mrf.mxu0
      %v1948 = vpop.f32.mrf.mxu0
      %v1949 = vadd.f32 %v1788, %v1948
      %v1950 = vpop.f32.mrf.mxu0
      %1951 = vmatprep.mubr.bf16.mxu0 %v852
      %1952 = vmatmul.mubr.bf16.gmra.mxu0 %v746
      %v1953 = vpop.f32.mrf.mxu0
      %v1954 = vadd.f32 %v1793, %v1953
      %v1955 = vpop.f32.mrf.mxu0
      %v1956 = vpop.f32.mrf.mxu0
      %v1957 = vadd.f32 %v1796, %v1956
      %v1958 = vpop.f32.mrf.mxu0
      %1959 = vmatprep.mubr.bf16.mxu0 %v855
      %1960 = vmatmul.mubr.bf16.gmra.mxu0 %v758
      %v1961 = vpop.f32.mrf.mxu0
      %v1962 = vadd.f32 %v1801, %v1961
      %v1963 = vpop.f32.mrf.mxu0
      %v1964 = vpop.f32.mrf.mxu0
      %v1965 = vadd.f32 %v1804, %v1964
      %v1966 = vpop.f32.mrf.mxu0
      %1967 = vmatprep.mubr.bf16.mxu0 %v889
      %1968 = vmatmul.mubr.bf16.gmra.mxu0 %v883
      %v1969 = vpop.f32.mrf.mxu0
      %v1970 = vadd.f32 %v1809, %v1969
      %v1971 = vpop.f32.mrf.mxu0
      %v1972 = vpop.f32.mrf.mxu0
      %v1973 = vadd.f32 %v1812, %v1972
      %v1974 = vpop.f32.mrf.mxu0
      %1975 = vdwg.mxu0
      %1976 = vmatprep.subr.bf16.mxu0 0
      %1977 = vmatpush1.bf16.msra.mxu0 %v1404
      %1978 = vmatprep.subr.bf16.mxu0 0
      %1979 = vmatpush1.bf16.msra.mxu0 %v1403
      %1980 = vmatprep.subr.bf16.mxu0 0
      %1981 = vmatpush1.bf16.msra.mxu0 %v1402
      %1982 = vmatprep.subr.bf16.mxu0 0
      %1983 = vmatpush1.bf16.msra.mxu0 %v1401
      %1984 = vmatprep.subr.bf16.mxu0 0
      %1985 = vmatpush1.bf16.msra.mxu0 %v1400
      %1986 = vmatprep.subr.bf16.mxu0 0
      %1987 = vmatpush1.bf16.msra.mxu0 %v1399
      %1988 = vmatprep.subr.bf16.mxu0 0
      %1989 = vmatpush1.bf16.msra.mxu0 %v1398
      %1990 = vmatprep.subr.bf16.mxu0 0
      %1991 = vmatpush1.bf16.msra.mxu0 %v1397
      %1992 = vmatprep.subr.bf16.mxu0 0
      %1993 = vmatpush2.bf16.msra.mxu0 %v1412
      %1994 = vmatprep.subr.bf16.mxu0 0
      %1995 = vmatpush2.bf16.msra.mxu0 %v1411
      %1996 = vmatprep.subr.bf16.mxu0 0
      %1997 = vmatpush2.bf16.msra.mxu0 %v1410
      %1998 = vmatprep.subr.bf16.mxu0 0
      %1999 = vmatpush2.bf16.msra.mxu0 %v1409
      %2000 = vmatprep.subr.bf16.mxu0 0
      %2001 = vmatpush2.bf16.msra.mxu0 %v1408
      %2002 = vmatprep.subr.bf16.mxu0 0
      %2003 = vmatpush2.bf16.msra.mxu0 %v1407
      %2004 = vmatprep.subr.bf16.mxu0 0
      %2005 = vmatpush2.bf16.msra.mxu0 %v1406
      %2006 = vmatprep.subr.bf16.mxu0 0
      %2007 = vmatpush2.bf16.msra.mxu0 %v1405
      %2008 = vmatprep.mubr.bf16.mxu0 %v602
      %2009 = vmatmul.mubr.bf16.gmra.mxu0 %v534
      %v2010 = vpop.f32.mrf.mxu0
      %v2011 = vadd.f32 %v1850, %v2010
      %v2012 = vpop.f32.mrf.mxu0
      %v2013 = vpop.f32.mrf.mxu0
      %v2014 = vadd.f32 %v1853, %v2013
      %v2015 = vpop.f32.mrf.mxu0
      %2016 = vmatprep.mubr.bf16.mxu0 %v614
      %2017 = vmatmul.mubr.bf16.gmra.mxu0 %v536
      %v2018 = vpop.f32.mrf.mxu0
      %v2019 = vadd.f32 %v1858, %v2018
      %v2020 = vpop.f32.mrf.mxu0
      %v2021 = vpop.f32.mrf.mxu0
      %v2022 = vadd.f32 %v1861, %v2021
      %v2023 = vpop.f32.mrf.mxu0
      %2024 = vmatprep.mubr.bf16.mxu0 %v626
      %2025 = vmatmul.mubr.bf16.gmra.mxu0 %v538
      %v2026 = vpop.f32.mrf.mxu0
      %v2027 = vadd.f32 %v1866, %v2026
      %v2028 = vpop.f32.mrf.mxu0
      %v2029 = vpop.f32.mrf.mxu0
      %v2030 = vadd.f32 %v1869, %v2029
      %v2031 = vpop.f32.mrf.mxu0
      %2032 = vmatprep.mubr.bf16.mxu0 %v638
      %2033 = vmatmul.mubr.bf16.gmra.mxu0 %v540
      %v2034 = vpop.f32.mrf.mxu0
      %v2035 = vadd.f32 %v1874, %v2034
      %v2036 = vpop.f32.mrf.mxu0
      %v2037 = vpop.f32.mrf.mxu0
      %v2038 = vadd.f32 %v1877, %v2037
      %v2039 = vpop.f32.mrf.mxu0
      %2040 = vmatprep.mubr.bf16.mxu0 %v650
      %2041 = vmatmul.mubr.bf16.gmra.mxu0 %v542
      %v2042 = vpop.f32.mrf.mxu0
      %v2043 = vadd.f32 %v1882, %v2042
      %v2044 = vpop.f32.mrf.mxu0
      %v2045 = vpop.f32.mrf.mxu0
      %v2046 = vadd.f32 %v1885, %v2045
      %v2047 = vpop.f32.mrf.mxu0
      %2048 = vmatprep.mubr.bf16.mxu0 %v662
      %2049 = vmatmul.mubr.bf16.gmra.mxu0 %v544
      %v2050 = vpop.f32.mrf.mxu0
      %v2051 = vadd.f32 %v1890, %v2050
      %v2052 = vpop.f32.mrf.mxu0
      %v2053 = vpop.f32.mrf.mxu0
      %v2054 = vadd.f32 %v1893, %v2053
      %v2055 = vpop.f32.mrf.mxu0
      %2056 = vmatprep.mubr.bf16.mxu0 %v674
      %2057 = vmatmul.mubr.bf16.gmra.mxu0 %v546
      %v2058 = vpop.f32.mrf.mxu0
      %v2059 = vadd.f32 %v1898, %v2058
      %v2060 = vpop.f32.mrf.mxu0
      %v2061 = vpop.f32.mrf.mxu0
      %v2062 = vadd.f32 %v1901, %v2061
      %v2063 = vpop.f32.mrf.mxu0
      %2064 = vmatprep.mubr.bf16.mxu0 %v686
      %2065 = vmatmul.mubr.bf16.gmra.mxu0 %v548
      %v2066 = vpop.f32.mrf.mxu0
      %v2067 = vadd.f32 %v1906, %v2066
      %v2068 = vpop.f32.mrf.mxu0
      %v2069 = vpop.f32.mrf.mxu0
      %v2070 = vadd.f32 %v1909, %v2069
      %v2071 = vpop.f32.mrf.mxu0
      %2072 = vmatprep.mubr.bf16.mxu0 %v698
      %2073 = vmatmul.mubr.bf16.gmra.mxu0 %v550
      %v2074 = vpop.f32.mrf.mxu0
      %v2075 = vadd.f32 %v1914, %v2074
      %v2076 = vpop.f32.mrf.mxu0
      %v2077 = vpop.f32.mrf.mxu0
      %v2078 = vadd.f32 %v1917, %v2077
      %v2079 = vpop.f32.mrf.mxu0
      %2080 = vmatprep.mubr.bf16.mxu0 %v710
      %2081 = vmatmul.mubr.bf16.gmra.mxu0 %v552
      %v2082 = vpop.f32.mrf.mxu0
      %v2083 = vadd.f32 %v1922, %v2082
      %v2084 = vpop.f32.mrf.mxu0
      %v2085 = vpop.f32.mrf.mxu0
      %v2086 = vadd.f32 %v1925, %v2085
      %v2087 = vpop.f32.mrf.mxu0
      %2088 = vmatprep.mubr.bf16.mxu0 %v722
      %2089 = vmatmul.mubr.bf16.gmra.mxu0 %v554
      %v2090 = vpop.f32.mrf.mxu0
      %v2091 = vadd.f32 %v1930, %v2090
      %v2092 = vpop.f32.mrf.mxu0
      %v2093 = vpop.f32.mrf.mxu0
      %v2094 = vadd.f32 %v1933, %v2093
      %v2095 = vpop.f32.mrf.mxu0
      %2096 = vmatprep.mubr.bf16.mxu0 %v734
      %2097 = vmatmul.mubr.bf16.gmra.mxu0 %v556
      %v2098 = vpop.f32.mrf.mxu0
      %v2099 = vadd.f32 %v1938, %v2098
      %v2100 = vpop.f32.mrf.mxu0
      %v2101 = vpop.f32.mrf.mxu0
      %v2102 = vadd.f32 %v1941, %v2101
      %v2103 = vpop.f32.mrf.mxu0
      %2104 = vmatprep.mubr.bf16.mxu0 %v746
      %2105 = vmatmul.mubr.bf16.gmra.mxu0 %v558
      %v2106 = vpop.f32.mrf.mxu0
      %v2107 = vadd.f32 %v1946, %v2106
      %v2108 = vpop.f32.mrf.mxu0
      %v2109 = vpop.f32.mrf.mxu0
      %v2110 = vadd.f32 %v1949, %v2109
      %v2111 = vpop.f32.mrf.mxu0
      %2112 = vmatprep.mubr.bf16.mxu0 %v758
      %2113 = vmatmul.mubr.bf16.gmra.mxu0 %v560
      %v2114 = vpop.f32.mrf.mxu0
      %v2115 = vadd.f32 %v1954, %v2114
      %v2116 = vpop.f32.mrf.mxu0
      %v2117 = vpop.f32.mrf.mxu0
      %v2118 = vadd.f32 %v1957, %v2117
      %v2119 = vpop.f32.mrf.mxu0
      %2120 = vmatprep.mubr.bf16.mxu0 %v883
      %2121 = vmatmul.mubr.bf16.gmra.mxu0 %v562
      %v2122 = vpop.f32.mrf.mxu0
      %v2123 = vadd.f32 %v1962, %v2122
      %v2124 = vpop.f32.mrf.mxu0
      %v2125 = vpop.f32.mrf.mxu0
      %v2126 = vadd.f32 %v1965, %v2125
      %v2127 = vpop.f32.mrf.mxu0
      %2128 = vmatprep.mubr.bf16.mxu0 %v902
      %2129 = vmatmul.mubr.bf16.gmra.mxu0 %v564
      %v2130 = vpop.f32.mrf.mxu0
      %v2131 = vadd.f32 %v1970, %v2130
      %v2132 = vpop.f32.mrf.mxu0
      %v2133 = vpop.f32.mrf.mxu0
      %v2134 = vadd.f32 %v1973, %v2133
      %v2135 = vpop.f32.mrf.mxu0
      %2136 = vdwg.mxu0
      %2137 = vmatprep.subr.bf16.mxu0 0
      %2138 = vmatpush1.bf16.msra.mxu0 %v1420
      %2139 = vmatprep.subr.bf16.mxu0 0
      %2140 = vmatpush1.bf16.msra.mxu0 %v1419
      %2141 = vmatprep.subr.bf16.mxu0 0
      %2142 = vmatpush1.bf16.msra.mxu0 %v1418
      %2143 = vmatprep.subr.bf16.mxu0 0
      %2144 = vmatpush1.bf16.msra.mxu0 %v1417
      %2145 = vmatprep.subr.bf16.mxu0 0
      %2146 = vmatpush1.bf16.msra.mxu0 %v1416
      %2147 = vmatprep.subr.bf16.mxu0 0
      %2148 = vmatpush1.bf16.msra.mxu0 %v1415
      %2149 = vmatprep.subr.bf16.mxu0 0
      %2150 = vmatpush1.bf16.msra.mxu0 %v1414
      %2151 = vmatprep.subr.bf16.mxu0 0
      %2152 = vmatpush1.bf16.msra.mxu0 %v1413
      %2153 = vmatprep.subr.bf16.mxu0 0
      %2154 = vmatpush2.bf16.msra.mxu0 0
      %2155 = vmatprep.subr.bf16.mxu0 0
      %2156 = vmatpush2.bf16.msra.mxu0 0
      %2157 = vmatprep.subr.bf16.mxu0 0
      %2158 = vmatpush2.bf16.msra.mxu0 0
      %2159 = vmatprep.subr.bf16.mxu0 0
      %2160 = vmatpush2.bf16.msra.mxu0 0
      %2161 = vmatprep.subr.bf16.mxu0 0
      %2162 = vmatpush2.bf16.msra.mxu0 0
      %2163 = vmatprep.subr.bf16.mxu0 0
      %2164 = vmatpush2.bf16.msra.mxu0 0
      %2165 = vmatprep.subr.bf16.mxu0 0
      %2166 = vmatpush2.bf16.msra.mxu0 0
      %2167 = vmatprep.subr.bf16.mxu0 0
      %2168 = vmatpush2.bf16.msra.mxu0 0
      %2169 = vmatprep.mubr.bf16.mxu0 0
      %2170 = vmatmul.mubr.bf16.gmra.mxu0 %v816
      %v2171 = vpop.f32.mrf.mxu0
      %v2172 = vadd.f32 %v2011, %v2171
      %v2173 = vpop.f32.mrf.mxu0
      %v2174 = vpop.f32.mrf.mxu0
      %v2175 = vadd.f32 %v2014, %v2174
      %v2176 = vpop.f32.mrf.mxu0
      %2177 = vmatprep.mubr.bf16.mxu0 0
      %2178 = vmatmul.mubr.bf16.gmra.mxu0 %v819
      %v2179 = vpop.f32.mrf.mxu0
      %v2180 = vadd.f32 %v2019, %v2179
      %v2181 = vpop.f32.mrf.mxu0
      %v2182 = vpop.f32.mrf.mxu0
      %v2183 = vadd.f32 %v2022, %v2182
      %v2184 = vpop.f32.mrf.mxu0
      %2185 = vmatprep.mubr.bf16.mxu0 0
      %2186 = vmatmul.mubr.bf16.gmra.mxu0 %v822
      %v2187 = vpop.f32.mrf.mxu0
      %v2188 = vadd.f32 %v2027, %v2187
      %v2189 = vpop.f32.mrf.mxu0
      %v2190 = vpop.f32.mrf.mxu0
      %v2191 = vadd.f32 %v2030, %v2190
      %v2192 = vpop.f32.mrf.mxu0
      %2193 = vmatprep.mubr.bf16.mxu0 0
      %2194 = vmatmul.mubr.bf16.gmra.mxu0 %v825
      %v2195 = vpop.f32.mrf.mxu0
      %v2196 = vadd.f32 %v2035, %v2195
      %v2197 = vpop.f32.mrf.mxu0
      %v2198 = vpop.f32.mrf.mxu0
      %v2199 = vadd.f32 %v2038, %v2198
      %v2200 = vpop.f32.mrf.mxu0
      %2201 = vmatprep.mubr.bf16.mxu0 0
      %2202 = vmatmul.mubr.bf16.gmra.mxu0 %v828
      %v2203 = vpop.f32.mrf.mxu0
      %v2204 = vadd.f32 %v2043, %v2203
      %v2205 = vpop.f32.mrf.mxu0
      %v2206 = vpop.f32.mrf.mxu0
      %v2207 = vadd.f32 %v2046, %v2206
      %v2208 = vpop.f32.mrf.mxu0
      %2209 = vmatprep.mubr.bf16.mxu0 0
      %2210 = vmatmul.mubr.bf16.gmra.mxu0 %v831
      %v2211 = vpop.f32.mrf.mxu0
      %v2212 = vadd.f32 %v2051, %v2211
      %v2213 = vpop.f32.mrf.mxu0
      %v2214 = vpop.f32.mrf.mxu0
      %v2215 = vadd.f32 %v2054, %v2214
      %v2216 = vpop.f32.mrf.mxu0
      %2217 = vmatprep.mubr.bf16.mxu0 0
      %2218 = vmatmul.mubr.bf16.gmra.mxu0 %v834
      %v2219 = vpop.f32.mrf.mxu0
      %v2220 = vadd.f32 %v2059, %v2219
      %v2221 = vpop.f32.mrf.mxu0
      %v2222 = vpop.f32.mrf.mxu0
      %v2223 = vadd.f32 %v2062, %v2222
      %v2224 = vpop.f32.mrf.mxu0
      %2225 = vmatprep.mubr.bf16.mxu0 0
      %2226 = vmatmul.mubr.bf16.gmra.mxu0 %v837
      %v2227 = vpop.f32.mrf.mxu0
      %v2228 = vadd.f32 %v2067, %v2227
      %v2229 = vpop.f32.mrf.mxu0
      %v2230 = vpop.f32.mrf.mxu0
      %v2231 = vadd.f32 %v2070, %v2230
      %v2232 = vpop.f32.mrf.mxu0
      %2233 = vmatprep.mubr.bf16.mxu0 0
      %2234 = vmatmul.mubr.bf16.gmra.mxu0 %v840
      %v2235 = vpop.f32.mrf.mxu0
      %v2236 = vadd.f32 %v2075, %v2235
      %v2237 = vpop.f32.mrf.mxu0
      %v2238 = vpop.f32.mrf.mxu0
      %v2239 = vadd.f32 %v2078, %v2238
      %v2240 = vpop.f32.mrf.mxu0
      %2241 = vmatprep.mubr.bf16.mxu0 0
      %2242 = vmatmul.mubr.bf16.gmra.mxu0 %v843
      %v2243 = vpop.f32.mrf.mxu0
      %v2244 = vadd.f32 %v2083, %v2243
      %v2245 = vpop.f32.mrf.mxu0
      %v2246 = vpop.f32.mrf.mxu0
      %v2247 = vadd.f32 %v2086, %v2246
      %v2248 = vpop.f32.mrf.mxu0
      %2249 = vmatprep.mubr.bf16.mxu0 0
      %2250 = vmatmul.mubr.bf16.gmra.mxu0 %v846
      %v2251 = vpop.f32.mrf.mxu0
      %v2252 = vadd.f32 %v2091, %v2251
      %v2253 = vpop.f32.mrf.mxu0
      %v2254 = vpop.f32.mrf.mxu0
      %v2255 = vadd.f32 %v2094, %v2254
      %v2256 = vpop.f32.mrf.mxu0
      %2257 = vmatprep.mubr.bf16.mxu0 0
      %2258 = vmatmul.mubr.bf16.gmra.mxu0 %v849
      %v2259 = vpop.f32.mrf.mxu0
      %v2260 = vadd.f32 %v2099, %v2259
      %v2261 = vpop.f32.mrf.mxu0
      %v2262 = vpop.f32.mrf.mxu0
      %v2263 = vadd.f32 %v2102, %v2262
      %v2264 = vpop.f32.mrf.mxu0
      %2265 = vmatprep.mubr.bf16.mxu0 0
      %2266 = vmatmul.mubr.bf16.gmra.mxu0 %v852
      %v2267 = vpop.f32.mrf.mxu0
      %v2268 = vadd.f32 %v2107, %v2267
      %v2269 = vpop.f32.mrf.mxu0
      %v2270 = vpop.f32.mrf.mxu0
      %v2271 = vadd.f32 %v2110, %v2270
      %v2272 = vpop.f32.mrf.mxu0
      %2273 = vmatprep.mubr.bf16.mxu0 0
      %2274 = vmatmul.mubr.bf16.gmra.mxu0 %v855
      %v2275 = vpop.f32.mrf.mxu0
      %v2276 = vadd.f32 %v2115, %v2275
      %v2277 = vpop.f32.mrf.mxu0
      %v2278 = vpop.f32.mrf.mxu0
      %v2279 = vadd.f32 %v2118, %v2278
      %v2280 = vpop.f32.mrf.mxu0
      %2281 = vmatprep.mubr.bf16.mxu0 0
      %2282 = vmatmul.mubr.bf16.gmra.mxu0 %v889
      %v2283 = vpop.f32.mrf.mxu0
      %v2284 = vadd.f32 %v2123, %v2283
      %v2285 = vpop.f32.mrf.mxu0
      %v2286 = vpop.f32.mrf.mxu0
      %v2287 = vadd.f32 %v2126, %v2286
      %v2288 = vpop.f32.mrf.mxu0
      %2289 = vmatprep.mubr.bf16.mxu0 0
      %2290 = vmatmul.mubr.bf16.gmra.mxu0 %v908
      %v2291 = vpop.f32.mrf.mxu0
      %v2292 = vadd.f32 %v2131, %v2291
      %v2293 = vpop.f32.mrf.mxu0
      %v2294 = vpop.f32.mrf.mxu0
      %v2295 = vadd.f32 %v2134, %v2294
      %v2296 = vpop.f32.mrf.mxu0
      %2297 = vdwg.mxu0
      %v2298 = vmax.f32 %v2172, 0.0
      %v2299 = vmax.f32 %v2175, 0.0
      %v2300 = vmax.f32 %v2180, 0.0
      %v2301 = vmax.f32 %v2183, 0.0
      %v2302 = vmax.f32 %v2188, 0.0
      %v2303 = vmax.f32 %v2191, 0.0
      %v2304 = vmax.f32 %v2196, 0.0
      %v2305 = vmax.f32 %v2199, 0.0
      %v2306 = vmax.f32 %v2204, 0.0
      %v2307 = vmax.f32 %v2207, 0.0
      %v2308 = vmax.f32 %v2212, 0.0
      %v2309 = vmax.f32 %v2215, 0.0
      %v2310 = vmax.f32 %v2220, 0.0
      %v2311 = vmax.f32 %v2223, 0.0
      %v2312 = vmax.f32 %v2228, 0.0
      %v2313 = vmax.f32 %v2231, 0.0
      %v2314 = vmax.f32 %v2236, 0.0
      %v2315 = vmax.f32 %v2239, 0.0
      %v2316 = vmax.f32 %v2244, 0.0
      %v2317 = vmax.f32 %v2247, 0.0
      %v2318 = vmax.f32 %v2252, 0.0
      %v2319 = vmax.f32 %v2255, 0.0
      %v2320 = vmax.f32 %v2260, 0.0
      %v2321 = vmax.f32 %v2263, 0.0
      %v2322 = vmax.f32 %v2268, 0.0
      %v2323 = vmax.f32 %v2271, 0.0
      %v2324 = vmax.f32 %v2276, 0.0
      %v2325 = vmax.f32 %v2279, 0.0
      %v2326 = vmax.f32 %v2284, 0.0
      %v2327 = vmax.f32 %v2287, 0.0
      %v2328 = vmax.f32 %v2292, 0.0
      %v2329 = vmax.f32 %v2295, 0.0
      %v2330 = vadd.f32 %v2298, %v2299
      %v2331 = vadd.f32 %v2330, %v2300
      %v2332 = vadd.f32 %v2331, %v2301
      %v2333 = vadd.f32 %v2332, %v2302
      %v2334 = vadd.f32 %v2333, %v2303
      %v2335 = vadd.f32 %v2334, %v2304
      %v2336 = vadd.f32 %v2335, %v2305
      %v2337 = vadd.f32 %v2336, %v2306
      %v2338 = vadd.f32 %v2337, %v2307
      %v2339 = vadd.f32 %v2338, %v2308
      %v2340 = vadd.f32 %v2339, %v2309
      %v2341 = vadd.f32 %v2340, %v2310
      %v2342 = vadd.f32 %v2341, %v2311
      %v2343 = vadd.f32 %v2342, %v2312
      %v2344 = vadd.f32 %v2343, %v2313
      %v2345 = vadd.f32 %v2344, %v2314
      %v2346 = vadd.f32 %v2345, %v2315
      %v2347 = vadd.f32 %v2346, %v2316
      %v2348 = vadd.f32 %v2347, %v2317
      %v2349 = vadd.f32 %v2348, %v2318
      %v2350 = vadd.f32 %v2349, %v2319
      %v2351 = vadd.f32 %v2350, %v2320
      %v2352 = vadd.f32 %v2351, %v2321
      %v2353 = vadd.f32 %v2352, %v2322
      %v2354 = vadd.f32 %v2353, %v2323
      %v2355 = vadd.f32 %v2354, %v2324
      %v2356 = vadd.f32 %v2355, %v2325
      %v2357 = vadd.f32 %v2356, %v2326
      %v2358 = vadd.f32 %v2357, %v2327
      %v2359 = vadd.f32 %v2358, %v2328
      %v2360 = vadd.f32 %v2359, %v2329
      %v2361 = vrot.slane %v2360, 4
      %v2362 = vadd.f32 %v2360, %v2361
      %v2363 = vrot.slane %v2362, 2
      %v2364 = vadd.f32 %v2362, %v2363
      %v2365 = vrot.slane %v2364, 1
      %v2366 = vadd.f32 %v2364, %v2365
      %v2367 = vmul.f32 %v2298, %v2298
      %v2368 = vmul.f32 %v2299, %v2299
      %v2369 = vmul.f32 %v2300, %v2300
      %v2370 = vmul.f32 %v2301, %v2301
      %v2371 = vmul.f32 %v2302, %v2302
      %v2372 = vmul.f32 %v2303, %v2303
      %v2373 = vmul.f32 %v2304, %v2304
      %v2374 = vmul.f32 %v2305, %v2305
      %v2375 = vmul.f32 %v2306, %v2306
      %v2376 = vmul.f32 %v2307, %v2307
      %v2377 = vmul.f32 %v2308, %v2308
      %v2378 = vmul.f32 %v2309, %v2309
      %v2379 = vmul.f32 %v2310, %v2310
      %v2380 = vmul.f32 %v2311, %v2311
      %v2381 = vmul.f32 %v2312, %v2312
      %v2382 = vmul.f32 %v2313, %v2313
      %v2383 = vmul.f32 %v2314, %v2314
      %v2384 = vmul.f32 %v2315, %v2315
      %v2385 = vmul.f32 %v2316, %v2316
      %v2386 = vmul.f32 %v2317, %v2317
      %v2387 = vmul.f32 %v2318, %v2318
      %v2388 = vmul.f32 %v2319, %v2319
      %v2389 = vmul.f32 %v2320, %v2320
      %v2390 = vmul.f32 %v2321, %v2321
      %v2391 = vmul.f32 %v2322, %v2322
      %v2392 = vmul.f32 %v2323, %v2323
      %v2393 = vmul.f32 %v2324, %v2324
      %v2394 = vmul.f32 %v2325, %v2325
      %v2395 = vmul.f32 %v2326, %v2326
      %v2396 = vmul.f32 %v2327, %v2327
      %v2397 = vmul.f32 %v2328, %v2328
      %v2398 = vmul.f32 %v2329, %v2329
      %v2399 = vadd.f32 %v2367, %v2368
      %v2400 = vadd.f32 %v2399, %v2369
      %v2401 = vadd.f32 %v2400, %v2370
      %v2402 = vadd.f32 %v2401, %v2371
      %v2403 = vadd.f32 %v2402, %v2372
      %v2404 = vadd.f32 %v2403, %v2373
      %v2405 = vadd.f32 %v2404, %v2374
      %v2406 = vadd.f32 %v2405, %v2375
      %v2407 = vadd.f32 %v2406, %v2376
      %v2408 = vadd.f32 %v2407, %v2377
      %v2409 = vadd.f32 %v2408, %v2378
      %v2410 = vadd.f32 %v2409, %v2379
      %v2411 = vadd.f32 %v2410, %v2380
      %v2412 = vadd.f32 %v2411, %v2381
      %v2413 = vadd.f32 %v2412, %v2382
      %v2414 = vadd.f32 %v2413, %v2383
      %v2415 = vadd.f32 %v2414, %v2384
      %v2416 = vadd.f32 %v2415, %v2385
      %v2417 = vadd.f32 %v2416, %v2386
      %v2418 = vadd.f32 %v2417, %v2387
      %v2419 = vadd.f32 %v2418, %v2388
      %v2420 = vadd.f32 %v2419, %v2389
      %v2421 = vadd.f32 %v2420, %v2390
      %v2422 = vadd.f32 %v2421, %v2391
      %v2423 = vadd.f32 %v2422, %v2392
      %v2424 = vadd.f32 %v2423, %v2393
      %v2425 = vadd.f32 %v2424, %v2394
      %v2426 = vadd.f32 %v2425, %v2395
      %v2427 = vadd.f32 %v2426, %v2396
      %v2428 = vadd.f32 %v2427, %v2397
      %v2429 = vadd.f32 %v2428, %v2398
      %v2430 = vrot.slane %v2429, 4
      %v2431 = vadd.f32 %v2429, %v2430
      %v2432 = vrot.slane %v2431, 2
      %v2433 = vadd.f32 %v2431, %v2432
      %v2434 = vrot.slane %v2433, 1
      %v2435 = vadd.f32 %v2433, %v2434
      %vm2436 = vcmask 1040384
      %v2437 = vsel %vm2436, %v2366, %v2435
      %2438 = vst [vmem:[%s276] sm:$0x3] %v2437
      %2439 = vst [vmem:[%s272] sm:$0xff] 0.0
      %2440 = vst [vmem:[%s272 + $0x8] sm:$0xff] 0.0
      %2441 = vst [vmem:[%s272 + $0x10] sm:$0x3] 0.0
      %2442 = vst [vmem:[%s272 + $0x18] sm:$0xff] 0.0
      %2443 = vst [vmem:[%s272 + $0x20] sm:$0xff] 0.0
      %2444 = vst [vmem:[%s272 + $0x28] sm:$0x3] 0.0
      %2445 = vst [vmem:[%s272 + $0x30] sm:$0xff] 0.0
      %2446 = vst [vmem:[%s272 + $0x38] sm:$0xff] 0.0
      %2447 = vst [vmem:[%s272 + $0x40] sm:$0x3] 0.0
      %2448 = vst [vmem:[%s272 + $0x48] sm:$0xff] 0.0
      %2449 = vst [vmem:[%s272 + $0x50] sm:$0xff] 0.0
      %2450 = vst [vmem:[%s272 + $0x58] sm:$0x3] 0.0
      %2451 = vst [vmem:[%s272 + $0x60] sm:$0xff] 0.0
      %2452 = vst [vmem:[%s272 + $0x68] sm:$0xff] 0.0
      %2453 = vst [vmem:[%s272 + $0x70] sm:$0x3] 0.0
      %2454 = vst [vmem:[%s272 + $0x78] sm:$0xff] 0.0
      %2455 = vst [vmem:[%s272 + $0x80] sm:$0xff] 0.0
      %2456 = vst [vmem:[%s272 + $0x88] sm:$0x3] 0.0
      %2457 = vst [vmem:[%s272 + $0x90] sm:$0xff] 0.0
      %2458 = vst [vmem:[%s272 + $0x98] sm:$0xff] 0.0
      %2459 = vst [vmem:[%s272 + $0xa0] sm:$0x3] 0.0
      %2460 = vst [vmem:[%s272 + $0xa8] sm:$0xff] 0.0
      %2461 = vst [vmem:[%s272 + $0xb0] sm:$0xff] 0.0
      %2462 = vst [vmem:[%s272 + $0xb8] sm:$0x3] 0.0
      %2463 = vst [vmem:[%s272 + $0xc0] sm:$0xff] 0.0
      %2464 = vst [vmem:[%s272 + $0xc8] sm:$0xff] 0.0
      %2465 = vst [vmem:[%s272 + $0xd0] sm:$0x3] 0.0
      %2466 = vst [vmem:[%s272 + $0xd8] sm:$0xff] 0.0
      %2467 = vst [vmem:[%s272 + $0xe0] sm:$0xff] 0.0
      %2468 = vst [vmem:[%s272 + $0xe8] sm:$0x3] 0.0
      %2469 = vst [vmem:[%s272 + $0xf0] sm:$0xff] 0.0
      %2470 = vst [vmem:[%s272 + $0xf8] sm:$0xff] 0.0
      %2471 = vst [vmem:[%s272 + $0x100] sm:$0x3] 0.0
      %2472 = vst [vmem:[%s272 + $0x108] sm:$0xff] 0.0
      %2473 = vst [vmem:[%s272 + $0x110] sm:$0xff] 0.0
      %2474 = vst [vmem:[%s272 + $0x118] sm:$0x3] 0.0
      %2475 = vst [vmem:[%s272 + $0x120] sm:$0xff] 0.0
      %2476 = vst [vmem:[%s272 + $0x128] sm:$0xff] 0.0
      %2477 = vst [vmem:[%s272 + $0x130] sm:$0x3] 0.0
      %2478 = vst [vmem:[%s272 + $0x138] sm:$0xff] 0.0
      %2479 = vst [vmem:[%s272 + $0x140] sm:$0xff] 0.0
      %2480 = vst [vmem:[%s272 + $0x148] sm:$0x3] 0.0
      %2481 = vst [vmem:[%s272 + $0x150] sm:$0xff] 0.0
      %2482 = vst [vmem:[%s272 + $0x158] sm:$0xff] 0.0
      %2483 = vst [vmem:[%s272 + $0x160] sm:$0x3] 0.0
      %2484 = vst [vmem:[%s272 + $0x168] sm:$0xff] 0.0
      %2485 = vst [vmem:[%s272 + $0x170] sm:$0xff] 0.0
      %2486 = vst [vmem:[%s272 + $0x178] sm:$0x3] 0.0
      %2487 = vst [vmem:[%s272 + $0x180] sm:$0xff] 0.0
      %2488 = vst [vmem:[%s272 + $0x188] sm:$0xff] 0.0
      %2489 = vst [vmem:[%s272 + $0x190] sm:$0x3] 0.0
      %2490 = vst [vmem:[%s272 + $0x198] sm:$0xff] 0.0
      %2491 = vst [vmem:[%s272 + $0x1a0] sm:$0xff] 0.0
      %2492 = vst [vmem:[%s272 + $0x1a8] sm:$0x3] 0.0
      %s2493 = scalar_lea.vmem %s272, 24
      %2494 = vst [vmem:[%s2493 + $0x1] sm:$0xff] %v2298
      %2495 = vst [vmem:[%s2493 + $0x9] sm:$0xff] %v2299
      %2496 = vst [vmem:[%s2493 + $0x19] sm:$0xff] %v2300
      %2497 = vst [vmem:[%s2493 + $0x21] sm:$0xff] %v2301
      %2498 = vst [vmem:[%s2493 + $0x31] sm:$0xff] %v2302
      %2499 = vst [vmem:[%s2493 + $0x39] sm:$0xff] %v2303
      %2500 = vst [vmem:[%s2493 + $0x49] sm:$0xff] %v2304
      %2501 = vst [vmem:[%s2493 + $0x51] sm:$0xff] %v2305
      %2502 = vst [vmem:[%s2493 + $0x61] sm:$0xff] %v2306
      %2503 = vst [vmem:[%s2493 + $0x69] sm:$0xff] %v2307
      %2504 = vst [vmem:[%s2493 + $0x79] sm:$0xff] %v2308
      %2505 = vst [vmem:[%s2493 + $0x81] sm:$0xff] %v2309
      %2506 = vst [vmem:[%s2493 + $0x91] sm:$0xff] %v2310
      %2507 = vst [vmem:[%s2493 + $0x99] sm:$0xff] %v2311
      %2508 = vst [vmem:[%s2493 + $0xa9] sm:$0xff] %v2312
      %2509 = vst [vmem:[%s2493 + $0xb1] sm:$0xff] %v2313
      %2510 = vst [vmem:[%s2493 + $0xc1] sm:$0xff] %v2314
      %2511 = vst [vmem:[%s2493 + $0xc9] sm:$0xff] %v2315
      %2512 = vst [vmem:[%s2493 + $0xd9] sm:$0xff] %v2316
      %2513 = vst [vmem:[%s2493 + $0xe1] sm:$0xff] %v2317
      %2514 = vst [vmem:[%s2493 + $0xf1] sm:$0xff] %v2318
      %2515 = vst [vmem:[%s2493 + $0xf9] sm:$0xff] %v2319
      %2516 = vst [vmem:[%s2493 + $0x109] sm:$0xff] %v2320
      %2517 = vst [vmem:[%s2493 + $0x111] sm:$0xff] %v2321
      %2518 = vst [vmem:[%s2493 + $0x121] sm:$0xff] %v2322
      %2519 = vst [vmem:[%s2493 + $0x129] sm:$0xff] %v2323
      %2520 = vst [vmem:[%s2493 + $0x139] sm:$0xff] %v2324
      %2521 = vst [vmem:[%s2493 + $0x141] sm:$0xff] %v2325
      %2522 = vst [vmem:[%s2493 + $0x151] sm:$0xff] %v2326
      %2523 = vst [vmem:[%s2493 + $0x159] sm:$0xff] %v2327
      %2524 = vst [vmem:[%s2493 + $0x169] sm:$0xff] %v2328
      %2525 = vst [vmem:[%s2493 + $0x171] sm:$0xff] %v2329
      %p2526 = scmp.lt.s32.totalorder %s18, 1
      %s2527 = scalar_select %p2526, %s18, 1
      %s2528 = smul.addr %s2527, 54
      %s2529 = smul.addr %s2528, 8
      %s2530 = scalar_lea.vmem %s5, %s2529
      %p2531 = scmp.lt.s32.totalorder %s18, 1
      %s2532 = scalar_select %p2531, %s18, 1
      %s2533 = smul.addr %s2532, 2
      %s2534 = scalar_lea.vmem %s6, %s2533
      // Predicated region
      $region41: #{block_forward.4} parent=39 // pred_check
        %p2535 = pneg %p151
      $region42: #{block_forward.4} parent=39 // pred_check_branch
        %2537 = sbr.rel (%p2535) target = $region44
      $region43: #{block_forward.4} parent=39 // pred_region
        _
      $region44: #{block_forward.4} parent=39 // pred_fallthru
        _
      // Predicated region
      $region45: #{block_forward.4} parent=39 // pred_check
        %p2538 = pneg %p177
      $region46: #{block_forward.4} parent=39 // pred_check_branch
        %2540 = sbr.rel (%p2538) target = $region48
      $region47: #{block_forward.4} parent=39 // pred_region
        _
      $region48: #{block_forward.4} parent=39 // pred_fallthru
        _
    $region40: #{block_forward.4} parent=5 // pred_fallthru
      _
    %p2541 = scmp.le.s32.totalorder 2, %s13
    // Predicated region
    $region49: #{block_forward.4} parent=5 // pred_check
      %p2542 = pneg %p2541
    $region50: #{block_forward.4} parent=5 // pred_check_branch
      %2544 = sbr.rel (%p2542) target = $region52
    $region51: #{block_forward.4} parent=5 // pred_region
      %s2545 = ssub.s32 %s13, 2
      // Predicated region
      $region53: #{block_forward.4} parent=51 // pred_check
        %p2546 = pneg %p157
      $region54: #{block_forward.4} parent=51 // pred_check_branch
        %2548 = sbr.rel (%p2546) target = $region56
      $region55: #{block_forward.4} parent=51 // pred_region
        %p2549 = scmp.lt.s32.totalorder %s19, 1
        %s2550 = scalar_select %p2549, %s19, 1
        %s2551 = smul.addr %s2550, 54
        %s2552 = smul.addr %s2551, 8
        %s2553 = scalar_lea.vmem %s5, %s2552
      $region56: #{block_forward.4} parent=51 // pred_fallthru
        _
      // Predicated region
      $region57: #{block_forward.4} parent=51 // pred_check
        %p2554 = pneg %p183
      $region58: #{block_forward.4} parent=51 // pred_check_branch
        %2556 = sbr.rel (%p2554) target = $region60
      $region59: #{block_forward.4} parent=51 // pred_region
        %p2557 = scmp.lt.s32.totalorder %s19, 1
        %s2558 = scalar_select %p2557, %s19, 1
        %s2559 = smul.addr %s2558, 2
        %s2560 = scalar_lea.vmem %s6, %s2559
      $region60: #{block_forward.4} parent=51 // pred_fallthru
        _
    $region52: #{block_forward.4} parent=5 // pred_fallthru
      _
  $region6: #{block_forward.4} parent=0 // loop_footer
    %s17 = sadd.s32 1, %s13
  $region7: #{block_forward.4} parent=0 // loop_footer_branch
    %12 = sbr.rel target = $region3
  $region8: #{block_forward.4} parent=0 // loop_exit
    _

// kernel: block_forward.3
$region0: #{block_forward.3}
  #allocation0 [shape = 'u32[]', space=smem, size = 0x4, offset = 0x4, fixed_abs, tag = 'smem constant byte address 0x4 - core index']
  #allocation1 [shape = 'u32[144,128]{1,0:T(1,128)}', space=vmem, size = 0x12000, scoped, tag = 'internal scratch']
  %s0 = inlined_call_operand.vmem [shape: bf16[2,18,18,128], index: 0, kind: input, shape index: {}]
  %s1 = inlined_call_operand.vmem [shape: bf16[1152,128], index: 1, kind: input, shape index: {}]
  %s2 = inlined_call_operand.vmem [shape: f32[1,128], index: 2, kind: input, shape index: {}]
  %s3 = inlined_call_operand.vmem [shape: bf16[2,1,32], index: 3, kind: input, shape index: {}]
  %s4 = inlined_call_operand.vmem [shape: bf16[32,128], index: 4, kind: input, shape index: {}]
  %s5 = inlined_call_operand.vmem [shape: f32[1,128], index: 5, kind: input, shape index: {}]
  %s6 = inlined_call_operand.vmem [shape: f32[2,18,18,128], index: 6, kind: output, shape index: {0}]
  %s7 = inlined_call_operand.vmem [shape: f32[2,3,128], index: 7, kind: output, shape index: {1}]
  %8 = xla_tuple %s6, %s7
  %s9 = sld [smem:[#allocation0]]
  $region65: #{block_forward.3} parent=0
    _
  %s11 = ssub.s32 1, %s9
  %s12 = scalar_select 0, %s11, %s9
  loop: start=0, step=1, limit=4
  $region2: #{block_forward.3} parent=0 // loop_pre_header
    _
  $region3: #{block_forward.3} parent=0 // loop_header
    %s14 = sphi 0, %s18
    %p15 = scmp.ge.s32.totalorder %s14, 4
    %s24 = sphi 0, %s26
    %s27 = sphi 0, %s24
    %s28 = sphi 0, %s27
    %s44 = sphi 0, %s28
    %s48 = sphi 0, %s48
    %s50 = sphi 0, %s48
    %s51 = sphi 0, %s50
    %s65 = sphi 0, %s51
    %s69 = sphi 0, %s69
    %s71 = sphi 0, %s69
    %s72 = sphi 0, %s71
    %s86 = sphi 0, %s72
    %s92 = sphi 0, %s94
    %s95 = sphi 0, %s92
    %s96 = sphi 0, %s95
    %s112 = sphi 0, %s96
    %s116 = sphi 0, %s116
    %s118 = sphi 0, %s116
    %s119 = sphi 0, %s118
    %s133 = sphi 0, %s119
    %s137 = sphi 0, %s137
    %s139 = sphi 0, %s137
    %s140 = sphi 0, %s139
    %s154 = sphi 0, %s140
    %s160 = sphi 0, %s162
    %s163 = sphi 0, %s160
    %s164 = sphi 0, %s163
    %s180 = sphi 0, %s164
    %s186 = sphi 0, %s188
    %s189 = sphi 0, %s186
    %s190 = sphi 0, %s189
    %s206 = sphi 0, %s190
  $region4: #{block_forward.3} parent=0 // loop_header_branch
    %17 = sbr.rel (%p15) target = $region8
  $region5: #{block_forward.3} parent=0 // loop_body
    %s19 = ssub.s32 %s14, 1
    %s20 = ssub.s32 %s14, 2
    %s21 = sadd.s32 %s14, 1
    %s22 = ssub.s32 %s14, %s21
    %p23 = scmp.eq.s32.totalorder %s22, 0
    %s25 = sadd.s32 %s24, 1
    %s26 = scalar_select %p23, %s24, %s25
    %p29 = pneg %p23
    %p30 = scmp.eq.s32.totalorder %s14, 1
    %p31 = por %p29, %p30
    %p32 = scmp.ne.s32.totalorder %s24, %s27
    %p33 = scmp.eq.s32.totalorder %s14, 0
    %p34 = por %p32, %p33
    %p35 = scmp.ne.s32.totalorder %s24, %s27
    %p36 = scmp.eq.s32.totalorder %s19, 1
    %p37 = por %p35, %p36
    %p38 = scmp.ne.s32.totalorder %s27, %s28
    %p39 = scmp.eq.s32.totalorder %s19, 0
    %p40 = por %p38, %p39
    %p41 = scmp.ne.s32.totalorder %s27, %s28
    %p42 = scmp.eq.s32.totalorder %s20, 1
    %p43 = por %p41, %p42
    %p45 = scmp.ne.s32.totalorder %s28, %s44
    %p46 = scmp.eq.s32.totalorder %s20, 0
    %p47 = por %p45, %p46
    %s49 = sadd.s32 %s48, 1
    %p52 = scmp.eq.s32.totalorder %s14, 1
    %p53 = scmp.ne.s32.totalorder %s48, %s50
    %p54 = scmp.eq.s32.totalorder %s14, 0
    %p55 = por %p53, %p54
    %p56 = scmp.ne.s32.totalorder %s48, %s50
    %p57 = scmp.eq.s32.totalorder %s19, 1
    %p58 = por %p56, %p57
    %p59 = scmp.ne.s32.totalorder %s50, %s51
    %p60 = scmp.eq.s32.totalorder %s19, 0
    %p61 = por %p59, %p60
    %p62 = scmp.ne.s32.totalorder %s50, %s51
    %p63 = scmp.eq.s32.totalorder %s20, 1
    %p64 = por %p62, %p63
    %p66 = scmp.ne.s32.totalorder %s51, %s65
    %p67 = scmp.eq.s32.totalorder %s20, 0
    %p68 = por %p66, %p67
    %s70 = sadd.s32 %s69, 1
    %p73 = scmp.eq.s32.totalorder %s14, 1
    %p74 = scmp.ne.s32.totalorder %s69, %s71
    %p75 = scmp.eq.s32.totalorder %s14, 0
    %p76 = por %p74, %p75
    %p77 = scmp.ne.s32.totalorder %s69, %s71
    %p78 = scmp.eq.s32.totalorder %s19, 1
    %p79 = por %p77, %p78
    %p80 = scmp.ne.s32.totalorder %s71, %s72
    %p81 = scmp.eq.s32.totalorder %s19, 0
    %p82 = por %p80, %p81
    %p83 = scmp.ne.s32.totalorder %s71, %s72
    %p84 = scmp.eq.s32.totalorder %s20, 1
    %p85 = por %p83, %p84
    %p87 = scmp.ne.s32.totalorder %s72, %s86
    %p88 = scmp.eq.s32.totalorder %s20, 0
    %p89 = por %p87, %p88
    %s90 = ssub.s32 %s14, %s21
    %p91 = scmp.eq.s32.totalorder %s90, 0
    %s93 = sadd.s32 %s92, 1
    %s94 = scalar_select %p91, %s92, %s93
    %p97 = pneg %p91
    %p98 = scmp.eq.s32.totalorder %s14, 1
    %p99 = por %p97, %p98
    %p100 = scmp.ne.s32.totalorder %s92, %s95
    %p101 = scmp.eq.s32.totalorder %s14, 0
    %p102 = por %p100, %p101
    %p103 = scmp.ne.s32.totalorder %s92, %s95
    %p104 = scmp.eq.s32.totalorder %s19, 1
    %p105 = por %p103, %p104
    %p106 = scmp.ne.s32.totalorder %s95, %s96
    %p107 = scmp.eq.s32.totalorder %s19, 0
    %p108 = por %p106, %p107
    %p109 = scmp.ne.s32.totalorder %s95, %s96
    %p110 = scmp.eq.s32.totalorder %s20, 1
    %p111 = por %p109, %p110
    %p113 = scmp.ne.s32.totalorder %s96, %s112
    %p114 = scmp.eq.s32.totalorder %s20, 0
    %p115 = por %p113, %p114
    %s117 = sadd.s32 %s116, 1
    %p120 = scmp.eq.s32.totalorder %s14, 1
    %p121 = scmp.ne.s32.totalorder %s116, %s118
    %p122 = scmp.eq.s32.totalorder %s14, 0
    %p123 = por %p121, %p122
    %p124 = scmp.ne.s32.totalorder %s116, %s118
    %p125 = scmp.eq.s32.totalorder %s19, 1
    %p126 = por %p124, %p125
    %p127 = scmp.ne.s32.totalorder %s118, %s119
    %p128 = scmp.eq.s32.totalorder %s19, 0
    %p129 = por %p127, %p128
    %p130 = scmp.ne.s32.totalorder %s118, %s119
    %p131 = scmp.eq.s32.totalorder %s20, 1
    %p132 = por %p130, %p131
    %p134 = scmp.ne.s32.totalorder %s119, %s133
    %p135 = scmp.eq.s32.totalorder %s20, 0
    %p136 = por %p134, %p135
    %s138 = sadd.s32 %s137, 1
    %p141 = scmp.eq.s32.totalorder %s14, 1
    %p142 = scmp.ne.s32.totalorder %s137, %s139
    %p143 = scmp.eq.s32.totalorder %s14, 0
    %p144 = por %p142, %p143
    %p145 = scmp.ne.s32.totalorder %s137, %s139
    %p146 = scmp.eq.s32.totalorder %s19, 1
    %p147 = por %p145, %p146
    %p148 = scmp.ne.s32.totalorder %s139, %s140
    %p149 = scmp.eq.s32.totalorder %s19, 0
    %p150 = por %p148, %p149
    %p151 = scmp.ne.s32.totalorder %s139, %s140
    %p152 = scmp.eq.s32.totalorder %s20, 1
    %p153 = por %p151, %p152
    %p155 = scmp.ne.s32.totalorder %s140, %s154
    %p156 = scmp.eq.s32.totalorder %s20, 0
    %p157 = por %p155, %p156
    %s158 = ssub.s32 %s14, %s21
    %p159 = scmp.eq.s32.totalorder %s158, 0
    %s161 = sadd.s32 %s160, 1
    %s162 = scalar_select %p159, %s160, %s161
    %p165 = pneg %p159
    %p166 = scmp.eq.s32.totalorder %s14, 1
    %p167 = por %p165, %p166
    %p168 = scmp.ne.s32.totalorder %s160, %s163
    %p169 = scmp.eq.s32.totalorder %s14, 0
    %p170 = por %p168, %p169
    %p171 = scmp.ne.s32.totalorder %s160, %s163
    %p172 = scmp.eq.s32.totalorder %s19, 1
    %p173 = por %p171, %p172
    %p174 = scmp.ne.s32.totalorder %s163, %s164
    %p175 = scmp.eq.s32.totalorder %s19, 0
    %p176 = por %p174, %p175
    %p177 = scmp.ne.s32.totalorder %s163, %s164
    %p178 = scmp.eq.s32.totalorder %s20, 1
    %p179 = por %p177, %p178
    %p181 = scmp.ne.s32.totalorder %s164, %s180
    %p182 = scmp.eq.s32.totalorder %s20, 0
    %p183 = por %p181, %p182
    %s184 = ssub.s32 %s14, %s21
    %p185 = scmp.eq.s32.totalorder %s184, 0
    %s187 = sadd.s32 %s186, 1
    %s188 = scalar_select %p185, %s186, %s187
    %p191 = pneg %p185
    %p192 = scmp.eq.s32.totalorder %s14, 1
    %p193 = por %p191, %p192
    %p194 = scmp.ne.s32.totalorder %s186, %s189
    %p195 = scmp.eq.s32.totalorder %s14, 0
    %p196 = por %p194, %p195
    %p197 = scmp.ne.s32.totalorder %s186, %s189
    %p198 = scmp.eq.s32.totalorder %s19, 1
    %p199 = por %p197, %p198
    %p200 = scmp.ne.s32.totalorder %s189, %s190
    %p201 = scmp.eq.s32.totalorder %s19, 0
    %p202 = por %p200, %p201
    %p203 = scmp.ne.s32.totalorder %s189, %s190
    %p204 = scmp.eq.s32.totalorder %s20, 1
    %p205 = por %p203, %p204
    %p207 = scmp.ne.s32.totalorder %s190, %s206
    %p208 = scmp.eq.s32.totalorder %s20, 0
    %p209 = por %p207, %p208
    %p210 = scmp.le.s32.totalorder 1, %s14
    %p211 = scmp.lt.s32.totalorder %s14, 3
    %p212 = pnand %p210, %p211
    %p213 = pneg %p212
    // Predicated region
    $region9: #{block_forward.3} parent=5 // pred_check
      _
    $region10: #{block_forward.3} parent=5 // pred_check_branch
      %215 = sbr.rel (%p212) target = $region12
    $region11: #{block_forward.3} parent=5 // pred_region
      %s216 = ssub.s32 %s14, 1
      // Predicated region
      $region13: #{block_forward.3} parent=11 // pred_check
        %p217 = pneg %p61
      $region14: #{block_forward.3} parent=11 // pred_check_branch
        %219 = sbr.rel (%p217) target = $region16
      $region15: #{block_forward.3} parent=11 // pred_region
        _
      $region16: #{block_forward.3} parent=11 // pred_fallthru
        _
      // Predicated region
      $region17: #{block_forward.3} parent=11 // pred_check
        %p220 = pneg %p82
      $region18: #{block_forward.3} parent=11 // pred_check_branch
        %222 = sbr.rel (%p220) target = $region20
      $region19: #{block_forward.3} parent=11 // pred_region
        _
      $region20: #{block_forward.3} parent=11 // pred_fallthru
        _
      // Predicated region
      $region21: #{block_forward.3} parent=11 // pred_check
        %p223 = pneg %p129
      $region22: #{block_forward.3} parent=11 // pred_check_branch
        %225 = sbr.rel (%p223) target = $region24
      $region23: #{block_forward.3} parent=11 // pred_region
        _
      $region24: #{block_forward.3} parent=11 // pred_fallthru
        _
      // Predicated region
      $region25: #{block_forward.3} parent=11 // pred_check
        %p226 = pneg %p150
      $region26: #{block_forward.3} parent=11 // pred_check_branch
        %228 = sbr.rel (%p226) target = $region28
      $region27: #{block_forward.3} parent=11 // pred_region
        _
      $region28: #{block_forward.3} parent=11 // pred_fallthru
        _
    $region12: #{block_forward.3} parent=5 // pred_fallthru
      _
    %p229 = scmp.lt.s32.totalorder %s14, 2
    // Predicated region
    $region29: #{block_forward.3} parent=5 // pred_check
      %p230 = pneg %p229
    $region30: #{block_forward.3} parent=5 // pred_check_branch
      %232 = sbr.rel (%p230) target = $region32
    $region31: #{block_forward.3} parent=5 // pred_region
      // Predicated region
      $region33: #{block_forward.3} parent=31 // pred_check
        %p233 = pneg %p34
      $region34: #{block_forward.3} parent=31 // pred_check_branch
        %235 = sbr.rel (%p233) target = $region36
      $region35: #{block_forward.3} parent=31 // pred_region
        %p236 = scmp.lt.s32.totalorder %s14, 1
        %s237 = scalar_select %p236, %s14, 1
        %s238 = smul.addr %s237, 54
        %s239 = smul.addr %s238, 4
        %s240 = scalar_lea.vmem %s0, %s239
      $region36: #{block_forward.3} parent=31 // pred_fallthru
        _
      // Predicated region
      $region37: #{block_forward.3} parent=31 // pred_check
        %p241 = pneg %p102
      $region38: #{block_forward.3} parent=31 // pred_check_branch
        %243 = sbr.rel (%p241) target = $region40
      $region39: #{block_forward.3} parent=31 // pred_region
        %p244 = scmp.lt.s32.totalorder %s14, 1
        %s245 = scalar_select %p244, %s14, 1
        %s246 = scalar_lea.vmem %s3, %s245
      $region40: #{block_forward.3} parent=31 // pred_fallthru
        _
    $region32: #{block_forward.3} parent=5 // pred_fallthru
      _
    %p247 = scmp.le.s32.totalorder 1, %s14
    %p248 = scmp.lt.s32.totalorder %s14, 3
    %p249 = pnand %p247, %p248
    %p250 = pneg %p249
    // Predicated region
    $region41: #{block_forward.3} parent=5 // pred_check
      _
    $region42: #{block_forward.3} parent=5 // pred_check_branch
      %252 = sbr.rel (%p249) target = $region44
    $region43: #{block_forward.3} parent=5 // pred_region
      %s253 = ssub.s32 %s14, 1
      %p254 = scmp.lt.s32.totalorder %s19, 1
      %s255 = scalar_select %p254, %s19, 1
      %s256 = smul.addr %s255, 54
      %s257 = smul.addr %s256, 4
      %s258 = scalar_lea.vmem %s0, %s257
      %p259 = pneg %p40
      %p260 = pneg %p37
      %p261 = pneg %p61
      %p262 = pneg %p58
      %p263 = pneg %p82
      %p264 = pneg %p79
      %p265 = scmp.lt.s32.totalorder %s19, 1
      %s266 = scalar_select %p265, %s19, 1
      %s267 = scalar_lea.vmem %s3, %s266
      %p268 = pneg %p108
      %p269 = pneg %p105
      %p270 = pneg %p129
      %p271 = pneg %p126
      %p272 = pneg %p150
      %p273 = pneg %p147
      %p274 = pneg %p176
      %p275 = pneg %p173
      %p276 = scmp.lt.s32.totalorder %s19, 1
      %s277 = scalar_select %p276, %s19, 1
      %s278 = smul.addr %s277, 54
      %s279 = smul.addr %s278, 8
      %s280 = scalar_lea.vmem %s6, %s279
      %p281 = pneg %p202
      %p282 = pneg %p199
      %p283 = scmp.lt.s32.totalorder %s19, 1
      %s284 = scalar_select %p283, %s19, 1
      %s285 = smul.addr %s284, 4
      %s286 = scalar_lea.vmem %s7, %s285
      %p287 = scmp.lt.s32.totalorder %s19, 1
      %s288 = scalar_select %p287, %s19, 1
      %s289 = smul.addr %s288, 54
      %s290 = smul.addr %s289, 4
      %s291 = scalar_lea.vmem %s0, %s290
      %p292 = scmp.lt.s32.totalorder %s19, 1
      %s293 = scalar_select %p292, %s19, 1
      %s294 = scalar_lea.vmem %s3, %s293
      %p295 = scmp.lt.s32.totalorder %s19, 1
      %s296 = scalar_select %p295, %s19, 1
      %s297 = smul.addr %s296, 54
      %s298 = smul.addr %s297, 8
      %s299 = scalar_lea.vmem %s6, %s298
      %p300 = scmp.lt.s32.totalorder %s19, 1
      %s301 = scalar_select %p300, %s19, 1
      %s302 = smul.addr %s301, 4
      %s303 = scalar_lea.vmem %s7, %s302
      %v305 = vld [vmem:[%s291] sm:$0xf]
      %v306 = vld [vmem:[%s291 + $0x4] sm:$0xf]
      %v307 = vld [vmem:[%s291 + $0x8] sm:$0x1]
      %v308 = vld [vmem:[%s291 + $0xc] sm:$0xf]
      %v309 = vld [vmem:[%s291 + $0x10] sm:$0xf]
      %v310 = vld [vmem:[%s291 + $0x14] sm:$0x1]
      %v311 = vld [vmem:[%s291 + $0x18] sm:$0xf]
      %v312 = vld [vmem:[%s291 + $0x1c] sm:$0xf]
      %v313 = vld [vmem:[%s291 + $0x20] sm:$0x1]
      %v314 = vld [vmem:[%s291 + $0x24] sm:$0xf]
      %v315 = vld [vmem:[%s291 + $0x28] sm:$0xf]
      %v316 = vld [vmem:[%s291 + $0x2c] sm:$0x1]
      %v317 = vld [vmem:[%s291 + $0x30] sm:$0xf]
      %v318 = vld [vmem:[%s291 + $0x34] sm:$0xf]
      %v319 = vld [vmem:[%s291 + $0x38] sm:$0x1]
      %v320 = vld [vmem:[%s291 + $0x3c] sm:$0xf]
      %v321 = vld [vmem:[%s291 + $0x40] sm:$0xf]
      %v322 = vld [vmem:[%s291 + $0x44] sm:$0x1]
      %v323 = vld [vmem:[%s291 + $0x48] sm:$0xf]
      %v324 = vld [vmem:[%s291 + $0x4c] sm:$0xf]
      %v325 = vld [vmem:[%s291 + $0x50] sm:$0x1]
      %v326 = vld [vmem:[%s291 + $0x54] sm:$0xf]
      %v327 = vld [vmem:[%s291 + $0x58] sm:$0xf]
      %v328 = vld [vmem:[%s291 + $0x5c] sm:$0x1]
      %v329 = vld [vmem:[%s291 + $0x60] sm:$0xf]
      %v330 = vld [vmem:[%s291 + $0x64] sm:$0xf]
      %v331 = vld [vmem:[%s291 + $0x68] sm:$0x1]
      %v332 = vld [vmem:[%s291 + $0x6c] sm:$0xf]
      %v333 = vld [vmem:[%s291 + $0x70] sm:$0xf]
      %v334 = vld [vmem:[%s291 + $0x74] sm:$0x1]
      %v335 = vld [vmem:[%s291 + $0x78] sm:$0xf]
      %v336 = vld [vmem:[%s291 + $0x7c] sm:$0xf]
      %v337 = vld [vmem:[%s291 + $0x80] sm:$0x1]
      %v338 = vld [vmem:[%s291 + $0x84] sm:$0xf]
      %v339 = vld [vmem:[%s291 + $0x88] sm:$0xf]
      %v340 = vld [vmem:[%s291 + $0x8c] sm:$0x1]
      %v341 = vld [vmem:[%s291 + $0x90] sm:$0xf]
      %v342 = vld [vmem:[%s291 + $0x94] sm:$0xf]
      %v343 = vld [vmem:[%s291 + $0x98] sm:$0x1]
      %v344 = vld [vmem:[%s291 + $0x9c] sm:$0xf]
      %v345 = vld [vmem:[%s291 + $0xa0] sm:$0xf]
      %v346 = vld [vmem:[%s291 + $0xa4] sm:$0x1]
      %v347 = vld [vmem:[%s291 + $0xa8] sm:$0xf]
      %v348 = vld [vmem:[%s291 + $0xac] sm:$0xf]
      %v349 = vld [vmem:[%s291 + $0xb0] sm:$0x1]
      %v350 = vld [vmem:[%s291 + $0xb4] sm:$0xf]
      %v351 = vld [vmem:[%s291 + $0xb8] sm:$0xf]
      %v352 = vld [vmem:[%s291 + $0xbc] sm:$0x1]
      %v353 = vld [vmem:[%s291 + $0xc0] sm:$0xf]
      %v354 = vld [vmem:[%s291 + $0xc4] sm:$0xf]
      %v355 = vld [vmem:[%s291 + $0xc8] sm:$0x1]
      %v356 = vld [vmem:[%s291 + $0xcc] sm:$0xf]
      %v357 = vld [vmem:[%s291 + $0xd0] sm:$0xf]
      %v358 = vld [vmem:[%s291 + $0xd4] sm:$0x1]
      %vm359 = vsmask.f32 3328
      %vm360 = vsmask.f32 7440
      %vm361 = vmor %vm359, %vm360
      %v363 = vshrl.u32 %v305, 16
      %v365 = vrot.slane %v363, 4
      %v366 = vshll.u32 %v305, 16
      %v368 = vrot.slane %v366, 5
      %v369 = vor.u32 %v365, %v368
      %v370 = vrot.slane %v369, 4
      %v372 = vshll.u32 %v306, 16
      %v374 = vrot.slane %v372, 5
      %v375 = vsel %vm361, %v370, %v374
      %v376 = vshrl.u32 %v306, 16
      %v378 = vrot.slane %v376, 4
      %v379 = vor.u32 %v378, %v374
      %v380 = vrot.slane %v379, 4
      %v382 = vshll.u32 %v307, 16
      %v384 = vrot.slane %v382, 5
      %v385 = vsel %vm361, %v380, %v384
      %v387 = vshrl.u32 %v308, 16
      %v389 = vrot.slane %v387, 4
      %v390 = vshll.u32 %v308, 16
      %v392 = vrot.slane %v390, 5
      %v393 = vor.u32 %v389, %v392
      %v394 = vrot.slane %v393, 4
      %v396 = vshll.u32 %v309, 16
      %v398 = vrot.slane %v396, 5
      %v399 = vsel %vm361, %v394, %v398
      %v400 = vshrl.u32 %v309, 16
      %v402 = vrot.slane %v400, 4
      %v403 = vor.u32 %v402, %v398
      %v404 = vrot.slane %v403, 4
      %v406 = vshll.u32 %v310, 16
      %v408 = vrot.slane %v406, 5
      %v409 = vsel %vm361, %v404, %v408
      %v411 = vshrl.u32 %v311, 16
      %v413 = vrot.slane %v411, 4
      %v414 = vshll.u32 %v311, 16
      %v416 = vrot.slane %v414, 5
      %v417 = vor.u32 %v413, %v416
      %v418 = vrot.slane %v417, 4
      %v420 = vshll.u32 %v312, 16
      %v422 = vrot.slane %v420, 5
      %v423 = vsel %vm361, %v418, %v422
      %v424 = vshrl.u32 %v312, 16
      %v426 = vrot.slane %v424, 4
      %v427 = vor.u32 %v426, %v422
      %v428 = vrot.slane %v427, 4
      %v430 = vshll.u32 %v313, 16
      %v432 = vrot.slane %v430, 5
      %v433 = vsel %vm361, %v428, %v432
      %v435 = vshrl.u32 %v314, 16
      %v437 = vrot.slane %v435, 4
      %v438 = vshll.u32 %v314, 16
      %v440 = vrot.slane %v438, 5
      %v441 = vor.u32 %v437, %v440
      %v442 = vrot.slane %v441, 4
      %v444 = vshll.u32 %v315, 16
      %v446 = vrot.slane %v444, 5
      %v447 = vsel %vm361, %v442, %v446
      %v448 = vshrl.u32 %v315, 16
      %v450 = vrot.slane %v448, 4
      %v451 = vor.u32 %v450, %v446
      %v452 = vrot.slane %v451, 4
      %v454 = vshll.u32 %v316, 16
      %v456 = vrot.slane %v454, 5
      %v457 = vsel %vm361, %v452, %v456
      %v459 = vshrl.u32 %v317, 16
      %v461 = vrot.slane %v459, 4
      %v462 = vshll.u32 %v317, 16
      %v464 = vrot.slane %v462, 5
      %v465 = vor.u32 %v461, %v464
      %v466 = vrot.slane %v465, 4
      %v468 = vshll.u32 %v318, 16
      %v470 = vrot.slane %v468, 5
      %v471 = vsel %vm361, %v466, %v470
      %v472 = vshrl.u32 %v318, 16
      %v474 = vrot.slane %v472, 4
      %v475 = vor.u32 %v474, %v470
      %v476 = vrot.slane %v475, 4
      %v478 = vshll.u32 %v319, 16
      %v480 = vrot.slane %v478, 5
      %v481 = vsel %vm361, %v476, %v480
      %v483 = vshrl.u32 %v320, 16
      %v485 = vrot.slane %v483, 4
      %v486 = vshll.u32 %v320, 16
      %v488 = vrot.slane %v486, 5
      %v489 = vor.u32 %v485, %v488
      %v490 = vrot.slane %v489, 4
      %v492 = vshll.u32 %v321, 16
      %v494 = vrot.slane %v492, 5
      %v495 = vsel %vm361, %v490, %v494
      %v496 = vshrl.u32 %v321, 16
      %v498 = vrot.slane %v496, 4
      %v499 = vor.u32 %v498, %v494
      %v500 = vrot.slane %v499, 4
      %v502 = vshll.u32 %v322, 16
      %v504 = vrot.slane %v502, 5
      %v505 = vsel %vm361, %v500, %v504
      %v507 = vshrl.u32 %v323, 16
      %v509 = vrot.slane %v507, 4
      %v510 = vshll.u32 %v323, 16
      %v512 = vrot.slane %v510, 5
      %v513 = vor.u32 %v509, %v512
      %v514 = vrot.slane %v513, 4
      %v516 = vshll.u32 %v324, 16
      %v518 = vrot.slane %v516, 5
      %v519 = vsel %vm361, %v514, %v518
      %v520 = vshrl.u32 %v324, 16
      %v522 = vrot.slane %v520, 4
      %v523 = vor.u32 %v522, %v518
      %v524 = vrot.slane %v523, 4
      %v526 = vshll.u32 %v325, 16
      %v528 = vrot.slane %v526, 5
      %v529 = vsel %vm361, %v524, %v528
      %v531 = vshrl.u32 %v326, 16
      %v533 = vrot.slane %v531, 4
      %v534 = vshll.u32 %v326, 16
      %v536 = vrot.slane %v534, 5
      %v537 = vor.u32 %v533, %v536
      %v538 = vrot.slane %v537, 4
      %v540 = vshll.u32 %v327, 16
      %v542 = vrot.slane %v540, 5
      %v543 = vsel %vm361, %v538, %v542
      %v544 = vshrl.u32 %v327, 16
      %v546 = vrot.slane %v544, 4
      %v547 = vor.u32 %v546, %v542
      %v548 = vrot.slane %v547, 4
      %v550 = vshll.u32 %v328, 16
      %v552 = vrot.slane %v550, 5
      %v553 = vsel %vm361, %v548, %v552
      %v555 = vshrl.u32 %v329, 16
      %v557 = vrot.slane %v555, 4
      %v558 = vshll.u32 %v329, 16
      %v560 = vrot.slane %v558, 5
      %v561 = vor.u32 %v557, %v560
      %v562 = vrot.slane %v561, 4
      %v564 = vshll.u32 %v330, 16
      %v566 = vrot.slane %v564, 5
      %v567 = vsel %vm361, %v562, %v566
      %v568 = vshrl.u32 %v330, 16
      %v570 = vrot.slane %v568, 4
      %v571 = vor.u32 %v570, %v566
      %v572 = vrot.slane %v571, 4
      %v574 = vshll.u32 %v331, 16
      %v576 = vrot.slane %v574, 5
      %v577 = vsel %vm361, %v572, %v576
      %v579 = vshrl.u32 %v332, 16
      %v581 = vrot.slane %v579, 4
      %v582 = vshll.u32 %v332, 16
      %v584 = vrot.slane %v582, 5
      %v585 = vor.u32 %v581, %v584
      %v586 = vrot.slane %v585, 4
      %v588 = vshll.u32 %v333, 16
      %v590 = vrot.slane %v588, 5
      %v591 = vsel %vm361, %v586, %v590
      %v592 = vshrl.u32 %v333, 16
      %v594 = vrot.slane %v592, 4
      %v595 = vor.u32 %v594, %v590
      %v596 = vrot.slane %v595, 4
      %v598 = vshll.u32 %v334, 16
      %v600 = vrot.slane %v598, 5
      %v601 = vsel %vm361, %v596, %v600
      %v603 = vshrl.u32 %v335, 16
      %v605 = vrot.slane %v603, 4
      %v606 = vshll.u32 %v335, 16
      %v608 = vrot.slane %v606, 5
      %v609 = vor.u32 %v605, %v608
      %v610 = vrot.slane %v609, 4
      %v612 = vshll.u32 %v336, 16
      %v614 = vrot.slane %v612, 5
      %v615 = vsel %vm361, %v610, %v614
      %v616 = vshrl.u32 %v336, 16
      %v618 = vrot.slane %v616, 4
      %v619 = vor.u32 %v618, %v614
      %v620 = vrot.slane %v619, 4
      %v622 = vshll.u32 %v337, 16
      %v624 = vrot.slane %v622, 5
      %v625 = vsel %vm361, %v620, %v624
      %v627 = vshrl.u32 %v338, 16
      %v629 = vrot.slane %v627, 4
      %v630 = vshll.u32 %v338, 16
      %v632 = vrot.slane %v630, 5
      %v633 = vor.u32 %v629, %v632
      %v634 = vrot.slane %v633, 4
      %v636 = vshll.u32 %v339, 16
      %v638 = vrot.slane %v636, 5
      %v639 = vsel %vm361, %v634, %v638
      %v640 = vshrl.u32 %v339, 16
      %v642 = vrot.slane %v640, 4
      %v643 = vor.u32 %v642, %v638
      %v644 = vrot.slane %v643, 4
      %v646 = vshll.u32 %v340, 16
      %v648 = vrot.slane %v646, 5
      %v649 = vsel %vm361, %v644, %v648
      %v651 = vshrl.u32 %v341, 16
      %v653 = vrot.slane %v651, 4
      %v654 = vshll.u32 %v341, 16
      %v656 = vrot.slane %v654, 5
      %v657 = vor.u32 %v653, %v656
      %v658 = vrot.slane %v657, 4
      %v660 = vshll.u32 %v342, 16
      %v662 = vrot.slane %v660, 5
      %v663 = vsel %vm361, %v658, %v662
      %v664 = vshrl.u32 %v342, 16
      %v666 = vrot.slane %v664, 4
      %v667 = vor.u32 %v666, %v662
      %v668 = vrot.slane %v667, 4
      %v670 = vshll.u32 %v343, 16
      %v672 = vrot.slane %v670, 5
      %v673 = vsel %vm361, %v668, %v672
      %v675 = vshrl.u32 %v344, 16
      %v677 = vrot.slane %v675, 4
      %v678 = vshll.u32 %v344, 16
      %v680 = vrot.slane %v678, 5
      %v681 = vor.u32 %v677, %v680
      %v682 = vrot.slane %v681, 4
      %v684 = vshll.u32 %v345, 16
      %v686 = vrot.slane %v684, 5
      %v687 = vsel %vm361, %v682, %v686
      %v688 = vshrl.u32 %v345, 16
      %v690 = vrot.slane %v688, 4
      %v691 = vor.u32 %v690, %v686
      %v692 = vrot.slane %v691, 4
      %v694 = vshll.u32 %v346, 16
      %v696 = vrot.slane %v694, 5
      %v697 = vsel %vm361, %v692, %v696
      %v699 = vshrl.u32 %v347, 16
      %v701 = vrot.slane %v699, 4
      %v702 = vshll.u32 %v347, 16
      %v704 = vrot.slane %v702, 5
      %v705 = vor.u32 %v701, %v704
      %v706 = vrot.slane %v705, 4
      %v708 = vshll.u32 %v348, 16
      %v710 = vrot.slane %v708, 5
      %v711 = vsel %vm361, %v706, %v710
      %v712 = vshrl.u32 %v348, 16
      %v714 = vrot.slane %v712, 4
      %v715 = vor.u32 %v714, %v710
      %v716 = vrot.slane %v715, 4
      %v718 = vshll.u32 %v349, 16
      %v720 = vrot.slane %v718, 5
      %v721 = vsel %vm361, %v716, %v720
      %v723 = vshrl.u32 %v350, 16
      %v725 = vrot.slane %v723, 4
      %v726 = vshll.u32 %v350, 16
      %v728 = vrot.slane %v726, 5
      %v729 = vor.u32 %v725, %v728
      %v730 = vrot.slane %v729, 4
      %v732 = vshll.u32 %v351, 16
      %v734 = vrot.slane %v732, 5
      %v735 = vsel %vm361, %v730, %v734
      %v736 = vshrl.u32 %v351, 16
      %v738 = vrot.slane %v736, 4
      %v739 = vor.u32 %v738, %v734
      %v740 = vrot.slane %v739, 4
      %v742 = vshll.u32 %v352, 16
      %v744 = vrot.slane %v742, 5
      %v745 = vsel %vm361, %v740, %v744
      %vm794 = vcmask 1042432
      %vm795 = vcmask 1046532
      %vm796 = vmor %vm794, %vm795
      %v797 = vrot.slane %v305, 5
      %v798 = vrot.slane %v797, 4
      %v799 = vrot.slane %v306, 5
      %v800 = vsel %vm796, %v798, %v799
      %v801 = vrot.slane %v799, 4
      %v802 = vrot.slane %v307, 5
      %v803 = vsel %vm796, %v801, %v802
      %v804 = vrot.slane %v308, 5
      %v805 = vrot.slane %v804, 4
      %v806 = vrot.slane %v309, 5
      %v807 = vsel %vm796, %v805, %v806
      %v808 = vrot.slane %v806, 4
      %v809 = vrot.slane %v310, 5
      %v810 = vsel %vm796, %v808, %v809
      %v811 = vrot.slane %v311, 5
      %v812 = vrot.slane %v811, 4
      %v813 = vrot.slane %v312, 5
      %v814 = vsel %vm796, %v812, %v813
      %v815 = vrot.slane %v813, 4
      %v816 = vrot.slane %v313, 5
      %v817 = vsel %vm796, %v815, %v816
      %v818 = vrot.slane %v314, 5
      %v819 = vrot.slane %v818, 4
      %v820 = vrot.slane %v315, 5
      %v821 = vsel %vm796, %v819, %v820
      %v822 = vrot.slane %v820, 4
      %v823 = vrot.slane %v316, 5
      %v824 = vsel %vm796, %v822, %v823
      %v825 = vrot.slane %v317, 5
      %v826 = vrot.slane %v825, 4
      %v827 = vrot.slane %v318, 5
      %v828 = vsel %vm796, %v826, %v827
      %v829 = vrot.slane %v827, 4
      %v830 = vrot.slane %v319, 5
      %v831 = vsel %vm796, %v829, %v830
      %v832 = vrot.slane %v320, 5
      %v833 = vrot.slane %v832, 4
      %v834 = vrot.slane %v321, 5
      %v835 = vsel %vm796, %v833, %v834
      %v836 = vrot.slane %v834, 4
      %v837 = vrot.slane %v322, 5
      %v838 = vsel %vm796, %v836, %v837
      %v839 = vrot.slane %v323, 5
      %v840 = vrot.slane %v839, 4
      %v841 = vrot.slane %v324, 5
      %v842 = vsel %vm796, %v840, %v841
      %v843 = vrot.slane %v841, 4
      %v844 = vrot.slane %v325, 5
      %v845 = vsel %vm796, %v843, %v844
      %v846 = vrot.slane %v326, 5
      %v847 = vrot.slane %v846, 4
      %v848 = vrot.slane %v327, 5
      %v849 = vsel %vm796, %v847, %v848
      %v850 = vrot.slane %v848, 4
      %v851 = vrot.slane %v328, 5
      %v852 = vsel %vm796, %v850, %v851
      %v853 = vrot.slane %v329, 5
      %v854 = vrot.slane %v853, 4
      %v855 = vrot.slane %v330, 5
      %v856 = vsel %vm796, %v854, %v855
      %v857 = vrot.slane %v855, 4
      %v858 = vrot.slane %v331, 5
      %v859 = vsel %vm796, %v857, %v858
      %v860 = vrot.slane %v332, 5
      %v861 = vrot.slane %v860, 4
      %v862 = vrot.slane %v333, 5
      %v863 = vsel %vm796, %v861, %v862
      %v864 = vrot.slane %v862, 4
      %v865 = vrot.slane %v334, 5
      %v866 = vsel %vm796, %v864, %v865
      %v867 = vrot.slane %v335, 5
      %v868 = vrot.slane %v867, 4
      %v869 = vrot.slane %v336, 5
      %v870 = vsel %vm796, %v868, %v869
      %v871 = vrot.slane %v869, 4
      %v872 = vrot.slane %v337, 5
      %v873 = vsel %vm796, %v871, %v872
      %v874 = vrot.slane %v338, 5
      %v875 = vrot.slane %v874, 4
      %v876 = vrot.slane %v339, 5
      %v877 = vsel %vm796, %v875, %v876
      %v878 = vrot.slane %v876, 4
      %v879 = vrot.slane %v340, 5
      %v880 = vsel %vm796, %v878, %v879
      %v881 = vrot.slane %v341, 5
      %v882 = vrot.slane %v881, 4
      %v883 = vrot.slane %v342, 5
      %v884 = vsel %vm796, %v882, %v883
      %v885 = vrot.slane %v883, 4
      %v886 = vrot.slane %v343, 5
      %v887 = vsel %vm796, %v885, %v886
      %v888 = vrot.slane %v344, 5
      %v889 = vrot.slane %v888, 4
      %v890 = vrot.slane %v345, 5
      %v891 = vsel %vm796, %v889, %v890
      %v892 = vrot.slane %v890, 4
      %v893 = vrot.slane %v346, 5
      %v894 = vsel %vm796, %v892, %v893
      %v895 = vrot.slane %v347, 5
      %v896 = vrot.slane %v895, 4
      %v897 = vrot.slane %v348, 5
      %v898 = vsel %vm796, %v896, %v897
      %v899 = vrot.slane %v897, 4
      %v900 = vrot.slane %v349, 5
      %v901 = vsel %vm796, %v899, %v900
      %v902 = vrot.slane %v350, 5
      %v903 = vrot.slane %v902, 4
      %v904 = vrot.slane %v351, 5
      %v905 = vsel %vm796, %v903, %v904
      %v906 = vrot.slane %v904, 4
      %v907 = vrot.slane %v352, 5
      %v908 = vsel %vm796, %v906, %v907
      %v910 = vshrl.u32 %v353, 16
      %v912 = vrot.slane %v910, 4
      %v913 = vshll.u32 %v353, 16
      %v915 = vrot.slane %v913, 5
      %v916 = vor.u32 %v912, %v915
      %v917 = vrot.slane %v916, 4
      %v919 = vshll.u32 %v354, 16
      %v921 = vrot.slane %v919, 5
      %v922 = vsel %vm361, %v917, %v921
      %v923 = vshrl.u32 %v354, 16
      %v925 = vrot.slane %v923, 4
      %v926 = vor.u32 %v925, %v921
      %v927 = vrot.slane %v926, 4
      %v929 = vshll.u32 %v355, 16
      %v931 = vrot.slane %v929, 5
      %v932 = vsel %vm361, %v927, %v931
      %v936 = vrot.slane %v353, 5
      %v937 = vrot.slane %v936, 4
      %v938 = vrot.slane %v354, 5
      %v939 = vsel %vm796, %v937, %v938
      %v940 = vrot.slane %v938, 4
      %v941 = vrot.slane %v355, 5
      %v942 = vsel %vm796, %v940, %v941
      %v944 = vshrl.u32 %v356, 16
      %v946 = vrot.slane %v944, 4
      %v947 = vshll.u32 %v356, 16
      %v949 = vrot.slane %v947, 5
      %v950 = vor.u32 %v946, %v949
      %v951 = vrot.slane %v950, 4
      %v953 = vshll.u32 %v357, 16
      %v955 = vrot.slane %v953, 5
      %v956 = vsel %vm361, %v951, %v955
      %v957 = vshrl.u32 %v357, 16
      %v959 = vrot.slane %v957, 4
      %v960 = vor.u32 %v959, %v955
      %v961 = vrot.slane %v960, 4
      %v963 = vshll.u32 %v358, 16
      %v965 = vrot.slane %v963, 5
      %v966 = vsel %vm361, %v961, %v965
      %v970 = vrot.slane %v356, 5
      %v971 = vrot.slane %v970, 4
      %v972 = vrot.slane %v357, 5
      %v973 = vsel %vm796, %v971, %v972
      %v974 = vrot.slane %v972, 4
      %v975 = vrot.slane %v358, 5
      %v976 = vsel %vm796, %v974, %v975
      %v977 = vunpack.c.l.b16 %v305
      %v978 = vunpack.c.l.b16 %v306
      %v979 = vunpack.c.l.b16 %v308
      %v980 = vunpack.c.l.b16 %v309
      %v981 = vunpack.c.l.b16 %v311
      %v982 = vunpack.c.l.b16 %v312
      %v983 = vunpack.c.l.b16 %v314
      %v984 = vunpack.c.l.b16 %v315
      %v985 = vunpack.c.l.b16 %v317
      %v986 = vunpack.c.l.b16 %v318
      %v987 = vunpack.c.l.b16 %v320
      %v988 = vunpack.c.l.b16 %v321
      %v989 = vunpack.c.l.b16 %v323
      %v990 = vunpack.c.l.b16 %v324
      %v991 = vunpack.c.l.b16 %v326
      %v992 = vunpack.c.l.b16 %v327
      %v993 = vunpack.c.l.b16 %v329
      %v994 = vunpack.c.l.b16 %v330
      %v995 = vunpack.c.l.b16 %v332
      %v996 = vunpack.c.l.b16 %v333
      %v997 = vunpack.c.l.b16 %v335
      %v998 = vunpack.c.l.b16 %v336
      %v999 = vunpack.c.l.b16 %v338
      %v1000 = vunpack.c.l.b16 %v339
      %v1001 = vunpack.c.l.b16 %v341
      %v1002 = vunpack.c.l.b16 %v342
      %v1003 = vunpack.c.l.b16 %v344
      %v1004 = vunpack.c.l.b16 %v345
      %v1005 = vunpack.c.l.b16 %v347
      %v1006 = vunpack.c.l.b16 %v348
      %v1007 = vunpack.c.l.b16 %v350
      %v1008 = vunpack.c.l.b16 %v351
      %v1009 = vpack.c.b16 %v978, %v977
      %v1010 = vpack.c.b16 %v980, %v979
      %v1011 = vpack.c.b16 %v982, %v981
      %v1012 = vpack.c.b16 %v984, %v983
      %v1013 = vpack.c.b16 %v986, %v985
      %v1014 = vpack.c.b16 %v988, %v987
      %v1015 = vpack.c.b16 %v990, %v989
      %v1016 = vpack.c.b16 %v992, %v991
      %v1017 = vpack.c.b16 %v994, %v993
      %v1018 = vpack.c.b16 %v996, %v995
      %v1019 = vpack.c.b16 %v998, %v997
      %v1020 = vpack.c.b16 %v1000, %v999
      %v1021 = vpack.c.b16 %v1002, %v1001
      %v1022 = vpack.c.b16 %v1004, %v1003
      %v1023 = vpack.c.b16 %v1006, %v1005
      %v1024 = vpack.c.b16 %v1008, %v1007
      %v1041 = vunpack.c.l.b16 %v375
      %v1042 = vunpack.c.l.b16 %v385
      %v1043 = vunpack.c.l.b16 %v399
      %v1044 = vunpack.c.l.b16 %v409
      %v1045 = vunpack.c.l.b16 %v423
      %v1046 = vunpack.c.l.b16 %v433
      %v1047 = vunpack.c.l.b16 %v447
      %v1048 = vunpack.c.l.b16 %v457
      %v1049 = vunpack.c.l.b16 %v471
      %v1050 = vunpack.c.l.b16 %v481
      %v1051 = vunpack.c.l.b16 %v495
      %v1052 = vunpack.c.l.b16 %v505
      %v1053 = vunpack.c.l.b16 %v519
      %v1054 = vunpack.c.l.b16 %v529
      %v1055 = vunpack.c.l.b16 %v543
      %v1056 = vunpack.c.l.b16 %v553
      %v1057 = vunpack.c.l.b16 %v567
      %v1058 = vunpack.c.l.b16 %v577
      %v1059 = vunpack.c.l.b16 %v591
      %v1060 = vunpack.c.l.b16 %v601
      %v1061 = vunpack.c.l.b16 %v615
      %v1062 = vunpack.c.l.b16 %v625
      %v1063 = vunpack.c.l.b16 %v639
      %v1064 = vunpack.c.l.b16 %v649
      %v1065 = vunpack.c.l.b16 %v663
      %v1066 = vunpack.c.l.b16 %v673
      %v1067 = vunpack.c.l.b16 %v687
      %v1068 = vunpack.c.l.b16 %v697
      %v1069 = vunpack.c.l.b16 %v711
      %v1070 = vunpack.c.l.b16 %v721
      %v1071 = vunpack.c.l.b16 %v735
      %v1072 = vunpack.c.l.b16 %v745
      %v1073 = vpack.c.b16 %v1042, %v1041
      %v1074 = vpack.c.b16 %v1044, %v1043
      %v1075 = vpack.c.b16 %v1046, %v1045
      %v1076 = vpack.c.b16 %v1048, %v1047
      %v1077 = vpack.c.b16 %v1050, %v1049
      %v1078 = vpack.c.b16 %v1052, %v1051
      %v1079 = vpack.c.b16 %v1054, %v1053
      %v1080 = vpack.c.b16 %v1056, %v1055
      %v1081 = vpack.c.b16 %v1058, %v1057
      %v1082 = vpack.c.b16 %v1060, %v1059
      %v1083 = vpack.c.b16 %v1062, %v1061
      %v1084 = vpack.c.b16 %v1064, %v1063
      %v1085 = vpack.c.b16 %v1066, %v1065
      %v1086 = vpack.c.b16 %v1068, %v1067
      %v1087 = vpack.c.b16 %v1070, %v1069
      %v1088 = vpack.c.b16 %v1072, %v1071
      %v1105 = vunpack.c.l.b16 %v800
      %v1106 = vunpack.c.l.b16 %v803
      %v1107 = vunpack.c.l.b16 %v807
      %v1108 = vunpack.c.l.b16 %v810
      %v1109 = vunpack.c.l.b16 %v814
      %v1110 = vunpack.c.l.b16 %v817
      %v1111 = vunpack.c.l.b16 %v821
      %v1112 = vunpack.c.l.b16 %v824
      %v1113 = vunpack.c.l.b16 %v828
      %v1114 = vunpack.c.l.b16 %v831
      %v1115 = vunpack.c.l.b16 %v835
      %v1116 = vunpack.c.l.b16 %v838
      %v1117 = vunpack.c.l.b16 %v842
      %v1118 = vunpack.c.l.b16 %v845
      %v1119 = vunpack.c.l.b16 %v849
      %v1120 = vunpack.c.l.b16 %v852
      %v1121 = vunpack.c.l.b16 %v856
      %v1122 = vunpack.c.l.b16 %v859
      %v1123 = vunpack.c.l.b16 %v863
      %v1124 = vunpack.c.l.b16 %v866
      %v1125 = vunpack.c.l.b16 %v870
      %v1126 = vunpack.c.l.b16 %v873
      %v1127 = vunpack.c.l.b16 %v877
      %v1128 = vunpack.c.l.b16 %v880
      %v1129 = vunpack.c.l.b16 %v884
      %v1130 = vunpack.c.l.b16 %v887
      %v1131 = vunpack.c.l.b16 %v891
      %v1132 = vunpack.c.l.b16 %v894
      %v1133 = vunpack.c.l.b16 %v898
      %v1134 = vunpack.c.l.b16 %v901
      %v1135 = vunpack.c.l.b16 %v905
      %v1136 = vunpack.c.l.b16 %v908
      %v1137 = vpack.c.b16 %v1106, %v1105
      %v1138 = vpack.c.b16 %v1108, %v1107
      %v1139 = vpack.c.b16 %v1110, %v1109
      %v1140 = vpack.c.b16 %v1112, %v1111
      %v1141 = vpack.c.b16 %v1114, %v1113
      %v1142 = vpack.c.b16 %v1116, %v1115
      %v1143 = vpack.c.b16 %v1118, %v1117
      %v1144 = vpack.c.b16 %v1120, %v1119
      %v1145 = vpack.c.b16 %v1122, %v1121
      %v1146 = vpack.c.b16 %v1124, %v1123
      %v1147 = vpack.c.b16 %v1126, %v1125
      %v1148 = vpack.c.b16 %v1128, %v1127
      %v1149 = vpack.c.b16 %v1130, %v1129
      %v1150 = vpack.c.b16 %v1132, %v1131
      %v1151 = vpack.c.b16 %v1134, %v1133
      %v1152 = vpack.c.b16 %v1136, %v1135
      %v1169 = vunpack.c.l.b16 %v353
      %v1170 = vunpack.c.l.b16 %v354
      %v1171 = vpack.c.b16 %v1170, %v1169
      %v1173 = vunpack.c.l.b16 %v922
      %v1174 = vunpack.c.l.b16 %v932
      %v1175 = vpack.c.b16 %v1174, %v1173
      %v1177 = vunpack.c.l.b16 %v939
      %v1178 = vunpack.c.l.b16 %v942
      %v1179 = vpack.c.b16 %v1178, %v1177
      %v1181 = vunpack.c.l.b16 %v356
      %v1182 = vunpack.c.l.b16 %v357
      %v1183 = vpack.c.b16 %v1182, %v1181
      %v1185 = vunpack.c.l.b16 %v956
      %v1186 = vunpack.c.l.b16 %v966
      %v1187 = vpack.c.b16 %v1186, %v1185
      %v1189 = vunpack.c.l.b16 %v973
      %v1190 = vunpack.c.l.b16 %v976
      %v1191 = vpack.c.b16 %v1190, %v1189
      %v1193 = vld [vmem:[%s1] sm:$0xf]
      %v1194 = vld [vmem:[%s1 + $0x4] sm:$0xf]
      %v1195 = vld [vmem:[%s1 + $0x8] sm:$0xf]
      %v1196 = vld [vmem:[%s1 + $0xc] sm:$0xf]
      %v1197 = vld [vmem:[%s1 + $0x10] sm:$0xf]
      %v1198 = vld [vmem:[%s1 + $0x14] sm:$0xf]
      %v1199 = vld [vmem:[%s1 + $0x18] sm:$0xf]
      %v1200 = vld [vmem:[%s1 + $0x1c] sm:$0xf]
      %v1201 = vld [vmem:[%s1 + $0x20] sm:$0xf]
      %v1202 = vld [vmem:[%s1 + $0x24] sm:$0xf]
      %v1203 = vld [vmem:[%s1 + $0x28] sm:$0xf]
      %v1204 = vld [vmem:[%s1 + $0x2c] sm:$0xf]
      %v1205 = vld [vmem:[%s1 + $0x30] sm:$0xf]
      %v1206 = vld [vmem:[%s1 + $0x34] sm:$0xf]
      %v1207 = vld [vmem:[%s1 + $0x38] sm:$0xf]
      %v1208 = vld [vmem:[%s1 + $0x3c] sm:$0xf]
      %v1209 = vld [vmem:[%s1 + $0x40] sm:$0xf]
      %v1210 = vld [vmem:[%s1 + $0x44] sm:$0xf]
      %v1211 = vld [vmem:[%s1 + $0x48] sm:$0xf]
      %v1212 = vld [vmem:[%s1 + $0x4c] sm:$0xf]
      %v1213 = vld [vmem:[%s1 + $0x50] sm:$0xf]
      %v1214 = vld [vmem:[%s1 + $0x54] sm:$0xf]
      %v1215 = vld [vmem:[%s1 + $0x58] sm:$0xf]
      %v1216 = vld [vmem:[%s1 + $0x5c] sm:$0xf]
      %v1217 = vld [vmem:[%s1 + $0x60] sm:$0xf]
      %v1218 = vld [vmem:[%s1 + $0x64] sm:$0xf]
      %v1219 = vld [vmem:[%s1 + $0x68] sm:$0xf]
      %v1220 = vld [vmem:[%s1 + $0x6c] sm:$0xf]
      %v1221 = vld [vmem:[%s1 + $0x70] sm:$0xf]
      %v1222 = vld [vmem:[%s1 + $0x74] sm:$0xf]
      %v1223 = vld [vmem:[%s1 + $0x78] sm:$0xf]
      %v1224 = vld [vmem:[%s1 + $0x7c] sm:$0xf]
      %v1225 = vld [vmem:[%s1 + $0x80] sm:$0xf]
      %v1226 = vld [vmem:[%s1 + $0x84] sm:$0xf]
      %v1227 = vld [vmem:[%s1 + $0x88] sm:$0xf]
      %v1228 = vld [vmem:[%s1 + $0x8c] sm:$0xf]
      %v1229 = vld [vmem:[%s1 + $0x90] sm:$0xf]
      %v1230 = vld [vmem:[%s1 + $0x94] sm:$0xf]
      %v1231 = vld [vmem:[%s1 + $0x98] sm:$0xf]
      %v1232 = vld [vmem:[%s1 + $0x9c] sm:$0xf]
      %v1233 = vld [vmem:[%s1 + $0xa0] sm:$0xf]
      %v1234 = vld [vmem:[%s1 + $0xa4] sm:$0xf]
      %v1235 = vld [vmem:[%s1 + $0xa8] sm:$0xf]
      %v1236 = vld [vmem:[%s1 + $0xac] sm:$0xf]
      %v1237 = vld [vmem:[%s1 + $0xb0] sm:$0xf]
      %v1238 = vld [vmem:[%s1 + $0xb4] sm:$0xf]
      %v1239 = vld [vmem:[%s1 + $0xb8] sm:$0xf]
      %v1240 = vld [vmem:[%s1 + $0xbc] sm:$0xf]
      %v1241 = vld [vmem:[%s1 + $0xc0] sm:$0xf]
      %v1242 = vld [vmem:[%s1 + $0xc4] sm:$0xf]
      %v1243 = vld [vmem:[%s1 + $0xc8] sm:$0xf]
      %v1244 = vld [vmem:[%s1 + $0xcc] sm:$0xf]
      %v1245 = vld [vmem:[%s1 + $0xd0] sm:$0xf]
      %v1246 = vld [vmem:[%s1 + $0xd4] sm:$0xf]
      %v1247 = vld [vmem:[%s1 + $0xd8] sm:$0xf]
      %v1248 = vld [vmem:[%s1 + $0xdc] sm:$0xf]
      %v1249 = vld [vmem:[%s1 + $0xe0] sm:$0xf]
      %v1250 = vld [vmem:[%s1 + $0xe4] sm:$0xf]
      %v1251 = vld [vmem:[%s1 + $0xe8] sm:$0xf]
      %v1252 = vld [vmem:[%s1 + $0xec] sm:$0xf]
      %v1253 = vld [vmem:[%s1 + $0xf0] sm:$0xf]
      %v1254 = vld [vmem:[%s1 + $0xf4] sm:$0xf]
      %v1255 = vld [vmem:[%s1 + $0xf8] sm:$0xf]
      %v1256 = vld [vmem:[%s1 + $0xfc] sm:$0xf]
      %v1257 = vld [vmem:[%s1 + $0x100] sm:$0xf]
      %v1258 = vld [vmem:[%s1 + $0x104] sm:$0xf]
      %v1259 = vld [vmem:[%s1 + $0x108] sm:$0xf]
      %v1260 = vld [vmem:[%s1 + $0x10c] sm:$0xf]
      %v1261 = vld [vmem:[%s1 + $0x110] sm:$0xf]
      %v1262 = vld [vmem:[%s1 + $0x114] sm:$0xf]
      %v1263 = vld [vmem:[%s1 + $0x118] sm:$0xf]
      %v1264 = vld [vmem:[%s1 + $0x11c] sm:$0xf]
      %v1265 = vld [vmem:[%s1 + $0x120] sm:$0xf]
      %v1266 = vld [vmem:[%s1 + $0x124] sm:$0xf]
      %v1267 = vld [vmem:[%s1 + $0x128] sm:$0xf]
      %v1268 = vld [vmem:[%s1 + $0x12c] sm:$0xf]
      %v1269 = vld [vmem:[%s1 + $0x130] sm:$0xf]
      %v1270 = vld [vmem:[%s1 + $0x134] sm:$0xf]
      %v1271 = vld [vmem:[%s1 + $0x138] sm:$0xf]
      %v1272 = vld [vmem:[%s1 + $0x13c] sm:$0xf]
      %v1273 = vld [vmem:[%s1 + $0x140] sm:$0xf]
      %v1274 = vld [vmem:[%s1 + $0x144] sm:$0xf]
      %v1275 = vld [vmem:[%s1 + $0x148] sm:$0xf]
      %v1276 = vld [vmem:[%s1 + $0x14c] sm:$0xf]
      %v1277 = vld [vmem:[%s1 + $0x150] sm:$0xf]
      %v1278 = vld [vmem:[%s1 + $0x154] sm:$0xf]
      %v1279 = vld [vmem:[%s1 + $0x158] sm:$0xf]
      %v1280 = vld [vmem:[%s1 + $0x15c] sm:$0xf]
      %v1281 = vld [vmem:[%s1 + $0x160] sm:$0xf]
      %v1282 = vld [vmem:[%s1 + $0x164] sm:$0xf]
      %v1283 = vld [vmem:[%s1 + $0x168] sm:$0xf]
      %v1284 = vld [vmem:[%s1 + $0x16c] sm:$0xf]
      %v1285 = vld [vmem:[%s1 + $0x170] sm:$0xf]
      %v1286 = vld [vmem:[%s1 + $0x174] sm:$0xf]
      %v1287 = vld [vmem:[%s1 + $0x178] sm:$0xf]
      %v1288 = vld [vmem:[%s1 + $0x17c] sm:$0xf]
      %v1289 = vld [vmem:[%s1 + $0x180] sm:$0xf]
      %v1290 = vld [vmem:[%s1 + $0x184] sm:$0xf]
      %v1291 = vld [vmem:[%s1 + $0x188] sm:$0xf]
      %v1292 = vld [vmem:[%s1 + $0x18c] sm:$0xf]
      %v1293 = vld [vmem:[%s1 + $0x190] sm:$0xf]
      %v1294 = vld [vmem:[%s1 + $0x194] sm:$0xf]
      %v1295 = vld [vmem:[%s1 + $0x198] sm:$0xf]
      %v1296 = vld [vmem:[%s1 + $0x19c] sm:$0xf]
      %v1297 = vld [vmem:[%s1 + $0x1a0] sm:$0xf]
      %v1298 = vld [vmem:[%s1 + $0x1a4] sm:$0xf]
      %v1299 = vld [vmem:[%s1 + $0x1a8] sm:$0xf]
      %v1300 = vld [vmem:[%s1 + $0x1ac] sm:$0xf]
      %v1301 = vld [vmem:[%s1 + $0x1b0] sm:$0xf]
      %v1302 = vld [vmem:[%s1 + $0x1b4] sm:$0xf]
      %v1303 = vld [vmem:[%s1 + $0x1b8] sm:$0xf]
      %v1304 = vld [vmem:[%s1 + $0x1bc] sm:$0xf]
      %v1305 = vld [vmem:[%s1 + $0x1c0] sm:$0xf]
      %v1306 = vld [vmem:[%s1 + $0x1c4] sm:$0xf]
      %v1307 = vld [vmem:[%s1 + $0x1c8] sm:$0xf]
      %v1308 = vld [vmem:[%s1 + $0x1cc] sm:$0xf]
      %v1309 = vld [vmem:[%s1 + $0x1d0] sm:$0xf]
      %v1310 = vld [vmem:[%s1 + $0x1d4] sm:$0xf]
      %v1311 = vld [vmem:[%s1 + $0x1d8] sm:$0xf]
      %v1312 = vld [vmem:[%s1 + $0x1dc] sm:$0xf]
      %v1313 = vld [vmem:[%s1 + $0x1e0] sm:$0xf]
      %v1314 = vld [vmem:[%s1 + $0x1e4] sm:$0xf]
      %v1315 = vld [vmem:[%s1 + $0x1e8] sm:$0xf]
      %v1316 = vld [vmem:[%s1 + $0x1ec] sm:$0xf]
      %v1317 = vld [vmem:[%s1 + $0x1f0] sm:$0xf]
      %v1318 = vld [vmem:[%s1 + $0x1f4] sm:$0xf]
      %v1319 = vld [vmem:[%s1 + $0x1f8] sm:$0xf]
      %v1320 = vld [vmem:[%s1 + $0x1fc] sm:$0xf]
      %v1321 = vld [vmem:[%s1 + $0x200] sm:$0xf]
      %v1322 = vld [vmem:[%s1 + $0x204] sm:$0xf]
      %v1323 = vld [vmem:[%s1 + $0x208] sm:$0xf]
      %v1324 = vld [vmem:[%s1 + $0x20c] sm:$0xf]
      %v1325 = vld [vmem:[%s1 + $0x210] sm:$0xf]
      %v1326 = vld [vmem:[%s1 + $0x214] sm:$0xf]
      %v1327 = vld [vmem:[%s1 + $0x218] sm:$0xf]
      %v1328 = vld [vmem:[%s1 + $0x21c] sm:$0xf]
      %v1329 = vld [vmem:[%s1 + $0x220] sm:$0xf]
      %v1330 = vld [vmem:[%s1 + $0x224] sm:$0xf]
      %v1331 = vld [vmem:[%s1 + $0x228] sm:$0xf]
      %v1332 = vld [vmem:[%s1 + $0x22c] sm:$0xf]
      %v1333 = vld [vmem:[%s1 + $0x230] sm:$0xf]
      %v1334 = vld [vmem:[%s1 + $0x234] sm:$0xf]
      %v1335 = vld [vmem:[%s1 + $0x238] sm:$0xf]
      %v1336 = vld [vmem:[%s1 + $0x23c] sm:$0xf]
      %v1337 = vld [vmem:[%s2] sm:$0x1]
      %v1339 = vlaneseq
      %v1340 = vshrl.u32 %v1339, 7
      %v1341 = vsub.s32 0, %v1340
      %v1342 = vrot.slane %v1337, %v1341
      %v1488 = vunpack.c.l.b16 %v1193
      %v1489 = vunpack.c.l.b16 %v1194
      %v1490 = vunpack.c.l.b16 %v1195
      %v1491 = vunpack.c.l.b16 %v1196
      %v1492 = vunpack.c.l.b16 %v1197
      %v1493 = vunpack.c.l.b16 %v1198
      %v1494 = vunpack.c.l.b16 %v1199
      %v1495 = vunpack.c.l.b16 %v1200
      %v1496 = vunpack.c.l.b16 %v1201
      %v1497 = vunpack.c.l.b16 %v1202
      %v1498 = vunpack.c.l.b16 %v1203
      %v1499 = vunpack.c.l.b16 %v1204
      %v1500 = vunpack.c.l.b16 %v1205
      %v1501 = vunpack.c.l.b16 %v1206
      %v1502 = vunpack.c.l.b16 %v1207
      %v1503 = vunpack.c.l.b16 %v1208
      %v1504 = vunpack.c.l.b16 %v1209
      %v1505 = vunpack.c.l.b16 %v1210
      %v1506 = vunpack.c.l.b16 %v1211
      %v1507 = vunpack.c.l.b16 %v1212
      %v1508 = vunpack.c.l.b16 %v1213
      %v1509 = vunpack.c.l.b16 %v1214
      %v1510 = vunpack.c.l.b16 %v1215
      %v1511 = vunpack.c.l.b16 %v1216
      %v1512 = vunpack.c.l.b16 %v1217
      %v1513 = vunpack.c.l.b16 %v1218
      %v1514 = vunpack.c.l.b16 %v1219
      %v1515 = vunpack.c.l.b16 %v1220
      %v1516 = vunpack.c.l.b16 %v1221
      %v1517 = vunpack.c.l.b16 %v1222
      %v1518 = vunpack.c.l.b16 %v1223
      %v1519 = vunpack.c.l.b16 %v1224
      %v1520 = vunpack.c.l.b16 %v1225
      %v1521 = vunpack.c.l.b16 %v1226
      %v1522 = vunpack.c.l.b16 %v1227
      %v1523 = vunpack.c.l.b16 %v1228
      %v1524 = vunpack.c.l.b16 %v1229
      %v1525 = vunpack.c.l.b16 %v1230
      %v1526 = vunpack.c.l.b16 %v1231
      %v1527 = vunpack.c.l.b16 %v1232
      %v1528 = vunpack.c.l.b16 %v1233
      %v1529 = vunpack.c.l.b16 %v1234
      %v1530 = vunpack.c.l.b16 %v1235
      %v1531 = vunpack.c.l.b16 %v1236
      %v1532 = vunpack.c.l.b16 %v1237
      %v1533 = vunpack.c.l.b16 %v1238
      %v1534 = vunpack.c.l.b16 %v1239
      %v1535 = vunpack.c.l.b16 %v1240
      %v1536 = vunpack.c.l.b16 %v1241
      %v1537 = vunpack.c.l.b16 %v1242
      %v1538 = vunpack.c.l.b16 %v1243
      %v1539 = vunpack.c.l.b16 %v1244
      %v1540 = vunpack.c.l.b16 %v1245
      %v1541 = vunpack.c.l.b16 %v1246
      %v1542 = vunpack.c.l.b16 %v1247
      %v1543 = vunpack.c.l.b16 %v1248
      %v1544 = vunpack.c.l.b16 %v1249
      %v1545 = vunpack.c.l.b16 %v1250
      %v1546 = vunpack.c.l.b16 %v1251
      %v1547 = vunpack.c.l.b16 %v1252
      %v1548 = vunpack.c.l.b16 %v1253
      %v1549 = vunpack.c.l.b16 %v1254
      %v1550 = vunpack.c.l.b16 %v1255
      %v1551 = vunpack.c.l.b16 %v1256
      %v1552 = vunpack.c.l.b16 %v1257
      %v1553 = vunpack.c.l.b16 %v1258
      %v1554 = vunpack.c.l.b16 %v1259
      %v1555 = vunpack.c.l.b16 %v1260
      %v1556 = vunpack.c.l.b16 %v1261
      %v1557 = vunpack.c.l.b16 %v1262
      %v1558 = vunpack.c.l.b16 %v1263
      %v1559 = vunpack.c.l.b16 %v1264
      %v1560 = vunpack.c.l.b16 %v1265
      %v1561 = vunpack.c.l.b16 %v1266
      %v1562 = vunpack.c.l.b16 %v1267
      %v1563 = vunpack.c.l.b16 %v1268
      %v1564 = vunpack.c.l.b16 %v1269
      %v1565 = vunpack.c.l.b16 %v1270
      %v1566 = vunpack.c.l.b16 %v1271
      %v1567 = vunpack.c.l.b16 %v1272
      %v1568 = vunpack.c.l.b16 %v1273
      %v1569 = vunpack.c.l.b16 %v1274
      %v1570 = vunpack.c.l.b16 %v1275
      %v1571 = vunpack.c.l.b16 %v1276
      %v1572 = vunpack.c.l.b16 %v1277
      %v1573 = vunpack.c.l.b16 %v1278
      %v1574 = vunpack.c.l.b16 %v1279
      %v1575 = vunpack.c.l.b16 %v1280
      %v1576 = vunpack.c.l.b16 %v1281
      %v1577 = vunpack.c.l.b16 %v1282
      %v1578 = vunpack.c.l.b16 %v1283
      %v1579 = vunpack.c.l.b16 %v1284
      %v1580 = vunpack.c.l.b16 %v1285
      %v1581 = vunpack.c.l.b16 %v1286
      %v1582 = vunpack.c.l.b16 %v1287
      %v1583 = vunpack.c.l.b16 %v1288
      %v1584 = vunpack.c.l.b16 %v1289
      %v1585 = vunpack.c.l.b16 %v1290
      %v1586 = vunpack.c.l.b16 %v1291
      %v1587 = vunpack.c.l.b16 %v1292
      %v1588 = vunpack.c.l.b16 %v1293
      %v1589 = vunpack.c.l.b16 %v1294
      %v1590 = vunpack.c.l.b16 %v1295
      %v1591 = vunpack.c.l.b16 %v1296
      %v1592 = vunpack.c.l.b16 %v1297
      %v1593 = vunpack.c.l.b16 %v1298
      %v1594 = vunpack.c.l.b16 %v1299
      %v1595 = vunpack.c.l.b16 %v1300
      %v1596 = vunpack.c.l.b16 %v1301
      %v1597 = vunpack.c.l.b16 %v1302
      %v1598 = vunpack.c.l.b16 %v1303
      %v1599 = vunpack.c.l.b16 %v1304
      %v1600 = vunpack.c.l.b16 %v1305
      %v1601 = vunpack.c.l.b16 %v1306
      %v1602 = vunpack.c.l.b16 %v1307
      %v1603 = vunpack.c.l.b16 %v1308
      %v1604 = vunpack.c.l.b16 %v1309
      %v1605 = vunpack.c.l.b16 %v1310
      %v1606 = vunpack.c.l.b16 %v1311
      %v1607 = vunpack.c.l.b16 %v1312
      %v1608 = vunpack.c.l.b16 %v1313
      %v1609 = vunpack.c.l.b16 %v1314
      %v1610 = vunpack.c.l.b16 %v1315
      %v1611 = vunpack.c.l.b16 %v1316
      %v1612 = vunpack.c.l.b16 %v1317
      %v1613 = vunpack.c.l.b16 %v1318
      %v1614 = vunpack.c.l.b16 %v1319
      %v1615 = vunpack.c.l.b16 %v1320
      %v1616 = vunpack.c.l.b16 %v1321
      %v1617 = vunpack.c.l.b16 %v1322
      %v1618 = vunpack.c.l.b16 %v1323
      %v1619 = vunpack.c.l.b16 %v1324
      %v1620 = vunpack.c.l.b16 %v1325
      %v1621 = vunpack.c.l.b16 %v1326
      %v1622 = vunpack.c.l.b16 %v1327
      %v1623 = vunpack.c.l.b16 %v1328
      %v1624 = vunpack.c.l.b16 %v1329
      %v1625 = vunpack.c.l.b16 %v1330
      %v1626 = vunpack.c.l.b16 %v1331
      %v1627 = vunpack.c.l.b16 %v1332
      %v1628 = vunpack.c.l.b16 %v1333
      %v1629 = vunpack.c.l.b16 %v1334
      %v1630 = vunpack.c.l.b16 %v1335
      %v1631 = vunpack.c.l.b16 %v1336
      %v1632 = vpack.c.b16 %v1489, %v1488
      %v1633 = vpack.c.b16 %v1491, %v1490
      %v1634 = vpack.c.b16 %v1493, %v1492
      %v1635 = vpack.c.b16 %v1495, %v1494
      %v1636 = vpack.c.b16 %v1497, %v1496
      %v1637 = vpack.c.b16 %v1499, %v1498
      %v1638 = vpack.c.b16 %v1501, %v1500
      %v1639 = vpack.c.b16 %v1503, %v1502
      %v1640 = vpack.c.b16 %v1505, %v1504
      %v1641 = vpack.c.b16 %v1507, %v1506
      %v1642 = vpack.c.b16 %v1509, %v1508
      %v1643 = vpack.c.b16 %v1511, %v1510
      %v1644 = vpack.c.b16 %v1513, %v1512
      %v1645 = vpack.c.b16 %v1515, %v1514
      %v1646 = vpack.c.b16 %v1517, %v1516
      %v1647 = vpack.c.b16 %v1519, %v1518
      %v1648 = vpack.c.b16 %v1521, %v1520
      %v1649 = vpack.c.b16 %v1523, %v1522
      %v1650 = vpack.c.b16 %v1525, %v1524
      %v1651 = vpack.c.b16 %v1527, %v1526
      %v1652 = vpack.c.b16 %v1529, %v1528
      %v1653 = vpack.c.b16 %v1531, %v1530
      %v1654 = vpack.c.b16 %v1533, %v1532
      %v1655 = vpack.c.b16 %v1535, %v1534
      %v1656 = vpack.c.b16 %v1537, %v1536
      %v1657 = vpack.c.b16 %v1539, %v1538
      %v1658 = vpack.c.b16 %v1541, %v1540
      %v1659 = vpack.c.b16 %v1543, %v1542
      %v1660 = vpack.c.b16 %v1545, %v1544
      %v1661 = vpack.c.b16 %v1547, %v1546
      %v1662 = vpack.c.b16 %v1549, %v1548
      %v1663 = vpack.c.b16 %v1551, %v1550
      %v1664 = vpack.c.b16 %v1553, %v1552
      %v1665 = vpack.c.b16 %v1555, %v1554
      %v1666 = vpack.c.b16 %v1557, %v1556
      %v1667 = vpack.c.b16 %v1559, %v1558
      %v1668 = vpack.c.b16 %v1561, %v1560
      %v1669 = vpack.c.b16 %v1563, %v1562
      %v1670 = vpack.c.b16 %v1565, %v1564
      %v1671 = vpack.c.b16 %v1567, %v1566
      %v1672 = vpack.c.b16 %v1569, %v1568
      %v1673 = vpack.c.b16 %v1571, %v1570
      %v1674 = vpack.c.b16 %v1573, %v1572
      %v1675 = vpack.c.b16 %v1575, %v1574
      %v1676 = vpack.c.b16 %v1577, %v1576
      %v1677 = vpack.c.b16 %v1579, %v1578
      %v1678 = vpack.c.b16 %v1581, %v1580
      %v1679 = vpack.c.b16 %v1583, %v1582
      %v1680 = vpack.c.b16 %v1585, %v1584
      %v1681 = vpack.c.b16 %v1587, %v1586
      %v1682 = vpack.c.b16 %v1589, %v1588
      %v1683 = vpack.c.b16 %v1591, %v1590
      %v1684 = vpack.c.b16 %v1593, %v1592
      %v1685 = vpack.c.b16 %v1595, %v1594
      %v1686 = vpack.c.b16 %v1597, %v1596
      %v1687 = vpack.c.b16 %v1599, %v1598
      %v1688 = vpack.c.b16 %v1601, %v1600
      %v1689 = vpack.c.b16 %v1603, %v1602
      %v1690 = vpack.c.b16 %v1605, %v1604
      %v1691 = vpack.c.b16 %v1607, %v1606
      %v1692 = vpack.c.b16 %v1609, %v1608
      %v1693 = vpack.c.b16 %v1611, %v1610
      %v1694 = vpack.c.b16 %v1613, %v1612
      %v1695 = vpack.c.b16 %v1615, %v1614
      %v1696 = vpack.c.b16 %v1617, %v1616
      %v1697 = vpack.c.b16 %v1619, %v1618
      %v1698 = vpack.c.b16 %v1621, %v1620
      %v1699 = vpack.c.b16 %v1623, %v1622
      %v1700 = vpack.c.b16 %v1625, %v1624
      %v1701 = vpack.c.b16 %v1627, %v1626
      %v1702 = vpack.c.b16 %v1629, %v1628
      %v1703 = vpack.c.b16 %v1631, %v1630
      %1776 = vmatprep.subr.bf16.mxu0 0
      %1777 = vmatpush1.bf16.msra.mxu0 %v1639
      %1778 = vmatprep.subr.bf16.mxu0 0
      %1779 = vmatpush1.bf16.msra.mxu0 %v1638
      %1780 = vmatprep.subr.bf16.mxu0 0
      %1781 = vmatpush1.bf16.msra.mxu0 %v1637
      %1782 = vmatprep.subr.bf16.mxu0 0
      %1783 = vmatpush1.bf16.msra.mxu0 %v1636
      %1784 = vmatprep.subr.bf16.mxu0 0
      %1785 = vmatpush1.bf16.msra.mxu0 %v1635
      %1786 = vmatprep.subr.bf16.mxu0 0
      %1787 = vmatpush1.bf16.msra.mxu0 %v1634
      %1788 = vmatprep.subr.bf16.mxu0 0
      %1789 = vmatpush1.bf16.msra.mxu0 %v1633
      %1790 = vmatprep.subr.bf16.mxu0 0
      %1791 = vmatpush1.bf16.msra.mxu0 %v1632
      %1792 = vmatprep.subr.bf16.mxu0 0
      %1793 = vmatpush2.bf16.msra.mxu0 %v1647
      %1794 = vmatprep.subr.bf16.mxu0 0
      %1795 = vmatpush2.bf16.msra.mxu0 %v1646
      %1796 = vmatprep.subr.bf16.mxu0 0
      %1797 = vmatpush2.bf16.msra.mxu0 %v1645
      %1798 = vmatprep.subr.bf16.mxu0 0
      %1799 = vmatpush2.bf16.msra.mxu0 %v1644
      %1800 = vmatprep.subr.bf16.mxu0 0
      %1801 = vmatpush2.bf16.msra.mxu0 %v1643
      %1802 = vmatprep.subr.bf16.mxu0 0
      %1803 = vmatpush2.bf16.msra.mxu0 %v1642
      %1804 = vmatprep.subr.bf16.mxu0 0
      %1805 = vmatpush2.bf16.msra.mxu0 %v1641
      %1806 = vmatprep.subr.bf16.mxu0 0
      %1807 = vmatpush2.bf16.msra.mxu0 %v1640
      %1808 = vmatprep.mubr.bf16.mxu0 %v1073
      %1809 = vmatmul.mubr.bf16.gmra.mxu0 %v1009
      %v1810 = vpop.f32.mrf.mxu0
      %v1811 = vadd.f32 %v1342, %v1810
      %v1812 = vpop.f32.mrf.mxu0
      %v1813 = vpop.f32.mrf.mxu0
      %v1814 = vadd.f32 %v1342, %v1813
      %v1815 = vpop.f32.mrf.mxu0
      %1816 = vmatprep.mubr.bf16.mxu0 %v1074
      %1817 = vmatmul.mubr.bf16.gmra.mxu0 %v1010
      %v1818 = vpop.f32.mrf.mxu0
      %v1819 = vadd.f32 %v1342, %v1818
      %v1820 = vpop.f32.mrf.mxu0
      %v1821 = vpop.f32.mrf.mxu0
      %v1822 = vadd.f32 %v1342, %v1821
      %v1823 = vpop.f32.mrf.mxu0
      %1824 = vmatprep.mubr.bf16.mxu0 %v1075
      %1825 = vmatmul.mubr.bf16.gmra.mxu0 %v1011
      %v1826 = vpop.f32.mrf.mxu0
      %v1827 = vadd.f32 %v1342, %v1826
      %v1828 = vpop.f32.mrf.mxu0
      %v1829 = vpop.f32.mrf.mxu0
      %v1830 = vadd.f32 %v1342, %v1829
      %v1831 = vpop.f32.mrf.mxu0
      %1832 = vmatprep.mubr.bf16.mxu0 %v1076
      %1833 = vmatmul.mubr.bf16.gmra.mxu0 %v1012
      %v1834 = vpop.f32.mrf.mxu0
      %v1835 = vadd.f32 %v1342, %v1834
      %v1836 = vpop.f32.mrf.mxu0
      %v1837 = vpop.f32.mrf.mxu0
      %v1838 = vadd.f32 %v1342, %v1837
      %v1839 = vpop.f32.mrf.mxu0
      %1840 = vmatprep.mubr.bf16.mxu0 %v1077
      %1841 = vmatmul.mubr.bf16.gmra.mxu0 %v1013
      %v1842 = vpop.f32.mrf.mxu0
      %v1843 = vadd.f32 %v1342, %v1842
      %v1844 = vpop.f32.mrf.mxu0
      %v1845 = vpop.f32.mrf.mxu0
      %v1846 = vadd.f32 %v1342, %v1845
      %v1847 = vpop.f32.mrf.mxu0
      %1848 = vmatprep.mubr.bf16.mxu0 %v1078
      %1849 = vmatmul.mubr.bf16.gmra.mxu0 %v1014
      %v1850 = vpop.f32.mrf.mxu0
      %v1851 = vadd.f32 %v1342, %v1850
      %v1852 = vpop.f32.mrf.mxu0
      %v1853 = vpop.f32.mrf.mxu0
      %v1854 = vadd.f32 %v1342, %v1853
      %v1855 = vpop.f32.mrf.mxu0
      %1856 = vmatprep.mubr.bf16.mxu0 %v1079
      %1857 = vmatmul.mubr.bf16.gmra.mxu0 %v1015
      %v1858 = vpop.f32.mrf.mxu0
      %v1859 = vadd.f32 %v1342, %v1858
      %v1860 = vpop.f32.mrf.mxu0
      %v1861 = vpop.f32.mrf.mxu0
      %v1862 = vadd.f32 %v1342, %v1861
      %v1863 = vpop.f32.mrf.mxu0
      %1864 = vmatprep.mubr.bf16.mxu0 %v1080
      %1865 = vmatmul.mubr.bf16.gmra.mxu0 %v1016
      %v1866 = vpop.f32.mrf.mxu0
      %v1867 = vadd.f32 %v1342, %v1866
      %v1868 = vpop.f32.mrf.mxu0
      %v1869 = vpop.f32.mrf.mxu0
      %v1870 = vadd.f32 %v1342, %v1869
      %v1871 = vpop.f32.mrf.mxu0
      %1872 = vmatprep.mubr.bf16.mxu0 %v1081
      %1873 = vmatmul.mubr.bf16.gmra.mxu0 %v1017
      %v1874 = vpop.f32.mrf.mxu0
      %v1875 = vadd.f32 %v1342, %v1874
      %v1876 = vpop.f32.mrf.mxu0
      %v1877 = vpop.f32.mrf.mxu0
      %v1878 = vadd.f32 %v1342, %v1877
      %v1879 = vpop.f32.mrf.mxu0
      %1880 = vmatprep.mubr.bf16.mxu0 %v1082
      %1881 = vmatmul.mubr.bf16.gmra.mxu0 %v1018
      %v1882 = vpop.f32.mrf.mxu0
      %v1883 = vadd.f32 %v1342, %v1882
      %v1884 = vpop.f32.mrf.mxu0
      %v1885 = vpop.f32.mrf.mxu0
      %v1886 = vadd.f32 %v1342, %v1885
      %v1887 = vpop.f32.mrf.mxu0
      %1888 = vmatprep.mubr.bf16.mxu0 %v1083
      %1889 = vmatmul.mubr.bf16.gmra.mxu0 %v1019
      %v1890 = vpop.f32.mrf.mxu0
      %v1891 = vadd.f32 %v1342, %v1890
      %v1892 = vpop.f32.mrf.mxu0
      %v1893 = vpop.f32.mrf.mxu0
      %v1894 = vadd.f32 %v1342, %v1893
      %v1895 = vpop.f32.mrf.mxu0
      %1896 = vmatprep.mubr.bf16.mxu0 %v1084
      %1897 = vmatmul.mubr.bf16.gmra.mxu0 %v1020
      %v1898 = vpop.f32.mrf.mxu0
      %v1899 = vadd.f32 %v1342, %v1898
      %v1900 = vpop.f32.mrf.mxu0
      %v1901 = vpop.f32.mrf.mxu0
      %v1902 = vadd.f32 %v1342, %v1901
      %v1903 = vpop.f32.mrf.mxu0
      %1904 = vmatprep.mubr.bf16.mxu0 %v1085
      %1905 = vmatmul.mubr.bf16.gmra.mxu0 %v1021
      %v1906 = vpop.f32.mrf.mxu0
      %v1907 = vadd.f32 %v1342, %v1906
      %v1908 = vpop.f32.mrf.mxu0
      %v1909 = vpop.f32.mrf.mxu0
      %v1910 = vadd.f32 %v1342, %v1909
      %v1911 = vpop.f32.mrf.mxu0
      %1912 = vmatprep.mubr.bf16.mxu0 %v1086
      %1913 = vmatmul.mubr.bf16.gmra.mxu0 %v1022
      %v1914 = vpop.f32.mrf.mxu0
      %v1915 = vadd.f32 %v1342, %v1914
      %v1916 = vpop.f32.mrf.mxu0
      %v1917 = vpop.f32.mrf.mxu0
      %v1918 = vadd.f32 %v1342, %v1917
      %v1919 = vpop.f32.mrf.mxu0
      %1920 = vmatprep.mubr.bf16.mxu0 %v1087
      %1921 = vmatmul.mubr.bf16.gmra.mxu0 %v1023
      %v1922 = vpop.f32.mrf.mxu0
      %v1923 = vadd.f32 %v1342, %v1922
      %v1924 = vpop.f32.mrf.mxu0
      %v1925 = vpop.f32.mrf.mxu0
      %v1926 = vadd.f32 %v1342, %v1925
      %v1927 = vpop.f32.mrf.mxu0
      %1928 = vmatprep.mubr.bf16.mxu0 %v1088
      %1929 = vmatmul.mubr.bf16.gmra.mxu0 %v1024
      %v1930 = vpop.f32.mrf.mxu0
      %v1931 = vadd.f32 %v1342, %v1930
      %v1932 = vpop.f32.mrf.mxu0
      %v1933 = vpop.f32.mrf.mxu0
      %v1934 = vadd.f32 %v1342, %v1933
      %v1935 = vpop.f32.mrf.mxu0
      %1936 = vdwg.mxu0
      %1937 = vmatprep.subr.bf16.mxu0 0
      %1938 = vmatpush1.bf16.msra.mxu0 %v1655
      %1939 = vmatprep.subr.bf16.mxu0 0
      %1940 = vmatpush1.bf16.msra.mxu0 %v1654
      %1941 = vmatprep.subr.bf16.mxu0 0
      %1942 = vmatpush1.bf16.msra.mxu0 %v1653
      %1943 = vmatprep.subr.bf16.mxu0 0
      %1944 = vmatpush1.bf16.msra.mxu0 %v1652
      %1945 = vmatprep.subr.bf16.mxu0 0
      %1946 = vmatpush1.bf16.msra.mxu0 %v1651
      %1947 = vmatprep.subr.bf16.mxu0 0
      %1948 = vmatpush1.bf16.msra.mxu0 %v1650
      %1949 = vmatprep.subr.bf16.mxu0 0
      %1950 = vmatpush1.bf16.msra.mxu0 %v1649
      %1951 = vmatprep.subr.bf16.mxu0 0
      %1952 = vmatpush1.bf16.msra.mxu0 %v1648
      %1953 = vmatprep.subr.bf16.mxu0 0
      %1954 = vmatpush2.bf16.msra.mxu0 %v1663
      %1955 = vmatprep.subr.bf16.mxu0 0
      %1956 = vmatpush2.bf16.msra.mxu0 %v1662
      %1957 = vmatprep.subr.bf16.mxu0 0
      %1958 = vmatpush2.bf16.msra.mxu0 %v1661
      %1959 = vmatprep.subr.bf16.mxu0 0
      %1960 = vmatpush2.bf16.msra.mxu0 %v1660
      %1961 = vmatprep.subr.bf16.mxu0 0
      %1962 = vmatpush2.bf16.msra.mxu0 %v1659
      %1963 = vmatprep.subr.bf16.mxu0 0
      %1964 = vmatpush2.bf16.msra.mxu0 %v1658
      %1965 = vmatprep.subr.bf16.mxu0 0
      %1966 = vmatpush2.bf16.msra.mxu0 %v1657
      %1967 = vmatprep.subr.bf16.mxu0 0
      %1968 = vmatpush2.bf16.msra.mxu0 %v1656
      %1969 = vmatprep.mubr.bf16.mxu0 %v1010
      %1970 = vmatmul.mubr.bf16.gmra.mxu0 %v1137
      %v1971 = vpop.f32.mrf.mxu0
      %v1972 = vadd.f32 %v1811, %v1971
      %v1973 = vpop.f32.mrf.mxu0
      %v1974 = vpop.f32.mrf.mxu0
      %v1975 = vadd.f32 %v1814, %v1974
      %v1976 = vpop.f32.mrf.mxu0
      %1977 = vmatprep.mubr.bf16.mxu0 %v1011
      %1978 = vmatmul.mubr.bf16.gmra.mxu0 %v1138
      %v1979 = vpop.f32.mrf.mxu0
      %v1980 = vadd.f32 %v1819, %v1979
      %v1981 = vpop.f32.mrf.mxu0
      %v1982 = vpop.f32.mrf.mxu0
      %v1983 = vadd.f32 %v1822, %v1982
      %v1984 = vpop.f32.mrf.mxu0
      %1985 = vmatprep.mubr.bf16.mxu0 %v1012
      %1986 = vmatmul.mubr.bf16.gmra.mxu0 %v1139
      %v1987 = vpop.f32.mrf.mxu0
      %v1988 = vadd.f32 %v1827, %v1987
      %v1989 = vpop.f32.mrf.mxu0
      %v1990 = vpop.f32.mrf.mxu0
      %v1991 = vadd.f32 %v1830, %v1990
      %v1992 = vpop.f32.mrf.mxu0
      %1993 = vmatprep.mubr.bf16.mxu0 %v1013
      %1994 = vmatmul.mubr.bf16.gmra.mxu0 %v1140
      %v1995 = vpop.f32.mrf.mxu0
      %v1996 = vadd.f32 %v1835, %v1995
      %v1997 = vpop.f32.mrf.mxu0
      %v1998 = vpop.f32.mrf.mxu0
      %v1999 = vadd.f32 %v1838, %v1998
      %v2000 = vpop.f32.mrf.mxu0
      %2001 = vmatprep.mubr.bf16.mxu0 %v1014
      %2002 = vmatmul.mubr.bf16.gmra.mxu0 %v1141
      %v2003 = vpop.f32.mrf.mxu0
      %v2004 = vadd.f32 %v1843, %v2003
      %v2005 = vpop.f32.mrf.mxu0
      %v2006 = vpop.f32.mrf.mxu0
      %v2007 = vadd.f32 %v1846, %v2006
      %v2008 = vpop.f32.mrf.mxu0
      %2009 = vmatprep.mubr.bf16.mxu0 %v1015
      %2010 = vmatmul.mubr.bf16.gmra.mxu0 %v1142
      %v2011 = vpop.f32.mrf.mxu0
      %v2012 = vadd.f32 %v1851, %v2011
      %v2013 = vpop.f32.mrf.mxu0
      %v2014 = vpop.f32.mrf.mxu0
      %v2015 = vadd.f32 %v1854, %v2014
      %v2016 = vpop.f32.mrf.mxu0
      %2017 = vmatprep.mubr.bf16.mxu0 %v1016
      %2018 = vmatmul.mubr.bf16.gmra.mxu0 %v1143
      %v2019 = vpop.f32.mrf.mxu0
      %v2020 = vadd.f32 %v1859, %v2019
      %v2021 = vpop.f32.mrf.mxu0
      %v2022 = vpop.f32.mrf.mxu0
      %v2023 = vadd.f32 %v1862, %v2022
      %v2024 = vpop.f32.mrf.mxu0
      %2025 = vmatprep.mubr.bf16.mxu0 %v1017
      %2026 = vmatmul.mubr.bf16.gmra.mxu0 %v1144
      %v2027 = vpop.f32.mrf.mxu0
      %v2028 = vadd.f32 %v1867, %v2027
      %v2029 = vpop.f32.mrf.mxu0
      %v2030 = vpop.f32.mrf.mxu0
      %v2031 = vadd.f32 %v1870, %v2030
      %v2032 = vpop.f32.mrf.mxu0
      %2033 = vmatprep.mubr.bf16.mxu0 %v1018
      %2034 = vmatmul.mubr.bf16.gmra.mxu0 %v1145
      %v2035 = vpop.f32.mrf.mxu0
      %v2036 = vadd.f32 %v1875, %v2035
      %v2037 = vpop.f32.mrf.mxu0
      %v2038 = vpop.f32.mrf.mxu0
      %v2039 = vadd.f32 %v1878, %v2038
      %v2040 = vpop.f32.mrf.mxu0
      %2041 = vmatprep.mubr.bf16.mxu0 %v1019
      %2042 = vmatmul.mubr.bf16.gmra.mxu0 %v1146
      %v2043 = vpop.f32.mrf.mxu0
      %v2044 = vadd.f32 %v1883, %v2043
      %v2045 = vpop.f32.mrf.mxu0
      %v2046 = vpop.f32.mrf.mxu0
      %v2047 = vadd.f32 %v1886, %v2046
      %v2048 = vpop.f32.mrf.mxu0
      %2049 = vmatprep.mubr.bf16.mxu0 %v1020
      %2050 = vmatmul.mubr.bf16.gmra.mxu0 %v1147
      %v2051 = vpop.f32.mrf.mxu0
      %v2052 = vadd.f32 %v1891, %v2051
      %v2053 = vpop.f32.mrf.mxu0
      %v2054 = vpop.f32.mrf.mxu0
      %v2055 = vadd.f32 %v1894, %v2054
      %v2056 = vpop.f32.mrf.mxu0
      %2057 = vmatprep.mubr.bf16.mxu0 %v1021
      %2058 = vmatmul.mubr.bf16.gmra.mxu0 %v1148
      %v2059 = vpop.f32.mrf.mxu0
      %v2060 = vadd.f32 %v1899, %v2059
      %v2061 = vpop.f32.mrf.mxu0
      %v2062 = vpop.f32.mrf.mxu0
      %v2063 = vadd.f32 %v1902, %v2062
      %v2064 = vpop.f32.mrf.mxu0
      %2065 = vmatprep.mubr.bf16.mxu0 %v1022
      %2066 = vmatmul.mubr.bf16.gmra.mxu0 %v1149
      %v2067 = vpop.f32.mrf.mxu0
      %v2068 = vadd.f32 %v1907, %v2067
      %v2069 = vpop.f32.mrf.mxu0
      %v2070 = vpop.f32.mrf.mxu0
      %v2071 = vadd.f32 %v1910, %v2070
      %v2072 = vpop.f32.mrf.mxu0
      %2073 = vmatprep.mubr.bf16.mxu0 %v1023
      %2074 = vmatmul.mubr.bf16.gmra.mxu0 %v1150
      %v2075 = vpop.f32.mrf.mxu0
      %v2076 = vadd.f32 %v1915, %v2075
      %v2077 = vpop.f32.mrf.mxu0
      %v2078 = vpop.f32.mrf.mxu0
      %v2079 = vadd.f32 %v1918, %v2078
      %v2080 = vpop.f32.mrf.mxu0
      %2081 = vmatprep.mubr.bf16.mxu0 %v1024
      %2082 = vmatmul.mubr.bf16.gmra.mxu0 %v1151
      %v2083 = vpop.f32.mrf.mxu0
      %v2084 = vadd.f32 %v1923, %v2083
      %v2085 = vpop.f32.mrf.mxu0
      %v2086 = vpop.f32.mrf.mxu0
      %v2087 = vadd.f32 %v1926, %v2086
      %v2088 = vpop.f32.mrf.mxu0
      %2089 = vmatprep.mubr.bf16.mxu0 %v1171
      %2090 = vmatmul.mubr.bf16.gmra.mxu0 %v1152
      %v2091 = vpop.f32.mrf.mxu0
      %v2092 = vadd.f32 %v1931, %v2091
      %v2093 = vpop.f32.mrf.mxu0
      %v2094 = vpop.f32.mrf.mxu0
      %v2095 = vadd.f32 %v1934, %v2094
      %v2096 = vpop.f32.mrf.mxu0
      %2097 = vdwg.mxu0
      %2098 = vmatprep.subr.bf16.mxu0 0
      %2099 = vmatpush1.bf16.msra.mxu0 %v1671
      %2100 = vmatprep.subr.bf16.mxu0 0
      %2101 = vmatpush1.bf16.msra.mxu0 %v1670
      %2102 = vmatprep.subr.bf16.mxu0 0
      %2103 = vmatpush1.bf16.msra.mxu0 %v1669
      %2104 = vmatprep.subr.bf16.mxu0 0
      %2105 = vmatpush1.bf16.msra.mxu0 %v1668
      %2106 = vmatprep.subr.bf16.mxu0 0
      %2107 = vmatpush1.bf16.msra.mxu0 %v1667
      %2108 = vmatprep.subr.bf16.mxu0 0
      %2109 = vmatpush1.bf16.msra.mxu0 %v1666
      %2110 = vmatprep.subr.bf16.mxu0 0
      %2111 = vmatpush1.bf16.msra.mxu0 %v1665
      %2112 = vmatprep.subr.bf16.mxu0 0
      %2113 = vmatpush1.bf16.msra.mxu0 %v1664
      %2114 = vmatprep.subr.bf16.mxu0 0
      %2115 = vmatpush2.bf16.msra.mxu0 %v1679
      %2116 = vmatprep.subr.bf16.mxu0 0
      %2117 = vmatpush2.bf16.msra.mxu0 %v1678
      %2118 = vmatprep.subr.bf16.mxu0 0
      %2119 = vmatpush2.bf16.msra.mxu0 %v1677
      %2120 = vmatprep.subr.bf16.mxu0 0
      %2121 = vmatpush2.bf16.msra.mxu0 %v1676
      %2122 = vmatprep.subr.bf16.mxu0 0
      %2123 = vmatpush2.bf16.msra.mxu0 %v1675
      %2124 = vmatprep.subr.bf16.mxu0 0
      %2125 = vmatpush2.bf16.msra.mxu0 %v1674
      %2126 = vmatprep.subr.bf16.mxu0 0
      %2127 = vmatpush2.bf16.msra.mxu0 %v1673
      %2128 = vmatprep.subr.bf16.mxu0 0
      %2129 = vmatpush2.bf16.msra.mxu0 %v1672
      %2130 = vmatprep.mubr.bf16.mxu0 %v1138
      %2131 = vmatmul.mubr.bf16.gmra.mxu0 %v1074
      %v2132 = vpop.f32.mrf.mxu0
      %v2133 = vadd.f32 %v1972, %v2132
      %v2134 = vpop.f32.mrf.mxu0
      %v2135 = vpop.f32.mrf.mxu0
      %v2136 = vadd.f32 %v1975, %v2135
      %v2137 = vpop.f32.mrf.mxu0
      %2138 = vmatprep.mubr.bf16.mxu0 %v1139
      %2139 = vmatmul.mubr.bf16.gmra.mxu0 %v1075
      %v2140 = vpop.f32.mrf.mxu0
      %v2141 = vadd.f32 %v1980, %v2140
      %v2142 = vpop.f32.mrf.mxu0
      %v2143 = vpop.f32.mrf.mxu0
      %v2144 = vadd.f32 %v1983, %v2143
      %v2145 = vpop.f32.mrf.mxu0
      %2146 = vmatprep.mubr.bf16.mxu0 %v1140
      %2147 = vmatmul.mubr.bf16.gmra.mxu0 %v1076
      %v2148 = vpop.f32.mrf.mxu0
      %v2149 = vadd.f32 %v1988, %v2148
      %v2150 = vpop.f32.mrf.mxu0
      %v2151 = vpop.f32.mrf.mxu0
      %v2152 = vadd.f32 %v1991, %v2151
      %v2153 = vpop.f32.mrf.mxu0
      %2154 = vmatprep.mubr.bf16.mxu0 %v1141
      %2155 = vmatmul.mubr.bf16.gmra.mxu0 %v1077
      %v2156 = vpop.f32.mrf.mxu0
      %v2157 = vadd.f32 %v1996, %v2156
      %v2158 = vpop.f32.mrf.mxu0
      %v2159 = vpop.f32.mrf.mxu0
      %v2160 = vadd.f32 %v1999, %v2159
      %v2161 = vpop.f32.mrf.mxu0
      %2162 = vmatprep.mubr.bf16.mxu0 %v1142
      %2163 = vmatmul.mubr.bf16.gmra.mxu0 %v1078
      %v2164 = vpop.f32.mrf.mxu0
      %v2165 = vadd.f32 %v2004, %v2164
      %v2166 = vpop.f32.mrf.mxu0
      %v2167 = vpop.f32.mrf.mxu0
      %v2168 = vadd.f32 %v2007, %v2167
      %v2169 = vpop.f32.mrf.mxu0
      %2170 = vmatprep.mubr.bf16.mxu0 %v1143
      %2171 = vmatmul.mubr.bf16.gmra.mxu0 %v1079
      %v2172 = vpop.f32.mrf.mxu0
      %v2173 = vadd.f32 %v2012, %v2172
      %v2174 = vpop.f32.mrf.mxu0
      %v2175 = vpop.f32.mrf.mxu0
      %v2176 = vadd.f32 %v2015, %v2175
      %v2177 = vpop.f32.mrf.mxu0
      %2178 = vmatprep.mubr.bf16.mxu0 %v1144
      %2179 = vmatmul.mubr.bf16.gmra.mxu0 %v1080
      %v2180 = vpop.f32.mrf.mxu0
      %v2181 = vadd.f32 %v2020, %v2180
      %v2182 = vpop.f32.mrf.mxu0
      %v2183 = vpop.f32.mrf.mxu0
      %v2184 = vadd.f32 %v2023, %v2183
      %v2185 = vpop.f32.mrf.mxu0
      %2186 = vmatprep.mubr.bf16.mxu0 %v1145
      %2187 = vmatmul.mubr.bf16.gmra.mxu0 %v1081
      %v2188 = vpop.f32.mrf.mxu0
      %v2189 = vadd.f32 %v2028, %v2188
      %v2190 = vpop.f32.mrf.mxu0
      %v2191 = vpop.f32.mrf.mxu0
      %v2192 = vadd.f32 %v2031, %v2191
      %v2193 = vpop.f32.mrf.mxu0
      %2194 = vmatprep.mubr.bf16.mxu0 %v1146
      %2195 = vmatmul.mubr.bf16.gmra.mxu0 %v1082
      %v2196 = vpop.f32.mrf.mxu0
      %v2197 = vadd.f32 %v2036, %v2196
      %v2198 = vpop.f32.mrf.mxu0
      %v2199 = vpop.f32.mrf.mxu0
      %v2200 = vadd.f32 %v2039, %v2199
      %v2201 = vpop.f32.mrf.mxu0
      %2202 = vmatprep.mubr.bf16.mxu0 %v1147
      %2203 = vmatmul.mubr.bf16.gmra.mxu0 %v1083
      %v2204 = vpop.f32.mrf.mxu0
      %v2205 = vadd.f32 %v2044, %v2204
      %v2206 = vpop.f32.mrf.mxu0
      %v2207 = vpop.f32.mrf.mxu0
      %v2208 = vadd.f32 %v2047, %v2207
      %v2209 = vpop.f32.mrf.mxu0
      %2210 = vmatprep.mubr.bf16.mxu0 %v1148
      %2211 = vmatmul.mubr.bf16.gmra.mxu0 %v1084
      %v2212 = vpop.f32.mrf.mxu0
      %v2213 = vadd.f32 %v2052, %v2212
      %v2214 = vpop.f32.mrf.mxu0
      %v2215 = vpop.f32.mrf.mxu0
      %v2216 = vadd.f32 %v2055, %v2215
      %v2217 = vpop.f32.mrf.mxu0
      %2218 = vmatprep.mubr.bf16.mxu0 %v1149
      %2219 = vmatmul.mubr.bf16.gmra.mxu0 %v1085
      %v2220 = vpop.f32.mrf.mxu0
      %v2221 = vadd.f32 %v2060, %v2220
      %v2222 = vpop.f32.mrf.mxu0
      %v2223 = vpop.f32.mrf.mxu0
      %v2224 = vadd.f32 %v2063, %v2223
      %v2225 = vpop.f32.mrf.mxu0
      %2226 = vmatprep.mubr.bf16.mxu0 %v1150
      %2227 = vmatmul.mubr.bf16.gmra.mxu0 %v1086
      %v2228 = vpop.f32.mrf.mxu0
      %v2229 = vadd.f32 %v2068, %v2228
      %v2230 = vpop.f32.mrf.mxu0
      %v2231 = vpop.f32.mrf.mxu0
      %v2232 = vadd.f32 %v2071, %v2231
      %v2233 = vpop.f32.mrf.mxu0
      %2234 = vmatprep.mubr.bf16.mxu0 %v1151
      %2235 = vmatmul.mubr.bf16.gmra.mxu0 %v1087
      %v2236 = vpop.f32.mrf.mxu0
      %v2237 = vadd.f32 %v2076, %v2236
      %v2238 = vpop.f32.mrf.mxu0
      %v2239 = vpop.f32.mrf.mxu0
      %v2240 = vadd.f32 %v2079, %v2239
      %v2241 = vpop.f32.mrf.mxu0
      %2242 = vmatprep.mubr.bf16.mxu0 %v1152
      %2243 = vmatmul.mubr.bf16.gmra.mxu0 %v1088
      %v2244 = vpop.f32.mrf.mxu0
      %v2245 = vadd.f32 %v2084, %v2244
      %v2246 = vpop.f32.mrf.mxu0
      %v2247 = vpop.f32.mrf.mxu0
      %v2248 = vadd.f32 %v2087, %v2247
      %v2249 = vpop.f32.mrf.mxu0
      %2250 = vmatprep.mubr.bf16.mxu0 %v1179
      %2251 = vmatmul.mubr.bf16.gmra.mxu0 %v1175
      %v2252 = vpop.f32.mrf.mxu0
      %v2253 = vadd.f32 %v2092, %v2252
      %v2254 = vpop.f32.mrf.mxu0
      %v2255 = vpop.f32.mrf.mxu0
      %v2256 = vadd.f32 %v2095, %v2255
      %v2257 = vpop.f32.mrf.mxu0
      %2258 = vdwg.mxu0
      %2259 = vmatprep.subr.bf16.mxu0 0
      %2260 = vmatpush1.bf16.msra.mxu0 %v1687
      %2261 = vmatprep.subr.bf16.mxu0 0
      %2262 = vmatpush1.bf16.msra.mxu0 %v1686
      %2263 = vmatprep.subr.bf16.mxu0 0
      %2264 = vmatpush1.bf16.msra.mxu0 %v1685
      %2265 = vmatprep.subr.bf16.mxu0 0
      %2266 = vmatpush1.bf16.msra.mxu0 %v1684
      %2267 = vmatprep.subr.bf16.mxu0 0
      %2268 = vmatpush1.bf16.msra.mxu0 %v1683
      %2269 = vmatprep.subr.bf16.mxu0 0
      %2270 = vmatpush1.bf16.msra.mxu0 %v1682
      %2271 = vmatprep.subr.bf16.mxu0 0
      %2272 = vmatpush1.bf16.msra.mxu0 %v1681
      %2273 = vmatprep.subr.bf16.mxu0 0
      %2274 = vmatpush1.bf16.msra.mxu0 %v1680
      %2275 = vmatprep.subr.bf16.mxu0 0
      %2276 = vmatpush2.bf16.msra.mxu0 %v1695
      %2277 = vmatprep.subr.bf16.mxu0 0
      %2278 = vmatpush2.bf16.msra.mxu0 %v1694
      %2279 = vmatprep.subr.bf16.mxu0 0
      %2280 = vmatpush2.bf16.msra.mxu0 %v1693
      %2281 = vmatprep.subr.bf16.mxu0 0
      %2282 = vmatpush2.bf16.msra.mxu0 %v1692
      %2283 = vmatprep.subr.bf16.mxu0 0
      %2284 = vmatpush2.bf16.msra.mxu0 %v1691
      %2285 = vmatprep.subr.bf16.mxu0 0
      %2286 = vmatpush2.bf16.msra.mxu0 %v1690
      %2287 = vmatprep.subr.bf16.mxu0 0
      %2288 = vmatpush2.bf16.msra.mxu0 %v1689
      %2289 = vmatprep.subr.bf16.mxu0 0
      %2290 = vmatpush2.bf16.msra.mxu0 %v1688
      %2291 = vmatprep.mubr.bf16.mxu0 %v1075
      %2292 = vmatmul.mubr.bf16.gmra.mxu0 %v1011
      %v2293 = vpop.f32.mrf.mxu0
      %v2294 = vadd.f32 %v2133, %v2293
      %v2295 = vpop.f32.mrf.mxu0
      %v2296 = vpop.f32.mrf.mxu0
      %v2297 = vadd.f32 %v2136, %v2296
      %v2298 = vpop.f32.mrf.mxu0
      %2299 = vmatprep.mubr.bf16.mxu0 %v1076
      %2300 = vmatmul.mubr.bf16.gmra.mxu0 %v1012
      %v2301 = vpop.f32.mrf.mxu0
      %v2302 = vadd.f32 %v2141, %v2301
      %v2303 = vpop.f32.mrf.mxu0
      %v2304 = vpop.f32.mrf.mxu0
      %v2305 = vadd.f32 %v2144, %v2304
      %v2306 = vpop.f32.mrf.mxu0
      %2307 = vmatprep.mubr.bf16.mxu0 %v1077
      %2308 = vmatmul.mubr.bf16.gmra.mxu0 %v1013
      %v2309 = vpop.f32.mrf.mxu0
      %v2310 = vadd.f32 %v2149, %v2309
      %v2311 = vpop.f32.mrf.mxu0
      %v2312 = vpop.f32.mrf.mxu0
      %v2313 = vadd.f32 %v2152, %v2312
      %v2314 = vpop.f32.mrf.mxu0
      %2315 = vmatprep.mubr.bf16.mxu0 %v1078
      %2316 = vmatmul.mubr.bf16.gmra.mxu0 %v1014
      %v2317 = vpop.f32.mrf.mxu0
      %v2318 = vadd.f32 %v2157, %v2317
      %v2319 = vpop.f32.mrf.mxu0
      %v2320 = vpop.f32.mrf.mxu0
      %v2321 = vadd.f32 %v2160, %v2320
      %v2322 = vpop.f32.mrf.mxu0
      %2323 = vmatprep.mubr.bf16.mxu0 %v1079
      %2324 = vmatmul.mubr.bf16.gmra.mxu0 %v1015
      %v2325 = vpop.f32.mrf.mxu0
      %v2326 = vadd.f32 %v2165, %v2325
      %v2327 = vpop.f32.mrf.mxu0
      %v2328 = vpop.f32.mrf.mxu0
      %v2329 = vadd.f32 %v2168, %v2328
      %v2330 = vpop.f32.mrf.mxu0
      %2331 = vmatprep.mubr.bf16.mxu0 %v1080
      %2332 = vmatmul.mubr.bf16.gmra.mxu0 %v1016
      %v2333 = vpop.f32.mrf.mxu0
      %v2334 = vadd.f32 %v2173, %v2333
      %v2335 = vpop.f32.mrf.mxu0
      %v2336 = vpop.f32.mrf.mxu0
      %v2337 = vadd.f32 %v2176, %v2336
      %v2338 = vpop.f32.mrf.mxu0
      %2339 = vmatprep.mubr.bf16.mxu0 %v1081
      %2340 = vmatmul.mubr.bf16.gmra.mxu0 %v1017
      %v2341 = vpop.f32.mrf.mxu0
      %v2342 = vadd.f32 %v2181, %v2341
      %v2343 = vpop.f32.mrf.mxu0
      %v2344 = vpop.f32.mrf.mxu0
      %v2345 = vadd.f32 %v2184, %v2344
      %v2346 = vpop.f32.mrf.mxu0
      %2347 = vmatprep.mubr.bf16.mxu0 %v1082
      %2348 = vmatmul.mubr.bf16.gmra.mxu0 %v1018
      %v2349 = vpop.f32.mrf.mxu0
      %v2350 = vadd.f32 %v2189, %v2349
      %v2351 = vpop.f32.mrf.mxu0
      %v2352 = vpop.f32.mrf.mxu0
      %v2353 = vadd.f32 %v2192, %v2352
      %v2354 = vpop.f32.mrf.mxu0
      %2355 = vmatprep.mubr.bf16.mxu0 %v1083
      %2356 = vmatmul.mubr.bf16.gmra.mxu0 %v1019
      %v2357 = vpop.f32.mrf.mxu0
      %v2358 = vadd.f32 %v2197, %v2357
      %v2359 = vpop.f32.mrf.mxu0
      %v2360 = vpop.f32.mrf.mxu0
      %v2361 = vadd.f32 %v2200, %v2360
      %v2362 = vpop.f32.mrf.mxu0
      %2363 = vmatprep.mubr.bf16.mxu0 %v1084
      %2364 = vmatmul.mubr.bf16.gmra.mxu0 %v1020
      %v2365 = vpop.f32.mrf.mxu0
      %v2366 = vadd.f32 %v2205, %v2365
      %v2367 = vpop.f32.mrf.mxu0
      %v2368 = vpop.f32.mrf.mxu0
      %v2369 = vadd.f32 %v2208, %v2368
      %v2370 = vpop.f32.mrf.mxu0
      %2371 = vmatprep.mubr.bf16.mxu0 %v1085
      %2372 = vmatmul.mubr.bf16.gmra.mxu0 %v1021
      %v2373 = vpop.f32.mrf.mxu0
      %v2374 = vadd.f32 %v2213, %v2373
      %v2375 = vpop.f32.mrf.mxu0
      %v2376 = vpop.f32.mrf.mxu0
      %v2377 = vadd.f32 %v2216, %v2376
      %v2378 = vpop.f32.mrf.mxu0
      %2379 = vmatprep.mubr.bf16.mxu0 %v1086
      %2380 = vmatmul.mubr.bf16.gmra.mxu0 %v1022
      %v2381 = vpop.f32.mrf.mxu0
      %v2382 = vadd.f32 %v2221, %v2381
      %v2383 = vpop.f32.mrf.mxu0
      %v2384 = vpop.f32.mrf.mxu0
      %v2385 = vadd.f32 %v2224, %v2384
      %v2386 = vpop.f32.mrf.mxu0
      %2387 = vmatprep.mubr.bf16.mxu0 %v1087
      %2388 = vmatmul.mubr.bf16.gmra.mxu0 %v1023
      %v2389 = vpop.f32.mrf.mxu0
      %v2390 = vadd.f32 %v2229, %v2389
      %v2391 = vpop.f32.mrf.mxu0
      %v2392 = vpop.f32.mrf.mxu0
      %v2393 = vadd.f32 %v2232, %v2392
      %v2394 = vpop.f32.mrf.mxu0
      %2395 = vmatprep.mubr.bf16.mxu0 %v1088
      %2396 = vmatmul.mubr.bf16.gmra.mxu0 %v1024
      %v2397 = vpop.f32.mrf.mxu0
      %v2398 = vadd.f32 %v2237, %v2397
      %v2399 = vpop.f32.mrf.mxu0
      %v2400 = vpop.f32.mrf.mxu0
      %v2401 = vadd.f32 %v2240, %v2400
      %v2402 = vpop.f32.mrf.mxu0
      %2403 = vmatprep.mubr.bf16.mxu0 %v1175
      %2404 = vmatmul.mubr.bf16.gmra.mxu0 %v1171
      %v2405 = vpop.f32.mrf.mxu0
      %v2406 = vadd.f32 %v2245, %v2405
      %v2407 = vpop.f32.mrf.mxu0
      %v2408 = vpop.f32.mrf.mxu0
      %v2409 = vadd.f32 %v2248, %v2408
      %v2410 = vpop.f32.mrf.mxu0
      %2411 = vmatprep.mubr.bf16.mxu0 %v1187
      %2412 = vmatmul.mubr.bf16.gmra.mxu0 %v1183
      %v2413 = vpop.f32.mrf.mxu0
      %v2414 = vadd.f32 %v2253, %v2413
      %v2415 = vpop.f32.mrf.mxu0
      %v2416 = vpop.f32.mrf.mxu0
      %v2417 = vadd.f32 %v2256, %v2416
      %v2418 = vpop.f32.mrf.mxu0
      %2419 = vdwg.mxu0
      %2420 = vmatprep.subr.bf16.mxu0 0
      %2421 = vmatpush1.bf16.msra.mxu0 %v1703
      %2422 = vmatprep.subr.bf16.mxu0 0
      %2423 = vmatpush1.bf16.msra.mxu0 %v1702
      %2424 = vmatprep.subr.bf16.mxu0 0
      %2425 = vmatpush1.bf16.msra.mxu0 %v1701
      %2426 = vmatprep.subr.bf16.mxu0 0
      %2427 = vmatpush1.bf16.msra.mxu0 %v1700
      %2428 = vmatprep.subr.bf16.mxu0 0
      %2429 = vmatpush1.bf16.msra.mxu0 %v1699
      %2430 = vmatprep.subr.bf16.mxu0 0
      %2431 = vmatpush1.bf16.msra.mxu0 %v1698
      %2432 = vmatprep.subr.bf16.mxu0 0
      %2433 = vmatpush1.bf16.msra.mxu0 %v1697
      %2434 = vmatprep.subr.bf16.mxu0 0
      %2435 = vmatpush1.bf16.msra.mxu0 %v1696
      %2436 = vmatprep.subr.bf16.mxu0 0
      %2437 = vmatpush2.bf16.msra.mxu0 0
      %2438 = vmatprep.subr.bf16.mxu0 0
      %2439 = vmatpush2.bf16.msra.mxu0 0
      %2440 = vmatprep.subr.bf16.mxu0 0
      %2441 = vmatpush2.bf16.msra.mxu0 0
      %2442 = vmatprep.subr.bf16.mxu0 0
      %2443 = vmatpush2.bf16.msra.mxu0 0
      %2444 = vmatprep.subr.bf16.mxu0 0
      %2445 = vmatpush2.bf16.msra.mxu0 0
      %2446 = vmatprep.subr.bf16.mxu0 0
      %2447 = vmatpush2.bf16.msra.mxu0 0
      %2448 = vmatprep.subr.bf16.mxu0 0
      %2449 = vmatpush2.bf16.msra.mxu0 0
      %2450 = vmatprep.subr.bf16.mxu0 0
      %2451 = vmatpush2.bf16.msra.mxu0 0
      %2452 = vmatprep.mubr.bf16.mxu0 0
      %2453 = vmatmul.mubr.bf16.gmra.mxu0 %v1139
      %v2454 = vpop.f32.mrf.mxu0
      %v2455 = vadd.f32 %v2294, %v2454
      %v2456 = vpop.f32.mrf.mxu0
      %v2457 = vpop.f32.mrf.mxu0
      %v2458 = vadd.f32 %v2297, %v2457
      %v2459 = vpop.f32.mrf.mxu0
      %2460 = vmatprep.mubr.bf16.mxu0 0
      %2461 = vmatmul.mubr.bf16.gmra.mxu0 %v1140
      %v2462 = vpop.f32.mrf.mxu0
      %v2463 = vadd.f32 %v2302, %v2462
      %v2464 = vpop.f32.mrf.mxu0
      %v2465 = vpop.f32.mrf.mxu0
      %v2466 = vadd.f32 %v2305, %v2465
      %v2467 = vpop.f32.mrf.mxu0
      %2468 = vmatprep.mubr.bf16.mxu0 0
      %2469 = vmatmul.mubr.bf16.gmra.mxu0 %v1141
      %v2470 = vpop.f32.mrf.mxu0
      %v2471 = vadd.f32 %v2310, %v2470
      %v2472 = vpop.f32.mrf.mxu0
      %v2473 = vpop.f32.mrf.mxu0
      %v2474 = vadd.f32 %v2313, %v2473
      %v2475 = vpop.f32.mrf.mxu0
      %2476 = vmatprep.mubr.bf16.mxu0 0
      %2477 = vmatmul.mubr.bf16.gmra.mxu0 %v1142
      %v2478 = vpop.f32.mrf.mxu0
      %v2479 = vadd.f32 %v2318, %v2478
      %v2480 = vpop.f32.mrf.mxu0
      %v2481 = vpop.f32.mrf.mxu0
      %v2482 = vadd.f32 %v2321, %v2481
      %v2483 = vpop.f32.mrf.mxu0
      %2484 = vmatprep.mubr.bf16.mxu0 0
      %2485 = vmatmul.mubr.bf16.gmra.mxu0 %v1143
      %v2486 = vpop.f32.mrf.mxu0
      %v2487 = vadd.f32 %v2326, %v2486
      %v2488 = vpop.f32.mrf.mxu0
      %v2489 = vpop.f32.mrf.mxu0
      %v2490 = vadd.f32 %v2329, %v2489
      %v2491 = vpop.f32.mrf.mxu0
      %2492 = vmatprep.mubr.bf16.mxu0 0
      %2493 = vmatmul.mubr.bf16.gmra.mxu0 %v1144
      %v2494 = vpop.f32.mrf.mxu0
      %v2495 = vadd.f32 %v2334, %v2494
      %v2496 = vpop.f32.mrf.mxu0
      %v2497 = vpop.f32.mrf.mxu0
      %v2498 = vadd.f32 %v2337, %v2497
      %v2499 = vpop.f32.mrf.mxu0
      %2500 = vmatprep.mubr.bf16.mxu0 0
      %2501 = vmatmul.mubr.bf16.gmra.mxu0 %v1145
      %v2502 = vpop.f32.mrf.mxu0
      %v2503 = vadd.f32 %v2342, %v2502
      %v2504 = vpop.f32.mrf.mxu0
      %v2505 = vpop.f32.mrf.mxu0
      %v2506 = vadd.f32 %v2345, %v2505
      %v2507 = vpop.f32.mrf.mxu0
      %2508 = vmatprep.mubr.bf16.mxu0 0
      %2509 = vmatmul.mubr.bf16.gmra.mxu0 %v1146
      %v2510 = vpop.f32.mrf.mxu0
      %v2511 = vadd.f32 %v2350, %v2510
      %v2512 = vpop.f32.mrf.mxu0
      %v2513 = vpop.f32.mrf.mxu0
      %v2514 = vadd.f32 %v2353, %v2513
      %v2515 = vpop.f32.mrf.mxu0
      %2516 = vmatprep.mubr.bf16.mxu0 0
      %2517 = vmatmul.mubr.bf16.gmra.mxu0 %v1147
      %v2518 = vpop.f32.mrf.mxu0
      %v2519 = vadd.f32 %v2358, %v2518
      %v2520 = vpop.f32.mrf.mxu0
      %v2521 = vpop.f32.mrf.mxu0
      %v2522 = vadd.f32 %v2361, %v2521
      %v2523 = vpop.f32.mrf.mxu0
      %2524 = vmatprep.mubr.bf16.mxu0 0
      %2525 = vmatmul.mubr.bf16.gmra.mxu0 %v1148
      %v2526 = vpop.f32.mrf.mxu0
      %v2527 = vadd.f32 %v2366, %v2526
      %v2528 = vpop.f32.mrf.mxu0
      %v2529 = vpop.f32.mrf.mxu0
      %v2530 = vadd.f32 %v2369, %v2529
      %v2531 = vpop.f32.mrf.mxu0
      %2532 = vmatprep.mubr.bf16.mxu0 0
      %2533 = vmatmul.mubr.bf16.gmra.mxu0 %v1149
      %v2534 = vpop.f32.mrf.mxu0
      %v2535 = vadd.f32 %v2374, %v2534
      %v2536 = vpop.f32.mrf.mxu0
      %v2537 = vpop.f32.mrf.mxu0
      %v2538 = vadd.f32 %v2377, %v2537
      %v2539 = vpop.f32.mrf.mxu0
      %2540 = vmatprep.mubr.bf16.mxu0 0
      %2541 = vmatmul.mubr.bf16.gmra.mxu0 %v1150
      %v2542 = vpop.f32.mrf.mxu0
      %v2543 = vadd.f32 %v2382, %v2542
      %v2544 = vpop.f32.mrf.mxu0
      %v2545 = vpop.f32.mrf.mxu0
      %v2546 = vadd.f32 %v2385, %v2545
      %v2547 = vpop.f32.mrf.mxu0
      %2548 = vmatprep.mubr.bf16.mxu0 0
      %2549 = vmatmul.mubr.bf16.gmra.mxu0 %v1151
      %v2550 = vpop.f32.mrf.mxu0
      %v2551 = vadd.f32 %v2390, %v2550
      %v2552 = vpop.f32.mrf.mxu0
      %v2553 = vpop.f32.mrf.mxu0
      %v2554 = vadd.f32 %v2393, %v2553
      %v2555 = vpop.f32.mrf.mxu0
      %2556 = vmatprep.mubr.bf16.mxu0 0
      %2557 = vmatmul.mubr.bf16.gmra.mxu0 %v1152
      %v2558 = vpop.f32.mrf.mxu0
      %v2559 = vadd.f32 %v2398, %v2558
      %v2560 = vpop.f32.mrf.mxu0
      %v2561 = vpop.f32.mrf.mxu0
      %v2562 = vadd.f32 %v2401, %v2561
      %v2563 = vpop.f32.mrf.mxu0
      %2564 = vmatprep.mubr.bf16.mxu0 0
      %2565 = vmatmul.mubr.bf16.gmra.mxu0 %v1179
      %v2566 = vpop.f32.mrf.mxu0
      %v2567 = vadd.f32 %v2406, %v2566
      %v2568 = vpop.f32.mrf.mxu0
      %v2569 = vpop.f32.mrf.mxu0
      %v2570 = vadd.f32 %v2409, %v2569
      %v2571 = vpop.f32.mrf.mxu0
      %2572 = vmatprep.mubr.bf16.mxu0 0
      %2573 = vmatmul.mubr.bf16.gmra.mxu0 %v1191
      %v2574 = vpop.f32.mrf.mxu0
      %v2575 = vadd.f32 %v2414, %v2574
      %v2576 = vpop.f32.mrf.mxu0
      %v2577 = vpop.f32.mrf.mxu0
      %v2578 = vadd.f32 %v2417, %v2577
      %v2579 = vpop.f32.mrf.mxu0
      %2580 = vdwg.mxu0
      %v2581 = vmax.f32 %v2455, 0.0
      %v2582 = vmax.f32 %v2458, 0.0
      %v2583 = vmax.f32 %v2463, 0.0
      %v2584 = vmax.f32 %v2466, 0.0
      %v2585 = vmax.f32 %v2471, 0.0
      %v2586 = vmax.f32 %v2474, 0.0
      %v2587 = vmax.f32 %v2479, 0.0
      %v2588 = vmax.f32 %v2482, 0.0
      %v2589 = vmax.f32 %v2487, 0.0
      %v2590 = vmax.f32 %v2490, 0.0
      %v2591 = vmax.f32 %v2495, 0.0
      %v2592 = vmax.f32 %v2498, 0.0
      %v2593 = vmax.f32 %v2503, 0.0
      %v2594 = vmax.f32 %v2506, 0.0
      %v2595 = vmax.f32 %v2511, 0.0
      %v2596 = vmax.f32 %v2514, 0.0
      %v2597 = vmax.f32 %v2519, 0.0
      %v2598 = vmax.f32 %v2522, 0.0
      %v2599 = vmax.f32 %v2527, 0.0
      %v2600 = vmax.f32 %v2530, 0.0
      %v2601 = vmax.f32 %v2535, 0.0
      %v2602 = vmax.f32 %v2538, 0.0
      %v2603 = vmax.f32 %v2543, 0.0
      %v2604 = vmax.f32 %v2546, 0.0
      %v2605 = vmax.f32 %v2551, 0.0
      %v2606 = vmax.f32 %v2554, 0.0
      %v2607 = vmax.f32 %v2559, 0.0
      %v2608 = vmax.f32 %v2562, 0.0
      %v2609 = vmax.f32 %v2567, 0.0
      %v2610 = vmax.f32 %v2570, 0.0
      %v2611 = vmax.f32 %v2575, 0.0
      %v2612 = vmax.f32 %v2578, 0.0
      %v2613 = vld [vmem:[%s294] sm:$0x1]
      %v2614 = vld [vmem:[%s4] sm:$0xf]
      %v2615 = vld [vmem:[%s4 + $0x4] sm:$0xf]
      %v2616 = vld [vmem:[%s4 + $0x8] sm:$0xf]
      %v2617 = vld [vmem:[%s4 + $0xc] sm:$0xf]
      %v2618 = vld [vmem:[%s5] sm:$0x1]
      %v2623 = vunpack.c.l.b16 %v2614
      %v2624 = vunpack.c.l.b16 %v2615
      %v2625 = vunpack.c.l.b16 %v2616
      %v2626 = vunpack.c.l.b16 %v2617
      %v2627 = vpack.c.b16 %v2624, %v2623
      %v2628 = vpack.c.b16 %v2626, %v2625
      %vm2631 = vcmask 261120
      %v2633 = vsel %vm2631, %v2613, 0
      %2635 = vmatprep.subr.bf16.mxu0 0
      %2636 = vmatpush1.bf16.msra.mxu0 0
      %2637 = vmatprep.subr.bf16.mxu0 0
      %2638 = vmatpush1.bf16.msra.mxu0 0
      %2639 = vmatprep.subr.bf16.mxu0 0
      %2640 = vmatpush1.bf16.msra.mxu0 0
      %2641 = vmatprep.subr.bf16.mxu0 0
      %2642 = vmatpush1.bf16.msra.mxu0 0
      %2643 = vmatprep.subr.bf16.mxu0 0
      %2644 = vmatpush1.bf16.msra.mxu0 0
      %2645 = vmatprep.subr.bf16.mxu0 0
      %2646 = vmatpush1.bf16.msra.mxu0 0
      %2647 = vmatprep.subr.bf16.mxu0 0
      %2648 = vmatpush1.bf16.msra.mxu0 %v2628
      %2649 = vmatprep.subr.bf16.mxu0 0
      %2650 = vmatpush1.bf16.msra.mxu0 %v2627
      %2651 = vmatprep.subr.bf16.mxu0 0
      %2652 = vmatpush2.bf16.msra.mxu0 0
      %2653 = vmatprep.subr.bf16.mxu0 0
      %2654 = vmatpush2.bf16.msra.mxu0 0
      %2655 = vmatprep.subr.bf16.mxu0 0
      %2656 = vmatpush2.bf16.msra.mxu0 0
      %2657 = vmatprep.subr.bf16.mxu0 0
      %2658 = vmatpush2.bf16.msra.mxu0 0
      %2659 = vmatprep.subr.bf16.mxu0 0
      %2660 = vmatpush2.bf16.msra.mxu0 0
      %2661 = vmatprep.subr.bf16.mxu0 0
      %2662 = vmatpush2.bf16.msra.mxu0 0
      %2663 = vmatprep.subr.bf16.mxu0 0
      %2664 = vmatpush2.bf16.msra.mxu0 0
      %2665 = vmatprep.subr.bf16.mxu0 0
      %2666 = vmatpush2.bf16.msra.mxu0 0
      %2667 = vmatprep.mubr.bf16.mxu0 0
      %2668 = vmatmul.mubr.bf16.gmra.mxu0 %v2633
      %v2669 = vpop.f32.mrf.mxu0
      %v2670 = vadd.f32 %v2618, %v2669
      %v2671 = vpop.f32.mrf.mxu0
      %v2672 = vpop.f32.mrf.mxu0
      %v2673 = vpop.f32.mrf.mxu0
      %2674 = vdwg.mxu0
      %v2675 = vmax.f32 %v2670, 0.0
      %v2676 = vadd.f32 %v2581, %v2582
      %v2677 = vadd.f32 %v2676, %v2583
      %v2678 = vadd.f32 %v2677, %v2584
      %v2679 = vadd.f32 %v2678, %v2585
      %v2680 = vadd.f32 %v2679, %v2586
      %v2681 = vadd.f32 %v2680, %v2587
      %v2682 = vadd.f32 %v2681, %v2588
      %v2683 = vadd.f32 %v2682, %v2589
      %v2684 = vadd.f32 %v2683, %v2590
      %v2685 = vadd.f32 %v2684, %v2591
      %v2686 = vadd.f32 %v2685, %v2592
      %v2687 = vadd.f32 %v2686, %v2593
      %v2688 = vadd.f32 %v2687, %v2594
      %v2689 = vadd.f32 %v2688, %v2595
      %v2690 = vadd.f32 %v2689, %v2596
      %v2691 = vadd.f32 %v2690, %v2597
      %v2692 = vadd.f32 %v2691, %v2598
      %v2693 = vadd.f32 %v2692, %v2599
      %v2694 = vadd.f32 %v2693, %v2600
      %v2695 = vadd.f32 %v2694, %v2601
      %v2696 = vadd.f32 %v2695, %v2602
      %v2697 = vadd.f32 %v2696, %v2603
      %v2698 = vadd.f32 %v2697, %v2604
      %v2699 = vadd.f32 %v2698, %v2605
      %v2700 = vadd.f32 %v2699, %v2606
      %v2701 = vadd.f32 %v2700, %v2607
      %v2702 = vadd.f32 %v2701, %v2608
      %v2703 = vadd.f32 %v2702, %v2609
      %v2704 = vadd.f32 %v2703, %v2610
      %v2705 = vadd.f32 %v2704, %v2611
      %v2706 = vadd.f32 %v2705, %v2612
      %v2707 = vrot.slane %v2706, 4
      %v2708 = vadd.f32 %v2706, %v2707
      %v2709 = vrot.slane %v2708, 2
      %v2710 = vadd.f32 %v2708, %v2709
      %v2711 = vrot.slane %v2710, 1
      %v2712 = vadd.f32 %v2710, %v2711
      %v2713 = vmul.f32 %v2581, %v2581
      %v2714 = vmul.f32 %v2582, %v2582
      %v2715 = vmul.f32 %v2583, %v2583
      %v2716 = vmul.f32 %v2584, %v2584
      %v2717 = vmul.f32 %v2585, %v2585
      %v2718 = vmul.f32 %v2586, %v2586
      %v2719 = vmul.f32 %v2587, %v2587
      %v2720 = vmul.f32 %v2588, %v2588
      %v2721 = vmul.f32 %v2589, %v2589
      %v2722 = vmul.f32 %v2590, %v2590
      %v2723 = vmul.f32 %v2591, %v2591
      %v2724 = vmul.f32 %v2592, %v2592
      %v2725 = vmul.f32 %v2593, %v2593
      %v2726 = vmul.f32 %v2594, %v2594
      %v2727 = vmul.f32 %v2595, %v2595
      %v2728 = vmul.f32 %v2596, %v2596
      %v2729 = vmul.f32 %v2597, %v2597
      %v2730 = vmul.f32 %v2598, %v2598
      %v2731 = vmul.f32 %v2599, %v2599
      %v2732 = vmul.f32 %v2600, %v2600
      %v2733 = vmul.f32 %v2601, %v2601
      %v2734 = vmul.f32 %v2602, %v2602
      %v2735 = vmul.f32 %v2603, %v2603
      %v2736 = vmul.f32 %v2604, %v2604
      %v2737 = vmul.f32 %v2605, %v2605
      %v2738 = vmul.f32 %v2606, %v2606
      %v2739 = vmul.f32 %v2607, %v2607
      %v2740 = vmul.f32 %v2608, %v2608
      %v2741 = vmul.f32 %v2609, %v2609
      %v2742 = vmul.f32 %v2610, %v2610
      %v2743 = vmul.f32 %v2611, %v2611
      %v2744 = vmul.f32 %v2612, %v2612
      %v2745 = vadd.f32 %v2713, %v2714
      %v2746 = vadd.f32 %v2745, %v2715
      %v2747 = vadd.f32 %v2746, %v2716
      %v2748 = vadd.f32 %v2747, %v2717
      %v2749 = vadd.f32 %v2748, %v2718
      %v2750 = vadd.f32 %v2749, %v2719
      %v2751 = vadd.f32 %v2750, %v2720
      %v2752 = vadd.f32 %v2751, %v2721
      %v2753 = vadd.f32 %v2752, %v2722
      %v2754 = vadd.f32 %v2753, %v2723
      %v2755 = vadd.f32 %v2754, %v2724
      %v2756 = vadd.f32 %v2755, %v2725
      %v2757 = vadd.f32 %v2756, %v2726
      %v2758 = vadd.f32 %v2757, %v2727
      %v2759 = vadd.f32 %v2758, %v2728
      %v2760 = vadd.f32 %v2759, %v2729
      %v2761 = vadd.f32 %v2760, %v2730
      %v2762 = vadd.f32 %v2761, %v2731
      %v2763 = vadd.f32 %v2762, %v2732
      %v2764 = vadd.f32 %v2763, %v2733
      %v2765 = vadd.f32 %v2764, %v2734
      %v2766 = vadd.f32 %v2765, %v2735
      %v2767 = vadd.f32 %v2766, %v2736
      %v2768 = vadd.f32 %v2767, %v2737
      %v2769 = vadd.f32 %v2768, %v2738
      %v2770 = vadd.f32 %v2769, %v2739
      %v2771 = vadd.f32 %v2770, %v2740
      %v2772 = vadd.f32 %v2771, %v2741
      %v2773 = vadd.f32 %v2772, %v2742
      %v2774 = vadd.f32 %v2773, %v2743
      %v2775 = vadd.f32 %v2774, %v2744
      %v2776 = vrot.slane %v2775, 4
      %v2777 = vadd.f32 %v2775, %v2776
      %v2778 = vrot.slane %v2777, 2
      %v2779 = vadd.f32 %v2777, %v2778
      %v2780 = vrot.slane %v2779, 1
      %v2781 = vadd.f32 %v2779, %v2780
      %v2783 = vrot.slane %v2675, 6
      %vm2785 = vcmask 1040384
      %v2786 = vsel %vm2785, %v2712, %v2781
      %vm2787 = vcmask 1041408
      %v2788 = vsel %vm2787, %v2786, %v2783
      %2789 = vst [vmem:[%s303] sm:$0x7] %v2788
      %2790 = vst [vmem:[%s299] sm:$0xff] 0.0
      %2791 = vst [vmem:[%s299 + $0x8] sm:$0xff] 0.0
      %2792 = vst [vmem:[%s299 + $0x10] sm:$0x3] 0.0
      %2793 = vst [vmem:[%s299 + $0x18] sm:$0xff] 0.0
      %2794 = vst [vmem:[%s299 + $0x20] sm:$0xff] 0.0
      %2795 = vst [vmem:[%s299 + $0x28] sm:$0x3] 0.0
      %2796 = vst [vmem:[%s299 + $0x30] sm:$0xff] 0.0
      %2797 = vst [vmem:[%s299 + $0x38] sm:$0xff] 0.0
      %2798 = vst [vmem:[%s299 + $0x40] sm:$0x3] 0.0
      %2799 = vst [vmem:[%s299 + $0x48] sm:$0xff] 0.0
      %2800 = vst [vmem:[%s299 + $0x50] sm:$0xff] 0.0
      %2801 = vst [vmem:[%s299 + $0x58] sm:$0x3] 0.0
      %2802 = vst [vmem:[%s299 + $0x60] sm:$0xff] 0.0
      %2803 = vst [vmem:[%s299 + $0x68] sm:$0xff] 0.0
      %2804 = vst [vmem:[%s299 + $0x70] sm:$0x3] 0.0
      %2805 = vst [vmem:[%s299 + $0x78] sm:$0xff] 0.0
      %2806 = vst [vmem:[%s299 + $0x80] sm:$0xff] 0.0
      %2807 = vst [vmem:[%s299 + $0x88] sm:$0x3] 0.0
      %2808 = vst [vmem:[%s299 + $0x90] sm:$0xff] 0.0
      %2809 = vst [vmem:[%s299 + $0x98] sm:$0xff] 0.0
      %2810 = vst [vmem:[%s299 + $0xa0] sm:$0x3] 0.0
      %2811 = vst [vmem:[%s299 + $0xa8] sm:$0xff] 0.0
      %2812 = vst [vmem:[%s299 + $0xb0] sm:$0xff] 0.0
      %2813 = vst [vmem:[%s299 + $0xb8] sm:$0x3] 0.0
      %2814 = vst [vmem:[%s299 + $0xc0] sm:$0xff] 0.0
      %2815 = vst [vmem:[%s299 + $0xc8] sm:$0xff] 0.0
      %2816 = vst [vmem:[%s299 + $0xd0] sm:$0x3] 0.0
      %2817 = vst [vmem:[%s299 + $0xd8] sm:$0xff] 0.0
      %2818 = vst [vmem:[%s299 + $0xe0] sm:$0xff] 0.0
      %2819 = vst [vmem:[%s299 + $0xe8] sm:$0x3] 0.0
      %2820 = vst [vmem:[%s299 + $0xf0] sm:$0xff] 0.0
      %2821 = vst [vmem:[%s299 + $0xf8] sm:$0xff] 0.0
      %2822 = vst [vmem:[%s299 + $0x100] sm:$0x3] 0.0
      %2823 = vst [vmem:[%s299 + $0x108] sm:$0xff] 0.0
      %2824 = vst [vmem:[%s299 + $0x110] sm:$0xff] 0.0
      %2825 = vst [vmem:[%s299 + $0x118] sm:$0x3] 0.0
      %2826 = vst [vmem:[%s299 + $0x120] sm:$0xff] 0.0
      %2827 = vst [vmem:[%s299 + $0x128] sm:$0xff] 0.0
      %2828 = vst [vmem:[%s299 + $0x130] sm:$0x3] 0.0
      %2829 = vst [vmem:[%s299 + $0x138] sm:$0xff] 0.0
      %2830 = vst [vmem:[%s299 + $0x140] sm:$0xff] 0.0
      %2831 = vst [vmem:[%s299 + $0x148] sm:$0x3] 0.0
      %2832 = vst [vmem:[%s299 + $0x150] sm:$0xff] 0.0
      %2833 = vst [vmem:[%s299 + $0x158] sm:$0xff] 0.0
      %2834 = vst [vmem:[%s299 + $0x160] sm:$0x3] 0.0
      %2835 = vst [vmem:[%s299 + $0x168] sm:$0xff] 0.0
      %2836 = vst [vmem:[%s299 + $0x170] sm:$0xff] 0.0
      %2837 = vst [vmem:[%s299 + $0x178] sm:$0x3] 0.0
      %2838 = vst [vmem:[%s299 + $0x180] sm:$0xff] 0.0
      %2839 = vst [vmem:[%s299 + $0x188] sm:$0xff] 0.0
      %2840 = vst [vmem:[%s299 + $0x190] sm:$0x3] 0.0
      %2841 = vst [vmem:[%s299 + $0x198] sm:$0xff] 0.0
      %2842 = vst [vmem:[%s299 + $0x1a0] sm:$0xff] 0.0
      %2843 = vst [vmem:[%s299 + $0x1a8] sm:$0x3] 0.0
      %s2844 = scalar_lea.vmem %s299, 24
      %2845 = vst [vmem:[%s2844 + $0x1] sm:$0xff] %v2581
      %2846 = vst [vmem:[%s2844 + $0x9] sm:$0xff] %v2582
      %2847 = vst [vmem:[%s2844 + $0x19] sm:$0xff] %v2583
      %2848 = vst [vmem:[%s2844 + $0x21] sm:$0xff] %v2584
      %2849 = vst [vmem:[%s2844 + $0x31] sm:$0xff] %v2585
      %2850 = vst [vmem:[%s2844 + $0x39] sm:$0xff] %v2586
      %2851 = vst [vmem:[%s2844 + $0x49] sm:$0xff] %v2587
      %2852 = vst [vmem:[%s2844 + $0x51] sm:$0xff] %v2588
      %2853 = vst [vmem:[%s2844 + $0x61] sm:$0xff] %v2589
      %2854 = vst [vmem:[%s2844 + $0x69] sm:$0xff] %v2590
      %2855 = vst [vmem:[%s2844 + $0x79] sm:$0xff] %v2591
      %2856 = vst [vmem:[%s2844 + $0x81] sm:$0xff] %v2592
      %2857 = vst [vmem:[%s2844 + $0x91] sm:$0xff] %v2593
      %2858 = vst [vmem:[%s2844 + $0x99] sm:$0xff] %v2594
      %2859 = vst [vmem:[%s2844 + $0xa9] sm:$0xff] %v2595
      %2860 = vst [vmem:[%s2844 + $0xb1] sm:$0xff] %v2596
      %2861 = vst [vmem:[%s2844 + $0xc1] sm:$0xff] %v2597
      %2862 = vst [vmem:[%s2844 + $0xc9] sm:$0xff] %v2598
      %2863 = vst [vmem:[%s2844 + $0xd9] sm:$0xff] %v2599
      %2864 = vst [vmem:[%s2844 + $0xe1] sm:$0xff] %v2600
      %2865 = vst [vmem:[%s2844 + $0xf1] sm:$0xff] %v2601
      %2866 = vst [vmem:[%s2844 + $0xf9] sm:$0xff] %v2602
      %2867 = vst [vmem:[%s2844 + $0x109] sm:$0xff] %v2603
      %2868 = vst [vmem:[%s2844 + $0x111] sm:$0xff] %v2604
      %2869 = vst [vmem:[%s2844 + $0x121] sm:$0xff] %v2605
      %2870 = vst [vmem:[%s2844 + $0x129] sm:$0xff] %v2606
      %2871 = vst [vmem:[%s2844 + $0x139] sm:$0xff] %v2607
      %2872 = vst [vmem:[%s2844 + $0x141] sm:$0xff] %v2608
      %2873 = vst [vmem:[%s2844 + $0x151] sm:$0xff] %v2609
      %2874 = vst [vmem:[%s2844 + $0x159] sm:$0xff] %v2610
      %2875 = vst [vmem:[%s2844 + $0x169] sm:$0xff] %v2611
      %2876 = vst [vmem:[%s2844 + $0x171] sm:$0xff] %v2612
      %p2877 = scmp.lt.s32.totalorder %s19, 1
      %s2878 = scalar_select %p2877, %s19, 1
      %s2879 = smul.addr %s2878, 54
      %s2880 = smul.addr %s2879, 8
      %s2881 = scalar_lea.vmem %s6, %s2880
      %p2882 = scmp.lt.s32.totalorder %s19, 1
      %s2883 = scalar_select %p2882, %s19, 1
      %s2884 = smul.addr %s2883, 4
      %s2885 = scalar_lea.vmem %s7, %s2884
      // Predicated region
      $region45: #{block_forward.3} parent=43 // pred_check
        %p2886 = pneg %p173
      $region46: #{block_forward.3} parent=43 // pred_check_branch
        %2888 = sbr.rel (%p2886) target = $region48
      $region47: #{block_forward.3} parent=43 // pred_region
        _
      $region48: #{block_forward.3} parent=43 // pred_fallthru
        _
      // Predicated region
      $region49: #{block_forward.3} parent=43 // pred_check
        %p2889 = pneg %p199
      $region50: #{block_forward.3} parent=43 // pred_check_branch
        %2891 = sbr.rel (%p2889) target = $region52
      $region51: #{block_forward.3} parent=43 // pred_region
        _
      $region52: #{block_forward.3} parent=43 // pred_fallthru
        _
    $region44: #{block_forward.3} parent=5 // pred_fallthru
      _
    %p2892 = scmp.le.s32.totalorder 2, %s14
    // Predicated region
    $region53: #{block_forward.3} parent=5 // pred_check
      %p2893 = pneg %p2892
    $region54: #{block_forward.3} parent=5 // pred_check_branch
      %2895 = sbr.rel (%p2893) target = $region56
    $region55: #{block_forward.3} parent=5 // pred_region
      %s2896 = ssub.s32 %s14, 2
      // Predicated region
      $region57: #{block_forward.3} parent=55 // pred_check
        %p2897 = pneg %p179
      $region58: #{block_forward.3} parent=55 // pred_check_branch
        %2899 = sbr.rel (%p2897) target = $region60
      $region59: #{block_forward.3} parent=55 // pred_region
        %p2900 = scmp.lt.s32.totalorder %s20, 1
        %s2901 = scalar_select %p2900, %s20, 1
        %s2902 = smul.addr %s2901, 54
        %s2903 = smul.addr %s2902, 8
        %s2904 = scalar_lea.vmem %s6, %s2903
      $region60: #{block_forward.3} parent=55 // pred_fallthru
        _
      // Predicated region
      $region61: #{block_forward.3} parent=55 // pred_check
        %p2905 = pneg %p205
      $region62: #{block_forward.3} parent=55 // pred_check_branch
        %2907 = sbr.rel (%p2905) target = $region64
      $region63: #{block_forward.3} parent=55 // pred_region
        %p2908 = scmp.lt.s32.totalorder %s20, 1
        %s2909 = scalar_select %p2908, %s20, 1
        %s2910 = smul.addr %s2909, 4
        %s2911 = scalar_lea.vmem %s7, %s2910
      $region64: #{block_forward.3} parent=55 // pred_fallthru
        _
    $region56: #{block_forward.3} parent=5 // pred_fallthru
      _
  $region6: #{block_forward.3} parent=0 // loop_footer
    %s18 = sadd.s32 1, %s14
  $region7: #{block_forward.3} parent=0 // loop_footer_branch
    %13 = sbr.rel target = $region3
  $region8: #{block_forward.3} parent=0 // loop_exit
    _

// kernel: block_forward.5
$region0: #{block_forward.5}
  #allocation0 [shape = 'u32[]', space=smem, size = 0x4, offset = 0x4, fixed_abs, tag = 'smem constant byte address 0x4 - core index']
  #allocation1 [shape = 'u32[144,128]{1,0:T(1,128)}', space=vmem, size = 0x12000, scoped, tag = 'internal scratch']
  %s0 = inlined_call_operand.vmem [shape: f32[2,4,9,9,128], index: 0, kind: input, shape index: {}]
  %s1 = inlined_call_operand.vmem [shape: f32[1,128], index: 1, kind: input, shape index: {}]
  %s2 = inlined_call_operand.vmem [shape: f32[1,128], index: 2, kind: input, shape index: {}]
  %s3 = inlined_call_operand.vmem [shape: bf16[2048,128], index: 3, kind: input, shape index: {}]
  %s4 = inlined_call_operand.vmem [shape: f32[1,128], index: 4, kind: input, shape index: {}]
  %s5 = inlined_call_operand.vmem [shape: f32[2,8,8,128], index: 5, kind: output, shape index: {}]
  %s6 = sld [smem:[#allocation0]]
  $region53: #{block_forward.5} parent=0
    _
  %s8 = ssub.s32 1, %s6
  %s9 = scalar_select 0, %s8, %s6
  loop: start=0, step=1, limit=4
  $region2: #{block_forward.5} parent=0 // loop_pre_header
    _
  $region3: #{block_forward.5} parent=0 // loop_header
    %s11 = sphi 0, %s15
    %p12 = scmp.ge.s32.totalorder %s11, 4
    %s21 = sphi 0, %s23
    %s24 = sphi 0, %s21
    %s25 = sphi 0, %s24
    %s41 = sphi 0, %s25
    %s45 = sphi 0, %s45
    %s47 = sphi 0, %s45
    %s48 = sphi 0, %s47
    %s62 = sphi 0, %s48
    %s66 = sphi 0, %s66
    %s68 = sphi 0, %s66
    %s69 = sphi 0, %s68
    %s83 = sphi 0, %s69
    %s87 = sphi 0, %s87
    %s89 = sphi 0, %s87
    %s90 = sphi 0, %s89
    %s104 = sphi 0, %s90
    %s108 = sphi 0, %s108
    %s110 = sphi 0, %s108
    %s111 = sphi 0, %s110
    %s125 = sphi 0, %s111
    %s131 = sphi 0, %s133
    %s134 = sphi 0, %s131
    %s135 = sphi 0, %s134
    %s151 = sphi 0, %s135
  $region4: #{block_forward.5} parent=0 // loop_header_branch
    %14 = sbr.rel (%p12) target = $region8
  $region5: #{block_forward.5} parent=0 // loop_body
    %s16 = ssub.s32 %s11, 1
    %s17 = ssub.s32 %s11, 2
    %s18 = sadd.s32 %s11, 1
    %s19 = ssub.s32 %s11, %s18
    %p20 = scmp.eq.s32.totalorder %s19, 0
    %s22 = sadd.s32 %s21, 1
    %s23 = scalar_select %p20, %s21, %s22
    %p26 = pneg %p20
    %p27 = scmp.eq.s32.totalorder %s11, 1
    %p28 = por %p26, %p27
    %p29 = scmp.ne.s32.totalorder %s21, %s24
    %p30 = scmp.eq.s32.totalorder %s11, 0
    %p31 = por %p29, %p30
    %p32 = scmp.ne.s32.totalorder %s21, %s24
    %p33 = scmp.eq.s32.totalorder %s16, 1
    %p34 = por %p32, %p33
    %p35 = scmp.ne.s32.totalorder %s24, %s25
    %p36 = scmp.eq.s32.totalorder %s16, 0
    %p37 = por %p35, %p36
    %p38 = scmp.ne.s32.totalorder %s24, %s25
    %p39 = scmp.eq.s32.totalorder %s17, 1
    %p40 = por %p38, %p39
    %p42 = scmp.ne.s32.totalorder %s25, %s41
    %p43 = scmp.eq.s32.totalorder %s17, 0
    %p44 = por %p42, %p43
    %s46 = sadd.s32 %s45, 1
    %p49 = scmp.eq.s32.totalorder %s11, 1
    %p50 = scmp.ne.s32.totalorder %s45, %s47
    %p51 = scmp.eq.s32.totalorder %s11, 0
    %p52 = por %p50, %p51
    %p53 = scmp.ne.s32.totalorder %s45, %s47
    %p54 = scmp.eq.s32.totalorder %s16, 1
    %p55 = por %p53, %p54
    %p56 = scmp.ne.s32.totalorder %s47, %s48
    %p57 = scmp.eq.s32.totalorder %s16, 0
    %p58 = por %p56, %p57
    %p59 = scmp.ne.s32.totalorder %s47, %s48
    %p60 = scmp.eq.s32.totalorder %s17, 1
    %p61 = por %p59, %p60
    %p63 = scmp.ne.s32.totalorder %s48, %s62
    %p64 = scmp.eq.s32.totalorder %s17, 0
    %p65 = por %p63, %p64
    %s67 = sadd.s32 %s66, 1
    %p70 = scmp.eq.s32.totalorder %s11, 1
    %p71 = scmp.ne.s32.totalorder %s66, %s68
    %p72 = scmp.eq.s32.totalorder %s11, 0
    %p73 = por %p71, %p72
    %p74 = scmp.ne.s32.totalorder %s66, %s68
    %p75 = scmp.eq.s32.totalorder %s16, 1
    %p76 = por %p74, %p75
    %p77 = scmp.ne.s32.totalorder %s68, %s69
    %p78 = scmp.eq.s32.totalorder %s16, 0
    %p79 = por %p77, %p78
    %p80 = scmp.ne.s32.totalorder %s68, %s69
    %p81 = scmp.eq.s32.totalorder %s17, 1
    %p82 = por %p80, %p81
    %p84 = scmp.ne.s32.totalorder %s69, %s83
    %p85 = scmp.eq.s32.totalorder %s17, 0
    %p86 = por %p84, %p85
    %s88 = sadd.s32 %s87, 1
    %p91 = scmp.eq.s32.totalorder %s11, 1
    %p92 = scmp.ne.s32.totalorder %s87, %s89
    %p93 = scmp.eq.s32.totalorder %s11, 0
    %p94 = por %p92, %p93
    %p95 = scmp.ne.s32.totalorder %s87, %s89
    %p96 = scmp.eq.s32.totalorder %s16, 1
    %p97 = por %p95, %p96
    %p98 = scmp.ne.s32.totalorder %s89, %s90
    %p99 = scmp.eq.s32.totalorder %s16, 0
    %p100 = por %p98, %p99
    %p101 = scmp.ne.s32.totalorder %s89, %s90
    %p102 = scmp.eq.s32.totalorder %s17, 1
    %p103 = por %p101, %p102
    %p105 = scmp.ne.s32.totalorder %s90, %s104
    %p106 = scmp.eq.s32.totalorder %s17, 0
    %p107 = por %p105, %p106
    %s109 = sadd.s32 %s108, 1
    %p112 = scmp.eq.s32.totalorder %s11, 1
    %p113 = scmp.ne.s32.totalorder %s108, %s110
    %p114 = scmp.eq.s32.totalorder %s11, 0
    %p115 = por %p113, %p114
    %p116 = scmp.ne.s32.totalorder %s108, %s110
    %p117 = scmp.eq.s32.totalorder %s16, 1
    %p118 = por %p116, %p117
    %p119 = scmp.ne.s32.totalorder %s110, %s111
    %p120 = scmp.eq.s32.totalorder %s16, 0
    %p121 = por %p119, %p120
    %p122 = scmp.ne.s32.totalorder %s110, %s111
    %p123 = scmp.eq.s32.totalorder %s17, 1
    %p124 = por %p122, %p123
    %p126 = scmp.ne.s32.totalorder %s111, %s125
    %p127 = scmp.eq.s32.totalorder %s17, 0
    %p128 = por %p126, %p127
    %s129 = ssub.s32 %s11, %s18
    %p130 = scmp.eq.s32.totalorder %s129, 0
    %s132 = sadd.s32 %s131, 1
    %s133 = scalar_select %p130, %s131, %s132
    %p136 = pneg %p130
    %p137 = scmp.eq.s32.totalorder %s11, 1
    %p138 = por %p136, %p137
    %p139 = scmp.ne.s32.totalorder %s131, %s134
    %p140 = scmp.eq.s32.totalorder %s11, 0
    %p141 = por %p139, %p140
    %p142 = scmp.ne.s32.totalorder %s131, %s134
    %p143 = scmp.eq.s32.totalorder %s16, 1
    %p144 = por %p142, %p143
    %p145 = scmp.ne.s32.totalorder %s134, %s135
    %p146 = scmp.eq.s32.totalorder %s16, 0
    %p147 = por %p145, %p146
    %p148 = scmp.ne.s32.totalorder %s134, %s135
    %p149 = scmp.eq.s32.totalorder %s17, 1
    %p150 = por %p148, %p149
    %p152 = scmp.ne.s32.totalorder %s135, %s151
    %p153 = scmp.eq.s32.totalorder %s17, 0
    %p154 = por %p152, %p153
    %p155 = scmp.le.s32.totalorder 1, %s11
    %p156 = scmp.lt.s32.totalorder %s11, 3
    %p157 = pnand %p155, %p156
    %p158 = pneg %p157
    // Predicated region
    $region9: #{block_forward.5} parent=5 // pred_check
      _
    $region10: #{block_forward.5} parent=5 // pred_check_branch
      %160 = sbr.rel (%p157) target = $region12
    $region11: #{block_forward.5} parent=5 // pred_region
      %s161 = ssub.s32 %s11, 1
      // Predicated region
      $region13: #{block_forward.5} parent=11 // pred_check
        %p162 = pneg %p58
      $region14: #{block_forward.5} parent=11 // pred_check_branch
        %164 = sbr.rel (%p162) target = $region16
      $region15: #{block_forward.5} parent=11 // pred_region
        _
      $region16: #{block_forward.5} parent=11 // pred_fallthru
        _
      // Predicated region
      $region17: #{block_forward.5} parent=11 // pred_check
        %p165 = pneg %p79
      $region18: #{block_forward.5} parent=11 // pred_check_branch
        %167 = sbr.rel (%p165) target = $region20
      $region19: #{block_forward.5} parent=11 // pred_region
        _
      $region20: #{block_forward.5} parent=11 // pred_fallthru
        _
      // Predicated region
      $region21: #{block_forward.5} parent=11 // pred_check
        %p168 = pneg %p100
      $region22: #{block_forward.5} parent=11 // pred_check_branch
        %170 = sbr.rel (%p168) target = $region24
      $region23: #{block_forward.5} parent=11 // pred_region
        _
      $region24: #{block_forward.5} parent=11 // pred_fallthru
        _
      // Predicated region
      $region25: #{block_forward.5} parent=11 // pred_check
        %p171 = pneg %p121
      $region26: #{block_forward.5} parent=11 // pred_check_branch
        %173 = sbr.rel (%p171) target = $region28
      $region27: #{block_forward.5} parent=11 // pred_region
        _
      $region28: #{block_forward.5} parent=11 // pred_fallthru
        _
    $region12: #{block_forward.5} parent=5 // pred_fallthru
      _
    %p174 = scmp.lt.s32.totalorder %s11, 2
    // Predicated region
    $region29: #{block_forward.5} parent=5 // pred_check
      %p175 = pneg %p174
    $region30: #{block_forward.5} parent=5 // pred_check_branch
      %177 = sbr.rel (%p175) target = $region32
    $region31: #{block_forward.5} parent=5 // pred_region
      // Predicated region
      $region33: #{block_forward.5} parent=31 // pred_check
        %p178 = pneg %p31
      $region34: #{block_forward.5} parent=31 // pred_check_branch
        %180 = sbr.rel (%p178) target = $region36
      $region35: #{block_forward.5} parent=31 // pred_region
        %p181 = scmp.lt.s32.totalorder %s11, 1
        %s182 = scalar_select %p181, %s11, 1
        %s183 = smul.addr %s182, 72
        %s184 = smul.addr %s183, 8
        %s185 = scalar_lea.vmem %s0, %s184
      $region36: #{block_forward.5} parent=31 // pred_fallthru
        _
    $region32: #{block_forward.5} parent=5 // pred_fallthru
      _
    %p186 = scmp.le.s32.totalorder 1, %s11
    %p187 = scmp.lt.s32.totalorder %s11, 3
    %p188 = pnand %p186, %p187
    %p189 = pneg %p188
    // Predicated region
    $region37: #{block_forward.5} parent=5 // pred_check
      _
    $region38: #{block_forward.5} parent=5 // pred_check_branch
      %191 = sbr.rel (%p188) target = $region40
    $region39: #{block_forward.5} parent=5 // pred_region
      %s192 = ssub.s32 %s11, 1
      %p193 = scmp.lt.s32.totalorder %s16, 1
      %s194 = scalar_select %p193, %s16, 1
      %s195 = smul.addr %s194, 72
      %s196 = smul.addr %s195, 8
      %s197 = scalar_lea.vmem %s0, %s196
      %p198 = pneg %p37
      %p199 = pneg %p34
      %p200 = pneg %p58
      %p201 = pneg %p55
      %p202 = pneg %p79
      %p203 = pneg %p76
      %p204 = pneg %p100
      %p205 = pneg %p97
      %p206 = pneg %p121
      %p207 = pneg %p118
      %p208 = pneg %p147
      %p209 = pneg %p144
      %p210 = scmp.lt.s32.totalorder %s16, 1
      %s211 = scalar_select %p210, %s16, 1
      %s212 = smul.addr %s211, 8
      %s213 = smul.addr %s212, 8
      %s214 = scalar_lea.vmem %s5, %s213
      %p215 = scmp.lt.s32.totalorder %s16, 1
      %s216 = scalar_select %p215, %s16, 1
      %s217 = smul.addr %s216, 72
      %s218 = smul.addr %s217, 8
      %s219 = scalar_lea.vmem %s0, %s218
      %p220 = scmp.lt.s32.totalorder %s16, 1
      %s221 = scalar_select %p220, %s16, 1
      %s222 = smul.addr %s221, 8
      %s223 = smul.addr %s222, 8
      %s224 = scalar_lea.vmem %s5, %s223
      %v226 = vlaneseq
      %v227 = vshrl.u32 %v226, 7
      %v228 = vadd.s32 %v227, 8
      %v229 = vld [vmem:[%s219] sm:$0xff]
      %v230 = vld [vmem:[%s219 + $0x8] sm:$0x1]
      %v231 = vld [vmem:[%s219 + $0x10] sm:$0xff]
      %v232 = vld [vmem:[%s219 + $0x18] sm:$0x1]
      %v233 = vld [vmem:[%s219 + $0x20] sm:$0xff]
      %v234 = vld [vmem:[%s219 + $0x28] sm:$0x1]
      %v235 = vld [vmem:[%s219 + $0x30] sm:$0xff]
      %v236 = vld [vmem:[%s219 + $0x38] sm:$0x1]
      %v237 = vld [vmem:[%s219 + $0x40] sm:$0xff]
      %v238 = vld [vmem:[%s219 + $0x48] sm:$0x1]
      %v239 = vld [vmem:[%s219 + $0x50] sm:$0xff]
      %v240 = vld [vmem:[%s219 + $0x58] sm:$0x1]
      %v241 = vld [vmem:[%s219 + $0x60] sm:$0xff]
      %v242 = vld [vmem:[%s219 + $0x68] sm:$0x1]
      %v243 = vld [vmem:[%s219 + $0x70] sm:$0xff]
      %v244 = vld [vmem:[%s219 + $0x78] sm:$0x1]
      %v245 = vld [vmem:[%s219 + $0x80] sm:$0xff]
      %v246 = vld [vmem:[%s219 + $0x88] sm:$0x1]
      %vm247 = vcmp.ne.s32.totalorder %v227, 0
      %vm248 = vcmp.ne.s32.totalorder %v228, 0
      %vm249 = vmand 0, %vm247
      %vm250 = vmand 0, %vm248
      %vm251 = vmand 1, %vm247
      %vm252 = vmand 1, %vm248
      %v253 = vld [vmem:[%s1] sm:$0x1]
      %v255 = vlaneseq
      %v256 = vshrl.u32 %v255, 7
      %v257 = vsub.s32 0, %v256
      %v258 = vrot.slane %v253, %v257
      %v260 = vmul.f32 %v229, %v258
      %v261 = vmul.f32 %v230, %v258
      %v262 = vmul.f32 %v231, %v258
      %v263 = vmul.f32 %v232, %v258
      %v264 = vmul.f32 %v233, %v258
      %v265 = vmul.f32 %v234, %v258
      %v266 = vmul.f32 %v235, %v258
      %v267 = vmul.f32 %v236, %v258
      %v268 = vmul.f32 %v237, %v258
      %v269 = vmul.f32 %v238, %v258
      %v270 = vmul.f32 %v239, %v258
      %v271 = vmul.f32 %v240, %v258
      %v272 = vmul.f32 %v241, %v258
      %v273 = vmul.f32 %v242, %v258
      %v274 = vmul.f32 %v243, %v258
      %v275 = vmul.f32 %v244, %v258
      %v276 = vmul.f32 %v245, %v258
      %v277 = vmul.f32 %v246, %v258
      %v278 = vld [vmem:[%s2] sm:$0x1]
      %v280 = vlaneseq
      %v281 = vshrl.u32 %v280, 7
      %v282 = vsub.s32 0, %v281
      %v283 = vrot.slane %v278, %v282
      %v285 = vadd.f32 %v260, %v283
      %v286 = vadd.f32 %v261, %v283
      %v287 = vadd.f32 %v262, %v283
      %v288 = vadd.f32 %v263, %v283
      %v289 = vadd.f32 %v264, %v283
      %v290 = vadd.f32 %v265, %v283
      %v291 = vadd.f32 %v266, %v283
      %v292 = vadd.f32 %v267, %v283
      %v293 = vadd.f32 %v268, %v283
      %v294 = vadd.f32 %v269, %v283
      %v295 = vadd.f32 %v270, %v283
      %v296 = vadd.f32 %v271, %v283
      %v297 = vadd.f32 %v272, %v283
      %v298 = vadd.f32 %v273, %v283
      %v299 = vadd.f32 %v274, %v283
      %v300 = vadd.f32 %v275, %v283
      %v301 = vadd.f32 %v276, %v283
      %v302 = vadd.f32 %v277, %v283
      %v303 = vsel %vm249, %v285, 0.0
      %v304 = vsel %vm250, %v286, 0.0
      %v305 = vsel %vm251, %v287, 0.0
      %v306 = vsel %vm252, %v288, 0.0
      %v307 = vsel %vm251, %v289, 0.0
      %v308 = vsel %vm252, %v290, 0.0
      %v309 = vsel %vm251, %v291, 0.0
      %v310 = vsel %vm252, %v292, 0.0
      %v311 = vsel %vm251, %v293, 0.0
      %v312 = vsel %vm252, %v294, 0.0
      %v313 = vsel %vm251, %v295, 0.0
      %v314 = vsel %vm252, %v296, 0.0
      %v315 = vsel %vm251, %v297, 0.0
      %v316 = vsel %vm252, %v298, 0.0
      %v317 = vsel %vm251, %v299, 0.0
      %v318 = vsel %vm252, %v300, 0.0
      %v319 = vsel %vm251, %v301, 0.0
      %v320 = vsel %vm252, %v302, 0.0
      %v321 = vpack.c.bf16 %v304, %v303
      %v322 = vpack.c.bf16 %v306, %v305
      %v323 = vpack.c.bf16 %v308, %v307
      %v324 = vpack.c.bf16 %v310, %v309
      %v325 = vpack.c.bf16 %v312, %v311
      %v326 = vpack.c.bf16 %v314, %v313
      %v327 = vpack.c.bf16 %v316, %v315
      %v328 = vpack.c.bf16 %v318, %v317
      %v329 = vpack.c.bf16 %v320, %v319
      %v338 = vunpack.c.l.b16 %v321
      %v339 = vunpack.c.h.b16 %v321
      %v340 = vunpack.c.l.b16 %v322
      %v341 = vunpack.c.h.b16 %v322
      %v342 = vunpack.c.l.b16 %v323
      %v343 = vunpack.c.h.b16 %v323
      %v344 = vunpack.c.l.b16 %v324
      %v345 = vunpack.c.h.b16 %v324
      %v346 = vunpack.c.l.b16 %v325
      %v347 = vunpack.c.h.b16 %v325
      %v348 = vunpack.c.l.b16 %v326
      %v349 = vunpack.c.h.b16 %v326
      %v350 = vunpack.c.l.b16 %v327
      %v351 = vunpack.c.h.b16 %v327
      %v352 = vunpack.c.l.b16 %v328
      %v353 = vunpack.c.h.b16 %v328
      %v354 = vpack.c.b16 %v338, %v338
      %v355 = vpack.c.b16 %v339, %v339
      %v356 = vpack.c.b16 %v340, %v340
      %v357 = vpack.c.b16 %v341, %v341
      %v358 = vpack.c.b16 %v342, %v342
      %v359 = vpack.c.b16 %v343, %v343
      %v360 = vpack.c.b16 %v344, %v344
      %v361 = vpack.c.b16 %v345, %v345
      %v362 = vpack.c.b16 %v346, %v346
      %v363 = vpack.c.b16 %v347, %v347
      %v364 = vpack.c.b16 %v348, %v348
      %v365 = vpack.c.b16 %v349, %v349
      %v366 = vpack.c.b16 %v350, %v350
      %v367 = vpack.c.b16 %v351, %v351
      %v368 = vpack.c.b16 %v352, %v352
      %v369 = vpack.c.b16 %v353, %v353
      %vm370 = vsmask.f32 3328
      %vm371 = vsmask.f32 7440
      %vm372 = vmor %vm370, %vm371
      %v374 = vshrl.u32 %v354, 16
      %v376 = vrot.slane %v374, 4
      %v377 = vshll.u32 %v354, 16
      %v379 = vrot.slane %v377, 5
      %v380 = vor.u32 %v376, %v379
      %v381 = vrot.slane %v380, 4
      %v383 = vshll.u32 %v355, 16
      %v385 = vrot.slane %v383, 5
      %v386 = vsel %vm372, %v381, %v385
      %v388 = vshrl.u32 %v356, 16
      %v390 = vrot.slane %v388, 4
      %v391 = vshll.u32 %v356, 16
      %v393 = vrot.slane %v391, 5
      %v394 = vor.u32 %v390, %v393
      %v395 = vrot.slane %v394, 4
      %v397 = vshll.u32 %v357, 16
      %v399 = vrot.slane %v397, 5
      %v400 = vsel %vm372, %v395, %v399
      %v402 = vshrl.u32 %v358, 16
      %v404 = vrot.slane %v402, 4
      %v405 = vshll.u32 %v358, 16
      %v407 = vrot.slane %v405, 5
      %v408 = vor.u32 %v404, %v407
      %v409 = vrot.slane %v408, 4
      %v411 = vshll.u32 %v359, 16
      %v413 = vrot.slane %v411, 5
      %v414 = vsel %vm372, %v409, %v413
      %v416 = vshrl.u32 %v360, 16
      %v418 = vrot.slane %v416, 4
      %v419 = vshll.u32 %v360, 16
      %v421 = vrot.slane %v419, 5
      %v422 = vor.u32 %v418, %v421
      %v423 = vrot.slane %v422, 4
      %v425 = vshll.u32 %v361, 16
      %v427 = vrot.slane %v425, 5
      %v428 = vsel %vm372, %v423, %v427
      %v430 = vshrl.u32 %v362, 16
      %v432 = vrot.slane %v430, 4
      %v433 = vshll.u32 %v362, 16
      %v435 = vrot.slane %v433, 5
      %v436 = vor.u32 %v432, %v435
      %v437 = vrot.slane %v436, 4
      %v439 = vshll.u32 %v363, 16
      %v441 = vrot.slane %v439, 5
      %v442 = vsel %vm372, %v437, %v441
      %v444 = vshrl.u32 %v364, 16
      %v446 = vrot.slane %v444, 4
      %v447 = vshll.u32 %v364, 16
      %v449 = vrot.slane %v447, 5
      %v450 = vor.u32 %v446, %v449
      %v451 = vrot.slane %v450, 4
      %v453 = vshll.u32 %v365, 16
      %v455 = vrot.slane %v453, 5
      %v456 = vsel %vm372, %v451, %v455
      %v458 = vshrl.u32 %v366, 16
      %v460 = vrot.slane %v458, 4
      %v461 = vshll.u32 %v366, 16
      %v463 = vrot.slane %v461, 5
      %v464 = vor.u32 %v460, %v463
      %v465 = vrot.slane %v464, 4
      %v467 = vshll.u32 %v367, 16
      %v469 = vrot.slane %v467, 5
      %v470 = vsel %vm372, %v465, %v469
      %v472 = vshrl.u32 %v368, 16
      %v474 = vrot.slane %v472, 4
      %v475 = vshll.u32 %v368, 16
      %v477 = vrot.slane %v475, 5
      %v478 = vor.u32 %v474, %v477
      %v479 = vrot.slane %v478, 4
      %v481 = vshll.u32 %v369, 16
      %v483 = vrot.slane %v481, 5
      %v484 = vsel %vm372, %v479, %v483
      %v486 = vunpack.c.l.b16 %v329
      %v487 = vunpack.c.h.b16 %v329
      %v488 = vpack.c.b16 %v486, %v486
      %v489 = vpack.c.b16 %v487, %v487
      %v491 = vshrl.u32 %v488, 16
      %v493 = vrot.slane %v491, 4
      %v494 = vshll.u32 %v488, 16
      %v496 = vrot.slane %v494, 5
      %v497 = vor.u32 %v493, %v496
      %v498 = vrot.slane %v497, 4
      %v500 = vshll.u32 %v489, 16
      %v502 = vrot.slane %v500, 5
      %v503 = vsel %vm372, %v498, %v502
      %s504 = scalar_lea.vmem %s219, 144
      %v505 = vld [vmem:[%s504] sm:$0xff]
      %v506 = vld [vmem:[%s504 + $0x8] sm:$0x1]
      %v507 = vld [vmem:[%s504 + $0x10] sm:$0xff]
      %v508 = vld [vmem:[%s504 + $0x18] sm:$0x1]
      %v509 = vld [vmem:[%s504 + $0x20] sm:$0xff]
      %v510 = vld [vmem:[%s504 + $0x28] sm:$0x1]
      %v511 = vld [vmem:[%s504 + $0x30] sm:$0xff]
      %v512 = vld [vmem:[%s504 + $0x38] sm:$0x1]
      %v513 = vld [vmem:[%s504 + $0x40] sm:$0xff]
      %v514 = vld [vmem:[%s504 + $0x48] sm:$0x1]
      %v515 = vld [vmem:[%s504 + $0x50] sm:$0xff]
      %v516 = vld [vmem:[%s504 + $0x58] sm:$0x1]
      %v517 = vld [vmem:[%s504 + $0x60] sm:$0xff]
      %v518 = vld [vmem:[%s504 + $0x68] sm:$0x1]
      %v519 = vld [vmem:[%s504 + $0x70] sm:$0xff]
      %v520 = vld [vmem:[%s504 + $0x78] sm:$0x1]
      %v521 = vld [vmem:[%s504 + $0x80] sm:$0xff]
      %v522 = vld [vmem:[%s504 + $0x88] sm:$0x1]
      %vm523 = vcmp.ne.s32.totalorder %v227, 8
      %vm524 = vcmp.ne.s32.totalorder %v228, 8
      %vm525 = vmand 0, %vm523
      %vm526 = vmand 0, %vm524
      %vm527 = vmand 1, %vm523
      %vm528 = vmand 1, %vm524
      %v529 = vmul.f32 %v505, %v258
      %v530 = vmul.f32 %v506, %v258
      %v531 = vmul.f32 %v507, %v258
      %v532 = vmul.f32 %v508, %v258
      %v533 = vmul.f32 %v509, %v258
      %v534 = vmul.f32 %v510, %v258
      %v535 = vmul.f32 %v511, %v258
      %v536 = vmul.f32 %v512, %v258
      %v537 = vmul.f32 %v513, %v258
      %v538 = vmul.f32 %v514, %v258
      %v539 = vmul.f32 %v515, %v258
      %v540 = vmul.f32 %v516, %v258
      %v541 = vmul.f32 %v517, %v258
      %v542 = vmul.f32 %v518, %v258
      %v543 = vmul.f32 %v519, %v258
      %v544 = vmul.f32 %v520, %v258
      %v545 = vmul.f32 %v521, %v258
      %v546 = vmul.f32 %v522, %v258
      %v547 = vadd.f32 %v529, %v283
      %v548 = vadd.f32 %v530, %v283
      %v549 = vadd.f32 %v531, %v283
      %v550 = vadd.f32 %v532, %v283
      %v551 = vadd.f32 %v533, %v283
      %v552 = vadd.f32 %v534, %v283
      %v553 = vadd.f32 %v535, %v283
      %v554 = vadd.f32 %v536, %v283
      %v555 = vadd.f32 %v537, %v283
      %v556 = vadd.f32 %v538, %v283
      %v557 = vadd.f32 %v539, %v283
      %v558 = vadd.f32 %v540, %v283
      %v559 = vadd.f32 %v541, %v283
      %v560 = vadd.f32 %v542, %v283
      %v561 = vadd.f32 %v543, %v283
      %v562 = vadd.f32 %v544, %v283
      %v563 = vadd.f32 %v545, %v283
      %v564 = vadd.f32 %v546, %v283
      %v565 = vsel %vm525, %v547, 0.0
      %v566 = vsel %vm526, %v548, 0.0
      %v567 = vsel %vm527, %v549, 0.0
      %v568 = vsel %vm528, %v550, 0.0
      %v569 = vsel %vm527, %v551, 0.0
      %v570 = vsel %vm528, %v552, 0.0
      %v571 = vsel %vm527, %v553, 0.0
      %v572 = vsel %vm528, %v554, 0.0
      %v573 = vsel %vm527, %v555, 0.0
      %v574 = vsel %vm528, %v556, 0.0
      %v575 = vsel %vm527, %v557, 0.0
      %v576 = vsel %vm528, %v558, 0.0
      %v577 = vsel %vm527, %v559, 0.0
      %v578 = vsel %vm528, %v560, 0.0
      %v579 = vsel %vm527, %v561, 0.0
      %v580 = vsel %vm528, %v562, 0.0
      %v581 = vsel %vm527, %v563, 0.0
      %v582 = vsel %vm528, %v564, 0.0
      %v583 = vpack.c.bf16 %v566, %v565
      %v584 = vpack.c.bf16 %v568, %v567
      %v585 = vpack.c.bf16 %v570, %v569
      %v586 = vpack.c.bf16 %v572, %v571
      %v587 = vpack.c.bf16 %v574, %v573
      %v588 = vpack.c.bf16 %v576, %v575
      %v589 = vpack.c.bf16 %v578, %v577
      %v590 = vpack.c.bf16 %v580, %v579
      %v591 = vpack.c.bf16 %v582, %v581
      %v600 = vunpack.c.l.b16 %v583
      %v601 = vunpack.c.h.b16 %v583
      %v602 = vunpack.c.l.b16 %v584
      %v603 = vunpack.c.h.b16 %v584
      %v604 = vunpack.c.l.b16 %v585
      %v605 = vunpack.c.h.b16 %v585
      %v606 = vunpack.c.l.b16 %v586
      %v607 = vunpack.c.h.b16 %v586
      %v608 = vunpack.c.l.b16 %v587
      %v609 = vunpack.c.h.b16 %v587
      %v610 = vunpack.c.l.b16 %v588
      %v611 = vunpack.c.h.b16 %v588
      %v612 = vunpack.c.l.b16 %v589
      %v613 = vunpack.c.h.b16 %v589
      %v614 = vunpack.c.l.b16 %v590
      %v615 = vunpack.c.h.b16 %v590
      %v616 = vpack.c.b16 %v600, %v600
      %v617 = vpack.c.b16 %v601, %v601
      %v618 = vpack.c.b16 %v602, %v602
      %v619 = vpack.c.b16 %v603, %v603
      %v620 = vpack.c.b16 %v604, %v604
      %v621 = vpack.c.b16 %v605, %v605
      %v622 = vpack.c.b16 %v606, %v606
      %v623 = vpack.c.b16 %v607, %v607
      %v624 = vpack.c.b16 %v608, %v608
      %v625 = vpack.c.b16 %v609, %v609
      %v626 = vpack.c.b16 %v610, %v610
      %v627 = vpack.c.b16 %v611, %v611
      %v628 = vpack.c.b16 %v612, %v612
      %v629 = vpack.c.b16 %v613, %v613
      %v630 = vpack.c.b16 %v614, %v614
      %v631 = vpack.c.b16 %v615, %v615
      %v633 = vshrl.u32 %v616, 16
      %v635 = vrot.slane %v633, 4
      %v636 = vshll.u32 %v616, 16
      %v638 = vrot.slane %v636, 5
      %v639 = vor.u32 %v635, %v638
      %v640 = vrot.slane %v639, 4
      %v642 = vshll.u32 %v617, 16
      %v644 = vrot.slane %v642, 5
      %v645 = vsel %vm372, %v640, %v644
      %v647 = vshrl.u32 %v618, 16
      %v649 = vrot.slane %v647, 4
      %v650 = vshll.u32 %v618, 16
      %v652 = vrot.slane %v650, 5
      %v653 = vor.u32 %v649, %v652
      %v654 = vrot.slane %v653, 4
      %v656 = vshll.u32 %v619, 16
      %v658 = vrot.slane %v656, 5
      %v659 = vsel %vm372, %v654, %v658
      %v661 = vshrl.u32 %v620, 16
      %v663 = vrot.slane %v661, 4
      %v664 = vshll.u32 %v620, 16
      %v666 = vrot.slane %v664, 5
      %v667 = vor.u32 %v663, %v666
      %v668 = vrot.slane %v667, 4
      %v670 = vshll.u32 %v621, 16
      %v672 = vrot.slane %v670, 5
      %v673 = vsel %vm372, %v668, %v672
      %v675 = vshrl.u32 %v622, 16
      %v677 = vrot.slane %v675, 4
      %v678 = vshll.u32 %v622, 16
      %v680 = vrot.slane %v678, 5
      %v681 = vor.u32 %v677, %v680
      %v682 = vrot.slane %v681, 4
      %v684 = vshll.u32 %v623, 16
      %v686 = vrot.slane %v684, 5
      %v687 = vsel %vm372, %v682, %v686
      %v689 = vshrl.u32 %v624, 16
      %v691 = vrot.slane %v689, 4
      %v692 = vshll.u32 %v624, 16
      %v694 = vrot.slane %v692, 5
      %v695 = vor.u32 %v691, %v694
      %v696 = vrot.slane %v695, 4
      %v698 = vshll.u32 %v625, 16
      %v700 = vrot.slane %v698, 5
      %v701 = vsel %vm372, %v696, %v700
      %v703 = vshrl.u32 %v626, 16
      %v705 = vrot.slane %v703, 4
      %v706 = vshll.u32 %v626, 16
      %v708 = vrot.slane %v706, 5
      %v709 = vor.u32 %v705, %v708
      %v710 = vrot.slane %v709, 4
      %v712 = vshll.u32 %v627, 16
      %v714 = vrot.slane %v712, 5
      %v715 = vsel %vm372, %v710, %v714
      %v717 = vshrl.u32 %v628, 16
      %v719 = vrot.slane %v717, 4
      %v720 = vshll.u32 %v628, 16
      %v722 = vrot.slane %v720, 5
      %v723 = vor.u32 %v719, %v722
      %v724 = vrot.slane %v723, 4
      %v726 = vshll.u32 %v629, 16
      %v728 = vrot.slane %v726, 5
      %v729 = vsel %vm372, %v724, %v728
      %v731 = vshrl.u32 %v630, 16
      %v733 = vrot.slane %v731, 4
      %v734 = vshll.u32 %v630, 16
      %v736 = vrot.slane %v734, 5
      %v737 = vor.u32 %v733, %v736
      %v738 = vrot.slane %v737, 4
      %v740 = vshll.u32 %v631, 16
      %v742 = vrot.slane %v740, 5
      %v743 = vsel %vm372, %v738, %v742
      %v745 = vunpack.c.l.b16 %v591
      %v746 = vunpack.c.h.b16 %v591
      %v747 = vpack.c.b16 %v745, %v745
      %v748 = vpack.c.b16 %v746, %v746
      %v750 = vshrl.u32 %v747, 16
      %v752 = vrot.slane %v750, 4
      %v753 = vshll.u32 %v747, 16
      %v755 = vrot.slane %v753, 5
      %v756 = vor.u32 %v752, %v755
      %v757 = vrot.slane %v756, 4
      %v759 = vshll.u32 %v748, 16
      %v761 = vrot.slane %v759, 5
      %v762 = vsel %vm372, %v757, %v761
      %s763 = scalar_lea.vmem %s219, 288
      %v764 = vld [vmem:[%s763] sm:$0xff]
      %v765 = vld [vmem:[%s763 + $0x8] sm:$0x1]
      %v766 = vld [vmem:[%s763 + $0x10] sm:$0xff]
      %v767 = vld [vmem:[%s763 + $0x18] sm:$0x1]
      %v768 = vld [vmem:[%s763 + $0x20] sm:$0xff]
      %v769 = vld [vmem:[%s763 + $0x28] sm:$0x1]
      %v770 = vld [vmem:[%s763 + $0x30] sm:$0xff]
      %v771 = vld [vmem:[%s763 + $0x38] sm:$0x1]
      %v772 = vld [vmem:[%s763 + $0x40] sm:$0xff]
      %v773 = vld [vmem:[%s763 + $0x48] sm:$0x1]
      %v774 = vld [vmem:[%s763 + $0x50] sm:$0xff]
      %v775 = vld [vmem:[%s763 + $0x58] sm:$0x1]
      %v776 = vld [vmem:[%s763 + $0x60] sm:$0xff]
      %v777 = vld [vmem:[%s763 + $0x68] sm:$0x1]
      %v778 = vld [vmem:[%s763 + $0x70] sm:$0xff]
      %v779 = vld [vmem:[%s763 + $0x78] sm:$0x1]
      %v780 = vld [vmem:[%s763 + $0x80] sm:$0xff]
      %v781 = vld [vmem:[%s763 + $0x88] sm:$0x1]
      %v782 = vmul.f32 %v764, %v258
      %v783 = vmul.f32 %v765, %v258
      %v784 = vmul.f32 %v766, %v258
      %v785 = vmul.f32 %v767, %v258
      %v786 = vmul.f32 %v768, %v258
      %v787 = vmul.f32 %v769, %v258
      %v788 = vmul.f32 %v770, %v258
      %v789 = vmul.f32 %v771, %v258
      %v790 = vmul.f32 %v772, %v258
      %v791 = vmul.f32 %v773, %v258
      %v792 = vmul.f32 %v774, %v258
      %v793 = vmul.f32 %v775, %v258
      %v794 = vmul.f32 %v776, %v258
      %v795 = vmul.f32 %v777, %v258
      %v796 = vmul.f32 %v778, %v258
      %v797 = vmul.f32 %v779, %v258
      %v798 = vmul.f32 %v780, %v258
      %v799 = vmul.f32 %v781, %v258
      %v800 = vadd.f32 %v782, %v283
      %v801 = vadd.f32 %v783, %v283
      %v802 = vadd.f32 %v784, %v283
      %v803 = vadd.f32 %v785, %v283
      %v804 = vadd.f32 %v786, %v283
      %v805 = vadd.f32 %v787, %v283
      %v806 = vadd.f32 %v788, %v283
      %v807 = vadd.f32 %v789, %v283
      %v808 = vadd.f32 %v790, %v283
      %v809 = vadd.f32 %v791, %v283
      %v810 = vadd.f32 %v792, %v283
      %v811 = vadd.f32 %v793, %v283
      %v812 = vadd.f32 %v794, %v283
      %v813 = vadd.f32 %v795, %v283
      %v814 = vadd.f32 %v796, %v283
      %v815 = vadd.f32 %v797, %v283
      %v816 = vadd.f32 %v798, %v283
      %v817 = vadd.f32 %v799, %v283
      %v818 = vsel %vm251, %v800, 0.0
      %v819 = vsel %vm252, %v801, 0.0
      %v820 = vsel %vm251, %v802, 0.0
      %v821 = vsel %vm252, %v803, 0.0
      %v822 = vsel %vm251, %v804, 0.0
      %v823 = vsel %vm252, %v805, 0.0
      %v824 = vsel %vm251, %v806, 0.0
      %v825 = vsel %vm252, %v807, 0.0
      %v826 = vsel %vm251, %v808, 0.0
      %v827 = vsel %vm252, %v809, 0.0
      %v828 = vsel %vm251, %v810, 0.0
      %v829 = vsel %vm252, %v811, 0.0
      %v830 = vsel %vm251, %v812, 0.0
      %v831 = vsel %vm252, %v813, 0.0
      %v832 = vsel %vm251, %v814, 0.0
      %v833 = vsel %vm252, %v815, 0.0
      %v834 = vsel %vm249, %v816, 0.0
      %v835 = vsel %vm250, %v817, 0.0
      %v836 = vpack.c.bf16 %v819, %v818
      %v837 = vpack.c.bf16 %v821, %v820
      %v838 = vpack.c.bf16 %v823, %v822
      %v839 = vpack.c.bf16 %v825, %v824
      %v840 = vpack.c.bf16 %v827, %v826
      %v841 = vpack.c.bf16 %v829, %v828
      %v842 = vpack.c.bf16 %v831, %v830
      %v843 = vpack.c.bf16 %v833, %v832
      %v844 = vpack.c.bf16 %v835, %v834
      %v853 = vunpack.c.l.b16 %v836
      %v854 = vunpack.c.h.b16 %v836
      %v855 = vunpack.c.l.b16 %v837
      %v856 = vunpack.c.h.b16 %v837
      %v857 = vunpack.c.l.b16 %v838
      %v858 = vunpack.c.h.b16 %v838
      %v859 = vunpack.c.l.b16 %v839
      %v860 = vunpack.c.h.b16 %v839
      %v861 = vunpack.c.l.b16 %v840
      %v862 = vunpack.c.h.b16 %v840
      %v863 = vunpack.c.l.b16 %v841
      %v864 = vunpack.c.h.b16 %v841
      %v865 = vunpack.c.l.b16 %v842
      %v866 = vunpack.c.h.b16 %v842
      %v867 = vunpack.c.l.b16 %v843
      %v868 = vunpack.c.h.b16 %v843
      %v869 = vpack.c.b16 %v853, %v853
      %v870 = vpack.c.b16 %v854, %v854
      %v871 = vpack.c.b16 %v855, %v855
      %v872 = vpack.c.b16 %v856, %v856
      %v873 = vpack.c.b16 %v857, %v857
      %v874 = vpack.c.b16 %v858, %v858
      %v875 = vpack.c.b16 %v859, %v859
      %v876 = vpack.c.b16 %v860, %v860
      %v877 = vpack.c.b16 %v861, %v861
      %v878 = vpack.c.b16 %v862, %v862
      %v879 = vpack.c.b16 %v863, %v863
      %v880 = vpack.c.b16 %v864, %v864
      %v881 = vpack.c.b16 %v865, %v865
      %v882 = vpack.c.b16 %v866, %v866
      %v883 = vpack.c.b16 %v867, %v867
      %v884 = vpack.c.b16 %v868, %v868
      %v886 = vshrl.u32 %v869, 16
      %v888 = vrot.slane %v886, 4
      %v889 = vshll.u32 %v869, 16
      %v891 = vrot.slane %v889, 5
      %v892 = vor.u32 %v888, %v891
      %v893 = vrot.slane %v892, 4
      %v895 = vshll.u32 %v870, 16
      %v897 = vrot.slane %v895, 5
      %v898 = vsel %vm372, %v893, %v897
      %v900 = vshrl.u32 %v871, 16
      %v902 = vrot.slane %v900, 4
      %v903 = vshll.u32 %v871, 16
      %v905 = vrot.slane %v903, 5
      %v906 = vor.u32 %v902, %v905
      %v907 = vrot.slane %v906, 4
      %v909 = vshll.u32 %v872, 16
      %v911 = vrot.slane %v909, 5
      %v912 = vsel %vm372, %v907, %v911
      %v914 = vshrl.u32 %v873, 16
      %v916 = vrot.slane %v914, 4
      %v917 = vshll.u32 %v873, 16
      %v919 = vrot.slane %v917, 5
      %v920 = vor.u32 %v916, %v919
      %v921 = vrot.slane %v920, 4
      %v923 = vshll.u32 %v874, 16
      %v925 = vrot.slane %v923, 5
      %v926 = vsel %vm372, %v921, %v925
      %v928 = vshrl.u32 %v875, 16
      %v930 = vrot.slane %v928, 4
      %v931 = vshll.u32 %v875, 16
      %v933 = vrot.slane %v931, 5
      %v934 = vor.u32 %v930, %v933
      %v935 = vrot.slane %v934, 4
      %v937 = vshll.u32 %v876, 16
      %v939 = vrot.slane %v937, 5
      %v940 = vsel %vm372, %v935, %v939
      %v942 = vshrl.u32 %v877, 16
      %v944 = vrot.slane %v942, 4
      %v945 = vshll.u32 %v877, 16
      %v947 = vrot.slane %v945, 5
      %v948 = vor.u32 %v944, %v947
      %v949 = vrot.slane %v948, 4
      %v951 = vshll.u32 %v878, 16
      %v953 = vrot.slane %v951, 5
      %v954 = vsel %vm372, %v949, %v953
      %v956 = vshrl.u32 %v879, 16
      %v958 = vrot.slane %v956, 4
      %v959 = vshll.u32 %v879, 16
      %v961 = vrot.slane %v959, 5
      %v962 = vor.u32 %v958, %v961
      %v963 = vrot.slane %v962, 4
      %v965 = vshll.u32 %v880, 16
      %v967 = vrot.slane %v965, 5
      %v968 = vsel %vm372, %v963, %v967
      %v970 = vshrl.u32 %v881, 16
      %v972 = vrot.slane %v970, 4
      %v973 = vshll.u32 %v881, 16
      %v975 = vrot.slane %v973, 5
      %v976 = vor.u32 %v972, %v975
      %v977 = vrot.slane %v976, 4
      %v979 = vshll.u32 %v882, 16
      %v981 = vrot.slane %v979, 5
      %v982 = vsel %vm372, %v977, %v981
      %v984 = vshrl.u32 %v883, 16
      %v986 = vrot.slane %v984, 4
      %v987 = vshll.u32 %v883, 16
      %v989 = vrot.slane %v987, 5
      %v990 = vor.u32 %v986, %v989
      %v991 = vrot.slane %v990, 4
      %v993 = vshll.u32 %v884, 16
      %v995 = vrot.slane %v993, 5
      %v996 = vsel %vm372, %v991, %v995
      %v998 = vunpack.c.l.b16 %v844
      %v999 = vunpack.c.h.b16 %v844
      %v1000 = vpack.c.b16 %v998, %v998
      %v1001 = vpack.c.b16 %v999, %v999
      %v1003 = vshrl.u32 %v1000, 16
      %v1005 = vrot.slane %v1003, 4
      %v1006 = vshll.u32 %v1000, 16
      %v1008 = vrot.slane %v1006, 5
      %v1009 = vor.u32 %v1005, %v1008
      %v1010 = vrot.slane %v1009, 4
      %v1012 = vshll.u32 %v1001, 16
      %v1014 = vrot.slane %v1012, 5
      %v1015 = vsel %vm372, %v1010, %v1014
      %s1016 = scalar_lea.vmem %s219, 432
      %v1017 = vld [vmem:[%s1016] sm:$0xff]
      %v1018 = vld [vmem:[%s1016 + $0x8] sm:$0x1]
      %v1019 = vld [vmem:[%s1016 + $0x10] sm:$0xff]
      %v1020 = vld [vmem:[%s1016 + $0x18] sm:$0x1]
      %v1021 = vld [vmem:[%s1016 + $0x20] sm:$0xff]
      %v1022 = vld [vmem:[%s1016 + $0x28] sm:$0x1]
      %v1023 = vld [vmem:[%s1016 + $0x30] sm:$0xff]
      %v1024 = vld [vmem:[%s1016 + $0x38] sm:$0x1]
      %v1025 = vld [vmem:[%s1016 + $0x40] sm:$0xff]
      %v1026 = vld [vmem:[%s1016 + $0x48] sm:$0x1]
      %v1027 = vld [vmem:[%s1016 + $0x50] sm:$0xff]
      %v1028 = vld [vmem:[%s1016 + $0x58] sm:$0x1]
      %v1029 = vld [vmem:[%s1016 + $0x60] sm:$0xff]
      %v1030 = vld [vmem:[%s1016 + $0x68] sm:$0x1]
      %v1031 = vld [vmem:[%s1016 + $0x70] sm:$0xff]
      %v1032 = vld [vmem:[%s1016 + $0x78] sm:$0x1]
      %v1033 = vld [vmem:[%s1016 + $0x80] sm:$0xff]
      %v1034 = vld [vmem:[%s1016 + $0x88] sm:$0x1]
      %v1035 = vmul.f32 %v1017, %v258
      %v1036 = vmul.f32 %v1018, %v258
      %v1037 = vmul.f32 %v1019, %v258
      %v1038 = vmul.f32 %v1020, %v258
      %v1039 = vmul.f32 %v1021, %v258
      %v1040 = vmul.f32 %v1022, %v258
      %v1041 = vmul.f32 %v1023, %v258
      %v1042 = vmul.f32 %v1024, %v258
      %v1043 = vmul.f32 %v1025, %v258
      %v1044 = vmul.f32 %v1026, %v258
      %v1045 = vmul.f32 %v1027, %v258
      %v1046 = vmul.f32 %v1028, %v258
      %v1047 = vmul.f32 %v1029, %v258
      %v1048 = vmul.f32 %v1030, %v258
      %v1049 = vmul.f32 %v1031, %v258
      %v1050 = vmul.f32 %v1032, %v258
      %v1051 = vmul.f32 %v1033, %v258
      %v1052 = vmul.f32 %v1034, %v258
      %v1053 = vadd.f32 %v1035, %v283
      %v1054 = vadd.f32 %v1036, %v283
      %v1055 = vadd.f32 %v1037, %v283
      %v1056 = vadd.f32 %v1038, %v283
      %v1057 = vadd.f32 %v1039, %v283
      %v1058 = vadd.f32 %v1040, %v283
      %v1059 = vadd.f32 %v1041, %v283
      %v1060 = vadd.f32 %v1042, %v283
      %v1061 = vadd.f32 %v1043, %v283
      %v1062 = vadd.f32 %v1044, %v283
      %v1063 = vadd.f32 %v1045, %v283
      %v1064 = vadd.f32 %v1046, %v283
      %v1065 = vadd.f32 %v1047, %v283
      %v1066 = vadd.f32 %v1048, %v283
      %v1067 = vadd.f32 %v1049, %v283
      %v1068 = vadd.f32 %v1050, %v283
      %v1069 = vadd.f32 %v1051, %v283
      %v1070 = vadd.f32 %v1052, %v283
      %v1071 = vsel %vm527, %v1053, 0.0
      %v1072 = vsel %vm528, %v1054, 0.0
      %v1073 = vsel %vm527, %v1055, 0.0
      %v1074 = vsel %vm528, %v1056, 0.0
      %v1075 = vsel %vm527, %v1057, 0.0
      %v1076 = vsel %vm528, %v1058, 0.0
      %v1077 = vsel %vm527, %v1059, 0.0
      %v1078 = vsel %vm528, %v1060, 0.0
      %v1079 = vsel %vm527, %v1061, 0.0
      %v1080 = vsel %vm528, %v1062, 0.0
      %v1081 = vsel %vm527, %v1063, 0.0
      %v1082 = vsel %vm528, %v1064, 0.0
      %v1083 = vsel %vm527, %v1065, 0.0
      %v1084 = vsel %vm528, %v1066, 0.0
      %v1085 = vsel %vm527, %v1067, 0.0
      %v1086 = vsel %vm528, %v1068, 0.0
      %v1087 = vsel %vm525, %v1069, 0.0
      %v1088 = vsel %vm526, %v1070, 0.0
      %v1089 = vpack.c.bf16 %v1072, %v1071
      %v1090 = vpack.c.bf16 %v1074, %v1073
      %v1091 = vpack.c.bf16 %v1076, %v1075
      %v1092 = vpack.c.bf16 %v1078, %v1077
      %v1093 = vpack.c.bf16 %v1080, %v1079
      %v1094 = vpack.c.bf16 %v1082, %v1081
      %v1095 = vpack.c.bf16 %v1084, %v1083
      %v1096 = vpack.c.bf16 %v1086, %v1085
      %v1097 = vpack.c.bf16 %v1088, %v1087
      %v1106 = vunpack.c.l.b16 %v1089
      %v1107 = vunpack.c.h.b16 %v1089
      %v1108 = vunpack.c.l.b16 %v1090
      %v1109 = vunpack.c.h.b16 %v1090
      %v1110 = vunpack.c.l.b16 %v1091
      %v1111 = vunpack.c.h.b16 %v1091
      %v1112 = vunpack.c.l.b16 %v1092
      %v1113 = vunpack.c.h.b16 %v1092
      %v1114 = vunpack.c.l.b16 %v1093
      %v1115 = vunpack.c.h.b16 %v1093
      %v1116 = vunpack.c.l.b16 %v1094
      %v1117 = vunpack.c.h.b16 %v1094
      %v1118 = vunpack.c.l.b16 %v1095
      %v1119 = vunpack.c.h.b16 %v1095
      %v1120 = vunpack.c.l.b16 %v1096
      %v1121 = vunpack.c.h.b16 %v1096
      %v1122 = vpack.c.b16 %v1106, %v1106
      %v1123 = vpack.c.b16 %v1107, %v1107
      %v1124 = vpack.c.b16 %v1108, %v1108
      %v1125 = vpack.c.b16 %v1109, %v1109
      %v1126 = vpack.c.b16 %v1110, %v1110
      %v1127 = vpack.c.b16 %v1111, %v1111
      %v1128 = vpack.c.b16 %v1112, %v1112
      %v1129 = vpack.c.b16 %v1113, %v1113
      %v1130 = vpack.c.b16 %v1114, %v1114
      %v1131 = vpack.c.b16 %v1115, %v1115
      %v1132 = vpack.c.b16 %v1116, %v1116
      %v1133 = vpack.c.b16 %v1117, %v1117
      %v1134 = vpack.c.b16 %v1118, %v1118
      %v1135 = vpack.c.b16 %v1119, %v1119
      %v1136 = vpack.c.b16 %v1120, %v1120
      %v1137 = vpack.c.b16 %v1121, %v1121
      %v1139 = vshrl.u32 %v1122, 16
      %v1141 = vrot.slane %v1139, 4
      %v1142 = vshll.u32 %v1122, 16
      %v1144 = vrot.slane %v1142, 5
      %v1145 = vor.u32 %v1141, %v1144
      %v1146 = vrot.slane %v1145, 4
      %v1148 = vshll.u32 %v1123, 16
      %v1150 = vrot.slane %v1148, 5
      %v1151 = vsel %vm372, %v1146, %v1150
      %v1153 = vshrl.u32 %v1124, 16
      %v1155 = vrot.slane %v1153, 4
      %v1156 = vshll.u32 %v1124, 16
      %v1158 = vrot.slane %v1156, 5
      %v1159 = vor.u32 %v1155, %v1158
      %v1160 = vrot.slane %v1159, 4
      %v1162 = vshll.u32 %v1125, 16
      %v1164 = vrot.slane %v1162, 5
      %v1165 = vsel %vm372, %v1160, %v1164
      %v1167 = vshrl.u32 %v1126, 16
      %v1169 = vrot.slane %v1167, 4
      %v1170 = vshll.u32 %v1126, 16
      %v1172 = vrot.slane %v1170, 5
      %v1173 = vor.u32 %v1169, %v1172
      %v1174 = vrot.slane %v1173, 4
      %v1176 = vshll.u32 %v1127, 16
      %v1178 = vrot.slane %v1176, 5
      %v1179 = vsel %vm372, %v1174, %v1178
      %v1181 = vshrl.u32 %v1128, 16
      %v1183 = vrot.slane %v1181, 4
      %v1184 = vshll.u32 %v1128, 16
      %v1186 = vrot.slane %v1184, 5
      %v1187 = vor.u32 %v1183, %v1186
      %v1188 = vrot.slane %v1187, 4
      %v1190 = vshll.u32 %v1129, 16
      %v1192 = vrot.slane %v1190, 5
      %v1193 = vsel %vm372, %v1188, %v1192
      %v1195 = vshrl.u32 %v1130, 16
      %v1197 = vrot.slane %v1195, 4
      %v1198 = vshll.u32 %v1130, 16
      %v1200 = vrot.slane %v1198, 5
      %v1201 = vor.u32 %v1197, %v1200
      %v1202 = vrot.slane %v1201, 4
      %v1204 = vshll.u32 %v1131, 16
      %v1206 = vrot.slane %v1204, 5
      %v1207 = vsel %vm372, %v1202, %v1206
      %v1209 = vshrl.u32 %v1132, 16
      %v1211 = vrot.slane %v1209, 4
      %v1212 = vshll.u32 %v1132, 16
      %v1214 = vrot.slane %v1212, 5
      %v1215 = vor.u32 %v1211, %v1214
      %v1216 = vrot.slane %v1215, 4
      %v1218 = vshll.u32 %v1133, 16
      %v1220 = vrot.slane %v1218, 5
      %v1221 = vsel %vm372, %v1216, %v1220
      %v1223 = vshrl.u32 %v1134, 16
      %v1225 = vrot.slane %v1223, 4
      %v1226 = vshll.u32 %v1134, 16
      %v1228 = vrot.slane %v1226, 5
      %v1229 = vor.u32 %v1225, %v1228
      %v1230 = vrot.slane %v1229, 4
      %v1232 = vshll.u32 %v1135, 16
      %v1234 = vrot.slane %v1232, 5
      %v1235 = vsel %vm372, %v1230, %v1234
      %v1237 = vshrl.u32 %v1136, 16
      %v1239 = vrot.slane %v1237, 4
      %v1240 = vshll.u32 %v1136, 16
      %v1242 = vrot.slane %v1240, 5
      %v1243 = vor.u32 %v1239, %v1242
      %v1244 = vrot.slane %v1243, 4
      %v1246 = vshll.u32 %v1137, 16
      %v1248 = vrot.slane %v1246, 5
      %v1249 = vsel %vm372, %v1244, %v1248
      %v1251 = vunpack.c.l.b16 %v1097
      %v1252 = vunpack.c.h.b16 %v1097
      %v1253 = vpack.c.b16 %v1251, %v1251
      %v1254 = vpack.c.b16 %v1252, %v1252
      %v1256 = vshrl.u32 %v1253, 16
      %v1258 = vrot.slane %v1256, 4
      %v1259 = vshll.u32 %v1253, 16
      %v1261 = vrot.slane %v1259, 5
      %v1262 = vor.u32 %v1258, %v1261
      %v1263 = vrot.slane %v1262, 4
      %v1265 = vshll.u32 %v1254, 16
      %v1267 = vrot.slane %v1265, 5
      %v1268 = vsel %vm372, %v1263, %v1267
      %v1269 = vpack.c.b16 %v340, %v338
      %v1270 = vpack.c.b16 %v344, %v342
      %v1271 = vpack.c.b16 %v348, %v346
      %v1272 = vpack.c.b16 %v352, %v350
      %v1277 = vunpack.c.l.b16 %v386
      %v1278 = vunpack.c.l.b16 %v400
      %v1279 = vunpack.c.l.b16 %v414
      %v1280 = vunpack.c.l.b16 %v428
      %v1281 = vunpack.c.l.b16 %v442
      %v1282 = vunpack.c.l.b16 %v456
      %v1283 = vunpack.c.l.b16 %v470
      %v1284 = vunpack.c.l.b16 %v484
      %v1285 = vpack.c.b16 %v1278, %v1277
      %v1286 = vpack.c.b16 %v1280, %v1279
      %v1287 = vpack.c.b16 %v1282, %v1281
      %v1288 = vpack.c.b16 %v1284, %v1283
      %v1293 = vpack.c.b16 %v342, %v340
      %v1294 = vpack.c.b16 %v346, %v344
      %v1295 = vpack.c.b16 %v350, %v348
      %v1296 = vpack.c.b16 %v486, %v352
      %v1301 = vunpack.c.l.b16 %v503
      %v1302 = vpack.c.b16 %v1279, %v1278
      %v1303 = vpack.c.b16 %v1281, %v1280
      %v1304 = vpack.c.b16 %v1283, %v1282
      %v1305 = vpack.c.b16 %v1301, %v1284
      %v1310 = vpack.c.b16 %v602, %v600
      %v1311 = vpack.c.b16 %v606, %v604
      %v1312 = vpack.c.b16 %v610, %v608
      %v1313 = vpack.c.b16 %v614, %v612
      %v1318 = vunpack.c.l.b16 %v645
      %v1319 = vunpack.c.l.b16 %v659
      %v1320 = vunpack.c.l.b16 %v673
      %v1321 = vunpack.c.l.b16 %v687
      %v1322 = vunpack.c.l.b16 %v701
      %v1323 = vunpack.c.l.b16 %v715
      %v1324 = vunpack.c.l.b16 %v729
      %v1325 = vunpack.c.l.b16 %v743
      %v1326 = vpack.c.b16 %v1319, %v1318
      %v1327 = vpack.c.b16 %v1321, %v1320
      %v1328 = vpack.c.b16 %v1323, %v1322
      %v1329 = vpack.c.b16 %v1325, %v1324
      %v1334 = vpack.c.b16 %v604, %v602
      %v1335 = vpack.c.b16 %v608, %v606
      %v1336 = vpack.c.b16 %v612, %v610
      %v1337 = vpack.c.b16 %v745, %v614
      %v1342 = vunpack.c.l.b16 %v762
      %v1343 = vpack.c.b16 %v1320, %v1319
      %v1344 = vpack.c.b16 %v1322, %v1321
      %v1345 = vpack.c.b16 %v1324, %v1323
      %v1346 = vpack.c.b16 %v1342, %v1325
      %v1351 = vpack.c.b16 %v855, %v853
      %v1352 = vpack.c.b16 %v859, %v857
      %v1353 = vpack.c.b16 %v863, %v861
      %v1354 = vpack.c.b16 %v867, %v865
      %v1359 = vunpack.c.l.b16 %v898
      %v1360 = vunpack.c.l.b16 %v912
      %v1361 = vunpack.c.l.b16 %v926
      %v1362 = vunpack.c.l.b16 %v940
      %v1363 = vunpack.c.l.b16 %v954
      %v1364 = vunpack.c.l.b16 %v968
      %v1365 = vunpack.c.l.b16 %v982
      %v1366 = vunpack.c.l.b16 %v996
      %v1367 = vpack.c.b16 %v1360, %v1359
      %v1368 = vpack.c.b16 %v1362, %v1361
      %v1369 = vpack.c.b16 %v1364, %v1363
      %v1370 = vpack.c.b16 %v1366, %v1365
      %v1375 = vpack.c.b16 %v857, %v855
      %v1376 = vpack.c.b16 %v861, %v859
      %v1377 = vpack.c.b16 %v865, %v863
      %v1378 = vpack.c.b16 %v998, %v867
      %v1383 = vunpack.c.l.b16 %v1015
      %v1384 = vpack.c.b16 %v1361, %v1360
      %v1385 = vpack.c.b16 %v1363, %v1362
      %v1386 = vpack.c.b16 %v1365, %v1364
      %v1387 = vpack.c.b16 %v1383, %v1366
      %v1392 = vpack.c.b16 %v1108, %v1106
      %v1393 = vpack.c.b16 %v1112, %v1110
      %v1394 = vpack.c.b16 %v1116, %v1114
      %v1395 = vpack.c.b16 %v1120, %v1118
      %v1400 = vunpack.c.l.b16 %v1151
      %v1401 = vunpack.c.l.b16 %v1165
      %v1402 = vunpack.c.l.b16 %v1179
      %v1403 = vunpack.c.l.b16 %v1193
      %v1404 = vunpack.c.l.b16 %v1207
      %v1405 = vunpack.c.l.b16 %v1221
      %v1406 = vunpack.c.l.b16 %v1235
      %v1407 = vunpack.c.l.b16 %v1249
      %v1408 = vpack.c.b16 %v1401, %v1400
      %v1409 = vpack.c.b16 %v1403, %v1402
      %v1410 = vpack.c.b16 %v1405, %v1404
      %v1411 = vpack.c.b16 %v1407, %v1406
      %v1416 = vpack.c.b16 %v1110, %v1108
      %v1417 = vpack.c.b16 %v1114, %v1112
      %v1418 = vpack.c.b16 %v1118, %v1116
      %v1419 = vpack.c.b16 %v1251, %v1120
      %v1424 = vunpack.c.l.b16 %v1268
      %v1425 = vpack.c.b16 %v1402, %v1401
      %v1426 = vpack.c.b16 %v1404, %v1403
      %v1427 = vpack.c.b16 %v1406, %v1405
      %v1428 = vpack.c.b16 %v1424, %v1407
      %v1433 = vld [vmem:[%s3] sm:$0xf]
      %v1434 = vld [vmem:[%s3 + $0x4] sm:$0xf]
      %v1435 = vld [vmem:[%s3 + $0x8] sm:$0xf]
      %v1436 = vld [vmem:[%s3 + $0xc] sm:$0xf]
      %v1437 = vld [vmem:[%s3 + $0x10] sm:$0xf]
      %v1438 = vld [vmem:[%s3 + $0x14] sm:$0xf]
      %v1439 = vld [vmem:[%s3 + $0x18] sm:$0xf]
      %v1440 = vld [vmem:[%s3 + $0x1c] sm:$0xf]
      %v1441 = vld [vmem:[%s3 + $0x20] sm:$0xf]
      %v1442 = vld [vmem:[%s3 + $0x24] sm:$0xf]
      %v1443 = vld [vmem:[%s3 + $0x28] sm:$0xf]
      %v1444 = vld [vmem:[%s3 + $0x2c] sm:$0xf]
      %v1445 = vld [vmem:[%s3 + $0x30] sm:$0xf]
      %v1446 = vld [vmem:[%s3 + $0x34] sm:$0xf]
      %v1447 = vld [vmem:[%s3 + $0x38] sm:$0xf]
      %v1448 = vld [vmem:[%s3 + $0x3c] sm:$0xf]
      %v1449 = vld [vmem:[%s3 + $0x40] sm:$0xf]
      %v1450 = vld [vmem:[%s3 + $0x44] sm:$0xf]
      %v1451 = vld [vmem:[%s3 + $0x48] sm:$0xf]
      %v1452 = vld [vmem:[%s3 + $0x4c] sm:$0xf]
      %v1453 = vld [vmem:[%s3 + $0x50] sm:$0xf]
      %v1454 = vld [vmem:[%s3 + $0x54] sm:$0xf]
      %v1455 = vld [vmem:[%s3 + $0x58] sm:$0xf]
      %v1456 = vld [vmem:[%s3 + $0x5c] sm:$0xf]
      %v1457 = vld [vmem:[%s3 + $0x60] sm:$0xf]
      %v1458 = vld [vmem:[%s3 + $0x64] sm:$0xf]
      %v1459 = vld [vmem:[%s3 + $0x68] sm:$0xf]
      %v1460 = vld [vmem:[%s3 + $0x6c] sm:$0xf]
      %v1461 = vld [vmem:[%s3 + $0x70] sm:$0xf]
      %v1462 = vld [vmem:[%s3 + $0x74] sm:$0xf]
      %v1463 = vld [vmem:[%s3 + $0x78] sm:$0xf]
      %v1464 = vld [vmem:[%s3 + $0x7c] sm:$0xf]
      %v1465 = vld [vmem:[%s3 + $0x80] sm:$0xf]
      %v1466 = vld [vmem:[%s3 + $0x84] sm:$0xf]
      %v1467 = vld [vmem:[%s3 + $0x88] sm:$0xf]
      %v1468 = vld [vmem:[%s3 + $0x8c] sm:$0xf]
      %v1469 = vld [vmem:[%s3 + $0x90] sm:$0xf]
      %v1470 = vld [vmem:[%s3 + $0x94] sm:$0xf]
      %v1471 = vld [vmem:[%s3 + $0x98] sm:$0xf]
      %v1472 = vld [vmem:[%s3 + $0x9c] sm:$0xf]
      %v1473 = vld [vmem:[%s3 + $0xa0] sm:$0xf]
      %v1474 = vld [vmem:[%s3 + $0xa4] sm:$0xf]
      %v1475 = vld [vmem:[%s3 + $0xa8] sm:$0xf]
      %v1476 = vld [vmem:[%s3 + $0xac] sm:$0xf]
      %v1477 = vld [vmem:[%s3 + $0xb0] sm:$0xf]
      %v1478 = vld [vmem:[%s3 + $0xb4] sm:$0xf]
      %v1479 = vld [vmem:[%s3 + $0xb8] sm:$0xf]
      %v1480 = vld [vmem:[%s3 + $0xbc] sm:$0xf]
      %v1481 = vld [vmem:[%s3 + $0xc0] sm:$0xf]
      %v1482 = vld [vmem:[%s3 + $0xc4] sm:$0xf]
      %v1483 = vld [vmem:[%s3 + $0xc8] sm:$0xf]
      %v1484 = vld [vmem:[%s3 + $0xcc] sm:$0xf]
      %v1485 = vld [vmem:[%s3 + $0xd0] sm:$0xf]
      %v1486 = vld [vmem:[%s3 + $0xd4] sm:$0xf]
      %v1487 = vld [vmem:[%s3 + $0xd8] sm:$0xf]
      %v1488 = vld [vmem:[%s3 + $0xdc] sm:$0xf]
      %v1489 = vld [vmem:[%s3 + $0xe0] sm:$0xf]
      %v1490 = vld [vmem:[%s3 + $0xe4] sm:$0xf]
      %v1491 = vld [vmem:[%s3 + $0xe8] sm:$0xf]
      %v1492 = vld [vmem:[%s3 + $0xec] sm:$0xf]
      %v1493 = vld [vmem:[%s3 + $0xf0] sm:$0xf]
      %v1494 = vld [vmem:[%s3 + $0xf4] sm:$0xf]
      %v1495 = vld [vmem:[%s3 + $0xf8] sm:$0xf]
      %v1496 = vld [vmem:[%s3 + $0xfc] sm:$0xf]
      %v1497 = vld [vmem:[%s3 + $0x100] sm:$0xf]
      %v1498 = vld [vmem:[%s3 + $0x104] sm:$0xf]
      %v1499 = vld [vmem:[%s3 + $0x108] sm:$0xf]
      %v1500 = vld [vmem:[%s3 + $0x10c] sm:$0xf]
      %v1501 = vld [vmem:[%s3 + $0x110] sm:$0xf]
      %v1502 = vld [vmem:[%s3 + $0x114] sm:$0xf]
      %v1503 = vld [vmem:[%s3 + $0x118] sm:$0xf]
      %v1504 = vld [vmem:[%s3 + $0x11c] sm:$0xf]
      %v1505 = vld [vmem:[%s3 + $0x120] sm:$0xf]
      %v1506 = vld [vmem:[%s3 + $0x124] sm:$0xf]
      %v1507 = vld [vmem:[%s3 + $0x128] sm:$0xf]
      %v1508 = vld [vmem:[%s3 + $0x12c] sm:$0xf]
      %v1509 = vld [vmem:[%s3 + $0x130] sm:$0xf]
      %v1510 = vld [vmem:[%s3 + $0x134] sm:$0xf]
      %v1511 = vld [vmem:[%s3 + $0x138] sm:$0xf]
      %v1512 = vld [vmem:[%s3 + $0x13c] sm:$0xf]
      %v1513 = vld [vmem:[%s3 + $0x140] sm:$0xf]
      %v1514 = vld [vmem:[%s3 + $0x144] sm:$0xf]
      %v1515 = vld [vmem:[%s3 + $0x148] sm:$0xf]
      %v1516 = vld [vmem:[%s3 + $0x14c] sm:$0xf]
      %v1517 = vld [vmem:[%s3 + $0x150] sm:$0xf]
      %v1518 = vld [vmem:[%s3 + $0x154] sm:$0xf]
      %v1519 = vld [vmem:[%s3 + $0x158] sm:$0xf]
      %v1520 = vld [vmem:[%s3 + $0x15c] sm:$0xf]
      %v1521 = vld [vmem:[%s3 + $0x160] sm:$0xf]
      %v1522 = vld [vmem:[%s3 + $0x164] sm:$0xf]
      %v1523 = vld [vmem:[%s3 + $0x168] sm:$0xf]
      %v1524 = vld [vmem:[%s3 + $0x16c] sm:$0xf]
      %v1525 = vld [vmem:[%s3 + $0x170] sm:$0xf]
      %v1526 = vld [vmem:[%s3 + $0x174] sm:$0xf]
      %v1527 = vld [vmem:[%s3 + $0x178] sm:$0xf]
      %v1528 = vld [vmem:[%s3 + $0x17c] sm:$0xf]
      %v1529 = vld [vmem:[%s3 + $0x180] sm:$0xf]
      %v1530 = vld [vmem:[%s3 + $0x184] sm:$0xf]
      %v1531 = vld [vmem:[%s3 + $0x188] sm:$0xf]
      %v1532 = vld [vmem:[%s3 + $0x18c] sm:$0xf]
      %v1533 = vld [vmem:[%s3 + $0x190] sm:$0xf]
      %v1534 = vld [vmem:[%s3 + $0x194] sm:$0xf]
      %v1535 = vld [vmem:[%s3 + $0x198] sm:$0xf]
      %v1536 = vld [vmem:[%s3 + $0x19c] sm:$0xf]
      %v1537 = vld [vmem:[%s3 + $0x1a0] sm:$0xf]
      %v1538 = vld [vmem:[%s3 + $0x1a4] sm:$0xf]
      %v1539 = vld [vmem:[%s3 + $0x1a8] sm:$0xf]
      %v1540 = vld [vmem:[%s3 + $0x1ac] sm:$0xf]
      %v1541 = vld [vmem:[%s3 + $0x1b0] sm:$0xf]
      %v1542 = vld [vmem:[%s3 + $0x1b4] sm:$0xf]
      %v1543 = vld [vmem:[%s3 + $0x1b8] sm:$0xf]
      %v1544 = vld [vmem:[%s3 + $0x1bc] sm:$0xf]
      %v1545 = vld [vmem:[%s3 + $0x1c0] sm:$0xf]
      %v1546 = vld [vmem:[%s3 + $0x1c4] sm:$0xf]
      %v1547 = vld [vmem:[%s3 + $0x1c8] sm:$0xf]
      %v1548 = vld [vmem:[%s3 + $0x1cc] sm:$0xf]
      %v1549 = vld [vmem:[%s3 + $0x1d0] sm:$0xf]
      %v1550 = vld [vmem:[%s3 + $0x1d4] sm:$0xf]
      %v1551 = vld [vmem:[%s3 + $0x1d8] sm:$0xf]
      %v1552 = vld [vmem:[%s3 + $0x1dc] sm:$0xf]
      %v1553 = vld [vmem:[%s3 + $0x1e0] sm:$0xf]
      %v1554 = vld [vmem:[%s3 + $0x1e4] sm:$0xf]
      %v1555 = vld [vmem:[%s3 + $0x1e8] sm:$0xf]
      %v1556 = vld [vmem:[%s3 + $0x1ec] sm:$0xf]
      %v1557 = vld [vmem:[%s3 + $0x1f0] sm:$0xf]
      %v1558 = vld [vmem:[%s3 + $0x1f4] sm:$0xf]
      %v1559 = vld [vmem:[%s3 + $0x1f8] sm:$0xf]
      %v1560 = vld [vmem:[%s3 + $0x1fc] sm:$0xf]
      %v1561 = vld [vmem:[%s3 + $0x200] sm:$0xf]
      %v1562 = vld [vmem:[%s3 + $0x204] sm:$0xf]
      %v1563 = vld [vmem:[%s3 + $0x208] sm:$0xf]
      %v1564 = vld [vmem:[%s3 + $0x20c] sm:$0xf]
      %v1565 = vld [vmem:[%s3 + $0x210] sm:$0xf]
      %v1566 = vld [vmem:[%s3 + $0x214] sm:$0xf]
      %v1567 = vld [vmem:[%s3 + $0x218] sm:$0xf]
      %v1568 = vld [vmem:[%s3 + $0x21c] sm:$0xf]
      %v1569 = vld [vmem:[%s3 + $0x220] sm:$0xf]
      %v1570 = vld [vmem:[%s3 + $0x224] sm:$0xf]
      %v1571 = vld [vmem:[%s3 + $0x228] sm:$0xf]
      %v1572 = vld [vmem:[%s3 + $0x22c] sm:$0xf]
      %v1573 = vld [vmem:[%s3 + $0x230] sm:$0xf]
      %v1574 = vld [vmem:[%s3 + $0x234] sm:$0xf]
      %v1575 = vld [vmem:[%s3 + $0x238] sm:$0xf]
      %v1576 = vld [vmem:[%s3 + $0x23c] sm:$0xf]
      %v1577 = vld [vmem:[%s3 + $0x240] sm:$0xf]
      %v1578 = vld [vmem:[%s3 + $0x244] sm:$0xf]
      %v1579 = vld [vmem:[%s3 + $0x248] sm:$0xf]
      %v1580 = vld [vmem:[%s3 + $0x24c] sm:$0xf]
      %v1581 = vld [vmem:[%s3 + $0x250] sm:$0xf]
      %v1582 = vld [vmem:[%s3 + $0x254] sm:$0xf]
      %v1583 = vld [vmem:[%s3 + $0x258] sm:$0xf]
      %v1584 = vld [vmem:[%s3 + $0x25c] sm:$0xf]
      %v1585 = vld [vmem:[%s3 + $0x260] sm:$0xf]
      %v1586 = vld [vmem:[%s3 + $0x264] sm:$0xf]
      %v1587 = vld [vmem:[%s3 + $0x268] sm:$0xf]
      %v1588 = vld [vmem:[%s3 + $0x26c] sm:$0xf]
      %v1589 = vld [vmem:[%s3 + $0x270] sm:$0xf]
      %v1590 = vld [vmem:[%s3 + $0x274] sm:$0xf]
      %v1591 = vld [vmem:[%s3 + $0x278] sm:$0xf]
      %v1592 = vld [vmem:[%s3 + $0x27c] sm:$0xf]
      %v1593 = vld [vmem:[%s3 + $0x280] sm:$0xf]
      %v1594 = vld [vmem:[%s3 + $0x284] sm:$0xf]
      %v1595 = vld [vmem:[%s3 + $0x288] sm:$0xf]
      %v1596 = vld [vmem:[%s3 + $0x28c] sm:$0xf]
      %v1597 = vld [vmem:[%s3 + $0x290] sm:$0xf]
      %v1598 = vld [vmem:[%s3 + $0x294] sm:$0xf]
      %v1599 = vld [vmem:[%s3 + $0x298] sm:$0xf]
      %v1600 = vld [vmem:[%s3 + $0x29c] sm:$0xf]
      %v1601 = vld [vmem:[%s3 + $0x2a0] sm:$0xf]
      %v1602 = vld [vmem:[%s3 + $0x2a4] sm:$0xf]
      %v1603 = vld [vmem:[%s3 + $0x2a8] sm:$0xf]
      %v1604 = vld [vmem:[%s3 + $0x2ac] sm:$0xf]
      %v1605 = vld [vmem:[%s3 + $0x2b0] sm:$0xf]
      %v1606 = vld [vmem:[%s3 + $0x2b4] sm:$0xf]
      %v1607 = vld [vmem:[%s3 + $0x2b8] sm:$0xf]
      %v1608 = vld [vmem:[%s3 + $0x2bc] sm:$0xf]
      %v1609 = vld [vmem:[%s3 + $0x2c0] sm:$0xf]
      %v1610 = vld [vmem:[%s3 + $0x2c4] sm:$0xf]
      %v1611 = vld [vmem:[%s3 + $0x2c8] sm:$0xf]
      %v1612 = vld [vmem:[%s3 + $0x2cc] sm:$0xf]
      %v1613 = vld [vmem:[%s3 + $0x2d0] sm:$0xf]
      %v1614 = vld [vmem:[%s3 + $0x2d4] sm:$0xf]
      %v1615 = vld [vmem:[%s3 + $0x2d8] sm:$0xf]
      %v1616 = vld [vmem:[%s3 + $0x2dc] sm:$0xf]
      %v1617 = vld [vmem:[%s3 + $0x2e0] sm:$0xf]
      %v1618 = vld [vmem:[%s3 + $0x2e4] sm:$0xf]
      %v1619 = vld [vmem:[%s3 + $0x2e8] sm:$0xf]
      %v1620 = vld [vmem:[%s3 + $0x2ec] sm:$0xf]
      %v1621 = vld [vmem:[%s3 + $0x2f0] sm:$0xf]
      %v1622 = vld [vmem:[%s3 + $0x2f4] sm:$0xf]
      %v1623 = vld [vmem:[%s3 + $0x2f8] sm:$0xf]
      %v1624 = vld [vmem:[%s3 + $0x2fc] sm:$0xf]
      %v1625 = vld [vmem:[%s3 + $0x300] sm:$0xf]
      %v1626 = vld [vmem:[%s3 + $0x304] sm:$0xf]
      %v1627 = vld [vmem:[%s3 + $0x308] sm:$0xf]
      %v1628 = vld [vmem:[%s3 + $0x30c] sm:$0xf]
      %v1629 = vld [vmem:[%s3 + $0x310] sm:$0xf]
      %v1630 = vld [vmem:[%s3 + $0x314] sm:$0xf]
      %v1631 = vld [vmem:[%s3 + $0x318] sm:$0xf]
      %v1632 = vld [vmem:[%s3 + $0x31c] sm:$0xf]
      %v1633 = vld [vmem:[%s3 + $0x320] sm:$0xf]
      %v1634 = vld [vmem:[%s3 + $0x324] sm:$0xf]
      %v1635 = vld [vmem:[%s3 + $0x328] sm:$0xf]
      %v1636 = vld [vmem:[%s3 + $0x32c] sm:$0xf]
      %v1637 = vld [vmem:[%s3 + $0x330] sm:$0xf]
      %v1638 = vld [vmem:[%s3 + $0x334] sm:$0xf]
      %v1639 = vld [vmem:[%s3 + $0x338] sm:$0xf]
      %v1640 = vld [vmem:[%s3 + $0x33c] sm:$0xf]
      %v1641 = vld [vmem:[%s3 + $0x340] sm:$0xf]
      %v1642 = vld [vmem:[%s3 + $0x344] sm:$0xf]
      %v1643 = vld [vmem:[%s3 + $0x348] sm:$0xf]
      %v1644 = vld [vmem:[%s3 + $0x34c] sm:$0xf]
      %v1645 = vld [vmem:[%s3 + $0x350] sm:$0xf]
      %v1646 = vld [vmem:[%s3 + $0x354] sm:$0xf]
      %v1647 = vld [vmem:[%s3 + $0x358] sm:$0xf]
      %v1648 = vld [vmem:[%s3 + $0x35c] sm:$0xf]
      %v1649 = vld [vmem:[%s3 + $0x360] sm:$0xf]
      %v1650 = vld [vmem:[%s3 + $0x364] sm:$0xf]
      %v1651 = vld [vmem:[%s3 + $0x368] sm:$0xf]
      %v1652 = vld [vmem:[%s3 + $0x36c] sm:$0xf]
      %v1653 = vld [vmem:[%s3 + $0x370] sm:$0xf]
      %v1654 = vld [vmem:[%s3 + $0x374] sm:$0xf]
      %v1655 = vld [vmem:[%s3 + $0x378] sm:$0xf]
      %v1656 = vld [vmem:[%s3 + $0x37c] sm:$0xf]
      %v1657 = vld [vmem:[%s3 + $0x380] sm:$0xf]
      %v1658 = vld [vmem:[%s3 + $0x384] sm:$0xf]
      %v1659 = vld [vmem:[%s3 + $0x388] sm:$0xf]
      %v1660 = vld [vmem:[%s3 + $0x38c] sm:$0xf]
      %v1661 = vld [vmem:[%s3 + $0x390] sm:$0xf]
      %v1662 = vld [vmem:[%s3 + $0x394] sm:$0xf]
      %v1663 = vld [vmem:[%s3 + $0x398] sm:$0xf]
      %v1664 = vld [vmem:[%s3 + $0x39c] sm:$0xf]
      %v1665 = vld [vmem:[%s3 + $0x3a0] sm:$0xf]
      %v1666 = vld [vmem:[%s3 + $0x3a4] sm:$0xf]
      %v1667 = vld [vmem:[%s3 + $0x3a8] sm:$0xf]
      %v1668 = vld [vmem:[%s3 + $0x3ac] sm:$0xf]
      %v1669 = vld [vmem:[%s3 + $0x3b0] sm:$0xf]
      %v1670 = vld [vmem:[%s3 + $0x3b4] sm:$0xf]
      %v1671 = vld [vmem:[%s3 + $0x3b8] sm:$0xf]
      %v1672 = vld [vmem:[%s3 + $0x3bc] sm:$0xf]
      %v1673 = vld [vmem:[%s3 + $0x3c0] sm:$0xf]
      %v1674 = vld [vmem:[%s3 + $0x3c4] sm:$0xf]
      %v1675 = vld [vmem:[%s3 + $0x3c8] sm:$0xf]
      %v1676 = vld [vmem:[%s3 + $0x3cc] sm:$0xf]
      %v1677 = vld [vmem:[%s3 + $0x3d0] sm:$0xf]
      %v1678 = vld [vmem:[%s3 + $0x3d4] sm:$0xf]
      %v1679 = vld [vmem:[%s3 + $0x3d8] sm:$0xf]
      %v1680 = vld [vmem:[%s3 + $0x3dc] sm:$0xf]
      %v1681 = vld [vmem:[%s3 + $0x3e0] sm:$0xf]
      %v1682 = vld [vmem:[%s3 + $0x3e4] sm:$0xf]
      %v1683 = vld [vmem:[%s3 + $0x3e8] sm:$0xf]
      %v1684 = vld [vmem:[%s3 + $0x3ec] sm:$0xf]
      %v1685 = vld [vmem:[%s3 + $0x3f0] sm:$0xf]
      %v1686 = vld [vmem:[%s3 + $0x3f4] sm:$0xf]
      %v1687 = vld [vmem:[%s3 + $0x3f8] sm:$0xf]
      %v1688 = vld [vmem:[%s3 + $0x3fc] sm:$0xf]
      %v1689 = vld [vmem:[%s4] sm:$0x1]
      %v1691 = vlaneseq
      %v1692 = vshrl.u32 %v1691, 7
      %v1693 = vsub.s32 0, %v1692
      %v1694 = vrot.slane %v1689, %v1693
      %v1952 = vunpack.c.l.b16 %v1433
      %v1953 = vunpack.c.l.b16 %v1434
      %v1954 = vunpack.c.l.b16 %v1435
      %v1955 = vunpack.c.l.b16 %v1436
      %v1956 = vunpack.c.l.b16 %v1437
      %v1957 = vunpack.c.l.b16 %v1438
      %v1958 = vunpack.c.l.b16 %v1439
      %v1959 = vunpack.c.l.b16 %v1440
      %v1960 = vunpack.c.l.b16 %v1441
      %v1961 = vunpack.c.l.b16 %v1442
      %v1962 = vunpack.c.l.b16 %v1443
      %v1963 = vunpack.c.l.b16 %v1444
      %v1964 = vunpack.c.l.b16 %v1445
      %v1965 = vunpack.c.l.b16 %v1446
      %v1966 = vunpack.c.l.b16 %v1447
      %v1967 = vunpack.c.l.b16 %v1448
      %v1968 = vunpack.c.l.b16 %v1449
      %v1969 = vunpack.c.l.b16 %v1450
      %v1970 = vunpack.c.l.b16 %v1451
      %v1971 = vunpack.c.l.b16 %v1452
      %v1972 = vunpack.c.l.b16 %v1453
      %v1973 = vunpack.c.l.b16 %v1454
      %v1974 = vunpack.c.l.b16 %v1455
      %v1975 = vunpack.c.l.b16 %v1456
      %v1976 = vunpack.c.l.b16 %v1457
      %v1977 = vunpack.c.l.b16 %v1458
      %v1978 = vunpack.c.l.b16 %v1459
      %v1979 = vunpack.c.l.b16 %v1460
      %v1980 = vunpack.c.l.b16 %v1461
      %v1981 = vunpack.c.l.b16 %v1462
      %v1982 = vunpack.c.l.b16 %v1463
      %v1983 = vunpack.c.l.b16 %v1464
      %v1984 = vunpack.c.l.b16 %v1465
      %v1985 = vunpack.c.l.b16 %v1466
      %v1986 = vunpack.c.l.b16 %v1467
      %v1987 = vunpack.c.l.b16 %v1468
      %v1988 = vunpack.c.l.b16 %v1469
      %v1989 = vunpack.c.l.b16 %v1470
      %v1990 = vunpack.c.l.b16 %v1471
      %v1991 = vunpack.c.l.b16 %v1472
      %v1992 = vunpack.c.l.b16 %v1473
      %v1993 = vunpack.c.l.b16 %v1474
      %v1994 = vunpack.c.l.b16 %v1475
      %v1995 = vunpack.c.l.b16 %v1476
      %v1996 = vunpack.c.l.b16 %v1477
      %v1997 = vunpack.c.l.b16 %v1478
      %v1998 = vunpack.c.l.b16 %v1479
      %v1999 = vunpack.c.l.b16 %v1480
      %v2000 = vunpack.c.l.b16 %v1481
      %v2001 = vunpack.c.l.b16 %v1482
      %v2002 = vunpack.c.l.b16 %v1483
      %v2003 = vunpack.c.l.b16 %v1484
      %v2004 = vunpack.c.l.b16 %v1485
      %v2005 = vunpack.c.l.b16 %v1486
      %v2006 = vunpack.c.l.b16 %v1487
      %v2007 = vunpack.c.l.b16 %v1488
      %v2008 = vunpack.c.l.b16 %v1489
      %v2009 = vunpack.c.l.b16 %v1490
      %v2010 = vunpack.c.l.b16 %v1491
      %v2011 = vunpack.c.l.b16 %v1492
      %v2012 = vunpack.c.l.b16 %v1493
      %v2013 = vunpack.c.l.b16 %v1494
      %v2014 = vunpack.c.l.b16 %v1495
      %v2015 = vunpack.c.l.b16 %v1496
      %v2016 = vunpack.c.l.b16 %v1497
      %v2017 = vunpack.c.l.b16 %v1498
      %v2018 = vunpack.c.l.b16 %v1499
      %v2019 = vunpack.c.l.b16 %v1500
      %v2020 = vunpack.c.l.b16 %v1501
      %v2021 = vunpack.c.l.b16 %v1502
      %v2022 = vunpack.c.l.b16 %v1503
      %v2023 = vunpack.c.l.b16 %v1504
      %v2024 = vunpack.c.l.b16 %v1505
      %v2025 = vunpack.c.l.b16 %v1506
      %v2026 = vunpack.c.l.b16 %v1507
      %v2027 = vunpack.c.l.b16 %v1508
      %v2028 = vunpack.c.l.b16 %v1509
      %v2029 = vunpack.c.l.b16 %v1510
      %v2030 = vunpack.c.l.b16 %v1511
      %v2031 = vunpack.c.l.b16 %v1512
      %v2032 = vunpack.c.l.b16 %v1513
      %v2033 = vunpack.c.l.b16 %v1514
      %v2034 = vunpack.c.l.b16 %v1515
      %v2035 = vunpack.c.l.b16 %v1516
      %v2036 = vunpack.c.l.b16 %v1517
      %v2037 = vunpack.c.l.b16 %v1518
      %v2038 = vunpack.c.l.b16 %v1519
      %v2039 = vunpack.c.l.b16 %v1520
      %v2040 = vunpack.c.l.b16 %v1521
      %v2041 = vunpack.c.l.b16 %v1522
      %v2042 = vunpack.c.l.b16 %v1523
      %v2043 = vunpack.c.l.b16 %v1524
      %v2044 = vunpack.c.l.b16 %v1525
      %v2045 = vunpack.c.l.b16 %v1526
      %v2046 = vunpack.c.l.b16 %v1527
      %v2047 = vunpack.c.l.b16 %v1528
      %v2048 = vunpack.c.l.b16 %v1529
      %v2049 = vunpack.c.l.b16 %v1530
      %v2050 = vunpack.c.l.b16 %v1531
      %v2051 = vunpack.c.l.b16 %v1532
      %v2052 = vunpack.c.l.b16 %v1533
      %v2053 = vunpack.c.l.b16 %v1534
      %v2054 = vunpack.c.l.b16 %v1535
      %v2055 = vunpack.c.l.b16 %v1536
      %v2056 = vunpack.c.l.b16 %v1537
      %v2057 = vunpack.c.l.b16 %v1538
      %v2058 = vunpack.c.l.b16 %v1539
      %v2059 = vunpack.c.l.b16 %v1540
      %v2060 = vunpack.c.l.b16 %v1541
      %v2061 = vunpack.c.l.b16 %v1542
      %v2062 = vunpack.c.l.b16 %v1543
      %v2063 = vunpack.c.l.b16 %v1544
      %v2064 = vunpack.c.l.b16 %v1545
      %v2065 = vunpack.c.l.b16 %v1546
      %v2066 = vunpack.c.l.b16 %v1547
      %v2067 = vunpack.c.l.b16 %v1548
      %v2068 = vunpack.c.l.b16 %v1549
      %v2069 = vunpack.c.l.b16 %v1550
      %v2070 = vunpack.c.l.b16 %v1551
      %v2071 = vunpack.c.l.b16 %v1552
      %v2072 = vunpack.c.l.b16 %v1553
      %v2073 = vunpack.c.l.b16 %v1554
      %v2074 = vunpack.c.l.b16 %v1555
      %v2075 = vunpack.c.l.b16 %v1556
      %v2076 = vunpack.c.l.b16 %v1557
      %v2077 = vunpack.c.l.b16 %v1558
      %v2078 = vunpack.c.l.b16 %v1559
      %v2079 = vunpack.c.l.b16 %v1560
      %v2080 = vunpack.c.l.b16 %v1561
      %v2081 = vunpack.c.l.b16 %v1562
      %v2082 = vunpack.c.l.b16 %v1563
      %v2083 = vunpack.c.l.b16 %v1564
      %v2084 = vunpack.c.l.b16 %v1565
      %v2085 = vunpack.c.l.b16 %v1566
      %v2086 = vunpack.c.l.b16 %v1567
      %v2087 = vunpack.c.l.b16 %v1568
      %v2088 = vunpack.c.l.b16 %v1569
      %v2089 = vunpack.c.l.b16 %v1570
      %v2090 = vunpack.c.l.b16 %v1571
      %v2091 = vunpack.c.l.b16 %v1572
      %v2092 = vunpack.c.l.b16 %v1573
      %v2093 = vunpack.c.l.b16 %v1574
      %v2094 = vunpack.c.l.b16 %v1575
      %v2095 = vunpack.c.l.b16 %v1576
      %v2096 = vunpack.c.l.b16 %v1577
      %v2097 = vunpack.c.l.b16 %v1578
      %v2098 = vunpack.c.l.b16 %v1579
      %v2099 = vunpack.c.l.b16 %v1580
      %v2100 = vunpack.c.l.b16 %v1581
      %v2101 = vunpack.c.l.b16 %v1582
      %v2102 = vunpack.c.l.b16 %v1583
      %v2103 = vunpack.c.l.b16 %v1584
      %v2104 = vunpack.c.l.b16 %v1585
      %v2105 = vunpack.c.l.b16 %v1586
      %v2106 = vunpack.c.l.b16 %v1587
      %v2107 = vunpack.c.l.b16 %v1588
      %v2108 = vunpack.c.l.b16 %v1589
      %v2109 = vunpack.c.l.b16 %v1590
      %v2110 = vunpack.c.l.b16 %v1591
      %v2111 = vunpack.c.l.b16 %v1592
      %v2112 = vunpack.c.l.b16 %v1593
      %v2113 = vunpack.c.l.b16 %v1594
      %v2114 = vunpack.c.l.b16 %v1595
      %v2115 = vunpack.c.l.b16 %v1596
      %v2116 = vunpack.c.l.b16 %v1597
      %v2117 = vunpack.c.l.b16 %v1598
      %v2118 = vunpack.c.l.b16 %v1599
      %v2119 = vunpack.c.l.b16 %v1600
      %v2120 = vunpack.c.l.b16 %v1601
      %v2121 = vunpack.c.l.b16 %v1602
      %v2122 = vunpack.c.l.b16 %v1603
      %v2123 = vunpack.c.l.b16 %v1604
      %v2124 = vunpack.c.l.b16 %v1605
      %v2125 = vunpack.c.l.b16 %v1606
      %v2126 = vunpack.c.l.b16 %v1607
      %v2127 = vunpack.c.l.b16 %v1608
      %v2128 = vunpack.c.l.b16 %v1609
      %v2129 = vunpack.c.l.b16 %v1610
      %v2130 = vunpack.c.l.b16 %v1611
      %v2131 = vunpack.c.l.b16 %v1612
      %v2132 = vunpack.c.l.b16 %v1613
      %v2133 = vunpack.c.l.b16 %v1614
      %v2134 = vunpack.c.l.b16 %v1615
      %v2135 = vunpack.c.l.b16 %v1616
      %v2136 = vunpack.c.l.b16 %v1617
      %v2137 = vunpack.c.l.b16 %v1618
      %v2138 = vunpack.c.l.b16 %v1619
      %v2139 = vunpack.c.l.b16 %v1620
      %v2140 = vunpack.c.l.b16 %v1621
      %v2141 = vunpack.c.l.b16 %v1622
      %v2142 = vunpack.c.l.b16 %v1623
      %v2143 = vunpack.c.l.b16 %v1624
      %v2144 = vunpack.c.l.b16 %v1625
      %v2145 = vunpack.c.l.b16 %v1626
      %v2146 = vunpack.c.l.b16 %v1627
      %v2147 = vunpack.c.l.b16 %v1628
      %v2148 = vunpack.c.l.b16 %v1629
      %v2149 = vunpack.c.l.b16 %v1630
      %v2150 = vunpack.c.l.b16 %v1631
      %v2151 = vunpack.c.l.b16 %v1632
      %v2152 = vunpack.c.l.b16 %v1633
      %v2153 = vunpack.c.l.b16 %v1634
      %v2154 = vunpack.c.l.b16 %v1635
      %v2155 = vunpack.c.l.b16 %v1636
      %v2156 = vunpack.c.l.b16 %v1637
      %v2157 = vunpack.c.l.b16 %v1638
      %v2158 = vunpack.c.l.b16 %v1639
      %v2159 = vunpack.c.l.b16 %v1640
      %v2160 = vunpack.c.l.b16 %v1641
      %v2161 = vunpack.c.l.b16 %v1642
      %v2162 = vunpack.c.l.b16 %v1643
      %v2163 = vunpack.c.l.b16 %v1644
      %v2164 = vunpack.c.l.b16 %v1645
      %v2165 = vunpack.c.l.b16 %v1646
      %v2166 = vunpack.c.l.b16 %v1647
      %v2167 = vunpack.c.l.b16 %v1648
      %v2168 = vunpack.c.l.b16 %v1649
      %v2169 = vunpack.c.l.b16 %v1650
      %v2170 = vunpack.c.l.b16 %v1651
      %v2171 = vunpack.c.l.b16 %v1652
      %v2172 = vunpack.c.l.b16 %v1653
      %v2173 = vunpack.c.l.b16 %v1654
      %v2174 = vunpack.c.l.b16 %v1655
      %v2175 = vunpack.c.l.b16 %v1656
      %v2176 = vunpack.c.l.b16 %v1657
      %v2177 = vunpack.c.l.b16 %v1658
      %v2178 = vunpack.c.l.b16 %v1659
      %v2179 = vunpack.c.l.b16 %v1660
      %v2180 = vunpack.c.l.b16 %v1661
      %v2181 = vunpack.c.l.b16 %v1662
      %v2182 = vunpack.c.l.b16 %v1663
      %v2183 = vunpack.c.l.b16 %v1664
      %v2184 = vunpack.c.l.b16 %v1665
      %v2185 = vunpack.c.l.b16 %v1666
      %v2186 = vunpack.c.l.b16 %v1667
      %v2187 = vunpack.c.l.b16 %v1668
      %v2188 = vunpack.c.l.b16 %v1669
      %v2189 = vunpack.c.l.b16 %v1670
      %v2190 = vunpack.c.l.b16 %v1671
      %v2191 = vunpack.c.l.b16 %v1672
      %v2192 = vunpack.c.l.b16 %v1673
      %v2193 = vunpack.c.l.b16 %v1674
      %v2194 = vunpack.c.l.b16 %v1675
      %v2195 = vunpack.c.l.b16 %v1676
      %v2196 = vunpack.c.l.b16 %v1677
      %v2197 = vunpack.c.l.b16 %v1678
      %v2198 = vunpack.c.l.b16 %v1679
      %v2199 = vunpack.c.l.b16 %v1680
      %v2200 = vunpack.c.l.b16 %v1681
      %v2201 = vunpack.c.l.b16 %v1682
      %v2202 = vunpack.c.l.b16 %v1683
      %v2203 = vunpack.c.l.b16 %v1684
      %v2204 = vunpack.c.l.b16 %v1685
      %v2205 = vunpack.c.l.b16 %v1686
      %v2206 = vunpack.c.l.b16 %v1687
      %v2207 = vunpack.c.l.b16 %v1688
      %v2208 = vpack.c.b16 %v1953, %v1952
      %v2209 = vpack.c.b16 %v1955, %v1954
      %v2210 = vpack.c.b16 %v1957, %v1956
      %v2211 = vpack.c.b16 %v1959, %v1958
      %v2212 = vpack.c.b16 %v1961, %v1960
      %v2213 = vpack.c.b16 %v1963, %v1962
      %v2214 = vpack.c.b16 %v1965, %v1964
      %v2215 = vpack.c.b16 %v1967, %v1966
      %v2216 = vpack.c.b16 %v1969, %v1968
      %v2217 = vpack.c.b16 %v1971, %v1970
      %v2218 = vpack.c.b16 %v1973, %v1972
      %v2219 = vpack.c.b16 %v1975, %v1974
      %v2220 = vpack.c.b16 %v1977, %v1976
      %v2221 = vpack.c.b16 %v1979, %v1978
      %v2222 = vpack.c.b16 %v1981, %v1980
      %v2223 = vpack.c.b16 %v1983, %v1982
      %v2224 = vpack.c.b16 %v1985, %v1984
      %v2225 = vpack.c.b16 %v1987, %v1986
      %v2226 = vpack.c.b16 %v1989, %v1988
      %v2227 = vpack.c.b16 %v1991, %v1990
      %v2228 = vpack.c.b16 %v1993, %v1992
      %v2229 = vpack.c.b16 %v1995, %v1994
      %v2230 = vpack.c.b16 %v1997, %v1996
      %v2231 = vpack.c.b16 %v1999, %v1998
      %v2232 = vpack.c.b16 %v2001, %v2000
      %v2233 = vpack.c.b16 %v2003, %v2002
      %v2234 = vpack.c.b16 %v2005, %v2004
      %v2235 = vpack.c.b16 %v2007, %v2006
      %v2236 = vpack.c.b16 %v2009, %v2008
      %v2237 = vpack.c.b16 %v2011, %v2010
      %v2238 = vpack.c.b16 %v2013, %v2012
      %v2239 = vpack.c.b16 %v2015, %v2014
      %v2240 = vpack.c.b16 %v2017, %v2016
      %v2241 = vpack.c.b16 %v2019, %v2018
      %v2242 = vpack.c.b16 %v2021, %v2020
      %v2243 = vpack.c.b16 %v2023, %v2022
      %v2244 = vpack.c.b16 %v2025, %v2024
      %v2245 = vpack.c.b16 %v2027, %v2026
      %v2246 = vpack.c.b16 %v2029, %v2028
      %v2247 = vpack.c.b16 %v2031, %v2030
      %v2248 = vpack.c.b16 %v2033, %v2032
      %v2249 = vpack.c.b16 %v2035, %v2034
      %v2250 = vpack.c.b16 %v2037, %v2036
      %v2251 = vpack.c.b16 %v2039, %v2038
      %v2252 = vpack.c.b16 %v2041, %v2040
      %v2253 = vpack.c.b16 %v2043, %v2042
      %v2254 = vpack.c.b16 %v2045, %v2044
      %v2255 = vpack.c.b16 %v2047, %v2046
      %v2256 = vpack.c.b16 %v2049, %v2048
      %v2257 = vpack.c.b16 %v2051, %v2050
      %v2258 = vpack.c.b16 %v2053, %v2052
      %v2259 = vpack.c.b16 %v2055, %v2054
      %v2260 = vpack.c.b16 %v2057, %v2056
      %v2261 = vpack.c.b16 %v2059, %v2058
      %v2262 = vpack.c.b16 %v2061, %v2060
      %v2263 = vpack.c.b16 %v2063, %v2062
      %v2264 = vpack.c.b16 %v2065, %v2064
      %v2265 = vpack.c.b16 %v2067, %v2066
      %v2266 = vpack.c.b16 %v2069, %v2068
      %v2267 = vpack.c.b16 %v2071, %v2070
      %v2268 = vpack.c.b16 %v2073, %v2072
      %v2269 = vpack.c.b16 %v2075, %v2074
      %v2270 = vpack.c.b16 %v2077, %v2076
      %v2271 = vpack.c.b16 %v2079, %v2078
      %v2272 = vpack.c.b16 %v2081, %v2080
      %v2273 = vpack.c.b16 %v2083, %v2082
      %v2274 = vpack.c.b16 %v2085, %v2084
      %v2275 = vpack.c.b16 %v2087, %v2086
      %v2276 = vpack.c.b16 %v2089, %v2088
      %v2277 = vpack.c.b16 %v2091, %v2090
      %v2278 = vpack.c.b16 %v2093, %v2092
      %v2279 = vpack.c.b16 %v2095, %v2094
      %v2280 = vpack.c.b16 %v2097, %v2096
      %v2281 = vpack.c.b16 %v2099, %v2098
      %v2282 = vpack.c.b16 %v2101, %v2100
      %v2283 = vpack.c.b16 %v2103, %v2102
      %v2284 = vpack.c.b16 %v2105, %v2104
      %v2285 = vpack.c.b16 %v2107, %v2106
      %v2286 = vpack.c.b16 %v2109, %v2108
      %v2287 = vpack.c.b16 %v2111, %v2110
      %v2288 = vpack.c.b16 %v2113, %v2112
      %v2289 = vpack.c.b16 %v2115, %v2114
      %v2290 = vpack.c.b16 %v2117, %v2116
      %v2291 = vpack.c.b16 %v2119, %v2118
      %v2292 = vpack.c.b16 %v2121, %v2120
      %v2293 = vpack.c.b16 %v2123, %v2122
      %v2294 = vpack.c.b16 %v2125, %v2124
      %v2295 = vpack.c.b16 %v2127, %v2126
      %v2296 = vpack.c.b16 %v2129, %v2128
      %v2297 = vpack.c.b16 %v2131, %v2130
      %v2298 = vpack.c.b16 %v2133, %v2132
      %v2299 = vpack.c.b16 %v2135, %v2134
      %v2300 = vpack.c.b16 %v2137, %v2136
      %v2301 = vpack.c.b16 %v2139, %v2138
      %v2302 = vpack.c.b16 %v2141, %v2140
      %v2303 = vpack.c.b16 %v2143, %v2142
      %v2304 = vpack.c.b16 %v2145, %v2144
      %v2305 = vpack.c.b16 %v2147, %v2146
      %v2306 = vpack.c.b16 %v2149, %v2148
      %v2307 = vpack.c.b16 %v2151, %v2150
      %v2308 = vpack.c.b16 %v2153, %v2152
      %v2309 = vpack.c.b16 %v2155, %v2154
      %v2310 = vpack.c.b16 %v2157, %v2156
      %v2311 = vpack.c.b16 %v2159, %v2158
      %v2312 = vpack.c.b16 %v2161, %v2160
      %v2313 = vpack.c.b16 %v2163, %v2162
      %v2314 = vpack.c.b16 %v2165, %v2164
      %v2315 = vpack.c.b16 %v2167, %v2166
      %v2316 = vpack.c.b16 %v2169, %v2168
      %v2317 = vpack.c.b16 %v2171, %v2170
      %v2318 = vpack.c.b16 %v2173, %v2172
      %v2319 = vpack.c.b16 %v2175, %v2174
      %v2320 = vpack.c.b16 %v2177, %v2176
      %v2321 = vpack.c.b16 %v2179, %v2178
      %v2322 = vpack.c.b16 %v2181, %v2180
      %v2323 = vpack.c.b16 %v2183, %v2182
      %v2324 = vpack.c.b16 %v2185, %v2184
      %v2325 = vpack.c.b16 %v2187, %v2186
      %v2326 = vpack.c.b16 %v2189, %v2188
      %v2327 = vpack.c.b16 %v2191, %v2190
      %v2328 = vpack.c.b16 %v2193, %v2192
      %v2329 = vpack.c.b16 %v2195, %v2194
      %v2330 = vpack.c.b16 %v2197, %v2196
      %v2331 = vpack.c.b16 %v2199, %v2198
      %v2332 = vpack.c.b16 %v2201, %v2200
      %v2333 = vpack.c.b16 %v2203, %v2202
      %v2334 = vpack.c.b16 %v2205, %v2204
      %v2335 = vpack.c.b16 %v2207, %v2206
      %2464 = vmatprep.subr.bf16.mxu0 0
      %2465 = vmatpush1.bf16.msra.mxu0 %v2215
      %2466 = vmatprep.subr.bf16.mxu0 0
      %2467 = vmatpush1.bf16.msra.mxu0 %v2214
      %2468 = vmatprep.subr.bf16.mxu0 0
      %2469 = vmatpush1.bf16.msra.mxu0 %v2213
      %2470 = vmatprep.subr.bf16.mxu0 0
      %2471 = vmatpush1.bf16.msra.mxu0 %v2212
      %2472 = vmatprep.subr.bf16.mxu0 0
      %2473 = vmatpush1.bf16.msra.mxu0 %v2211
      %2474 = vmatprep.subr.bf16.mxu0 0
      %2475 = vmatpush1.bf16.msra.mxu0 %v2210
      %2476 = vmatprep.subr.bf16.mxu0 0
      %2477 = vmatpush1.bf16.msra.mxu0 %v2209
      %2478 = vmatprep.subr.bf16.mxu0 0
      %2479 = vmatpush1.bf16.msra.mxu0 %v2208
      %2480 = vmatprep.subr.bf16.mxu0 0
      %2481 = vmatpush2.bf16.msra.mxu0 %v2223
      %2482 = vmatprep.subr.bf16.mxu0 0
      %2483 = vmatpush2.bf16.msra.mxu0 %v2222
      %2484 = vmatprep.subr.bf16.mxu0 0
      %2485 = vmatpush2.bf16.msra.mxu0 %v2221
      %2486 = vmatprep.subr.bf16.mxu0 0
      %2487 = vmatpush2.bf16.msra.mxu0 %v2220
      %2488 = vmatprep.subr.bf16.mxu0 0
      %2489 = vmatpush2.bf16.msra.mxu0 %v2219
      %2490 = vmatprep.subr.bf16.mxu0 0
      %2491 = vmatpush2.bf16.msra.mxu0 %v2218
      %2492 = vmatprep.subr.bf16.mxu0 0
      %2493 = vmatpush2.bf16.msra.mxu0 %v2217
      %2494 = vmatprep.subr.bf16.mxu0 0
      %2495 = vmatpush2.bf16.msra.mxu0 %v2216
      %2496 = vmatprep.mubr.bf16.mxu0 %v1285
      %2497 = vmatmul.mubr.bf16.gmra.mxu0 %v1269
      %v2498 = vpop.f32.mrf.mxu0
      %v2499 = vadd.f32 %v1694, %v2498
      %v2500 = vpop.f32.mrf.mxu0
      %v2501 = vpop.f32.mrf.mxu0
      %v2502 = vadd.f32 %v1694, %v2501
      %v2503 = vpop.f32.mrf.mxu0
      %2504 = vmatprep.mubr.bf16.mxu0 %v1286
      %2505 = vmatmul.mubr.bf16.gmra.mxu0 %v1270
      %v2506 = vpop.f32.mrf.mxu0
      %v2507 = vadd.f32 %v1694, %v2506
      %v2508 = vpop.f32.mrf.mxu0
      %v2509 = vpop.f32.mrf.mxu0
      %v2510 = vadd.f32 %v1694, %v2509
      %v2511 = vpop.f32.mrf.mxu0
      %2512 = vmatprep.mubr.bf16.mxu0 %v1287
      %2513 = vmatmul.mubr.bf16.gmra.mxu0 %v1271
      %v2514 = vpop.f32.mrf.mxu0
      %v2515 = vadd.f32 %v1694, %v2514
      %v2516 = vpop.f32.mrf.mxu0
      %v2517 = vpop.f32.mrf.mxu0
      %v2518 = vadd.f32 %v1694, %v2517
      %v2519 = vpop.f32.mrf.mxu0
      %2520 = vmatprep.mubr.bf16.mxu0 %v1288
      %2521 = vmatmul.mubr.bf16.gmra.mxu0 %v1272
      %v2522 = vpop.f32.mrf.mxu0
      %v2523 = vadd.f32 %v1694, %v2522
      %v2524 = vpop.f32.mrf.mxu0
      %v2525 = vpop.f32.mrf.mxu0
      %v2526 = vadd.f32 %v1694, %v2525
      %v2527 = vpop.f32.mrf.mxu0
      %2528 = vdwg.mxu0
      %2529 = vmatprep.subr.bf16.mxu0 0
      %2530 = vmatpush1.bf16.msra.mxu0 %v2231
      %2531 = vmatprep.subr.bf16.mxu0 0
      %2532 = vmatpush1.bf16.msra.mxu0 %v2230
      %2533 = vmatprep.subr.bf16.mxu0 0
      %2534 = vmatpush1.bf16.msra.mxu0 %v2229
      %2535 = vmatprep.subr.bf16.mxu0 0
      %2536 = vmatpush1.bf16.msra.mxu0 %v2228
      %2537 = vmatprep.subr.bf16.mxu0 0
      %2538 = vmatpush1.bf16.msra.mxu0 %v2227
      %2539 = vmatprep.subr.bf16.mxu0 0
      %2540 = vmatpush1.bf16.msra.mxu0 %v2226
      %2541 = vmatprep.subr.bf16.mxu0 0
      %2542 = vmatpush1.bf16.msra.mxu0 %v2225
      %2543 = vmatprep.subr.bf16.mxu0 0
      %2544 = vmatpush1.bf16.msra.mxu0 %v2224
      %2545 = vmatprep.subr.bf16.mxu0 0
      %2546 = vmatpush2.bf16.msra.mxu0 %v2239
      %2547 = vmatprep.subr.bf16.mxu0 0
      %2548 = vmatpush2.bf16.msra.mxu0 %v2238
      %2549 = vmatprep.subr.bf16.mxu0 0
      %2550 = vmatpush2.bf16.msra.mxu0 %v2237
      %2551 = vmatprep.subr.bf16.mxu0 0
      %2552 = vmatpush2.bf16.msra.mxu0 %v2236
      %2553 = vmatprep.subr.bf16.mxu0 0
      %2554 = vmatpush2.bf16.msra.mxu0 %v2235
      %2555 = vmatprep.subr.bf16.mxu0 0
      %2556 = vmatpush2.bf16.msra.mxu0 %v2234
      %2557 = vmatprep.subr.bf16.mxu0 0
      %2558 = vmatpush2.bf16.msra.mxu0 %v2233
      %2559 = vmatprep.subr.bf16.mxu0 0
      %2560 = vmatpush2.bf16.msra.mxu0 %v2232
      %2561 = vmatprep.mubr.bf16.mxu0 %v1302
      %2562 = vmatmul.mubr.bf16.gmra.mxu0 %v1293
      %v2563 = vpop.f32.mrf.mxu0
      %v2564 = vadd.f32 %v2499, %v2563
      %v2565 = vpop.f32.mrf.mxu0
      %v2566 = vpop.f32.mrf.mxu0
      %v2567 = vadd.f32 %v2502, %v2566
      %v2568 = vpop.f32.mrf.mxu0
      %2569 = vmatprep.mubr.bf16.mxu0 %v1303
      %2570 = vmatmul.mubr.bf16.gmra.mxu0 %v1294
      %v2571 = vpop.f32.mrf.mxu0
      %v2572 = vadd.f32 %v2507, %v2571
      %v2573 = vpop.f32.mrf.mxu0
      %v2574 = vpop.f32.mrf.mxu0
      %v2575 = vadd.f32 %v2510, %v2574
      %v2576 = vpop.f32.mrf.mxu0
      %2577 = vmatprep.mubr.bf16.mxu0 %v1304
      %2578 = vmatmul.mubr.bf16.gmra.mxu0 %v1295
      %v2579 = vpop.f32.mrf.mxu0
      %v2580 = vadd.f32 %v2515, %v2579
      %v2581 = vpop.f32.mrf.mxu0
      %v2582 = vpop.f32.mrf.mxu0
      %v2583 = vadd.f32 %v2518, %v2582
      %v2584 = vpop.f32.mrf.mxu0
      %2585 = vmatprep.mubr.bf16.mxu0 %v1305
      %2586 = vmatmul.mubr.bf16.gmra.mxu0 %v1296
      %v2587 = vpop.f32.mrf.mxu0
      %v2588 = vadd.f32 %v2523, %v2587
      %v2589 = vpop.f32.mrf.mxu0
      %v2590 = vpop.f32.mrf.mxu0
      %v2591 = vadd.f32 %v2526, %v2590
      %v2592 = vpop.f32.mrf.mxu0
      %2593 = vdwg.mxu0
      %2594 = vmatprep.subr.bf16.mxu0 0
      %2595 = vmatpush1.bf16.msra.mxu0 %v2247
      %2596 = vmatprep.subr.bf16.mxu0 0
      %2597 = vmatpush1.bf16.msra.mxu0 %v2246
      %2598 = vmatprep.subr.bf16.mxu0 0
      %2599 = vmatpush1.bf16.msra.mxu0 %v2245
      %2600 = vmatprep.subr.bf16.mxu0 0
      %2601 = vmatpush1.bf16.msra.mxu0 %v2244
      %2602 = vmatprep.subr.bf16.mxu0 0
      %2603 = vmatpush1.bf16.msra.mxu0 %v2243
      %2604 = vmatprep.subr.bf16.mxu0 0
      %2605 = vmatpush1.bf16.msra.mxu0 %v2242
      %2606 = vmatprep.subr.bf16.mxu0 0
      %2607 = vmatpush1.bf16.msra.mxu0 %v2241
      %2608 = vmatprep.subr.bf16.mxu0 0
      %2609 = vmatpush1.bf16.msra.mxu0 %v2240
      %2610 = vmatprep.subr.bf16.mxu0 0
      %2611 = vmatpush2.bf16.msra.mxu0 %v2255
      %2612 = vmatprep.subr.bf16.mxu0 0
      %2613 = vmatpush2.bf16.msra.mxu0 %v2254
      %2614 = vmatprep.subr.bf16.mxu0 0
      %2615 = vmatpush2.bf16.msra.mxu0 %v2253
      %2616 = vmatprep.subr.bf16.mxu0 0
      %2617 = vmatpush2.bf16.msra.mxu0 %v2252
      %2618 = vmatprep.subr.bf16.mxu0 0
      %2619 = vmatpush2.bf16.msra.mxu0 %v2251
      %2620 = vmatprep.subr.bf16.mxu0 0
      %2621 = vmatpush2.bf16.msra.mxu0 %v2250
      %2622 = vmatprep.subr.bf16.mxu0 0
      %2623 = vmatpush2.bf16.msra.mxu0 %v2249
      %2624 = vmatprep.subr.bf16.mxu0 0
      %2625 = vmatpush2.bf16.msra.mxu0 %v2248
      %2626 = vmatprep.mubr.bf16.mxu0 %v1326
      %2627 = vmatmul.mubr.bf16.gmra.mxu0 %v1310
      %v2628 = vpop.f32.mrf.mxu0
      %v2629 = vadd.f32 %v2564, %v2628
      %v2630 = vpop.f32.mrf.mxu0
      %v2631 = vpop.f32.mrf.mxu0
      %v2632 = vadd.f32 %v2567, %v2631
      %v2633 = vpop.f32.mrf.mxu0
      %2634 = vmatprep.mubr.bf16.mxu0 %v1327
      %2635 = vmatmul.mubr.bf16.gmra.mxu0 %v1311
      %v2636 = vpop.f32.mrf.mxu0
      %v2637 = vadd.f32 %v2572, %v2636
      %v2638 = vpop.f32.mrf.mxu0
      %v2639 = vpop.f32.mrf.mxu0
      %v2640 = vadd.f32 %v2575, %v2639
      %v2641 = vpop.f32.mrf.mxu0
      %2642 = vmatprep.mubr.bf16.mxu0 %v1328
      %2643 = vmatmul.mubr.bf16.gmra.mxu0 %v1312
      %v2644 = vpop.f32.mrf.mxu0
      %v2645 = vadd.f32 %v2580, %v2644
      %v2646 = vpop.f32.mrf.mxu0
      %v2647 = vpop.f32.mrf.mxu0
      %v2648 = vadd.f32 %v2583, %v2647
      %v2649 = vpop.f32.mrf.mxu0
      %2650 = vmatprep.mubr.bf16.mxu0 %v1329
      %2651 = vmatmul.mubr.bf16.gmra.mxu0 %v1313
      %v2652 = vpop.f32.mrf.mxu0
      %v2653 = vadd.f32 %v2588, %v2652
      %v2654 = vpop.f32.mrf.mxu0
      %v2655 = vpop.f32.mrf.mxu0
      %v2656 = vadd.f32 %v2591, %v2655
      %v2657 = vpop.f32.mrf.mxu0
      %2658 = vdwg.mxu0
      %2659 = vmatprep.subr.bf16.mxu0 0
      %2660 = vmatpush1.bf16.msra.mxu0 %v2263
      %2661 = vmatprep.subr.bf16.mxu0 0
      %2662 = vmatpush1.bf16.msra.mxu0 %v2262
      %2663 = vmatprep.subr.bf16.mxu0 0
      %2664 = vmatpush1.bf16.msra.mxu0 %v2261
      %2665 = vmatprep.subr.bf16.mxu0 0
      %2666 = vmatpush1.bf16.msra.mxu0 %v2260
      %2667 = vmatprep.subr.bf16.mxu0 0
      %2668 = vmatpush1.bf16.msra.mxu0 %v2259
      %2669 = vmatprep.subr.bf16.mxu0 0
      %2670 = vmatpush1.bf16.msra.mxu0 %v2258
      %2671 = vmatprep.subr.bf16.mxu0 0
      %2672 = vmatpush1.bf16.msra.mxu0 %v2257
      %2673 = vmatprep.subr.bf16.mxu0 0
      %2674 = vmatpush1.bf16.msra.mxu0 %v2256
      %2675 = vmatprep.subr.bf16.mxu0 0
      %2676 = vmatpush2.bf16.msra.mxu0 %v2271
      %2677 = vmatprep.subr.bf16.mxu0 0
      %2678 = vmatpush2.bf16.msra.mxu0 %v2270
      %2679 = vmatprep.subr.bf16.mxu0 0
      %2680 = vmatpush2.bf16.msra.mxu0 %v2269
      %2681 = vmatprep.subr.bf16.mxu0 0
      %2682 = vmatpush2.bf16.msra.mxu0 %v2268
      %2683 = vmatprep.subr.bf16.mxu0 0
      %2684 = vmatpush2.bf16.msra.mxu0 %v2267
      %2685 = vmatprep.subr.bf16.mxu0 0
      %2686 = vmatpush2.bf16.msra.mxu0 %v2266
      %2687 = vmatprep.subr.bf16.mxu0 0
      %2688 = vmatpush2.bf16.msra.mxu0 %v2265
      %2689 = vmatprep.subr.bf16.mxu0 0
      %2690 = vmatpush2.bf16.msra.mxu0 %v2264
      %2691 = vmatprep.mubr.bf16.mxu0 %v1343
      %2692 = vmatmul.mubr.bf16.gmra.mxu0 %v1334
      %v2693 = vpop.f32.mrf.mxu0
      %v2694 = vadd.f32 %v2629, %v2693
      %v2695 = vpop.f32.mrf.mxu0
      %v2696 = vpop.f32.mrf.mxu0
      %v2697 = vadd.f32 %v2632, %v2696
      %v2698 = vpop.f32.mrf.mxu0
      %2699 = vmatprep.mubr.bf16.mxu0 %v1344
      %2700 = vmatmul.mubr.bf16.gmra.mxu0 %v1335
      %v2701 = vpop.f32.mrf.mxu0
      %v2702 = vadd.f32 %v2637, %v2701
      %v2703 = vpop.f32.mrf.mxu0
      %v2704 = vpop.f32.mrf.mxu0
      %v2705 = vadd.f32 %v2640, %v2704
      %v2706 = vpop.f32.mrf.mxu0
      %2707 = vmatprep.mubr.bf16.mxu0 %v1345
      %2708 = vmatmul.mubr.bf16.gmra.mxu0 %v1336
      %v2709 = vpop.f32.mrf.mxu0
      %v2710 = vadd.f32 %v2645, %v2709
      %v2711 = vpop.f32.mrf.mxu0
      %v2712 = vpop.f32.mrf.mxu0
      %v2713 = vadd.f32 %v2648, %v2712
      %v2714 = vpop.f32.mrf.mxu0
      %2715 = vmatprep.mubr.bf16.mxu0 %v1346
      %2716 = vmatmul.mubr.bf16.gmra.mxu0 %v1337
      %v2717 = vpop.f32.mrf.mxu0
      %v2718 = vadd.f32 %v2653, %v2717
      %v2719 = vpop.f32.mrf.mxu0
      %v2720 = vpop.f32.mrf.mxu0
      %v2721 = vadd.f32 %v2656, %v2720
      %v2722 = vpop.f32.mrf.mxu0
      %2723 = vdwg.mxu0
      %2724 = vmatprep.subr.bf16.mxu0 0
      %2725 = vmatpush1.bf16.msra.mxu0 %v2279
      %2726 = vmatprep.subr.bf16.mxu0 0
      %2727 = vmatpush1.bf16.msra.mxu0 %v2278
      %2728 = vmatprep.subr.bf16.mxu0 0
      %2729 = vmatpush1.bf16.msra.mxu0 %v2277
      %2730 = vmatprep.subr.bf16.mxu0 0
      %2731 = vmatpush1.bf16.msra.mxu0 %v2276
      %2732 = vmatprep.subr.bf16.mxu0 0
      %2733 = vmatpush1.bf16.msra.mxu0 %v2275
      %2734 = vmatprep.subr.bf16.mxu0 0
      %2735 = vmatpush1.bf16.msra.mxu0 %v2274
      %2736 = vmatprep.subr.bf16.mxu0 0
      %2737 = vmatpush1.bf16.msra.mxu0 %v2273
      %2738 = vmatprep.subr.bf16.mxu0 0
      %2739 = vmatpush1.bf16.msra.mxu0 %v2272
      %2740 = vmatprep.subr.bf16.mxu0 0
      %2741 = vmatpush2.bf16.msra.mxu0 %v2287
      %2742 = vmatprep.subr.bf16.mxu0 0
      %2743 = vmatpush2.bf16.msra.mxu0 %v2286
      %2744 = vmatprep.subr.bf16.mxu0 0
      %2745 = vmatpush2.bf16.msra.mxu0 %v2285
      %2746 = vmatprep.subr.bf16.mxu0 0
      %2747 = vmatpush2.bf16.msra.mxu0 %v2284
      %2748 = vmatprep.subr.bf16.mxu0 0
      %2749 = vmatpush2.bf16.msra.mxu0 %v2283
      %2750 = vmatprep.subr.bf16.mxu0 0
      %2751 = vmatpush2.bf16.msra.mxu0 %v2282
      %2752 = vmatprep.subr.bf16.mxu0 0
      %2753 = vmatpush2.bf16.msra.mxu0 %v2281
      %2754 = vmatprep.subr.bf16.mxu0 0
      %2755 = vmatpush2.bf16.msra.mxu0 %v2280
      %2756 = vmatprep.mubr.bf16.mxu0 %v1367
      %2757 = vmatmul.mubr.bf16.gmra.mxu0 %v1351
      %v2758 = vpop.f32.mrf.mxu0
      %v2759 = vadd.f32 %v2694, %v2758
      %v2760 = vpop.f32.mrf.mxu0
      %v2761 = vpop.f32.mrf.mxu0
      %v2762 = vadd.f32 %v2697, %v2761
      %v2763 = vpop.f32.mrf.mxu0
      %2764 = vmatprep.mubr.bf16.mxu0 %v1368
      %2765 = vmatmul.mubr.bf16.gmra.mxu0 %v1352
      %v2766 = vpop.f32.mrf.mxu0
      %v2767 = vadd.f32 %v2702, %v2766
      %v2768 = vpop.f32.mrf.mxu0
      %v2769 = vpop.f32.mrf.mxu0
      %v2770 = vadd.f32 %v2705, %v2769
      %v2771 = vpop.f32.mrf.mxu0
      %2772 = vmatprep.mubr.bf16.mxu0 %v1369
      %2773 = vmatmul.mubr.bf16.gmra.mxu0 %v1353
      %v2774 = vpop.f32.mrf.mxu0
      %v2775 = vadd.f32 %v2710, %v2774
      %v2776 = vpop.f32.mrf.mxu0
      %v2777 = vpop.f32.mrf.mxu0
      %v2778 = vadd.f32 %v2713, %v2777
      %v2779 = vpop.f32.mrf.mxu0
      %2780 = vmatprep.mubr.bf16.mxu0 %v1370
      %2781 = vmatmul.mubr.bf16.gmra.mxu0 %v1354
      %v2782 = vpop.f32.mrf.mxu0
      %v2783 = vadd.f32 %v2718, %v2782
      %v2784 = vpop.f32.mrf.mxu0
      %v2785 = vpop.f32.mrf.mxu0
      %v2786 = vadd.f32 %v2721, %v2785
      %v2787 = vpop.f32.mrf.mxu0
      %2788 = vdwg.mxu0
      %2789 = vmatprep.subr.bf16.mxu0 0
      %2790 = vmatpush1.bf16.msra.mxu0 %v2295
      %2791 = vmatprep.subr.bf16.mxu0 0
      %2792 = vmatpush1.bf16.msra.mxu0 %v2294
      %2793 = vmatprep.subr.bf16.mxu0 0
      %2794 = vmatpush1.bf16.msra.mxu0 %v2293
      %2795 = vmatprep.subr.bf16.mxu0 0
      %2796 = vmatpush1.bf16.msra.mxu0 %v2292
      %2797 = vmatprep.subr.bf16.mxu0 0
      %2798 = vmatpush1.bf16.msra.mxu0 %v2291
      %2799 = vmatprep.subr.bf16.mxu0 0
      %2800 = vmatpush1.bf16.msra.mxu0 %v2290
      %2801 = vmatprep.subr.bf16.mxu0 0
      %2802 = vmatpush1.bf16.msra.mxu0 %v2289
      %2803 = vmatprep.subr.bf16.mxu0 0
      %2804 = vmatpush1.bf16.msra.mxu0 %v2288
      %2805 = vmatprep.subr.bf16.mxu0 0
      %2806 = vmatpush2.bf16.msra.mxu0 %v2303
      %2807 = vmatprep.subr.bf16.mxu0 0
      %2808 = vmatpush2.bf16.msra.mxu0 %v2302
      %2809 = vmatprep.subr.bf16.mxu0 0
      %2810 = vmatpush2.bf16.msra.mxu0 %v2301
      %2811 = vmatprep.subr.bf16.mxu0 0
      %2812 = vmatpush2.bf16.msra.mxu0 %v2300
      %2813 = vmatprep.subr.bf16.mxu0 0
      %2814 = vmatpush2.bf16.msra.mxu0 %v2299
      %2815 = vmatprep.subr.bf16.mxu0 0
      %2816 = vmatpush2.bf16.msra.mxu0 %v2298
      %2817 = vmatprep.subr.bf16.mxu0 0
      %2818 = vmatpush2.bf16.msra.mxu0 %v2297
      %2819 = vmatprep.subr.bf16.mxu0 0
      %2820 = vmatpush2.bf16.msra.mxu0 %v2296
      %2821 = vmatprep.mubr.bf16.mxu0 %v1384
      %2822 = vmatmul.mubr.bf16.gmra.mxu0 %v1375
      %v2823 = vpop.f32.mrf.mxu0
      %v2824 = vadd.f32 %v2759, %v2823
      %v2825 = vpop.f32.mrf.mxu0
      %v2826 = vpop.f32.mrf.mxu0
      %v2827 = vadd.f32 %v2762, %v2826
      %v2828 = vpop.f32.mrf.mxu0
      %2829 = vmatprep.mubr.bf16.mxu0 %v1385
      %2830 = vmatmul.mubr.bf16.gmra.mxu0 %v1376
      %v2831 = vpop.f32.mrf.mxu0
      %v2832 = vadd.f32 %v2767, %v2831
      %v2833 = vpop.f32.mrf.mxu0
      %v2834 = vpop.f32.mrf.mxu0
      %v2835 = vadd.f32 %v2770, %v2834
      %v2836 = vpop.f32.mrf.mxu0
      %2837 = vmatprep.mubr.bf16.mxu0 %v1386
      %2838 = vmatmul.mubr.bf16.gmra.mxu0 %v1377
      %v2839 = vpop.f32.mrf.mxu0
      %v2840 = vadd.f32 %v2775, %v2839
      %v2841 = vpop.f32.mrf.mxu0
      %v2842 = vpop.f32.mrf.mxu0
      %v2843 = vadd.f32 %v2778, %v2842
      %v2844 = vpop.f32.mrf.mxu0
      %2845 = vmatprep.mubr.bf16.mxu0 %v1387
      %2846 = vmatmul.mubr.bf16.gmra.mxu0 %v1378
      %v2847 = vpop.f32.mrf.mxu0
      %v2848 = vadd.f32 %v2783, %v2847
      %v2849 = vpop.f32.mrf.mxu0
      %v2850 = vpop.f32.mrf.mxu0
      %v2851 = vadd.f32 %v2786, %v2850
      %v2852 = vpop.f32.mrf.mxu0
      %2853 = vdwg.mxu0
      %2854 = vmatprep.subr.bf16.mxu0 0
      %2855 = vmatpush1.bf16.msra.mxu0 %v2311
      %2856 = vmatprep.subr.bf16.mxu0 0
      %2857 = vmatpush1.bf16.msra.mxu0 %v2310
      %2858 = vmatprep.subr.bf16.mxu0 0
      %2859 = vmatpush1.bf16.msra.mxu0 %v2309
      %2860 = vmatprep.subr.bf16.mxu0 0
      %2861 = vmatpush1.bf16.msra.mxu0 %v2308
      %2862 = vmatprep.subr.bf16.mxu0 0
      %2863 = vmatpush1.bf16.msra.mxu0 %v2307
      %2864 = vmatprep.subr.bf16.mxu0 0
      %2865 = vmatpush1.bf16.msra.mxu0 %v2306
      %2866 = vmatprep.subr.bf16.mxu0 0
      %2867 = vmatpush1.bf16.msra.mxu0 %v2305
      %2868 = vmatprep.subr.bf16.mxu0 0
      %2869 = vmatpush1.bf16.msra.mxu0 %v2304
      %2870 = vmatprep.subr.bf16.mxu0 0
      %2871 = vmatpush2.bf16.msra.mxu0 %v2319
      %2872 = vmatprep.subr.bf16.mxu0 0
      %2873 = vmatpush2.bf16.msra.mxu0 %v2318
      %2874 = vmatprep.subr.bf16.mxu0 0
      %2875 = vmatpush2.bf16.msra.mxu0 %v2317
      %2876 = vmatprep.subr.bf16.mxu0 0
      %2877 = vmatpush2.bf16.msra.mxu0 %v2316
      %2878 = vmatprep.subr.bf16.mxu0 0
      %2879 = vmatpush2.bf16.msra.mxu0 %v2315
      %2880 = vmatprep.subr.bf16.mxu0 0
      %2881 = vmatpush2.bf16.msra.mxu0 %v2314
      %2882 = vmatprep.subr.bf16.mxu0 0
      %2883 = vmatpush2.bf16.msra.mxu0 %v2313
      %2884 = vmatprep.subr.bf16.mxu0 0
      %2885 = vmatpush2.bf16.msra.mxu0 %v2312
      %2886 = vmatprep.mubr.bf16.mxu0 %v1408
      %2887 = vmatmul.mubr.bf16.gmra.mxu0 %v1392
      %v2888 = vpop.f32.mrf.mxu0
      %v2889 = vadd.f32 %v2824, %v2888
      %v2890 = vpop.f32.mrf.mxu0
      %v2891 = vpop.f32.mrf.mxu0
      %v2892 = vadd.f32 %v2827, %v2891
      %v2893 = vpop.f32.mrf.mxu0
      %2894 = vmatprep.mubr.bf16.mxu0 %v1409
      %2895 = vmatmul.mubr.bf16.gmra.mxu0 %v1393
      %v2896 = vpop.f32.mrf.mxu0
      %v2897 = vadd.f32 %v2832, %v2896
      %v2898 = vpop.f32.mrf.mxu0
      %v2899 = vpop.f32.mrf.mxu0
      %v2900 = vadd.f32 %v2835, %v2899
      %v2901 = vpop.f32.mrf.mxu0
      %2902 = vmatprep.mubr.bf16.mxu0 %v1410
      %2903 = vmatmul.mubr.bf16.gmra.mxu0 %v1394
      %v2904 = vpop.f32.mrf.mxu0
      %v2905 = vadd.f32 %v2840, %v2904
      %v2906 = vpop.f32.mrf.mxu0
      %v2907 = vpop.f32.mrf.mxu0
      %v2908 = vadd.f32 %v2843, %v2907
      %v2909 = vpop.f32.mrf.mxu0
      %2910 = vmatprep.mubr.bf16.mxu0 %v1411
      %2911 = vmatmul.mubr.bf16.gmra.mxu0 %v1395
      %v2912 = vpop.f32.mrf.mxu0
      %v2913 = vadd.f32 %v2848, %v2912
      %v2914 = vpop.f32.mrf.mxu0
      %v2915 = vpop.f32.mrf.mxu0
      %v2916 = vadd.f32 %v2851, %v2915
      %v2917 = vpop.f32.mrf.mxu0
      %2918 = vdwg.mxu0
      %2919 = vmatprep.subr.bf16.mxu0 0
      %2920 = vmatpush1.bf16.msra.mxu0 %v2327
      %2921 = vmatprep.subr.bf16.mxu0 0
      %2922 = vmatpush1.bf16.msra.mxu0 %v2326
      %2923 = vmatprep.subr.bf16.mxu0 0
      %2924 = vmatpush1.bf16.msra.mxu0 %v2325
      %2925 = vmatprep.subr.bf16.mxu0 0
      %2926 = vmatpush1.bf16.msra.mxu0 %v2324
      %2927 = vmatprep.subr.bf16.mxu0 0
      %2928 = vmatpush1.bf16.msra.mxu0 %v2323
      %2929 = vmatprep.subr.bf16.mxu0 0
      %2930 = vmatpush1.bf16.msra.mxu0 %v2322
      %2931 = vmatprep.subr.bf16.mxu0 0
      %2932 = vmatpush1.bf16.msra.mxu0 %v2321
      %2933 = vmatprep.subr.bf16.mxu0 0
      %2934 = vmatpush1.bf16.msra.mxu0 %v2320
      %2935 = vmatprep.subr.bf16.mxu0 0
      %2936 = vmatpush2.bf16.msra.mxu0 %v2335
      %2937 = vmatprep.subr.bf16.mxu0 0
      %2938 = vmatpush2.bf16.msra.mxu0 %v2334
      %2939 = vmatprep.subr.bf16.mxu0 0
      %2940 = vmatpush2.bf16.msra.mxu0 %v2333
      %2941 = vmatprep.subr.bf16.mxu0 0
      %2942 = vmatpush2.bf16.msra.mxu0 %v2332
      %2943 = vmatprep.subr.bf16.mxu0 0
      %2944 = vmatpush2.bf16.msra.mxu0 %v2331
      %2945 = vmatprep.subr.bf16.mxu0 0
      %2946 = vmatpush2.bf16.msra.mxu0 %v2330
      %2947 = vmatprep.subr.bf16.mxu0 0
      %2948 = vmatpush2.bf16.msra.mxu0 %v2329
      %2949 = vmatprep.subr.bf16.mxu0 0
      %2950 = vmatpush2.bf16.msra.mxu0 %v2328
      %2951 = vmatprep.mubr.bf16.mxu0 %v1425
      %2952 = vmatmul.mubr.bf16.gmra.mxu0 %v1416
      %v2953 = vpop.f32.mrf.mxu0
      %v2954 = vadd.f32 %v2889, %v2953
      %v2955 = vpop.f32.mrf.mxu0
      %v2956 = vpop.f32.mrf.mxu0
      %v2957 = vadd.f32 %v2892, %v2956
      %v2958 = vpop.f32.mrf.mxu0
      %2959 = vmatprep.mubr.bf16.mxu0 %v1426
      %2960 = vmatmul.mubr.bf16.gmra.mxu0 %v1417
      %v2961 = vpop.f32.mrf.mxu0
      %v2962 = vadd.f32 %v2897, %v2961
      %v2963 = vpop.f32.mrf.mxu0
      %v2964 = vpop.f32.mrf.mxu0
      %v2965 = vadd.f32 %v2900, %v2964
      %v2966 = vpop.f32.mrf.mxu0
      %2967 = vmatprep.mubr.bf16.mxu0 %v1427
      %2968 = vmatmul.mubr.bf16.gmra.mxu0 %v1418
      %v2969 = vpop.f32.mrf.mxu0
      %v2970 = vadd.f32 %v2905, %v2969
      %v2971 = vpop.f32.mrf.mxu0
      %v2972 = vpop.f32.mrf.mxu0
      %v2973 = vadd.f32 %v2908, %v2972
      %v2974 = vpop.f32.mrf.mxu0
      %2975 = vmatprep.mubr.bf16.mxu0 %v1428
      %2976 = vmatmul.mubr.bf16.gmra.mxu0 %v1419
      %v2977 = vpop.f32.mrf.mxu0
      %v2978 = vadd.f32 %v2913, %v2977
      %v2979 = vpop.f32.mrf.mxu0
      %v2980 = vpop.f32.mrf.mxu0
      %v2981 = vadd.f32 %v2916, %v2980
      %v2982 = vpop.f32.mrf.mxu0
      %2983 = vdwg.mxu0
      %2984 = vst [vmem:[%s224] sm:$0xff] %v2954
      %2985 = vst [vmem:[%s224 + $0x8] sm:$0xff] %v2957
      %2986 = vst [vmem:[%s224 + $0x10] sm:$0xff] %v2962
      %2987 = vst [vmem:[%s224 + $0x18] sm:$0xff] %v2965
      %2988 = vst [vmem:[%s224 + $0x20] sm:$0xff] %v2970
      %2989 = vst [vmem:[%s224 + $0x28] sm:$0xff] %v2973
      %2990 = vst [vmem:[%s224 + $0x30] sm:$0xff] %v2978
      %2991 = vst [vmem:[%s224 + $0x38] sm:$0xff] %v2981
      %p2992 = scmp.lt.s32.totalorder %s16, 1
      %s2993 = scalar_select %p2992, %s16, 1
      %s2994 = smul.addr %s2993, 8
      %s2995 = smul.addr %s2994, 8
      %s2996 = scalar_lea.vmem %s5, %s2995
      // Predicated region
      $region41: #{block_forward.5} parent=39 // pred_check
        %p2997 = pneg %p144
      $region42: #{block_forward.5} parent=39 // pred_check_branch
        %2999 = sbr.rel (%p2997) target = $region44
      $region43: #{block_forward.5} parent=39 // pred_region
        _
      $region44: #{block_forward.5} parent=39 // pred_fallthru
        _
    $region40: #{block_forward.5} parent=5 // pred_fallthru
      _
    %p3000 = scmp.le.s32.totalorder 2, %s11
    // Predicated region
    $region45: #{block_forward.5} parent=5 // pred_check
      %p3001 = pneg %p3000
    $region46: #{block_forward.5} parent=5 // pred_check_branch
      %3003 = sbr.rel (%p3001) target = $region48
    $region47: #{block_forward.5} parent=5 // pred_region
      %s3004 = ssub.s32 %s11, 2
      // Predicated region
      $region49: #{block_forward.5} parent=47 // pred_check
        %p3005 = pneg %p150
      $region50: #{block_forward.5} parent=47 // pred_check_branch
        %3007 = sbr.rel (%p3005) target = $region52
      $region51: #{block_forward.5} parent=47 // pred_region
        %p3008 = scmp.lt.s32.totalorder %s17, 1
        %s3009 = scalar_select %p3008, %s17, 1
        %s3010 = smul.addr %s3009, 8
        %s3011 = smul.addr %s3010, 8
        %s3012 = scalar_lea.vmem %s5, %s3011
      $region52: #{block_forward.5} parent=47 // pred_fallthru
        _
    $region48: #{block_forward.5} parent=5 // pred_fallthru
      _
  $region6: #{block_forward.5} parent=0 // loop_footer
    %s15 = sadd.s32 1, %s11
  $region7: #{block_forward.5} parent=0 // loop_footer_branch
    %10 = sbr.rel target = $region3
  $region8: #{block_forward.5} parent=0 // loop_exit
    _

</llo_original>
